<compile_context>
chip_gen: v5e
topology: v5e:2x2
jax: 0.10.0
libtpu: 0.0.40
codegen_flags: <defaults>
</compile_context>

<pallas_src>
import jax
import jax.numpy as jnp
from jax import lax
from jax.experimental import pallas as pl
from jax.experimental.pallas import tpu as pltpu

EPS = 1e-5


def _bn(x, gamma, beta):
    """Training-mode batch-norm over axis 0 (per-channel), one-pass stats, f32."""
    inv_n = 1.0 / x.shape[0]
    mean = jnp.sum(x, axis=0, keepdims=True) * inv_n
    ex2 = jnp.sum(x * x, axis=0, keepdims=True) * inv_n
    var = ex2 - mean * mean
    return (x - mean) * lax.rsqrt(var + EPS) * gamma + beta


def _store_padded(pref, interior):
    """Write `interior` (N,H,W,C) into pref (N,H+2,W+2,C), zeroing only the 1-px halo."""
    N, Hp, Wp, C = pref.shape
    H, W = Hp - 2, Wp - 2
    dt = pref.dtype
    pref[:, 0:1, :, :] = jnp.zeros((N, 1, Wp, C), dt)               # top halo row
    pref[:, H + 1:H + 2, :, :] = jnp.zeros((N, 1, Wp, C), dt)       # bottom halo row
    pref[:, 1:H + 1, 0:1, :] = jnp.zeros((N, H, 1, C), dt)          # left halo col
    pref[:, 1:H + 1, W + 1:W + 2, :] = jnp.zeros((N, H, 1, C), dt)  # right halo col
    pref[:, 1:H + 1, 1:W + 1, :] = interior


def basic_block_kernel(x_ref, w1d_ref, w2_ref,
                       g1_ref, be1_ref, g2_ref, be2_ref, gd_ref, bed_ref,
                       out_ref,
                       xpad_ref, pad2_ref, p1_ref, p2_ref):
    N, H, W, Cin = x_ref.shape
    Cout = out_ref.shape[-1]
    NHW = N * H * W

    # ---- pad input in VMEM (halo-only zeroing), build conv1 im2col slab ----
    _store_padded(xpad_ref, x_ref[...])
    xp = xpad_ref[...]
    for k in range(9):
        ky, kx = divmod(k, 3)
        p1_ref[:, k * Cin:(k + 1) * Cin] = (
            xp[:, ky:ky + H, kx:kx + W, :].reshape(NHW, Cin))

    # ---- conv1 (3x3) and downsample (1x1 centre tap) as ONE bf16 MXU matmul ----
    acc = jnp.dot(p1_ref[...].astype(jnp.bfloat16), w1d_ref[...],
                  preferred_element_type=jnp.float32)        # (NHW, 2*Cout) f32
    acc1 = acc[:, :Cout]        # conv1 output
    accd = acc[:, Cout:]        # downsample 1x1 output

    # ---- BN1 + ReLU ----
    out1 = jnp.maximum(_bn(acc1, g1_ref[...], be1_ref[...]), 0.0)

    # ---- pad intermediate, build conv2 im2col slab ----
    _store_padded(pad2_ref, out1.reshape(N, H, W, Cout))
    o1p = pad2_ref[...]
    for k in range(9):
        ky, kx = divmod(k, 3)
        p2_ref[:, k * Cout:(k + 1) * Cout] = (
            o1p[:, ky:ky + H, kx:kx + W, :].reshape(NHW, Cout))

    # ---- conv2 (3x3) as one bf16 MXU matmul + BN2 ----
    acc2 = jnp.dot(p2_ref[...].astype(jnp.bfloat16), w2_ref[...],
                   preferred_element_type=jnp.float32)
    out2 = _bn(acc2, g2_ref[...], be2_ref[...])

    # ---- downsample BN, residual add, final ReLU ----
    outd = _bn(accd, gd_ref[...], bed_ref[...])
    out_ref[...] = jnp.maximum(out2 + outd, 0.0)


def basic_block(x_nchw, p):
    """x_nchw: (N, Cin, H, W) float32 (PyTorch layout). Returns (N, Cout, H, W)."""
    N, Cin, H, W = x_nchw.shape
    Cout = p["w1"].shape[-1]
    NHW = N * H * W

    # NCHW -> NHWC (channels on lanes) at the boundary.
    # TODO(synk): fold this transpose (and the output one) into the kernel for large
    # activations; each is a full HBM round-trip.
    x = jnp.transpose(x_nchw, (0, 2, 3, 1)).astype(jnp.float32)

    # Conv weights as im2col matrices, bf16 for the MXU. The 1x1 downsample weight sits
    # in the centre-tap rows of a second column block of w1d so conv1 and the skip conv
    # share one matmul (and the centre patch).
    w1_flat = p["w1"].reshape(9 * Cin, Cout)
    wd_pad = jnp.zeros((9 * Cin, Cout), jnp.float32).at[4 * Cin:5 * Cin, :].set(p["wd"])
    w1d = jnp.concatenate([w1_flat, wd_pad], axis=1).astype(jnp.bfloat16)  # (9Cin, 2Cout)
    w2_flat = p["w2"].reshape(9 * Cout, Cout).astype(jnp.bfloat16)

    # Conv biases (b1, b2, bd) are intentionally NOT passed: training-mode BN removes
    # the per-channel mean, so a pre-BN per-channel bias cancels exactly.
    vmem = pl.BlockSpec(memory_space=pltpu.MemorySpace.VMEM)
    args = (x, w1d, w2_flat,
            p["g1"], p["be1"], p["g2"], p["be2"], p["gd"], p["bed"])

    # No grid: training-mode BN is a global (N,H,W) reduction and the whole working set
    # fits VMEM at these shapes (see TODOs at top for the tiled/megacore variant).
    out2d = pl.pallas_call(
        basic_block_kernel,
        out_shape=jax.ShapeDtypeStruct((NHW, Cout), jnp.float32),
        in_specs=[vmem] * len(args),
        out_specs=vmem,
        scratch_shapes=[
            pltpu.VMEM((N, H + 2, W + 2, Cin), jnp.float32),   # padded input
            pltpu.VMEM((N, H + 2, W + 2, Cout), jnp.float32),  # padded intermediate
            pltpu.VMEM((NHW, 9 * Cin), jnp.float32),           # conv1 im2col slab
            pltpu.VMEM((NHW, 9 * Cout), jnp.float32),          # conv2 im2col slab
        ],
        compiler_params=pltpu.CompilerParams(vmem_limit_bytes=32 * 1024 * 1024),
    )(*args)

    return jnp.transpose(out2d.reshape(N, H, W, Cout), (0, 3, 1, 2))   # back to NCHW


def init_params(key, cin, cout):
    ks = jax.random.split(key, 8)
    scale1 = 1.0 / (9 * cin) ** 0.5
    scale2 = 1.0 / (9 * cout) ** 0.5
    scaled = 1.0 / cin ** 0.5
    return dict(
        w1=jax.random.normal(ks[0], (9, cin, cout), jnp.float32) * scale1,
        b1=jax.random.normal(ks[1], (1, cout), jnp.float32) * 0.1,
        g1=jnp.ones((1, cout), jnp.float32) * 1.1,
        be1=jnp.ones((1, cout), jnp.float32) * 0.05,
        w2=jax.random.normal(ks[2], (9, cout, cout), jnp.float32) * scale2,
        b2=jax.random.normal(ks[3], (1, cout), jnp.float32) * 0.1,
        g2=jnp.ones((1, cout), jnp.float32) * 0.9,
        be2=jnp.ones((1, cout), jnp.float32) * -0.05,
        wd=jax.random.normal(ks[4], (cin, cout), jnp.float32) * scaled,
        bd=jax.random.normal(ks[5], (1, cout), jnp.float32) * 0.1,
        gd=jnp.ones((1, cout), jnp.float32) * 1.05,
        bed=jnp.ones((1, cout), jnp.float32) * 0.02,
    )


def reference(x_nchw, p):
    """Pure-JAX f32 reference of the PyTorch forward (training-mode BN, with biases)."""
    def conv3x3(x, w9, b):
        ci, co = w9.shape[1], w9.shape[2]
        w = w9.reshape(3, 3, ci, co)
        y = lax.conv_general_dilated(
            x, w, window_strides=(1, 1), padding=((1, 1), (1, 1)),
            dimension_numbers=("NHWC", "HWIO", "NHWC"))
        return y + b.reshape(1, 1, 1, co)

    def bn(x, g, b):
        mean = jnp.mean(x, axis=(0, 1, 2), keepdims=True)
        var = jnp.mean((x - mean) ** 2, axis=(0, 1, 2), keepdims=True)
        return (x - mean) * lax.rsqrt(var + EPS) * g.reshape(1, 1, 1, -1) + b.reshape(1, 1, 1, -1)

    x = jnp.transpose(x_nchw, (0, 2, 3, 1))
    o = jax.nn.relu(bn(conv3x3(x, p["w1"], p["b1"]), p["g1"], p["be1"]))
    o = bn(conv3x3(o, p["w2"], p["b2"]), p["g2"], p["be2"])
    idn = bn(jnp.einsum("nhwc,cd->nhwd", x, p["wd"]) + p["bd"].reshape(1, 1, 1, -1),
             p["gd"], p["bed"])
    return jnp.transpose(jax.nn.relu(o + idn), (0, 3, 1, 2))


if __name__ == "__main__":
    key = jax.random.PRNGKey(0)
    kx, kp = jax.random.split(key)
    N, Cin, Cout, H, W = 2, 4, 8, 16, 16

    x = jax.random.normal(kx, (N, Cin, H, W), jnp.float32)
    params = init_params(kp, Cin, Cout)

    out = jax.block_until_ready(basic_block(x, params))
    ref = jax.block_until_ready(reference(x, params))

    assert out.shape == (N, Cout, H, W)
    # Tolerance accounts for bf16 MXU operands in the kernel vs. the f32 reference.
    assert jnp.allclose(out, ref, atol=5e-2, rtol=5e-2), float(jnp.max(jnp.abs(out - ref)))

    print("KERNEL_OK")
</pallas_src>

<mosaic_0001>
module attributes {stable_mosaic.version = 11 : i64} {
  func.func @basic_block_kernel(%arg0: memref<2x16x16x4xf32, #tpu.memory_space<vmem>>, %arg1: memref<36x16xbf16, #tpu.memory_space<vmem>>, %arg2: memref<72x8xbf16, #tpu.memory_space<vmem>>, %arg3: memref<1x8xf32, #tpu.memory_space<vmem>>, %arg4: memref<1x8xf32, #tpu.memory_space<vmem>>, %arg5: memref<1x8xf32, #tpu.memory_space<vmem>>, %arg6: memref<1x8xf32, #tpu.memory_space<vmem>>, %arg7: memref<1x8xf32, #tpu.memory_space<vmem>>, %arg8: memref<1x8xf32, #tpu.memory_space<vmem>>, %arg9: memref<512x8xf32, #tpu.memory_space<vmem>>, %arg10: memref<2x18x18x4xf32, #tpu.memory_space<vmem>>, %arg11: memref<2x18x18x8xf32, #tpu.memory_space<vmem>>, %arg12: memref<512x36xf32, #tpu.memory_space<vmem>>, %arg13: memref<512x72xf32, #tpu.memory_space<vmem>>) attributes {dimension_semantics = [], scalar_prefetch = 0 : i64, scratch_operands = 4 : i64, tpu.core_type = #tpu.core_type<tc>} {
    %c0 = arith.constant 0 : index
    %c0_0 = arith.constant 0 : index
    %c0_1 = arith.constant 0 : index
    %c0_2 = arith.constant 0 : index
    %0 = vector.load %arg0[%c0, %c0_0, %c0_1, %c0_2] : memref<2x16x16x4xf32, #tpu.memory_space<vmem>>, vector<2x16x16x4xf32>
    %cst = arith.constant 0.000000e+00 : f32
    %1 = vector.broadcast %cst : f32 to vector<2x1x18x4xf32>
    %c0_3 = arith.constant 0 : index
    %c0_4 = arith.constant 0 : index
    %c0_5 = arith.constant 0 : index
    %c0_6 = arith.constant 0 : index
    %2 = vector.load %arg10[%c0_3, %c0_4, %c0_5, %c0_6] : memref<2x18x18x4xf32, #tpu.memory_space<vmem>>, vector<2x1x18x4xf32>
    tpu.vector_store %arg10[%c0_3, %c0_4, %c0_5, %c0_6], %1 {strides = array<i32>} : memref<2x18x18x4xf32, #tpu.memory_space<vmem>>, vector<2x1x18x4xf32>,
    %cst_7 = arith.constant 0.000000e+00 : f32
    %3 = vector.broadcast %cst_7 : f32 to vector<2x1x18x4xf32>
    %c0_8 = arith.constant 0 : index
    %c17 = arith.constant 17 : index
    %c0_9 = arith.constant 0 : index
    %c0_10 = arith.constant 0 : index
    %4 = vector.load %arg10[%c0_8, %c17, %c0_9, %c0_10] : memref<2x18x18x4xf32, #tpu.memory_space<vmem>>, vector<2x1x18x4xf32>
    tpu.vector_store %arg10[%c0_8, %c17, %c0_9, %c0_10], %3 {strides = array<i32>} : memref<2x18x18x4xf32, #tpu.memory_space<vmem>>, vector<2x1x18x4xf32>,
    %cst_11 = arith.constant 0.000000e+00 : f32
    %5 = vector.broadcast %cst_11 : f32 to vector<2x16x1x4xf32>
    %c0_12 = arith.constant 0 : index
    %c1 = arith.constant 1 : index
    %c0_13 = arith.constant 0 : index
    %c0_14 = arith.constant 0 : index
    %6 = vector.load %arg10[%c0_12, %c1, %c0_13, %c0_14] : memref<2x18x18x4xf32, #tpu.memory_space<vmem>>, vector<2x16x1x4xf32>
    tpu.vector_store %arg10[%c0_12, %c1, %c0_13, %c0_14], %5 {strides = array<i32>} : memref<2x18x18x4xf32, #tpu.memory_space<vmem>>, vector<2x16x1x4xf32>,
    %cst_15 = arith.constant 0.000000e+00 : f32
    %7 = vector.broadcast %cst_15 : f32 to vector<2x16x1x4xf32>
    %c0_16 = arith.constant 0 : index
    %c1_17 = arith.constant 1 : index
    %c17_18 = arith.constant 17 : index
    %c0_19 = arith.constant 0 : index
    %8 = vector.load %arg10[%c0_16, %c1_17, %c17_18, %c0_19] : memref<2x18x18x4xf32, #tpu.memory_space<vmem>>, vector<2x16x1x4xf32>
    tpu.vector_store %arg10[%c0_16, %c1_17, %c17_18, %c0_19], %7 {strides = array<i32>} : memref<2x18x18x4xf32, #tpu.memory_space<vmem>>, vector<2x16x1x4xf32>,
    %c0_20 = arith.constant 0 : index
    %c1_21 = arith.constant 1 : index
    %c1_22 = arith.constant 1 : index
    %c0_23 = arith.constant 0 : index
    %9 = vector.load %arg10[%c0_20, %c1_21, %c1_22, %c0_23] : memref<2x18x18x4xf32, #tpu.memory_space<vmem>>, vector<2x16x16x4xf32>
    tpu.vector_store %arg10[%c0_20, %c1_21, %c1_22, %c0_23], %0 {strides = array<i32>} : memref<2x18x18x4xf32, #tpu.memory_space<vmem>>, vector<2x16x16x4xf32>,
    %c0_24 = arith.constant 0 : index
    %c0_25 = arith.constant 0 : index
    %c0_26 = arith.constant 0 : index
    %c0_27 = arith.constant 0 : index
    %10 = vector.load %arg10[%c0_24, %c0_25, %c0_26, %c0_27] : memref<2x18x18x4xf32, #tpu.memory_space<vmem>>, vector<2x18x18x4xf32>
    %11 = vector.extract_strided_slice %10 {offsets = [0, 0, 0, 0], sizes = [2, 16, 16, 4], strides = [1, 1, 1, 1]} : vector<2x18x18x4xf32> to vector<2x16x16x4xf32>
    %12 = vector.shape_cast %11 : vector<2x16x16x4xf32> to vector<512x4xf32>
    %c0_28 = arith.constant 0 : index
    %c0_29 = arith.constant 0 : index
    %13 = vector.load %arg12[%c0_28, %c0_29] : memref<512x36xf32, #tpu.memory_space<vmem>>, vector<512x4xf32>
    tpu.vector_store %arg12[%c0_28, %c0_29], %12 {strides = array<i32>} : memref<512x36xf32, #tpu.memory_space<vmem>>, vector<512x4xf32>,
    %14 = vector.extract_strided_slice %10 {offsets = [0, 0, 1, 0], sizes = [2, 16, 16, 4], strides = [1, 1, 1, 1]} : vector<2x18x18x4xf32> to vector<2x16x16x4xf32>
    %15 = vector.shape_cast %14 : vector<2x16x16x4xf32> to vector<512x4xf32>
    %c0_30 = arith.constant 0 : index
    %c4 = arith.constant 4 : index
    %16 = vector.load %arg12[%c0_30, %c4] : memref<512x36xf32, #tpu.memory_space<vmem>>, vector<512x4xf32>
    tpu.vector_store %arg12[%c0_30, %c4], %15 {strides = array<i32>} : memref<512x36xf32, #tpu.memory_space<vmem>>, vector<512x4xf32>,
    %17 = vector.extract_strided_slice %10 {offsets = [0, 0, 2, 0], sizes = [2, 16, 16, 4], strides = [1, 1, 1, 1]} : vector<2x18x18x4xf32> to vector<2x16x16x4xf32>
    %18 = vector.shape_cast %17 : vector<2x16x16x4xf32> to vector<512x4xf32>
    %c0_31 = arith.constant 0 : index
    %c8 = arith.constant 8 : index
    %19 = vector.load %arg12[%c0_31, %c8] : memref<512x36xf32, #tpu.memory_space<vmem>>, vector<512x4xf32>
    tpu.vector_store %arg12[%c0_31, %c8], %18 {strides = array<i32>} : memref<512x36xf32, #tpu.memory_space<vmem>>, vector<512x4xf32>,
    %20 = vector.extract_strided_slice %10 {offsets = [0, 1, 0, 0], sizes = [2, 16, 16, 4], strides = [1, 1, 1, 1]} : vector<2x18x18x4xf32> to vector<2x16x16x4xf32>
    %21 = vector.shape_cast %20 : vector<2x16x16x4xf32> to vector<512x4xf32>
    %c0_32 = arith.constant 0 : index
    %c12 = arith.constant 12 : index
    %22 = vector.load %arg12[%c0_32, %c12] : memref<512x36xf32, #tpu.memory_space<vmem>>, vector<512x4xf32>
    tpu.vector_store %arg12[%c0_32, %c12], %21 {strides = array<i32>} : memref<512x36xf32, #tpu.memory_space<vmem>>, vector<512x4xf32>,
    %23 = vector.extract_strided_slice %10 {offsets = [0, 1, 1, 0], sizes = [2, 16, 16, 4], strides = [1, 1, 1, 1]} : vector<2x18x18x4xf32> to vector<2x16x16x4xf32>
    %24 = vector.shape_cast %23 : vector<2x16x16x4xf32> to vector<512x4xf32>
    %c0_33 = arith.constant 0 : index
    %c16 = arith.constant 16 : index
    %25 = vector.load %arg12[%c0_33, %c16] : memref<512x36xf32, #tpu.memory_space<vmem>>, vector<512x4xf32>
    tpu.vector_store %arg12[%c0_33, %c16], %24 {strides = array<i32>} : memref<512x36xf32, #tpu.memory_space<vmem>>, vector<512x4xf32>,
    %26 = vector.extract_strided_slice %10 {offsets = [0, 1, 2, 0], sizes = [2, 16, 16, 4], strides = [1, 1, 1, 1]} : vector<2x18x18x4xf32> to vector<2x16x16x4xf32>
    %27 = vector.shape_cast %26 : vector<2x16x16x4xf32> to vector<512x4xf32>
    %c0_34 = arith.constant 0 : index
    %c20 = arith.constant 20 : index
    %28 = vector.load %arg12[%c0_34, %c20] : memref<512x36xf32, #tpu.memory_space<vmem>>, vector<512x4xf32>
    tpu.vector_store %arg12[%c0_34, %c20], %27 {strides = array<i32>} : memref<512x36xf32, #tpu.memory_space<vmem>>, vector<512x4xf32>,
    %29 = vector.extract_strided_slice %10 {offsets = [0, 2, 0, 0], sizes = [2, 16, 16, 4], strides = [1, 1, 1, 1]} : vector<2x18x18x4xf32> to vector<2x16x16x4xf32>
    %30 = vector.shape_cast %29 : vector<2x16x16x4xf32> to vector<512x4xf32>
    %c0_35 = arith.constant 0 : index
    %c24 = arith.constant 24 : index
    %31 = vector.load %arg12[%c0_35, %c24] : memref<512x36xf32, #tpu.memory_space<vmem>>, vector<512x4xf32>
    tpu.vector_store %arg12[%c0_35, %c24], %30 {strides = array<i32>} : memref<512x36xf32, #tpu.memory_space<vmem>>, vector<512x4xf32>,
    %32 = vector.extract_strided_slice %10 {offsets = [0, 2, 1, 0], sizes = [2, 16, 16, 4], strides = [1, 1, 1, 1]} : vector<2x18x18x4xf32> to vector<2x16x16x4xf32>
    %33 = vector.shape_cast %32 : vector<2x16x16x4xf32> to vector<512x4xf32>
    %c0_36 = arith.constant 0 : index
    %c28 = arith.constant 28 : index
    %34 = vector.load %arg12[%c0_36, %c28] : memref<512x36xf32, #tpu.memory_space<vmem>>, vector<512x4xf32>
    tpu.vector_store %arg12[%c0_36, %c28], %33 {strides = array<i32>} : memref<512x36xf32, #tpu.memory_space<vmem>>, vector<512x4xf32>,
    %35 = vector.extract_strided_slice %10 {offsets = [0, 2, 2, 0], sizes = [2, 16, 16, 4], strides = [1, 1, 1, 1]} : vector<2x18x18x4xf32> to vector<2x16x16x4xf32>
    %36 = vector.shape_cast %35 : vector<2x16x16x4xf32> to vector<512x4xf32>
    %c0_37 = arith.constant 0 : index
    %c32 = arith.constant 32 : index
    %37 = vector.load %arg12[%c0_37, %c32] : memref<512x36xf32, #tpu.memory_space<vmem>>, vector<512x4xf32>
    tpu.vector_store %arg12[%c0_37, %c32], %36 {strides = array<i32>} : memref<512x36xf32, #tpu.memory_space<vmem>>, vector<512x4xf32>,
    %c0_38 = arith.constant 0 : index
    %c0_39 = arith.constant 0 : index
    %38 = vector.load %arg12[%c0_38, %c0_39] : memref<512x36xf32, #tpu.memory_space<vmem>>, vector<512x36xf32>
    %39 = arith.truncf %38 : vector<512x36xf32> to vector<512x36xbf16>
    %c0_40 = arith.constant 0 : index
    %c0_41 = arith.constant 0 : index
    %40 = vector.load %arg1[%c0_40, %c0_41] : memref<36x16xbf16, #tpu.memory_space<vmem>>, vector<36x16xbf16>
    %cst_42 = arith.constant dense<0.000000e+00> : vector<512x16xf32>
    %41 = tpu.matmul %39, %40, %cst_42 {dimension_numbers = #tpu.dot_dimension_numbers<[1], [0], [0], [1], [0, 0, 1, 1], [], []>} : vector<512x36xbf16>, vector<36x16xbf16>, vector<512x16xf32> -> vector<512x16xf32>
    %42 = vector.extract_strided_slice %41 {offsets = [0, 0], sizes = [512, 8], strides = [1, 1]} : vector<512x16xf32> to vector<512x8xf32>
    %43 = vector.extract_strided_slice %41 {offsets = [0, 8], sizes = [512, 8], strides = [1, 1]} : vector<512x16xf32> to vector<512x8xf32>
    %c0_43 = arith.constant 0 : index
    %c0_44 = arith.constant 0 : index
    %44 = vector.load %arg3[%c0_43, %c0_44] : memref<1x8xf32, #tpu.memory_space<vmem>>, vector<1x8xf32>
    %c0_45 = arith.constant 0 : index
    %c0_46 = arith.constant 0 : index
    %45 = vector.load %arg4[%c0_45, %c0_46] : memref<1x8xf32, #tpu.memory_space<vmem>>, vector<1x8xf32>
    %cst_47 = arith.constant dense<0.000000e+00> : vector<8xf32>
    %46 = vector.multi_reduction <add>, %42, %cst_47 [0] : vector<512x8xf32> to vector<8xf32>
    %47 = vector.shape_cast %46 : vector<8xf32> to vector<1x8xf32>
    %cst_48 = arith.constant 0.001953125 : f32
    %48 = vector.broadcast %cst_48 : f32 to vector<1x8xf32>
    %49 = arith.mulf %47, %48 : vector<1x8xf32>
    %50 = arith.mulf %42, %42 : vector<512x8xf32>
    %cst_49 = arith.constant dense<0.000000e+00> : vector<8xf32>
    %51 = vector.multi_reduction <add>, %50, %cst_49 [0] : vector<512x8xf32> to vector<8xf32>
    %52 = vector.shape_cast %51 : vector<8xf32> to vector<1x8xf32>
    %cst_50 = arith.constant 0.001953125 : f32
    %53 = vector.broadcast %cst_50 : f32 to vector<1x8xf32>
    %54 = arith.mulf %52, %53 : vector<1x8xf32>
    %55 = arith.mulf %49, %49 : vector<1x8xf32>
    %56 = arith.subf %54, %55 : vector<1x8xf32>
    %57 = vector.broadcast %49 : vector<1x8xf32> to vector<512x8xf32>
    %58 = arith.subf %42, %57 : vector<512x8xf32>
    %cst_51 = arith.constant 9.99999974E-6 : f32
    %59 = vector.broadcast %cst_51 : f32 to vector<1x8xf32>
    %60 = arith.addf %56, %59 : vector<1x8xf32>
    %61 = math.rsqrt %60 : vector<1x8xf32>
    %62 = vector.broadcast %61 : vector<1x8xf32> to vector<512x8xf32>
    %63 = arith.mulf %58, %62 : vector<512x8xf32>
    %64 = vector.broadcast %44 : vector<1x8xf32> to vector<512x8xf32>
    %65 = arith.mulf %63, %64 : vector<512x8xf32>
    %66 = vector.broadcast %45 : vector<1x8xf32> to vector<512x8xf32>
    %67 = arith.addf %65, %66 : vector<512x8xf32>
    %cst_52 = arith.constant 0.000000e+00 : f32
    %68 = vector.broadcast %cst_52 : f32 to vector<512x8xf32>
    %69 = arith.maximumf %67, %68 : vector<512x8xf32>
    %70 = vector.shape_cast %69 : vector<512x8xf32> to vector<2x16x16x8xf32>
    %cst_53 = arith.constant 0.000000e+00 : f32
    %71 = vector.broadcast %cst_53 : f32 to vector<2x1x18x8xf32>
    %c0_54 = arith.constant 0 : index
    %c0_55 = arith.constant 0 : index
    %c0_56 = arith.constant 0 : index
    %c0_57 = arith.constant 0 : index
    %72 = vector.load %arg11[%c0_54, %c0_55, %c0_56, %c0_57] : memref<2x18x18x8xf32, #tpu.memory_space<vmem>>, vector<2x1x18x8xf32>
    tpu.vector_store %arg11[%c0_54, %c0_55, %c0_56, %c0_57], %71 {strides = array<i32>} : memref<2x18x18x8xf32, #tpu.memory_space<vmem>>, vector<2x1x18x8xf32>,
    %cst_58 = arith.constant 0.000000e+00 : f32
    %73 = vector.broadcast %cst_58 : f32 to vector<2x1x18x8xf32>
    %c0_59 = arith.constant 0 : index
    %c17_60 = arith.constant 17 : index
    %c0_61 = arith.constant 0 : index
    %c0_62 = arith.constant 0 : index
    %74 = vector.load %arg11[%c0_59, %c17_60, %c0_61, %c0_62] : memref<2x18x18x8xf32, #tpu.memory_space<vmem>>, vector<2x1x18x8xf32>
    tpu.vector_store %arg11[%c0_59, %c17_60, %c0_61, %c0_62], %73 {strides = array<i32>} : memref<2x18x18x8xf32, #tpu.memory_space<vmem>>, vector<2x1x18x8xf32>,
    %cst_63 = arith.constant 0.000000e+00 : f32
    %75 = vector.broadcast %cst_63 : f32 to vector<2x16x1x8xf32>
    %c0_64 = arith.constant 0 : index
    %c1_65 = arith.constant 1 : index
    %c0_66 = arith.constant 0 : index
    %c0_67 = arith.constant 0 : index
    %76 = vector.load %arg11[%c0_64, %c1_65, %c0_66, %c0_67] : memref<2x18x18x8xf32, #tpu.memory_space<vmem>>, vector<2x16x1x8xf32>
    tpu.vector_store %arg11[%c0_64, %c1_65, %c0_66, %c0_67], %75 {strides = array<i32>} : memref<2x18x18x8xf32, #tpu.memory_space<vmem>>, vector<2x16x1x8xf32>,
    %cst_68 = arith.constant 0.000000e+00 : f32
    %77 = vector.broadcast %cst_68 : f32 to vector<2x16x1x8xf32>
    %c0_69 = arith.constant 0 : index
    %c1_70 = arith.constant 1 : index
    %c17_71 = arith.constant 17 : index
    %c0_72 = arith.constant 0 : index
    %78 = vector.load %arg11[%c0_69, %c1_70, %c17_71, %c0_72] : memref<2x18x18x8xf32, #tpu.memory_space<vmem>>, vector<2x16x1x8xf32>
    tpu.vector_store %arg11[%c0_69, %c1_70, %c17_71, %c0_72], %77 {strides = array<i32>} : memref<2x18x18x8xf32, #tpu.memory_space<vmem>>, vector<2x16x1x8xf32>,
    %c0_73 = arith.constant 0 : index
    %c1_74 = arith.constant 1 : index
    %c1_75 = arith.constant 1 : index
    %c0_76 = arith.constant 0 : index
    %79 = vector.load %arg11[%c0_73, %c1_74, %c1_75, %c0_76] : memref<2x18x18x8xf32, #tpu.memory_space<vmem>>, vector<2x16x16x8xf32>
    tpu.vector_store %arg11[%c0_73, %c1_74, %c1_75, %c0_76], %70 {strides = array<i32>} : memref<2x18x18x8xf32, #tpu.memory_space<vmem>>, vector<2x16x16x8xf32>,
    %c0_77 = arith.constant 0 : index
    %c0_78 = arith.constant 0 : index
    %c0_79 = arith.constant 0 : index
    %c0_80 = arith.constant 0 : index
    %80 = vector.load %arg11[%c0_77, %c0_78, %c0_79, %c0_80] : memref<2x18x18x8xf32, #tpu.memory_space<vmem>>, vector<2x18x18x8xf32>
    %81 = vector.extract_strided_slice %80 {offsets = [0, 0, 0, 0], sizes = [2, 16, 16, 8], strides = [1, 1, 1, 1]} : vector<2x18x18x8xf32> to vector<2x16x16x8xf32>
    %82 = vector.shape_cast %81 : vector<2x16x16x8xf32> to vector<512x8xf32>
    %c0_81 = arith.constant 0 : index
    %c0_82 = arith.constant 0 : index
    %83 = vector.load %arg13[%c0_81, %c0_82] : memref<512x72xf32, #tpu.memory_space<vmem>>, vector<512x8xf32>
    tpu.vector_store %arg13[%c0_81, %c0_82], %82 {strides = array<i32>} : memref<512x72xf32, #tpu.memory_space<vmem>>, vector<512x8xf32>,
    %84 = vector.extract_strided_slice %80 {offsets = [0, 0, 1, 0], sizes = [2, 16, 16, 8], strides = [1, 1, 1, 1]} : vector<2x18x18x8xf32> to vector<2x16x16x8xf32>
    %85 = vector.shape_cast %84 : vector<2x16x16x8xf32> to vector<512x8xf32>
    %c0_83 = arith.constant 0 : index
    %c8_84 = arith.constant 8 : index
    %86 = vector.load %arg13[%c0_83, %c8_84] : memref<512x72xf32, #tpu.memory_space<vmem>>, vector<512x8xf32>
    tpu.vector_store %arg13[%c0_83, %c8_84], %85 {strides = array<i32>} : memref<512x72xf32, #tpu.memory_space<vmem>>, vector<512x8xf32>,
    %87 = vector.extract_strided_slice %80 {offsets = [0, 0, 2, 0], sizes = [2, 16, 16, 8], strides = [1, 1, 1, 1]} : vector<2x18x18x8xf32> to vector<2x16x16x8xf32>
    %88 = vector.shape_cast %87 : vector<2x16x16x8xf32> to vector<512x8xf32>
    %c0_85 = arith.constant 0 : index
    %c16_86 = arith.constant 16 : index
    %89 = vector.load %arg13[%c0_85, %c16_86] : memref<512x72xf32, #tpu.memory_space<vmem>>, vector<512x8xf32>
    tpu.vector_store %arg13[%c0_85, %c16_86], %88 {strides = array<i32>} : memref<512x72xf32, #tpu.memory_space<vmem>>, vector<512x8xf32>,
    %90 = vector.extract_strided_slice %80 {offsets = [0, 1, 0, 0], sizes = [2, 16, 16, 8], strides = [1, 1, 1, 1]} : vector<2x18x18x8xf32> to vector<2x16x16x8xf32>
    %91 = vector.shape_cast %90 : vector<2x16x16x8xf32> to vector<512x8xf32>
    %c0_87 = arith.constant 0 : index
    %c24_88 = arith.constant 24 : index
    %92 = vector.load %arg13[%c0_87, %c24_88] : memref<512x72xf32, #tpu.memory_space<vmem>>, vector<512x8xf32>
    tpu.vector_store %arg13[%c0_87, %c24_88], %91 {strides = array<i32>} : memref<512x72xf32, #tpu.memory_space<vmem>>, vector<512x8xf32>,
    %93 = vector.extract_strided_slice %80 {offsets = [0, 1, 1, 0], sizes = [2, 16, 16, 8], strides = [1, 1, 1, 1]} : vector<2x18x18x8xf32> to vector<2x16x16x8xf32>
    %94 = vector.shape_cast %93 : vector<2x16x16x8xf32> to vector<512x8xf32>
    %c0_89 = arith.constant 0 : index
    %c32_90 = arith.constant 32 : index
    %95 = vector.load %arg13[%c0_89, %c32_90] : memref<512x72xf32, #tpu.memory_space<vmem>>, vector<512x8xf32>
    tpu.vector_store %arg13[%c0_89, %c32_90], %94 {strides = array<i32>} : memref<512x72xf32, #tpu.memory_space<vmem>>, vector<512x8xf32>,
    %96 = vector.extract_strided_slice %80 {offsets = [0, 1, 2, 0], sizes = [2, 16, 16, 8], strides = [1, 1, 1, 1]} : vector<2x18x18x8xf32> to vector<2x16x16x8xf32>
    %97 = vector.shape_cast %96 : vector<2x16x16x8xf32> to vector<512x8xf32>
    %c0_91 = arith.constant 0 : index
    %c40 = arith.constant 40 : index
    %98 = vector.load %arg13[%c0_91, %c40] : memref<512x72xf32, #tpu.memory_space<vmem>>, vector<512x8xf32>
    tpu.vector_store %arg13[%c0_91, %c40], %97 {strides = array<i32>} : memref<512x72xf32, #tpu.memory_space<vmem>>, vector<512x8xf32>,
    %99 = vector.extract_strided_slice %80 {offsets = [0, 2, 0, 0], sizes = [2, 16, 16, 8], strides = [1, 1, 1, 1]} : vector<2x18x18x8xf32> to vector<2x16x16x8xf32>
    %100 = vector.shape_cast %99 : vector<2x16x16x8xf32> to vector<512x8xf32>
    %c0_92 = arith.constant 0 : index
    %c48 = arith.constant 48 : index
    %101 = vector.load %arg13[%c0_92, %c48] : memref<512x72xf32, #tpu.memory_space<vmem>>, vector<512x8xf32>
    tpu.vector_store %arg13[%c0_92, %c48], %100 {strides = array<i32>} : memref<512x72xf32, #tpu.memory_space<vmem>>, vector<512x8xf32>,
    %102 = vector.extract_strided_slice %80 {offsets = [0, 2, 1, 0], sizes = [2, 16, 16, 8], strides = [1, 1, 1, 1]} : vector<2x18x18x8xf32> to vector<2x16x16x8xf32>
    %103 = vector.shape_cast %102 : vector<2x16x16x8xf32> to vector<512x8xf32>
    %c0_93 = arith.constant 0 : index
    %c56 = arith.constant 56 : index
    %104 = vector.load %arg13[%c0_93, %c56] : memref<512x72xf32, #tpu.memory_space<vmem>>, vector<512x8xf32>
    tpu.vector_store %arg13[%c0_93, %c56], %103 {strides = array<i32>} : memref<512x72xf32, #tpu.memory_space<vmem>>, vector<512x8xf32>,
    %105 = vector.extract_strided_slice %80 {offsets = [0, 2, 2, 0], sizes = [2, 16, 16, 8], strides = [1, 1, 1, 1]} : vector<2x18x18x8xf32> to vector<2x16x16x8xf32>
    %106 = vector.shape_cast %105 : vector<2x16x16x8xf32> to vector<512x8xf32>
    %c0_94 = arith.constant 0 : index
    %c64 = arith.constant 64 : index
    %107 = vector.load %arg13[%c0_94, %c64] : memref<512x72xf32, #tpu.memory_space<vmem>>, vector<512x8xf32>
    tpu.vector_store %arg13[%c0_94, %c64], %106 {strides = array<i32>} : memref<512x72xf32, #tpu.memory_space<vmem>>, vector<512x8xf32>,
    %c0_95 = arith.constant 0 : index
    %c0_96 = arith.constant 0 : index
    %108 = vector.load %arg13[%c0_95, %c0_96] : memref<512x72xf32, #tpu.memory_space<vmem>>, vector<512x72xf32>
    %109 = arith.truncf %108 : vector<512x72xf32> to vector<512x72xbf16>
    %c0_97 = arith.constant 0 : index
    %c0_98 = arith.constant 0 : index
    %110 = vector.load %arg2[%c0_97, %c0_98] : memref<72x8xbf16, #tpu.memory_space<vmem>>, vector<72x8xbf16>
    %cst_99 = arith.constant dense<0.000000e+00> : vector<512x8xf32>
    %111 = tpu.matmul %109, %110, %cst_99 {dimension_numbers = #tpu.dot_dimension_numbers<[1], [0], [0], [1], [0, 0, 1, 1], [], []>} : vector<512x72xbf16>, vector<72x8xbf16>, vector<512x8xf32> -> vector<512x8xf32>
    %c0_100 = arith.constant 0 : index
    %c0_101 = arith.constant 0 : index
    %112 = vector.load %arg5[%c0_100, %c0_101] : memref<1x8xf32, #tpu.memory_space<vmem>>, vector<1x8xf32>
    %c0_102 = arith.constant 0 : index
    %c0_103 = arith.constant 0 : index
    %113 = vector.load %arg6[%c0_102, %c0_103] : memref<1x8xf32, #tpu.memory_space<vmem>>, vector<1x8xf32>
    %cst_104 = arith.constant dense<0.000000e+00> : vector<8xf32>
    %114 = vector.multi_reduction <add>, %111, %cst_104 [0] : vector<512x8xf32> to vector<8xf32>
    %115 = vector.shape_cast %114 : vector<8xf32> to vector<1x8xf32>
    %cst_105 = arith.constant 0.001953125 : f32
    %116 = vector.broadcast %cst_105 : f32 to vector<1x8xf32>
    %117 = arith.mulf %115, %116 : vector<1x8xf32>
    %118 = arith.mulf %111, %111 : vector<512x8xf32>
    %cst_106 = arith.constant dense<0.000000e+00> : vector<8xf32>
    %119 = vector.multi_reduction <add>, %118, %cst_106 [0] : vector<512x8xf32> to vector<8xf32>
    %120 = vector.shape_cast %119 : vector<8xf32> to vector<1x8xf32>
    %cst_107 = arith.constant 0.001953125 : f32
    %121 = vector.broadcast %cst_107 : f32 to vector<1x8xf32>
    %122 = arith.mulf %120, %121 : vector<1x8xf32>
    %123 = arith.mulf %117, %117 : vector<1x8xf32>
    %124 = arith.subf %122, %123 : vector<1x8xf32>
    %125 = vector.broadcast %117 : vector<1x8xf32> to vector<512x8xf32>
    %126 = arith.subf %111, %125 : vector<512x8xf32>
    %cst_108 = arith.constant 9.99999974E-6 : f32
    %127 = vector.broadcast %cst_108 : f32 to vector<1x8xf32>
    %128 = arith.addf %124, %127 : vector<1x8xf32>
    %129 = math.rsqrt %128 : vector<1x8xf32>
    %130 = vector.broadcast %129 : vector<1x8xf32> to vector<512x8xf32>
    %131 = arith.mulf %126, %130 : vector<512x8xf32>
    %132 = vector.broadcast %112 : vector<1x8xf32> to vector<512x8xf32>
    %133 = arith.mulf %131, %132 : vector<512x8xf32>
    %134 = vector.broadcast %113 : vector<1x8xf32> to vector<512x8xf32>
    %135 = arith.addf %133, %134 : vector<512x8xf32>
    %c0_109 = arith.constant 0 : index
    %c0_110 = arith.constant 0 : index
    %136 = vector.load %arg7[%c0_109, %c0_110] : memref<1x8xf32, #tpu.memory_space<vmem>>, vector<1x8xf32>
    %c0_111 = arith.constant 0 : index
    %c0_112 = arith.constant 0 : index
    %137 = vector.load %arg8[%c0_111, %c0_112] : memref<1x8xf32, #tpu.memory_space<vmem>>, vector<1x8xf32>
    %cst_113 = arith.constant dense<0.000000e+00> : vector<8xf32>
    %138 = vector.multi_reduction <add>, %43, %cst_113 [0] : vector<512x8xf32> to vector<8xf32>
    %139 = vector.shape_cast %138 : vector<8xf32> to vector<1x8xf32>
    %cst_114 = arith.constant 0.001953125 : f32
    %140 = vector.broadcast %cst_114 : f32 to vector<1x8xf32>
    %141 = arith.mulf %139, %140 : vector<1x8xf32>
    %142 = arith.mulf %43, %43 : vector<512x8xf32>
    %cst_115 = arith.constant dense<0.000000e+00> : vector<8xf32>
    %143 = vector.multi_reduction <add>, %142, %cst_115 [0] : vector<512x8xf32> to vector<8xf32>
    %144 = vector.shape_cast %143 : vector<8xf32> to vector<1x8xf32>
    %cst_116 = arith.constant 0.001953125 : f32
    %145 = vector.broadcast %cst_116 : f32 to vector<1x8xf32>
    %146 = arith.mulf %144, %145 : vector<1x8xf32>
    %147 = arith.mulf %141, %141 : vector<1x8xf32>
    %148 = arith.subf %146, %147 : vector<1x8xf32>
    %149 = vector.broadcast %141 : vector<1x8xf32> to vector<512x8xf32>
    %150 = arith.subf %43, %149 : vector<512x8xf32>
    %cst_117 = arith.constant 9.99999974E-6 : f32
    %151 = vector.broadcast %cst_117 : f32 to vector<1x8xf32>
    %152 = arith.addf %148, %151 : vector<1x8xf32>
    %153 = math.rsqrt %152 : vector<1x8xf32>
    %154 = vector.broadcast %153 : vector<1x8xf32> to vector<512x8xf32>
    %155 = arith.mulf %150, %154 : vector<512x8xf32>
    %156 = vector.broadcast %136 : vector<1x8xf32> to vector<512x8xf32>
    %157 = arith.mulf %155, %156 : vector<512x8xf32>
    %158 = vector.broadcast %137 : vector<1x8xf32> to vector<512x8xf32>
    %159 = arith.addf %157, %158 : vector<512x8xf32>
    %160 = arith.addf %135, %159 : vector<512x8xf32>
    %cst_118 = arith.constant 0.000000e+00 : f32
    %161 = vector.broadcast %cst_118 : f32 to vector<512x8xf32>
    %162 = arith.maximumf %160, %161 : vector<512x8xf32>
    %c0_119 = arith.constant 0 : index
    %c0_120 = arith.constant 0 : index
    %163 = vector.load %arg9[%c0_119, %c0_120] : memref<512x8xf32, #tpu.memory_space<vmem>>, vector<512x8xf32>
    tpu.vector_store %arg9[%c0_119, %c0_120], %162 {strides = array<i32>} : memref<512x8xf32, #tpu.memory_space<vmem>>, vector<512x8xf32>,
    return
  }
}

</mosaic_0001>

<llo_original>
// kernel: tpu_custom_call.1
$region0: #{tpu_custom_call.1}
  #allocation0 [shape = 'u32[]', space=smem, size = 0x4, offset = 0x4, fixed_abs, tag = 'smem constant byte address 0x4 - core index']
  #allocation1 [shape = 'u32[72,128]{1,0:T(1,128)}', space=vmem, size = 0x9000, scoped, tag = 'internal scratch']
  #allocation2 [shape = 'f32[2,18,18,4]{3,2,1,0:T(8,128)}', space=vmem, size = 0x6c000, scoped, tag = 'scratch operand']
  #allocation3 [shape = 'f32[2,18,18,8]{3,2,1,0:T(8,128)}', space=vmem, size = 0x6c000, scoped, tag = 'scratch operand']
  #allocation4 [shape = 'f32[512,36]{1,0:T(8,128)}', space=vmem, size = 0x40000, scoped, tag = 'scratch operand']
  #allocation5 [shape = 'f32[512,72]{1,0:T(8,128)}', space=vmem, size = 0x40000, scoped, tag = 'scratch operand']
  %s0 = inlined_call_operand.vmem [shape: f32[2,16,16,4], index: 0, kind: input, shape index: {}]
  %s1 = inlined_call_operand.vmem [shape: bf16[36,16], index: 1, kind: input, shape index: {}]
  %s2 = inlined_call_operand.vmem [shape: bf16[72,8], index: 2, kind: input, shape index: {}]
  %s3 = inlined_call_operand.vmem [shape: f32[1,8], index: 3, kind: input, shape index: {}]
  %s4 = inlined_call_operand.vmem [shape: f32[1,8], index: 4, kind: input, shape index: {}]
  %s5 = inlined_call_operand.vmem [shape: f32[1,8], index: 5, kind: input, shape index: {}]
  %s6 = inlined_call_operand.vmem [shape: f32[1,8], index: 6, kind: input, shape index: {}]
  %s7 = inlined_call_operand.vmem [shape: f32[1,8], index: 7, kind: input, shape index: {}]
  %s8 = inlined_call_operand.vmem [shape: f32[1,8], index: 8, kind: input, shape index: {}]
  %s9 = inlined_call_operand.vmem [shape: f32[512,8], index: 9, kind: output, shape index: {}]
  %s10 = sld [smem:[#allocation0]]
  $region46: #{tpu_custom_call.1} parent=0
    _
  %s12 = ssub.s32 1, %s10
  %s13 = scalar_select 0, %s12, %s10
  // Predicated region
  $region2: #{tpu_custom_call.1} parent=0 // pred_check
    _
  $region3: #{tpu_custom_call.1} parent=0 // pred_check_branch
    %15 = sbr.rel (0) target = $region5
  $region4: #{tpu_custom_call.1} parent=0 // pred_region
    _
  $region5: #{tpu_custom_call.1} parent=0 // pred_fallthru
    _
  // Predicated region
  $region6: #{tpu_custom_call.1} parent=0 // pred_check
    _
  $region7: #{tpu_custom_call.1} parent=0 // pred_check_branch
    %17 = sbr.rel (0) target = $region9
  $region8: #{tpu_custom_call.1} parent=0 // pred_region
    _
  $region9: #{tpu_custom_call.1} parent=0 // pred_fallthru
    _
  // Predicated region
  $region10: #{tpu_custom_call.1} parent=0 // pred_check
    _
  $region11: #{tpu_custom_call.1} parent=0 // pred_check_branch
    %19 = sbr.rel (0) target = $region13
  $region12: #{tpu_custom_call.1} parent=0 // pred_region
    _
  $region13: #{tpu_custom_call.1} parent=0 // pred_fallthru
    _
  // Predicated region
  $region14: #{tpu_custom_call.1} parent=0 // pred_check
    _
  $region15: #{tpu_custom_call.1} parent=0 // pred_check_branch
    %21 = sbr.rel (0) target = $region17
  $region16: #{tpu_custom_call.1} parent=0 // pred_region
    _
  $region17: #{tpu_custom_call.1} parent=0 // pred_fallthru
    _
  // Predicated region
  $region18: #{tpu_custom_call.1} parent=0 // pred_check
    _
  $region19: #{tpu_custom_call.1} parent=0 // pred_check_branch
    %23 = sbr.rel (0) target = $region21
  $region20: #{tpu_custom_call.1} parent=0 // pred_region
    _
  $region21: #{tpu_custom_call.1} parent=0 // pred_fallthru
    _
  // Predicated region
  $region22: #{tpu_custom_call.1} parent=0 // pred_check
    _
  $region23: #{tpu_custom_call.1} parent=0 // pred_check_branch
    %25 = sbr.rel (0) target = $region25
  $region24: #{tpu_custom_call.1} parent=0 // pred_region
    _
  $region25: #{tpu_custom_call.1} parent=0 // pred_fallthru
    _
  // Predicated region
  $region26: #{tpu_custom_call.1} parent=0 // pred_check
    _
  $region27: #{tpu_custom_call.1} parent=0 // pred_check_branch
    %27 = sbr.rel (0) target = $region29
  $region28: #{tpu_custom_call.1} parent=0 // pred_region
    _
  $region29: #{tpu_custom_call.1} parent=0 // pred_fallthru
    _
  // Predicated region
  $region30: #{tpu_custom_call.1} parent=0 // pred_check
    _
  $region31: #{tpu_custom_call.1} parent=0 // pred_check_branch
    %29 = sbr.rel (0) target = $region33
  $region32: #{tpu_custom_call.1} parent=0 // pred_region
    _
  $region33: #{tpu_custom_call.1} parent=0 // pred_fallthru
    _
  // Predicated region
  $region34: #{tpu_custom_call.1} parent=0 // pred_check
    _
  $region35: #{tpu_custom_call.1} parent=0 // pred_check_branch
    %31 = sbr.rel (0) target = $region37
  $region36: #{tpu_custom_call.1} parent=0 // pred_region
    _
  $region37: #{tpu_custom_call.1} parent=0 // pred_fallthru
    _
  %v33 = vld [vmem:[%s0] sm:$0xff]
  %v34 = vld [vmem:[%s0 + $0x8] sm:$0xff]
  %v35 = vld [vmem:[%s0 + $0x10] sm:$0xff]
  %v36 = vld [vmem:[%s0 + $0x18] sm:$0xff]
  %v37 = vld [vmem:[%s0 + $0x20] sm:$0xff]
  %v38 = vld [vmem:[%s0 + $0x28] sm:$0xff]
  %v39 = vld [vmem:[%s0 + $0x30] sm:$0xff]
  %v40 = vld [vmem:[%s0 + $0x38] sm:$0xff]
  %v41 = vld [vmem:[%s0 + $0x40] sm:$0xff]
  %v42 = vld [vmem:[%s0 + $0x48] sm:$0xff]
  %v43 = vld [vmem:[%s0 + $0x50] sm:$0xff]
  %v44 = vld [vmem:[%s0 + $0x58] sm:$0xff]
  %v45 = vld [vmem:[%s0 + $0x60] sm:$0xff]
  %v46 = vld [vmem:[%s0 + $0x68] sm:$0xff]
  %v47 = vld [vmem:[%s0 + $0x70] sm:$0xff]
  %v48 = vld [vmem:[%s0 + $0x78] sm:$0xff]
  %v49 = vld [vmem:[%s0 + $0x80] sm:$0xff]
  %v50 = vld [vmem:[%s0 + $0x88] sm:$0xff]
  %v51 = vld [vmem:[%s0 + $0x90] sm:$0xff]
  %v52 = vld [vmem:[%s0 + $0x98] sm:$0xff]
  %v53 = vld [vmem:[%s0 + $0xa0] sm:$0xff]
  %v54 = vld [vmem:[%s0 + $0xa8] sm:$0xff]
  %v55 = vld [vmem:[%s0 + $0xb0] sm:$0xff]
  %v56 = vld [vmem:[%s0 + $0xb8] sm:$0xff]
  %v57 = vld [vmem:[%s0 + $0xc0] sm:$0xff]
  %v58 = vld [vmem:[%s0 + $0xc8] sm:$0xff]
  %v59 = vld [vmem:[%s0 + $0xd0] sm:$0xff]
  %v60 = vld [vmem:[%s0 + $0xd8] sm:$0xff]
  %v61 = vld [vmem:[%s0 + $0xe0] sm:$0xff]
  %v62 = vld [vmem:[%s0 + $0xe8] sm:$0xff]
  %v63 = vld [vmem:[%s0 + $0xf0] sm:$0xff]
  %v64 = vld [vmem:[%s0 + $0xf8] sm:$0xff]
  %v65 = vld [vmem:[%s0 + $0x100] sm:$0xff]
  %v66 = vld [vmem:[%s0 + $0x108] sm:$0xff]
  %v67 = vld [vmem:[%s0 + $0x110] sm:$0xff]
  %v68 = vld [vmem:[%s0 + $0x118] sm:$0xff]
  %v69 = vld [vmem:[%s0 + $0x120] sm:$0xff]
  %v70 = vld [vmem:[%s0 + $0x128] sm:$0xff]
  %v71 = vld [vmem:[%s0 + $0x130] sm:$0xff]
  %v72 = vld [vmem:[%s0 + $0x138] sm:$0xff]
  %v73 = vld [vmem:[%s0 + $0x140] sm:$0xff]
  %v74 = vld [vmem:[%s0 + $0x148] sm:$0xff]
  %v75 = vld [vmem:[%s0 + $0x150] sm:$0xff]
  %v76 = vld [vmem:[%s0 + $0x158] sm:$0xff]
  %v77 = vld [vmem:[%s0 + $0x160] sm:$0xff]
  %v78 = vld [vmem:[%s0 + $0x168] sm:$0xff]
  %v79 = vld [vmem:[%s0 + $0x170] sm:$0xff]
  %v80 = vld [vmem:[%s0 + $0x178] sm:$0xff]
  %v81 = vld [vmem:[%s0 + $0x180] sm:$0xff]
  %v82 = vld [vmem:[%s0 + $0x188] sm:$0xff]
  %v83 = vld [vmem:[%s0 + $0x190] sm:$0xff]
  %v84 = vld [vmem:[%s0 + $0x198] sm:$0xff]
  %v85 = vld [vmem:[%s0 + $0x1a0] sm:$0xff]
  %v86 = vld [vmem:[%s0 + $0x1a8] sm:$0xff]
  %v87 = vld [vmem:[%s0 + $0x1b0] sm:$0xff]
  %v88 = vld [vmem:[%s0 + $0x1b8] sm:$0xff]
  %v89 = vld [vmem:[%s0 + $0x1c0] sm:$0xff]
  %v90 = vld [vmem:[%s0 + $0x1c8] sm:$0xff]
  %v91 = vld [vmem:[%s0 + $0x1d0] sm:$0xff]
  %v92 = vld [vmem:[%s0 + $0x1d8] sm:$0xff]
  %v93 = vld [vmem:[%s0 + $0x1e0] sm:$0xff]
  %v94 = vld [vmem:[%s0 + $0x1e8] sm:$0xff]
  %v95 = vld [vmem:[%s0 + $0x1f0] sm:$0xff]
  %v96 = vld [vmem:[%s0 + $0x1f8] sm:$0xff]
  %vm97 = vcmask 31744
  %98 = vst.msk [vmem:[#allocation2] sm:$0xff] %vm97, 0.0
  %99 = vst.msk [vmem:[#allocation2 + $0x8] sm:$0xff] %vm97, 0.0
  %vm100 = vcmask 25600
  %101 = vst.msk [vmem:[#allocation2 + $0x10] sm:$0x3] %vm100, 0.0
  %102 = vst.msk [vmem:[#allocation2 + $0x1b0] sm:$0xff] %vm97, 0.0
  %103 = vst.msk [vmem:[#allocation2 + $0x1b8] sm:$0xff] %vm97, 0.0
  %104 = vst.msk [vmem:[#allocation2 + $0x1c0] sm:$0x3] %vm100, 0.0
  %s105 = scalar_lea.vmem [#allocation2], 408
  %106 = vst.msk [vmem:[%s105] sm:$0xff] %vm97, 0.0
  %107 = vst.msk [vmem:[%s105 + $0x8] sm:$0xff] %vm97, 0.0
  %108 = vst.msk [vmem:[%s105 + $0x10] sm:$0x3] %vm100, 0.0
  %109 = vst.msk [vmem:[%s105 + $0x1b0] sm:$0xff] %vm97, 0.0
  %110 = vst.msk [vmem:[%s105 + $0x1b8] sm:$0xff] %vm97, 0.0
  %111 = vst.msk [vmem:[%s105 + $0x1c0] sm:$0x3] %vm100, 0.0
  %s112 = scalar_lea.vmem [#allocation2], 24
  %vm113 = vcmask 24576
  %114 = vst.msk [vmem:[%s112] sm:$0x1] %vm113, 0.0
  %115 = vst.msk [vmem:[%s112 + $0x18] sm:$0x1] %vm113, 0.0
  %116 = vst.msk [vmem:[%s112 + $0x30] sm:$0x1] %vm113, 0.0
  %117 = vst.msk [vmem:[%s112 + $0x48] sm:$0x1] %vm113, 0.0
  %118 = vst.msk [vmem:[%s112 + $0x60] sm:$0x1] %vm113, 0.0
  %119 = vst.msk [vmem:[%s112 + $0x78] sm:$0x1] %vm113, 0.0
  %120 = vst.msk [vmem:[%s112 + $0x90] sm:$0x1] %vm113, 0.0
  %121 = vst.msk [vmem:[%s112 + $0xa8] sm:$0x1] %vm113, 0.0
  %122 = vst.msk [vmem:[%s112 + $0xc0] sm:$0x1] %vm113, 0.0
  %123 = vst.msk [vmem:[%s112 + $0xd8] sm:$0x1] %vm113, 0.0
  %124 = vst.msk [vmem:[%s112 + $0xf0] sm:$0x1] %vm113, 0.0
  %125 = vst.msk [vmem:[%s112 + $0x108] sm:$0x1] %vm113, 0.0
  %126 = vst.msk [vmem:[%s112 + $0x120] sm:$0x1] %vm113, 0.0
  %127 = vst.msk [vmem:[%s112 + $0x138] sm:$0x1] %vm113, 0.0
  %128 = vst.msk [vmem:[%s112 + $0x150] sm:$0x1] %vm113, 0.0
  %129 = vst.msk [vmem:[%s112 + $0x168] sm:$0x1] %vm113, 0.0
  %130 = vst.msk [vmem:[%s112 + $0x1b0] sm:$0x1] %vm113, 0.0
  %131 = vst.msk [vmem:[%s112 + $0x1c8] sm:$0x1] %vm113, 0.0
  %132 = vst.msk [vmem:[%s112 + $0x1e0] sm:$0x1] %vm113, 0.0
  %133 = vst.msk [vmem:[%s112 + $0x1f8] sm:$0x1] %vm113, 0.0
  %134 = vst.msk [vmem:[%s112 + $0x210] sm:$0x1] %vm113, 0.0
  %135 = vst.msk [vmem:[%s112 + $0x228] sm:$0x1] %vm113, 0.0
  %136 = vst.msk [vmem:[%s112 + $0x240] sm:$0x1] %vm113, 0.0
  %137 = vst.msk [vmem:[%s112 + $0x258] sm:$0x1] %vm113, 0.0
  %138 = vst.msk [vmem:[%s112 + $0x270] sm:$0x1] %vm113, 0.0
  %139 = vst.msk [vmem:[%s112 + $0x288] sm:$0x1] %vm113, 0.0
  %140 = vst.msk [vmem:[%s112 + $0x2a0] sm:$0x1] %vm113, 0.0
  %141 = vst.msk [vmem:[%s112 + $0x2b8] sm:$0x1] %vm113, 0.0
  %142 = vst.msk [vmem:[%s112 + $0x2d0] sm:$0x1] %vm113, 0.0
  %143 = vst.msk [vmem:[%s112 + $0x2e8] sm:$0x1] %vm113, 0.0
  %144 = vst.msk [vmem:[%s112 + $0x300] sm:$0x1] %vm113, 0.0
  %145 = vst.msk [vmem:[%s112 + $0x318] sm:$0x1] %vm113, 0.0
  %146 = vst.msk [vmem:[%s112 + $0x11] sm:$0x1] %vm113, 0.0
  %147 = vst.msk [vmem:[%s112 + $0x29] sm:$0x1] %vm113, 0.0
  %148 = vst.msk [vmem:[%s112 + $0x41] sm:$0x1] %vm113, 0.0
  %149 = vst.msk [vmem:[%s112 + $0x59] sm:$0x1] %vm113, 0.0
  %150 = vst.msk [vmem:[%s112 + $0x71] sm:$0x1] %vm113, 0.0
  %151 = vst.msk [vmem:[%s112 + $0x89] sm:$0x1] %vm113, 0.0
  %152 = vst.msk [vmem:[%s112 + $0xa1] sm:$0x1] %vm113, 0.0
  %153 = vst.msk [vmem:[%s112 + $0xb9] sm:$0x1] %vm113, 0.0
  %154 = vst.msk [vmem:[%s112 + $0xd1] sm:$0x1] %vm113, 0.0
  %155 = vst.msk [vmem:[%s112 + $0xe9] sm:$0x1] %vm113, 0.0
  %156 = vst.msk [vmem:[%s112 + $0x101] sm:$0x1] %vm113, 0.0
  %157 = vst.msk [vmem:[%s112 + $0x119] sm:$0x1] %vm113, 0.0
  %158 = vst.msk [vmem:[%s112 + $0x131] sm:$0x1] %vm113, 0.0
  %159 = vst.msk [vmem:[%s112 + $0x149] sm:$0x1] %vm113, 0.0
  %160 = vst.msk [vmem:[%s112 + $0x161] sm:$0x1] %vm113, 0.0
  %161 = vst.msk [vmem:[%s112 + $0x179] sm:$0x1] %vm113, 0.0
  %162 = vst.msk [vmem:[%s112 + $0x1c1] sm:$0x1] %vm113, 0.0
  %163 = vst.msk [vmem:[%s112 + $0x1d9] sm:$0x1] %vm113, 0.0
  %164 = vst.msk [vmem:[%s112 + $0x1f1] sm:$0x1] %vm113, 0.0
  %165 = vst.msk [vmem:[%s112 + $0x209] sm:$0x1] %vm113, 0.0
  %166 = vst.msk [vmem:[%s112 + $0x221] sm:$0x1] %vm113, 0.0
  %167 = vst.msk [vmem:[%s112 + $0x239] sm:$0x1] %vm113, 0.0
  %168 = vst.msk [vmem:[%s112 + $0x251] sm:$0x1] %vm113, 0.0
  %169 = vst.msk [vmem:[%s112 + $0x269] sm:$0x1] %vm113, 0.0
  %170 = vst.msk [vmem:[%s112 + $0x281] sm:$0x1] %vm113, 0.0
  %171 = vst.msk [vmem:[%s112 + $0x299] sm:$0x1] %vm113, 0.0
  %172 = vst.msk [vmem:[%s112 + $0x2b1] sm:$0x1] %vm113, 0.0
  %173 = vst.msk [vmem:[%s112 + $0x2c9] sm:$0x1] %vm113, 0.0
  %174 = vst.msk [vmem:[%s112 + $0x2e1] sm:$0x1] %vm113, 0.0
  %175 = vst.msk [vmem:[%s112 + $0x2f9] sm:$0x1] %vm113, 0.0
  %176 = vst.msk [vmem:[%s112 + $0x311] sm:$0x1] %vm113, 0.0
  %177 = vst.msk [vmem:[%s112 + $0x329] sm:$0x1] %vm113, 0.0
  %178 = vst.msk [vmem:[%s112 + $0x1] sm:$0xff] %vm97, %v33
  %179 = vst.msk [vmem:[%s112 + $0x9] sm:$0xff] %vm97, %v34
  %180 = vst.msk [vmem:[%s112 + $0x19] sm:$0xff] %vm97, %v35
  %181 = vst.msk [vmem:[%s112 + $0x21] sm:$0xff] %vm97, %v36
  %182 = vst.msk [vmem:[%s112 + $0x31] sm:$0xff] %vm97, %v37
  %183 = vst.msk [vmem:[%s112 + $0x39] sm:$0xff] %vm97, %v38
  %184 = vst.msk [vmem:[%s112 + $0x49] sm:$0xff] %vm97, %v39
  %185 = vst.msk [vmem:[%s112 + $0x51] sm:$0xff] %vm97, %v40
  %186 = vst.msk [vmem:[%s112 + $0x61] sm:$0xff] %vm97, %v41
  %187 = vst.msk [vmem:[%s112 + $0x69] sm:$0xff] %vm97, %v42
  %188 = vst.msk [vmem:[%s112 + $0x79] sm:$0xff] %vm97, %v43
  %189 = vst.msk [vmem:[%s112 + $0x81] sm:$0xff] %vm97, %v44
  %190 = vst.msk [vmem:[%s112 + $0x91] sm:$0xff] %vm97, %v45
  %191 = vst.msk [vmem:[%s112 + $0x99] sm:$0xff] %vm97, %v46
  %192 = vst.msk [vmem:[%s112 + $0xa9] sm:$0xff] %vm97, %v47
  %193 = vst.msk [vmem:[%s112 + $0xb1] sm:$0xff] %vm97, %v48
  %194 = vst.msk [vmem:[%s112 + $0xc1] sm:$0xff] %vm97, %v49
  %195 = vst.msk [vmem:[%s112 + $0xc9] sm:$0xff] %vm97, %v50
  %196 = vst.msk [vmem:[%s112 + $0xd9] sm:$0xff] %vm97, %v51
  %197 = vst.msk [vmem:[%s112 + $0xe1] sm:$0xff] %vm97, %v52
  %198 = vst.msk [vmem:[%s112 + $0xf1] sm:$0xff] %vm97, %v53
  %199 = vst.msk [vmem:[%s112 + $0xf9] sm:$0xff] %vm97, %v54
  %200 = vst.msk [vmem:[%s112 + $0x109] sm:$0xff] %vm97, %v55
  %201 = vst.msk [vmem:[%s112 + $0x111] sm:$0xff] %vm97, %v56
  %202 = vst.msk [vmem:[%s112 + $0x121] sm:$0xff] %vm97, %v57
  %203 = vst.msk [vmem:[%s112 + $0x129] sm:$0xff] %vm97, %v58
  %204 = vst.msk [vmem:[%s112 + $0x139] sm:$0xff] %vm97, %v59
  %205 = vst.msk [vmem:[%s112 + $0x141] sm:$0xff] %vm97, %v60
  %206 = vst.msk [vmem:[%s112 + $0x151] sm:$0xff] %vm97, %v61
  %207 = vst.msk [vmem:[%s112 + $0x159] sm:$0xff] %vm97, %v62
  %208 = vst.msk [vmem:[%s112 + $0x169] sm:$0xff] %vm97, %v63
  %209 = vst.msk [vmem:[%s112 + $0x171] sm:$0xff] %vm97, %v64
  %210 = vst.msk [vmem:[%s112 + $0x1b1] sm:$0xff] %vm97, %v65
  %211 = vst.msk [vmem:[%s112 + $0x1b9] sm:$0xff] %vm97, %v66
  %212 = vst.msk [vmem:[%s112 + $0x1c9] sm:$0xff] %vm97, %v67
  %213 = vst.msk [vmem:[%s112 + $0x1d1] sm:$0xff] %vm97, %v68
  %214 = vst.msk [vmem:[%s112 + $0x1e1] sm:$0xff] %vm97, %v69
  %215 = vst.msk [vmem:[%s112 + $0x1e9] sm:$0xff] %vm97, %v70
  %216 = vst.msk [vmem:[%s112 + $0x1f9] sm:$0xff] %vm97, %v71
  %217 = vst.msk [vmem:[%s112 + $0x201] sm:$0xff] %vm97, %v72
  %218 = vst.msk [vmem:[%s112 + $0x211] sm:$0xff] %vm97, %v73
  %219 = vst.msk [vmem:[%s112 + $0x219] sm:$0xff] %vm97, %v74
  %220 = vst.msk [vmem:[%s112 + $0x229] sm:$0xff] %vm97, %v75
  %221 = vst.msk [vmem:[%s112 + $0x231] sm:$0xff] %vm97, %v76
  %222 = vst.msk [vmem:[%s112 + $0x241] sm:$0xff] %vm97, %v77
  %223 = vst.msk [vmem:[%s112 + $0x249] sm:$0xff] %vm97, %v78
  %224 = vst.msk [vmem:[%s112 + $0x259] sm:$0xff] %vm97, %v79
  %225 = vst.msk [vmem:[%s112 + $0x261] sm:$0xff] %vm97, %v80
  %226 = vst.msk [vmem:[%s112 + $0x271] sm:$0xff] %vm97, %v81
  %227 = vst.msk [vmem:[%s112 + $0x279] sm:$0xff] %vm97, %v82
  %228 = vst.msk [vmem:[%s112 + $0x289] sm:$0xff] %vm97, %v83
  %229 = vst.msk [vmem:[%s112 + $0x291] sm:$0xff] %vm97, %v84
  %230 = vst.msk [vmem:[%s112 + $0x2a1] sm:$0xff] %vm97, %v85
  %231 = vst.msk [vmem:[%s112 + $0x2a9] sm:$0xff] %vm97, %v86
  %232 = vst.msk [vmem:[%s112 + $0x2b9] sm:$0xff] %vm97, %v87
  %233 = vst.msk [vmem:[%s112 + $0x2c1] sm:$0xff] %vm97, %v88
  %234 = vst.msk [vmem:[%s112 + $0x2d1] sm:$0xff] %vm97, %v89
  %235 = vst.msk [vmem:[%s112 + $0x2d9] sm:$0xff] %vm97, %v90
  %236 = vst.msk [vmem:[%s112 + $0x2e9] sm:$0xff] %vm97, %v91
  %237 = vst.msk [vmem:[%s112 + $0x2f1] sm:$0xff] %vm97, %v92
  %238 = vst.msk [vmem:[%s112 + $0x301] sm:$0xff] %vm97, %v93
  %239 = vst.msk [vmem:[%s112 + $0x309] sm:$0xff] %vm97, %v94
  %240 = vst.msk [vmem:[%s112 + $0x319] sm:$0xff] %vm97, %v95
  %241 = vst.msk [vmem:[%s112 + $0x321] sm:$0xff] %vm97, %v96
  %v242 = vld [vmem:[#allocation2] sm:$0xff]
  %v243 = vld [vmem:[#allocation2 + $0x8] sm:$0xff]
  %v244 = vld [vmem:[#allocation2 + $0x10] sm:$0x3]
  %v245 = vld [vmem:[#allocation2 + $0x18] sm:$0xff]
  %v246 = vld [vmem:[#allocation2 + $0x20] sm:$0xff]
  %v247 = vld [vmem:[#allocation2 + $0x28] sm:$0x3]
  %v248 = vld [vmem:[#allocation2 + $0x30] sm:$0xff]
  %v249 = vld [vmem:[#allocation2 + $0x38] sm:$0xff]
  %v250 = vld [vmem:[#allocation2 + $0x40] sm:$0x3]
  %v251 = vld [vmem:[#allocation2 + $0x48] sm:$0xff]
  %v252 = vld [vmem:[#allocation2 + $0x50] sm:$0xff]
  %v253 = vld [vmem:[#allocation2 + $0x58] sm:$0x3]
  %v254 = vld [vmem:[#allocation2 + $0x60] sm:$0xff]
  %v255 = vld [vmem:[#allocation2 + $0x68] sm:$0xff]
  %v256 = vld [vmem:[#allocation2 + $0x70] sm:$0x3]
  %v257 = vld [vmem:[#allocation2 + $0x78] sm:$0xff]
  %v258 = vld [vmem:[#allocation2 + $0x80] sm:$0xff]
  %v259 = vld [vmem:[#allocation2 + $0x88] sm:$0x3]
  %v260 = vld [vmem:[#allocation2 + $0x90] sm:$0xff]
  %v261 = vld [vmem:[#allocation2 + $0x98] sm:$0xff]
  %v262 = vld [vmem:[#allocation2 + $0xa0] sm:$0x3]
  %v263 = vld [vmem:[#allocation2 + $0xa8] sm:$0xff]
  %v264 = vld [vmem:[#allocation2 + $0xb0] sm:$0xff]
  %v265 = vld [vmem:[#allocation2 + $0xb8] sm:$0x3]
  %v266 = vld [vmem:[#allocation2 + $0xc0] sm:$0xff]
  %v267 = vld [vmem:[#allocation2 + $0xc8] sm:$0xff]
  %v268 = vld [vmem:[#allocation2 + $0xd0] sm:$0x3]
  %v269 = vld [vmem:[#allocation2 + $0xd8] sm:$0xff]
  %v270 = vld [vmem:[#allocation2 + $0xe0] sm:$0xff]
  %v271 = vld [vmem:[#allocation2 + $0xe8] sm:$0x3]
  %v272 = vld [vmem:[#allocation2 + $0xf0] sm:$0xff]
  %v273 = vld [vmem:[#allocation2 + $0xf8] sm:$0xff]
  %v274 = vld [vmem:[#allocation2 + $0x100] sm:$0x3]
  %v275 = vld [vmem:[#allocation2 + $0x108] sm:$0xff]
  %v276 = vld [vmem:[#allocation2 + $0x110] sm:$0xff]
  %v277 = vld [vmem:[#allocation2 + $0x118] sm:$0x3]
  %v278 = vld [vmem:[#allocation2 + $0x120] sm:$0xff]
  %v279 = vld [vmem:[#allocation2 + $0x128] sm:$0xff]
  %v280 = vld [vmem:[#allocation2 + $0x130] sm:$0x3]
  %v281 = vld [vmem:[#allocation2 + $0x138] sm:$0xff]
  %v282 = vld [vmem:[#allocation2 + $0x140] sm:$0xff]
  %v283 = vld [vmem:[#allocation2 + $0x148] sm:$0x3]
  %v284 = vld [vmem:[#allocation2 + $0x150] sm:$0xff]
  %v285 = vld [vmem:[#allocation2 + $0x158] sm:$0xff]
  %v286 = vld [vmem:[#allocation2 + $0x160] sm:$0x3]
  %v287 = vld [vmem:[#allocation2 + $0x168] sm:$0xff]
  %v288 = vld [vmem:[#allocation2 + $0x170] sm:$0xff]
  %v289 = vld [vmem:[#allocation2 + $0x178] sm:$0x3]
  %v290 = vld [vmem:[#allocation2 + $0x180] sm:$0xff]
  %v291 = vld [vmem:[#allocation2 + $0x188] sm:$0xff]
  %v292 = vld [vmem:[#allocation2 + $0x190] sm:$0x3]
  %v293 = vld [vmem:[#allocation2 + $0x198] sm:$0xff]
  %v294 = vld [vmem:[#allocation2 + $0x1a0] sm:$0xff]
  %v295 = vld [vmem:[#allocation2 + $0x1a8] sm:$0x3]
  %v296 = vld [vmem:[#allocation2 + $0x1b0] sm:$0xff]
  %v297 = vld [vmem:[#allocation2 + $0x1b8] sm:$0xff]
  %v298 = vld [vmem:[#allocation2 + $0x1c0] sm:$0x3]
  %v299 = vld [vmem:[#allocation2 + $0x1c8] sm:$0xff]
  %v300 = vld [vmem:[#allocation2 + $0x1d0] sm:$0xff]
  %v301 = vld [vmem:[#allocation2 + $0x1d8] sm:$0x3]
  %v302 = vld [vmem:[#allocation2 + $0x1e0] sm:$0xff]
  %v303 = vld [vmem:[#allocation2 + $0x1e8] sm:$0xff]
  %v304 = vld [vmem:[#allocation2 + $0x1f0] sm:$0x3]
  %v305 = vld [vmem:[#allocation2 + $0x1f8] sm:$0xff]
  %v306 = vld [vmem:[#allocation2 + $0x200] sm:$0xff]
  %v307 = vld [vmem:[#allocation2 + $0x208] sm:$0x3]
  %v308 = vld [vmem:[#allocation2 + $0x210] sm:$0xff]
  %v309 = vld [vmem:[#allocation2 + $0x218] sm:$0xff]
  %v310 = vld [vmem:[#allocation2 + $0x220] sm:$0x3]
  %v311 = vld [vmem:[#allocation2 + $0x228] sm:$0xff]
  %v312 = vld [vmem:[#allocation2 + $0x230] sm:$0xff]
  %v313 = vld [vmem:[#allocation2 + $0x238] sm:$0x3]
  %v314 = vld [vmem:[#allocation2 + $0x240] sm:$0xff]
  %v315 = vld [vmem:[#allocation2 + $0x248] sm:$0xff]
  %v316 = vld [vmem:[#allocation2 + $0x250] sm:$0x3]
  %v317 = vld [vmem:[#allocation2 + $0x258] sm:$0xff]
  %v318 = vld [vmem:[#allocation2 + $0x260] sm:$0xff]
  %v319 = vld [vmem:[#allocation2 + $0x268] sm:$0x3]
  %v320 = vld [vmem:[#allocation2 + $0x270] sm:$0xff]
  %v321 = vld [vmem:[#allocation2 + $0x278] sm:$0xff]
  %v322 = vld [vmem:[#allocation2 + $0x280] sm:$0x3]
  %v323 = vld [vmem:[#allocation2 + $0x288] sm:$0xff]
  %v324 = vld [vmem:[#allocation2 + $0x290] sm:$0xff]
  %v325 = vld [vmem:[#allocation2 + $0x298] sm:$0x3]
  %v326 = vld [vmem:[#allocation2 + $0x2a0] sm:$0xff]
  %v327 = vld [vmem:[#allocation2 + $0x2a8] sm:$0xff]
  %v328 = vld [vmem:[#allocation2 + $0x2b0] sm:$0x3]
  %v329 = vld [vmem:[#allocation2 + $0x2b8] sm:$0xff]
  %v330 = vld [vmem:[#allocation2 + $0x2c0] sm:$0xff]
  %v331 = vld [vmem:[#allocation2 + $0x2c8] sm:$0x3]
  %v332 = vld [vmem:[#allocation2 + $0x2d0] sm:$0xff]
  %v333 = vld [vmem:[#allocation2 + $0x2d8] sm:$0xff]
  %v334 = vld [vmem:[#allocation2 + $0x2e0] sm:$0x3]
  %v335 = vld [vmem:[#allocation2 + $0x2e8] sm:$0xff]
  %v336 = vld [vmem:[#allocation2 + $0x2f0] sm:$0xff]
  %v337 = vld [vmem:[#allocation2 + $0x2f8] sm:$0x3]
  %v338 = vld [vmem:[#allocation2 + $0x300] sm:$0xff]
  %v339 = vld [vmem:[#allocation2 + $0x308] sm:$0xff]
  %v340 = vld [vmem:[#allocation2 + $0x310] sm:$0x3]
  %v341 = vld [vmem:[#allocation2 + $0x318] sm:$0xff]
  %v342 = vld [vmem:[#allocation2 + $0x320] sm:$0xff]
  %v343 = vld [vmem:[#allocation2 + $0x328] sm:$0x3]
  %v344 = vld [vmem:[#allocation2 + $0x330] sm:$0xff]
  %v345 = vld [vmem:[#allocation2 + $0x338] sm:$0xff]
  %v346 = vld [vmem:[#allocation2 + $0x340] sm:$0x3]
  %v347 = vld [vmem:[#allocation2 + $0x348] sm:$0xff]
  %v348 = vld [vmem:[#allocation2 + $0x350] sm:$0xff]
  %v349 = vld [vmem:[#allocation2 + $0x358] sm:$0x3]
  %350 = vst.msk [vmem:[#allocation4] sm:$0xff] %vm97, %v242
  %351 = vst.msk [vmem:[#allocation4 + $0x8] sm:$0xff] %vm97, %v243
  %352 = vst.msk [vmem:[#allocation4 + $0x10] sm:$0xff] %vm97, %v245
  %353 = vst.msk [vmem:[#allocation4 + $0x18] sm:$0xff] %vm97, %v246
  %354 = vst.msk [vmem:[#allocation4 + $0x20] sm:$0xff] %vm97, %v248
  %355 = vst.msk [vmem:[#allocation4 + $0x28] sm:$0xff] %vm97, %v249
  %356 = vst.msk [vmem:[#allocation4 + $0x30] sm:$0xff] %vm97, %v251
  %357 = vst.msk [vmem:[#allocation4 + $0x38] sm:$0xff] %vm97, %v252
  %358 = vst.msk [vmem:[#allocation4 + $0x40] sm:$0xff] %vm97, %v254
  %359 = vst.msk [vmem:[#allocation4 + $0x48] sm:$0xff] %vm97, %v255
  %360 = vst.msk [vmem:[#allocation4 + $0x50] sm:$0xff] %vm97, %v257
  %361 = vst.msk [vmem:[#allocation4 + $0x58] sm:$0xff] %vm97, %v258
  %362 = vst.msk [vmem:[#allocation4 + $0x60] sm:$0xff] %vm97, %v260
  %363 = vst.msk [vmem:[#allocation4 + $0x68] sm:$0xff] %vm97, %v261
  %364 = vst.msk [vmem:[#allocation4 + $0x70] sm:$0xff] %vm97, %v263
  %365 = vst.msk [vmem:[#allocation4 + $0x78] sm:$0xff] %vm97, %v264
  %366 = vst.msk [vmem:[#allocation4 + $0x80] sm:$0xff] %vm97, %v266
  %367 = vst.msk [vmem:[#allocation4 + $0x88] sm:$0xff] %vm97, %v267
  %368 = vst.msk [vmem:[#allocation4 + $0x90] sm:$0xff] %vm97, %v269
  %369 = vst.msk [vmem:[#allocation4 + $0x98] sm:$0xff] %vm97, %v270
  %370 = vst.msk [vmem:[#allocation4 + $0xa0] sm:$0xff] %vm97, %v272
  %371 = vst.msk [vmem:[#allocation4 + $0xa8] sm:$0xff] %vm97, %v273
  %372 = vst.msk [vmem:[#allocation4 + $0xb0] sm:$0xff] %vm97, %v275
  %373 = vst.msk [vmem:[#allocation4 + $0xb8] sm:$0xff] %vm97, %v276
  %374 = vst.msk [vmem:[#allocation4 + $0xc0] sm:$0xff] %vm97, %v278
  %375 = vst.msk [vmem:[#allocation4 + $0xc8] sm:$0xff] %vm97, %v279
  %376 = vst.msk [vmem:[#allocation4 + $0xd0] sm:$0xff] %vm97, %v281
  %377 = vst.msk [vmem:[#allocation4 + $0xd8] sm:$0xff] %vm97, %v282
  %378 = vst.msk [vmem:[#allocation4 + $0xe0] sm:$0xff] %vm97, %v284
  %379 = vst.msk [vmem:[#allocation4 + $0xe8] sm:$0xff] %vm97, %v285
  %380 = vst.msk [vmem:[#allocation4 + $0xf0] sm:$0xff] %vm97, %v287
  %381 = vst.msk [vmem:[#allocation4 + $0xf8] sm:$0xff] %vm97, %v288
  %382 = vst.msk [vmem:[#allocation4 + $0x100] sm:$0xff] %vm97, %v296
  %383 = vst.msk [vmem:[#allocation4 + $0x108] sm:$0xff] %vm97, %v297
  %384 = vst.msk [vmem:[#allocation4 + $0x110] sm:$0xff] %vm97, %v299
  %385 = vst.msk [vmem:[#allocation4 + $0x118] sm:$0xff] %vm97, %v300
  %386 = vst.msk [vmem:[#allocation4 + $0x120] sm:$0xff] %vm97, %v302
  %387 = vst.msk [vmem:[#allocation4 + $0x128] sm:$0xff] %vm97, %v303
  %388 = vst.msk [vmem:[#allocation4 + $0x130] sm:$0xff] %vm97, %v305
  %389 = vst.msk [vmem:[#allocation4 + $0x138] sm:$0xff] %vm97, %v306
  %390 = vst.msk [vmem:[#allocation4 + $0x140] sm:$0xff] %vm97, %v308
  %391 = vst.msk [vmem:[#allocation4 + $0x148] sm:$0xff] %vm97, %v309
  %392 = vst.msk [vmem:[#allocation4 + $0x150] sm:$0xff] %vm97, %v311
  %393 = vst.msk [vmem:[#allocation4 + $0x158] sm:$0xff] %vm97, %v312
  %394 = vst.msk [vmem:[#allocation4 + $0x160] sm:$0xff] %vm97, %v314
  %395 = vst.msk [vmem:[#allocation4 + $0x168] sm:$0xff] %vm97, %v315
  %396 = vst.msk [vmem:[#allocation4 + $0x170] sm:$0xff] %vm97, %v317
  %397 = vst.msk [vmem:[#allocation4 + $0x178] sm:$0xff] %vm97, %v318
  %398 = vst.msk [vmem:[#allocation4 + $0x180] sm:$0xff] %vm97, %v320
  %399 = vst.msk [vmem:[#allocation4 + $0x188] sm:$0xff] %vm97, %v321
  %400 = vst.msk [vmem:[#allocation4 + $0x190] sm:$0xff] %vm97, %v323
  %401 = vst.msk [vmem:[#allocation4 + $0x198] sm:$0xff] %vm97, %v324
  %402 = vst.msk [vmem:[#allocation4 + $0x1a0] sm:$0xff] %vm97, %v326
  %403 = vst.msk [vmem:[#allocation4 + $0x1a8] sm:$0xff] %vm97, %v327
  %404 = vst.msk [vmem:[#allocation4 + $0x1b0] sm:$0xff] %vm97, %v329
  %405 = vst.msk [vmem:[#allocation4 + $0x1b8] sm:$0xff] %vm97, %v330
  %406 = vst.msk [vmem:[#allocation4 + $0x1c0] sm:$0xff] %vm97, %v332
  %407 = vst.msk [vmem:[#allocation4 + $0x1c8] sm:$0xff] %vm97, %v333
  %408 = vst.msk [vmem:[#allocation4 + $0x1d0] sm:$0xff] %vm97, %v335
  %409 = vst.msk [vmem:[#allocation4 + $0x1d8] sm:$0xff] %vm97, %v336
  %410 = vst.msk [vmem:[#allocation4 + $0x1e0] sm:$0xff] %vm97, %v338
  %411 = vst.msk [vmem:[#allocation4 + $0x1e8] sm:$0xff] %vm97, %v339
  %412 = vst.msk [vmem:[#allocation4 + $0x1f0] sm:$0xff] %vm97, %v341
  %413 = vst.msk [vmem:[#allocation4 + $0x1f8] sm:$0xff] %vm97, %v342
  %vm510 = vcmask 1046528
  %v511 = vrot.slane %v242, 1
  %v512 = vrot.slane %v243, 1
  %v513 = vsel %vm510, %v511, %v512
  %v514 = vrot.slane %v244, 1
  %v515 = vsel %vm510, %v512, %v514
  %v516 = vrot.slane %v245, 1
  %v517 = vrot.slane %v246, 1
  %v518 = vsel %vm510, %v516, %v517
  %v519 = vrot.slane %v247, 1
  %v520 = vsel %vm510, %v517, %v519
  %v521 = vrot.slane %v248, 1
  %v522 = vrot.slane %v249, 1
  %v523 = vsel %vm510, %v521, %v522
  %v524 = vrot.slane %v250, 1
  %v525 = vsel %vm510, %v522, %v524
  %v526 = vrot.slane %v251, 1
  %v527 = vrot.slane %v252, 1
  %v528 = vsel %vm510, %v526, %v527
  %v529 = vrot.slane %v253, 1
  %v530 = vsel %vm510, %v527, %v529
  %v531 = vrot.slane %v254, 1
  %v532 = vrot.slane %v255, 1
  %v533 = vsel %vm510, %v531, %v532
  %v534 = vrot.slane %v256, 1
  %v535 = vsel %vm510, %v532, %v534
  %v536 = vrot.slane %v257, 1
  %v537 = vrot.slane %v258, 1
  %v538 = vsel %vm510, %v536, %v537
  %v539 = vrot.slane %v259, 1
  %v540 = vsel %vm510, %v537, %v539
  %v541 = vrot.slane %v260, 1
  %v542 = vrot.slane %v261, 1
  %v543 = vsel %vm510, %v541, %v542
  %v544 = vrot.slane %v262, 1
  %v545 = vsel %vm510, %v542, %v544
  %v546 = vrot.slane %v263, 1
  %v547 = vrot.slane %v264, 1
  %v548 = vsel %vm510, %v546, %v547
  %v549 = vrot.slane %v265, 1
  %v550 = vsel %vm510, %v547, %v549
  %v551 = vrot.slane %v266, 1
  %v552 = vrot.slane %v267, 1
  %v553 = vsel %vm510, %v551, %v552
  %v554 = vrot.slane %v268, 1
  %v555 = vsel %vm510, %v552, %v554
  %v556 = vrot.slane %v269, 1
  %v557 = vrot.slane %v270, 1
  %v558 = vsel %vm510, %v556, %v557
  %v559 = vrot.slane %v271, 1
  %v560 = vsel %vm510, %v557, %v559
  %v561 = vrot.slane %v272, 1
  %v562 = vrot.slane %v273, 1
  %v563 = vsel %vm510, %v561, %v562
  %v564 = vrot.slane %v274, 1
  %v565 = vsel %vm510, %v562, %v564
  %v566 = vrot.slane %v275, 1
  %v567 = vrot.slane %v276, 1
  %v568 = vsel %vm510, %v566, %v567
  %v569 = vrot.slane %v277, 1
  %v570 = vsel %vm510, %v567, %v569
  %v571 = vrot.slane %v278, 1
  %v572 = vrot.slane %v279, 1
  %v573 = vsel %vm510, %v571, %v572
  %v574 = vrot.slane %v280, 1
  %v575 = vsel %vm510, %v572, %v574
  %v576 = vrot.slane %v281, 1
  %v577 = vrot.slane %v282, 1
  %v578 = vsel %vm510, %v576, %v577
  %v579 = vrot.slane %v283, 1
  %v580 = vsel %vm510, %v577, %v579
  %v581 = vrot.slane %v284, 1
  %v582 = vrot.slane %v285, 1
  %v583 = vsel %vm510, %v581, %v582
  %v584 = vrot.slane %v286, 1
  %v585 = vsel %vm510, %v582, %v584
  %v586 = vrot.slane %v287, 1
  %v587 = vrot.slane %v288, 1
  %v588 = vsel %vm510, %v586, %v587
  %v589 = vrot.slane %v289, 1
  %v590 = vsel %vm510, %v587, %v589
  %v591 = vrot.slane %v296, 1
  %v592 = vrot.slane %v297, 1
  %v593 = vsel %vm510, %v591, %v592
  %v594 = vrot.slane %v298, 1
  %v595 = vsel %vm510, %v592, %v594
  %v596 = vrot.slane %v299, 1
  %v597 = vrot.slane %v300, 1
  %v598 = vsel %vm510, %v596, %v597
  %v599 = vrot.slane %v301, 1
  %v600 = vsel %vm510, %v597, %v599
  %v601 = vrot.slane %v302, 1
  %v602 = vrot.slane %v303, 1
  %v603 = vsel %vm510, %v601, %v602
  %v604 = vrot.slane %v304, 1
  %v605 = vsel %vm510, %v602, %v604
  %v606 = vrot.slane %v305, 1
  %v607 = vrot.slane %v306, 1
  %v608 = vsel %vm510, %v606, %v607
  %v609 = vrot.slane %v307, 1
  %v610 = vsel %vm510, %v607, %v609
  %v611 = vrot.slane %v308, 1
  %v612 = vrot.slane %v309, 1
  %v613 = vsel %vm510, %v611, %v612
  %v614 = vrot.slane %v310, 1
  %v615 = vsel %vm510, %v612, %v614
  %v616 = vrot.slane %v311, 1
  %v617 = vrot.slane %v312, 1
  %v618 = vsel %vm510, %v616, %v617
  %v619 = vrot.slane %v313, 1
  %v620 = vsel %vm510, %v617, %v619
  %v621 = vrot.slane %v314, 1
  %v622 = vrot.slane %v315, 1
  %v623 = vsel %vm510, %v621, %v622
  %v624 = vrot.slane %v316, 1
  %v625 = vsel %vm510, %v622, %v624
  %v626 = vrot.slane %v317, 1
  %v627 = vrot.slane %v318, 1
  %v628 = vsel %vm510, %v626, %v627
  %v629 = vrot.slane %v319, 1
  %v630 = vsel %vm510, %v627, %v629
  %v631 = vrot.slane %v320, 1
  %v632 = vrot.slane %v321, 1
  %v633 = vsel %vm510, %v631, %v632
  %v634 = vrot.slane %v322, 1
  %v635 = vsel %vm510, %v632, %v634
  %v636 = vrot.slane %v323, 1
  %v637 = vrot.slane %v324, 1
  %v638 = vsel %vm510, %v636, %v637
  %v639 = vrot.slane %v325, 1
  %v640 = vsel %vm510, %v637, %v639
  %v641 = vrot.slane %v326, 1
  %v642 = vrot.slane %v327, 1
  %v643 = vsel %vm510, %v641, %v642
  %v644 = vrot.slane %v328, 1
  %v645 = vsel %vm510, %v642, %v644
  %v646 = vrot.slane %v329, 1
  %v647 = vrot.slane %v330, 1
  %v648 = vsel %vm510, %v646, %v647
  %v649 = vrot.slane %v331, 1
  %v650 = vsel %vm510, %v647, %v649
  %v651 = vrot.slane %v332, 1
  %v652 = vrot.slane %v333, 1
  %v653 = vsel %vm510, %v651, %v652
  %v654 = vrot.slane %v334, 1
  %v655 = vsel %vm510, %v652, %v654
  %v656 = vrot.slane %v335, 1
  %v657 = vrot.slane %v336, 1
  %v658 = vsel %vm510, %v656, %v657
  %v659 = vrot.slane %v337, 1
  %v660 = vsel %vm510, %v657, %v659
  %v661 = vrot.slane %v338, 1
  %v662 = vrot.slane %v339, 1
  %v663 = vsel %vm510, %v661, %v662
  %v664 = vrot.slane %v340, 1
  %v665 = vsel %vm510, %v662, %v664
  %v666 = vrot.slane %v341, 1
  %v667 = vrot.slane %v342, 1
  %v668 = vsel %vm510, %v666, %v667
  %v669 = vrot.slane %v343, 1
  %v670 = vsel %vm510, %v667, %v669
  %671 = vrot.lane.b32.xlu0 %v513, 4
  %v672 = vpop.permute.xlu0 %671
  %673 = vrot.lane.b32.xlu0 %v515, 4
  %v674 = vpop.permute.xlu0 %673
  %675 = vrot.lane.b32.xlu0 %v518, 4
  %v676 = vpop.permute.xlu0 %675
  %677 = vrot.lane.b32.xlu0 %v520, 4
  %v678 = vpop.permute.xlu0 %677
  %679 = vrot.lane.b32.xlu0 %v523, 4
  %v680 = vpop.permute.xlu0 %679
  %681 = vrot.lane.b32.xlu0 %v525, 4
  %v682 = vpop.permute.xlu0 %681
  %683 = vrot.lane.b32.xlu0 %v528, 4
  %v684 = vpop.permute.xlu0 %683
  %685 = vrot.lane.b32.xlu0 %v530, 4
  %v686 = vpop.permute.xlu0 %685
  %687 = vrot.lane.b32.xlu0 %v533, 4
  %v688 = vpop.permute.xlu0 %687
  %689 = vrot.lane.b32.xlu0 %v535, 4
  %v690 = vpop.permute.xlu0 %689
  %691 = vrot.lane.b32.xlu0 %v538, 4
  %v692 = vpop.permute.xlu0 %691
  %693 = vrot.lane.b32.xlu0 %v540, 4
  %v694 = vpop.permute.xlu0 %693
  %695 = vrot.lane.b32.xlu0 %v543, 4
  %v696 = vpop.permute.xlu0 %695
  %697 = vrot.lane.b32.xlu0 %v545, 4
  %v698 = vpop.permute.xlu0 %697
  %699 = vrot.lane.b32.xlu0 %v548, 4
  %v700 = vpop.permute.xlu0 %699
  %701 = vrot.lane.b32.xlu0 %v550, 4
  %v702 = vpop.permute.xlu0 %701
  %703 = vrot.lane.b32.xlu0 %v553, 4
  %v704 = vpop.permute.xlu0 %703
  %705 = vrot.lane.b32.xlu0 %v555, 4
  %v706 = vpop.permute.xlu0 %705
  %707 = vrot.lane.b32.xlu0 %v558, 4
  %v708 = vpop.permute.xlu0 %707
  %709 = vrot.lane.b32.xlu0 %v560, 4
  %v710 = vpop.permute.xlu0 %709
  %711 = vrot.lane.b32.xlu0 %v563, 4
  %v712 = vpop.permute.xlu0 %711
  %713 = vrot.lane.b32.xlu0 %v565, 4
  %v714 = vpop.permute.xlu0 %713
  %715 = vrot.lane.b32.xlu0 %v568, 4
  %v716 = vpop.permute.xlu0 %715
  %717 = vrot.lane.b32.xlu0 %v570, 4
  %v718 = vpop.permute.xlu0 %717
  %719 = vrot.lane.b32.xlu0 %v573, 4
  %v720 = vpop.permute.xlu0 %719
  %721 = vrot.lane.b32.xlu0 %v575, 4
  %v722 = vpop.permute.xlu0 %721
  %723 = vrot.lane.b32.xlu0 %v578, 4
  %v724 = vpop.permute.xlu0 %723
  %725 = vrot.lane.b32.xlu0 %v580, 4
  %v726 = vpop.permute.xlu0 %725
  %727 = vrot.lane.b32.xlu0 %v583, 4
  %v728 = vpop.permute.xlu0 %727
  %729 = vrot.lane.b32.xlu0 %v585, 4
  %v730 = vpop.permute.xlu0 %729
  %731 = vrot.lane.b32.xlu0 %v588, 4
  %v732 = vpop.permute.xlu0 %731
  %733 = vrot.lane.b32.xlu0 %v590, 4
  %v734 = vpop.permute.xlu0 %733
  %735 = vrot.lane.b32.xlu0 %v593, 4
  %v736 = vpop.permute.xlu0 %735
  %737 = vrot.lane.b32.xlu0 %v595, 4
  %v738 = vpop.permute.xlu0 %737
  %739 = vrot.lane.b32.xlu0 %v598, 4
  %v740 = vpop.permute.xlu0 %739
  %741 = vrot.lane.b32.xlu0 %v600, 4
  %v742 = vpop.permute.xlu0 %741
  %743 = vrot.lane.b32.xlu0 %v603, 4
  %v744 = vpop.permute.xlu0 %743
  %745 = vrot.lane.b32.xlu0 %v605, 4
  %v746 = vpop.permute.xlu0 %745
  %747 = vrot.lane.b32.xlu0 %v608, 4
  %v748 = vpop.permute.xlu0 %747
  %749 = vrot.lane.b32.xlu0 %v610, 4
  %v750 = vpop.permute.xlu0 %749
  %751 = vrot.lane.b32.xlu0 %v613, 4
  %v752 = vpop.permute.xlu0 %751
  %753 = vrot.lane.b32.xlu0 %v615, 4
  %v754 = vpop.permute.xlu0 %753
  %755 = vrot.lane.b32.xlu0 %v618, 4
  %v756 = vpop.permute.xlu0 %755
  %757 = vrot.lane.b32.xlu0 %v620, 4
  %v758 = vpop.permute.xlu0 %757
  %759 = vrot.lane.b32.xlu0 %v623, 4
  %v760 = vpop.permute.xlu0 %759
  %761 = vrot.lane.b32.xlu0 %v625, 4
  %v762 = vpop.permute.xlu0 %761
  %763 = vrot.lane.b32.xlu0 %v628, 4
  %v764 = vpop.permute.xlu0 %763
  %765 = vrot.lane.b32.xlu0 %v630, 4
  %v766 = vpop.permute.xlu0 %765
  %767 = vrot.lane.b32.xlu0 %v633, 4
  %v768 = vpop.permute.xlu0 %767
  %769 = vrot.lane.b32.xlu0 %v635, 4
  %v770 = vpop.permute.xlu0 %769
  %771 = vrot.lane.b32.xlu0 %v638, 4
  %v772 = vpop.permute.xlu0 %771
  %773 = vrot.lane.b32.xlu0 %v640, 4
  %v774 = vpop.permute.xlu0 %773
  %775 = vrot.lane.b32.xlu0 %v643, 4
  %v776 = vpop.permute.xlu0 %775
  %777 = vrot.lane.b32.xlu0 %v645, 4
  %v778 = vpop.permute.xlu0 %777
  %779 = vrot.lane.b32.xlu0 %v648, 4
  %v780 = vpop.permute.xlu0 %779
  %781 = vrot.lane.b32.xlu0 %v650, 4
  %v782 = vpop.permute.xlu0 %781
  %783 = vrot.lane.b32.xlu0 %v653, 4
  %v784 = vpop.permute.xlu0 %783
  %785 = vrot.lane.b32.xlu0 %v655, 4
  %v786 = vpop.permute.xlu0 %785
  %787 = vrot.lane.b32.xlu0 %v658, 4
  %v788 = vpop.permute.xlu0 %787
  %789 = vrot.lane.b32.xlu0 %v660, 4
  %v790 = vpop.permute.xlu0 %789
  %791 = vrot.lane.b32.xlu0 %v663, 4
  %v792 = vpop.permute.xlu0 %791
  %793 = vrot.lane.b32.xlu0 %v665, 4
  %v794 = vpop.permute.xlu0 %793
  %795 = vrot.lane.b32.xlu0 %v668, 4
  %v796 = vpop.permute.xlu0 %795
  %797 = vrot.lane.b32.xlu0 %v670, 4
  %v798 = vpop.permute.xlu0 %797
  %vm863 = vcmask 64544
  %864 = vst.msk [vmem:[#allocation4] sm:$0xff] %vm863, %v672
  %865 = vst.msk [vmem:[#allocation4 + $0x8] sm:$0xff] %vm863, %v674
  %866 = vst.msk [vmem:[#allocation4 + $0x10] sm:$0xff] %vm863, %v676
  %867 = vst.msk [vmem:[#allocation4 + $0x18] sm:$0xff] %vm863, %v678
  %868 = vst.msk [vmem:[#allocation4 + $0x20] sm:$0xff] %vm863, %v680
  %869 = vst.msk [vmem:[#allocation4 + $0x28] sm:$0xff] %vm863, %v682
  %870 = vst.msk [vmem:[#allocation4 + $0x30] sm:$0xff] %vm863, %v684
  %871 = vst.msk [vmem:[#allocation4 + $0x38] sm:$0xff] %vm863, %v686
  %872 = vst.msk [vmem:[#allocation4 + $0x40] sm:$0xff] %vm863, %v688
  %873 = vst.msk [vmem:[#allocation4 + $0x48] sm:$0xff] %vm863, %v690
  %874 = vst.msk [vmem:[#allocation4 + $0x50] sm:$0xff] %vm863, %v692
  %875 = vst.msk [vmem:[#allocation4 + $0x58] sm:$0xff] %vm863, %v694
  %876 = vst.msk [vmem:[#allocation4 + $0x60] sm:$0xff] %vm863, %v696
  %877 = vst.msk [vmem:[#allocation4 + $0x68] sm:$0xff] %vm863, %v698
  %878 = vst.msk [vmem:[#allocation4 + $0x70] sm:$0xff] %vm863, %v700
  %879 = vst.msk [vmem:[#allocation4 + $0x78] sm:$0xff] %vm863, %v702
  %880 = vst.msk [vmem:[#allocation4 + $0x80] sm:$0xff] %vm863, %v704
  %881 = vst.msk [vmem:[#allocation4 + $0x88] sm:$0xff] %vm863, %v706
  %882 = vst.msk [vmem:[#allocation4 + $0x90] sm:$0xff] %vm863, %v708
  %883 = vst.msk [vmem:[#allocation4 + $0x98] sm:$0xff] %vm863, %v710
  %884 = vst.msk [vmem:[#allocation4 + $0xa0] sm:$0xff] %vm863, %v712
  %885 = vst.msk [vmem:[#allocation4 + $0xa8] sm:$0xff] %vm863, %v714
  %886 = vst.msk [vmem:[#allocation4 + $0xb0] sm:$0xff] %vm863, %v716
  %887 = vst.msk [vmem:[#allocation4 + $0xb8] sm:$0xff] %vm863, %v718
  %888 = vst.msk [vmem:[#allocation4 + $0xc0] sm:$0xff] %vm863, %v720
  %889 = vst.msk [vmem:[#allocation4 + $0xc8] sm:$0xff] %vm863, %v722
  %890 = vst.msk [vmem:[#allocation4 + $0xd0] sm:$0xff] %vm863, %v724
  %891 = vst.msk [vmem:[#allocation4 + $0xd8] sm:$0xff] %vm863, %v726
  %892 = vst.msk [vmem:[#allocation4 + $0xe0] sm:$0xff] %vm863, %v728
  %893 = vst.msk [vmem:[#allocation4 + $0xe8] sm:$0xff] %vm863, %v730
  %894 = vst.msk [vmem:[#allocation4 + $0xf0] sm:$0xff] %vm863, %v732
  %895 = vst.msk [vmem:[#allocation4 + $0xf8] sm:$0xff] %vm863, %v734
  %896 = vst.msk [vmem:[#allocation4 + $0x100] sm:$0xff] %vm863, %v736
  %897 = vst.msk [vmem:[#allocation4 + $0x108] sm:$0xff] %vm863, %v738
  %898 = vst.msk [vmem:[#allocation4 + $0x110] sm:$0xff] %vm863, %v740
  %899 = vst.msk [vmem:[#allocation4 + $0x118] sm:$0xff] %vm863, %v742
  %900 = vst.msk [vmem:[#allocation4 + $0x120] sm:$0xff] %vm863, %v744
  %901 = vst.msk [vmem:[#allocation4 + $0x128] sm:$0xff] %vm863, %v746
  %902 = vst.msk [vmem:[#allocation4 + $0x130] sm:$0xff] %vm863, %v748
  %903 = vst.msk [vmem:[#allocation4 + $0x138] sm:$0xff] %vm863, %v750
  %904 = vst.msk [vmem:[#allocation4 + $0x140] sm:$0xff] %vm863, %v752
  %905 = vst.msk [vmem:[#allocation4 + $0x148] sm:$0xff] %vm863, %v754
  %906 = vst.msk [vmem:[#allocation4 + $0x150] sm:$0xff] %vm863, %v756
  %907 = vst.msk [vmem:[#allocation4 + $0x158] sm:$0xff] %vm863, %v758
  %908 = vst.msk [vmem:[#allocation4 + $0x160] sm:$0xff] %vm863, %v760
  %909 = vst.msk [vmem:[#allocation4 + $0x168] sm:$0xff] %vm863, %v762
  %910 = vst.msk [vmem:[#allocation4 + $0x170] sm:$0xff] %vm863, %v764
  %911 = vst.msk [vmem:[#allocation4 + $0x178] sm:$0xff] %vm863, %v766
  %912 = vst.msk [vmem:[#allocation4 + $0x180] sm:$0xff] %vm863, %v768
  %913 = vst.msk [vmem:[#allocation4 + $0x188] sm:$0xff] %vm863, %v770
  %914 = vst.msk [vmem:[#allocation4 + $0x190] sm:$0xff] %vm863, %v772
  %915 = vst.msk [vmem:[#allocation4 + $0x198] sm:$0xff] %vm863, %v774
  %916 = vst.msk [vmem:[#allocation4 + $0x1a0] sm:$0xff] %vm863, %v776
  %917 = vst.msk [vmem:[#allocation4 + $0x1a8] sm:$0xff] %vm863, %v778
  %918 = vst.msk [vmem:[#allocation4 + $0x1b0] sm:$0xff] %vm863, %v780
  %919 = vst.msk [vmem:[#allocation4 + $0x1b8] sm:$0xff] %vm863, %v782
  %920 = vst.msk [vmem:[#allocation4 + $0x1c0] sm:$0xff] %vm863, %v784
  %921 = vst.msk [vmem:[#allocation4 + $0x1c8] sm:$0xff] %vm863, %v786
  %922 = vst.msk [vmem:[#allocation4 + $0x1d0] sm:$0xff] %vm863, %v788
  %923 = vst.msk [vmem:[#allocation4 + $0x1d8] sm:$0xff] %vm863, %v790
  %924 = vst.msk [vmem:[#allocation4 + $0x1e0] sm:$0xff] %vm863, %v792
  %925 = vst.msk [vmem:[#allocation4 + $0x1e8] sm:$0xff] %vm863, %v794
  %926 = vst.msk [vmem:[#allocation4 + $0x1f0] sm:$0xff] %vm863, %v796
  %927 = vst.msk [vmem:[#allocation4 + $0x1f8] sm:$0xff] %vm863, %v798
  %vm928 = vcmask 1045504
  %v929 = vrot.slane %v242, 2
  %v930 = vrot.slane %v243, 2
  %v931 = vsel %vm928, %v929, %v930
  %v932 = vrot.slane %v244, 2
  %v933 = vsel %vm928, %v930, %v932
  %v934 = vrot.slane %v245, 2
  %v935 = vrot.slane %v246, 2
  %v936 = vsel %vm928, %v934, %v935
  %v937 = vrot.slane %v247, 2
  %v938 = vsel %vm928, %v935, %v937
  %v939 = vrot.slane %v248, 2
  %v940 = vrot.slane %v249, 2
  %v941 = vsel %vm928, %v939, %v940
  %v942 = vrot.slane %v250, 2
  %v943 = vsel %vm928, %v940, %v942
  %v944 = vrot.slane %v251, 2
  %v945 = vrot.slane %v252, 2
  %v946 = vsel %vm928, %v944, %v945
  %v947 = vrot.slane %v253, 2
  %v948 = vsel %vm928, %v945, %v947
  %v949 = vrot.slane %v254, 2
  %v950 = vrot.slane %v255, 2
  %v951 = vsel %vm928, %v949, %v950
  %v952 = vrot.slane %v256, 2
  %v953 = vsel %vm928, %v950, %v952
  %v954 = vrot.slane %v257, 2
  %v955 = vrot.slane %v258, 2
  %v956 = vsel %vm928, %v954, %v955
  %v957 = vrot.slane %v259, 2
  %v958 = vsel %vm928, %v955, %v957
  %v959 = vrot.slane %v260, 2
  %v960 = vrot.slane %v261, 2
  %v961 = vsel %vm928, %v959, %v960
  %v962 = vrot.slane %v262, 2
  %v963 = vsel %vm928, %v960, %v962
  %v964 = vrot.slane %v263, 2
  %v965 = vrot.slane %v264, 2
  %v966 = vsel %vm928, %v964, %v965
  %v967 = vrot.slane %v265, 2
  %v968 = vsel %vm928, %v965, %v967
  %v969 = vrot.slane %v266, 2
  %v970 = vrot.slane %v267, 2
  %v971 = vsel %vm928, %v969, %v970
  %v972 = vrot.slane %v268, 2
  %v973 = vsel %vm928, %v970, %v972
  %v974 = vrot.slane %v269, 2
  %v975 = vrot.slane %v270, 2
  %v976 = vsel %vm928, %v974, %v975
  %v977 = vrot.slane %v271, 2
  %v978 = vsel %vm928, %v975, %v977
  %v979 = vrot.slane %v272, 2
  %v980 = vrot.slane %v273, 2
  %v981 = vsel %vm928, %v979, %v980
  %v982 = vrot.slane %v274, 2
  %v983 = vsel %vm928, %v980, %v982
  %v984 = vrot.slane %v275, 2
  %v985 = vrot.slane %v276, 2
  %v986 = vsel %vm928, %v984, %v985
  %v987 = vrot.slane %v277, 2
  %v988 = vsel %vm928, %v985, %v987
  %v989 = vrot.slane %v278, 2
  %v990 = vrot.slane %v279, 2
  %v991 = vsel %vm928, %v989, %v990
  %v992 = vrot.slane %v280, 2
  %v993 = vsel %vm928, %v990, %v992
  %v994 = vrot.slane %v281, 2
  %v995 = vrot.slane %v282, 2
  %v996 = vsel %vm928, %v994, %v995
  %v997 = vrot.slane %v283, 2
  %v998 = vsel %vm928, %v995, %v997
  %v999 = vrot.slane %v284, 2
  %v1000 = vrot.slane %v285, 2
  %v1001 = vsel %vm928, %v999, %v1000
  %v1002 = vrot.slane %v286, 2
  %v1003 = vsel %vm928, %v1000, %v1002
  %v1004 = vrot.slane %v287, 2
  %v1005 = vrot.slane %v288, 2
  %v1006 = vsel %vm928, %v1004, %v1005
  %v1007 = vrot.slane %v289, 2
  %v1008 = vsel %vm928, %v1005, %v1007
  %v1009 = vrot.slane %v296, 2
  %v1010 = vrot.slane %v297, 2
  %v1011 = vsel %vm928, %v1009, %v1010
  %v1012 = vrot.slane %v298, 2
  %v1013 = vsel %vm928, %v1010, %v1012
  %v1014 = vrot.slane %v299, 2
  %v1015 = vrot.slane %v300, 2
  %v1016 = vsel %vm928, %v1014, %v1015
  %v1017 = vrot.slane %v301, 2
  %v1018 = vsel %vm928, %v1015, %v1017
  %v1019 = vrot.slane %v302, 2
  %v1020 = vrot.slane %v303, 2
  %v1021 = vsel %vm928, %v1019, %v1020
  %v1022 = vrot.slane %v304, 2
  %v1023 = vsel %vm928, %v1020, %v1022
  %v1024 = vrot.slane %v305, 2
  %v1025 = vrot.slane %v306, 2
  %v1026 = vsel %vm928, %v1024, %v1025
  %v1027 = vrot.slane %v307, 2
  %v1028 = vsel %vm928, %v1025, %v1027
  %v1029 = vrot.slane %v308, 2
  %v1030 = vrot.slane %v309, 2
  %v1031 = vsel %vm928, %v1029, %v1030
  %v1032 = vrot.slane %v310, 2
  %v1033 = vsel %vm928, %v1030, %v1032
  %v1034 = vrot.slane %v311, 2
  %v1035 = vrot.slane %v312, 2
  %v1036 = vsel %vm928, %v1034, %v1035
  %v1037 = vrot.slane %v313, 2
  %v1038 = vsel %vm928, %v1035, %v1037
  %v1039 = vrot.slane %v314, 2
  %v1040 = vrot.slane %v315, 2
  %v1041 = vsel %vm928, %v1039, %v1040
  %v1042 = vrot.slane %v316, 2
  %v1043 = vsel %vm928, %v1040, %v1042
  %v1044 = vrot.slane %v317, 2
  %v1045 = vrot.slane %v318, 2
  %v1046 = vsel %vm928, %v1044, %v1045
  %v1047 = vrot.slane %v319, 2
  %v1048 = vsel %vm928, %v1045, %v1047
  %v1049 = vrot.slane %v320, 2
  %v1050 = vrot.slane %v321, 2
  %v1051 = vsel %vm928, %v1049, %v1050
  %v1052 = vrot.slane %v322, 2
  %v1053 = vsel %vm928, %v1050, %v1052
  %v1054 = vrot.slane %v323, 2
  %v1055 = vrot.slane %v324, 2
  %v1056 = vsel %vm928, %v1054, %v1055
  %v1057 = vrot.slane %v325, 2
  %v1058 = vsel %vm928, %v1055, %v1057
  %v1059 = vrot.slane %v326, 2
  %v1060 = vrot.slane %v327, 2
  %v1061 = vsel %vm928, %v1059, %v1060
  %v1062 = vrot.slane %v328, 2
  %v1063 = vsel %vm928, %v1060, %v1062
  %v1064 = vrot.slane %v329, 2
  %v1065 = vrot.slane %v330, 2
  %v1066 = vsel %vm928, %v1064, %v1065
  %v1067 = vrot.slane %v331, 2
  %v1068 = vsel %vm928, %v1065, %v1067
  %v1069 = vrot.slane %v332, 2
  %v1070 = vrot.slane %v333, 2
  %v1071 = vsel %vm928, %v1069, %v1070
  %v1072 = vrot.slane %v334, 2
  %v1073 = vsel %vm928, %v1070, %v1072
  %v1074 = vrot.slane %v335, 2
  %v1075 = vrot.slane %v336, 2
  %v1076 = vsel %vm928, %v1074, %v1075
  %v1077 = vrot.slane %v337, 2
  %v1078 = vsel %vm928, %v1075, %v1077
  %v1079 = vrot.slane %v338, 2
  %v1080 = vrot.slane %v339, 2
  %v1081 = vsel %vm928, %v1079, %v1080
  %v1082 = vrot.slane %v340, 2
  %v1083 = vsel %vm928, %v1080, %v1082
  %v1084 = vrot.slane %v341, 2
  %v1085 = vrot.slane %v342, 2
  %v1086 = vsel %vm928, %v1084, %v1085
  %v1087 = vrot.slane %v343, 2
  %v1088 = vsel %vm928, %v1085, %v1087
  %1089 = vrot.lane.b32.xlu0 %v931, 8
  %v1090 = vpop.permute.xlu0 %1089
  %1091 = vrot.lane.b32.xlu0 %v933, 8
  %v1092 = vpop.permute.xlu0 %1091
  %1093 = vrot.lane.b32.xlu0 %v936, 8
  %v1094 = vpop.permute.xlu0 %1093
  %1095 = vrot.lane.b32.xlu0 %v938, 8
  %v1096 = vpop.permute.xlu0 %1095
  %1097 = vrot.lane.b32.xlu0 %v941, 8
  %v1098 = vpop.permute.xlu0 %1097
  %1099 = vrot.lane.b32.xlu0 %v943, 8
  %v1100 = vpop.permute.xlu0 %1099
  %1101 = vrot.lane.b32.xlu0 %v946, 8
  %v1102 = vpop.permute.xlu0 %1101
  %1103 = vrot.lane.b32.xlu0 %v948, 8
  %v1104 = vpop.permute.xlu0 %1103
  %1105 = vrot.lane.b32.xlu0 %v951, 8
  %v1106 = vpop.permute.xlu0 %1105
  %1107 = vrot.lane.b32.xlu0 %v953, 8
  %v1108 = vpop.permute.xlu0 %1107
  %1109 = vrot.lane.b32.xlu0 %v956, 8
  %v1110 = vpop.permute.xlu0 %1109
  %1111 = vrot.lane.b32.xlu0 %v958, 8
  %v1112 = vpop.permute.xlu0 %1111
  %1113 = vrot.lane.b32.xlu0 %v961, 8
  %v1114 = vpop.permute.xlu0 %1113
  %1115 = vrot.lane.b32.xlu0 %v963, 8
  %v1116 = vpop.permute.xlu0 %1115
  %1117 = vrot.lane.b32.xlu0 %v966, 8
  %v1118 = vpop.permute.xlu0 %1117
  %1119 = vrot.lane.b32.xlu0 %v968, 8
  %v1120 = vpop.permute.xlu0 %1119
  %1121 = vrot.lane.b32.xlu0 %v971, 8
  %v1122 = vpop.permute.xlu0 %1121
  %1123 = vrot.lane.b32.xlu0 %v973, 8
  %v1124 = vpop.permute.xlu0 %1123
  %1125 = vrot.lane.b32.xlu0 %v976, 8
  %v1126 = vpop.permute.xlu0 %1125
  %1127 = vrot.lane.b32.xlu0 %v978, 8
  %v1128 = vpop.permute.xlu0 %1127
  %1129 = vrot.lane.b32.xlu0 %v981, 8
  %v1130 = vpop.permute.xlu0 %1129
  %1131 = vrot.lane.b32.xlu0 %v983, 8
  %v1132 = vpop.permute.xlu0 %1131
  %1133 = vrot.lane.b32.xlu0 %v986, 8
  %v1134 = vpop.permute.xlu0 %1133
  %1135 = vrot.lane.b32.xlu0 %v988, 8
  %v1136 = vpop.permute.xlu0 %1135
  %1137 = vrot.lane.b32.xlu0 %v991, 8
  %v1138 = vpop.permute.xlu0 %1137
  %1139 = vrot.lane.b32.xlu0 %v993, 8
  %v1140 = vpop.permute.xlu0 %1139
  %1141 = vrot.lane.b32.xlu0 %v996, 8
  %v1142 = vpop.permute.xlu0 %1141
  %1143 = vrot.lane.b32.xlu0 %v998, 8
  %v1144 = vpop.permute.xlu0 %1143
  %1145 = vrot.lane.b32.xlu0 %v1001, 8
  %v1146 = vpop.permute.xlu0 %1145
  %1147 = vrot.lane.b32.xlu0 %v1003, 8
  %v1148 = vpop.permute.xlu0 %1147
  %1149 = vrot.lane.b32.xlu0 %v1006, 8
  %v1150 = vpop.permute.xlu0 %1149
  %1151 = vrot.lane.b32.xlu0 %v1008, 8
  %v1152 = vpop.permute.xlu0 %1151
  %1153 = vrot.lane.b32.xlu0 %v1011, 8
  %v1154 = vpop.permute.xlu0 %1153
  %1155 = vrot.lane.b32.xlu0 %v1013, 8
  %v1156 = vpop.permute.xlu0 %1155
  %1157 = vrot.lane.b32.xlu0 %v1016, 8
  %v1158 = vpop.permute.xlu0 %1157
  %1159 = vrot.lane.b32.xlu0 %v1018, 8
  %v1160 = vpop.permute.xlu0 %1159
  %1161 = vrot.lane.b32.xlu0 %v1021, 8
  %v1162 = vpop.permute.xlu0 %1161
  %1163 = vrot.lane.b32.xlu0 %v1023, 8
  %v1164 = vpop.permute.xlu0 %1163
  %1165 = vrot.lane.b32.xlu0 %v1026, 8
  %v1166 = vpop.permute.xlu0 %1165
  %1167 = vrot.lane.b32.xlu0 %v1028, 8
  %v1168 = vpop.permute.xlu0 %1167
  %1169 = vrot.lane.b32.xlu0 %v1031, 8
  %v1170 = vpop.permute.xlu0 %1169
  %1171 = vrot.lane.b32.xlu0 %v1033, 8
  %v1172 = vpop.permute.xlu0 %1171
  %1173 = vrot.lane.b32.xlu0 %v1036, 8
  %v1174 = vpop.permute.xlu0 %1173
  %1175 = vrot.lane.b32.xlu0 %v1038, 8
  %v1176 = vpop.permute.xlu0 %1175
  %1177 = vrot.lane.b32.xlu0 %v1041, 8
  %v1178 = vpop.permute.xlu0 %1177
  %1179 = vrot.lane.b32.xlu0 %v1043, 8
  %v1180 = vpop.permute.xlu0 %1179
  %1181 = vrot.lane.b32.xlu0 %v1046, 8
  %v1182 = vpop.permute.xlu0 %1181
  %1183 = vrot.lane.b32.xlu0 %v1048, 8
  %v1184 = vpop.permute.xlu0 %1183
  %1185 = vrot.lane.b32.xlu0 %v1051, 8
  %v1186 = vpop.permute.xlu0 %1185
  %1187 = vrot.lane.b32.xlu0 %v1053, 8
  %v1188 = vpop.permute.xlu0 %1187
  %1189 = vrot.lane.b32.xlu0 %v1056, 8
  %v1190 = vpop.permute.xlu0 %1189
  %1191 = vrot.lane.b32.xlu0 %v1058, 8
  %v1192 = vpop.permute.xlu0 %1191
  %1193 = vrot.lane.b32.xlu0 %v1061, 8
  %v1194 = vpop.permute.xlu0 %1193
  %1195 = vrot.lane.b32.xlu0 %v1063, 8
  %v1196 = vpop.permute.xlu0 %1195
  %1197 = vrot.lane.b32.xlu0 %v1066, 8
  %v1198 = vpop.permute.xlu0 %1197
  %1199 = vrot.lane.b32.xlu0 %v1068, 8
  %v1200 = vpop.permute.xlu0 %1199
  %1201 = vrot.lane.b32.xlu0 %v1071, 8
  %v1202 = vpop.permute.xlu0 %1201
  %1203 = vrot.lane.b32.xlu0 %v1073, 8
  %v1204 = vpop.permute.xlu0 %1203
  %1205 = vrot.lane.b32.xlu0 %v1076, 8
  %v1206 = vpop.permute.xlu0 %1205
  %1207 = vrot.lane.b32.xlu0 %v1078, 8
  %v1208 = vpop.permute.xlu0 %1207
  %1209 = vrot.lane.b32.xlu0 %v1081, 8
  %v1210 = vpop.permute.xlu0 %1209
  %1211 = vrot.lane.b32.xlu0 %v1083, 8
  %v1212 = vpop.permute.xlu0 %1211
  %1213 = vrot.lane.b32.xlu0 %v1086, 8
  %v1214 = vpop.permute.xlu0 %1213
  %1215 = vrot.lane.b32.xlu0 %v1088, 8
  %v1216 = vpop.permute.xlu0 %1215
  %vm1281 = vcmask 97344
  %1282 = vst.msk [vmem:[#allocation4] sm:$0xff] %vm1281, %v1090
  %1283 = vst.msk [vmem:[#allocation4 + $0x8] sm:$0xff] %vm1281, %v1092
  %1284 = vst.msk [vmem:[#allocation4 + $0x10] sm:$0xff] %vm1281, %v1094
  %1285 = vst.msk [vmem:[#allocation4 + $0x18] sm:$0xff] %vm1281, %v1096
  %1286 = vst.msk [vmem:[#allocation4 + $0x20] sm:$0xff] %vm1281, %v1098
  %1287 = vst.msk [vmem:[#allocation4 + $0x28] sm:$0xff] %vm1281, %v1100
  %1288 = vst.msk [vmem:[#allocation4 + $0x30] sm:$0xff] %vm1281, %v1102
  %1289 = vst.msk [vmem:[#allocation4 + $0x38] sm:$0xff] %vm1281, %v1104
  %1290 = vst.msk [vmem:[#allocation4 + $0x40] sm:$0xff] %vm1281, %v1106
  %1291 = vst.msk [vmem:[#allocation4 + $0x48] sm:$0xff] %vm1281, %v1108
  %1292 = vst.msk [vmem:[#allocation4 + $0x50] sm:$0xff] %vm1281, %v1110
  %1293 = vst.msk [vmem:[#allocation4 + $0x58] sm:$0xff] %vm1281, %v1112
  %1294 = vst.msk [vmem:[#allocation4 + $0x60] sm:$0xff] %vm1281, %v1114
  %1295 = vst.msk [vmem:[#allocation4 + $0x68] sm:$0xff] %vm1281, %v1116
  %1296 = vst.msk [vmem:[#allocation4 + $0x70] sm:$0xff] %vm1281, %v1118
  %1297 = vst.msk [vmem:[#allocation4 + $0x78] sm:$0xff] %vm1281, %v1120
  %1298 = vst.msk [vmem:[#allocation4 + $0x80] sm:$0xff] %vm1281, %v1122
  %1299 = vst.msk [vmem:[#allocation4 + $0x88] sm:$0xff] %vm1281, %v1124
  %1300 = vst.msk [vmem:[#allocation4 + $0x90] sm:$0xff] %vm1281, %v1126
  %1301 = vst.msk [vmem:[#allocation4 + $0x98] sm:$0xff] %vm1281, %v1128
  %1302 = vst.msk [vmem:[#allocation4 + $0xa0] sm:$0xff] %vm1281, %v1130
  %1303 = vst.msk [vmem:[#allocation4 + $0xa8] sm:$0xff] %vm1281, %v1132
  %1304 = vst.msk [vmem:[#allocation4 + $0xb0] sm:$0xff] %vm1281, %v1134
  %1305 = vst.msk [vmem:[#allocation4 + $0xb8] sm:$0xff] %vm1281, %v1136
  %1306 = vst.msk [vmem:[#allocation4 + $0xc0] sm:$0xff] %vm1281, %v1138
  %1307 = vst.msk [vmem:[#allocation4 + $0xc8] sm:$0xff] %vm1281, %v1140
  %1308 = vst.msk [vmem:[#allocation4 + $0xd0] sm:$0xff] %vm1281, %v1142
  %1309 = vst.msk [vmem:[#allocation4 + $0xd8] sm:$0xff] %vm1281, %v1144
  %1310 = vst.msk [vmem:[#allocation4 + $0xe0] sm:$0xff] %vm1281, %v1146
  %1311 = vst.msk [vmem:[#allocation4 + $0xe8] sm:$0xff] %vm1281, %v1148
  %1312 = vst.msk [vmem:[#allocation4 + $0xf0] sm:$0xff] %vm1281, %v1150
  %1313 = vst.msk [vmem:[#allocation4 + $0xf8] sm:$0xff] %vm1281, %v1152
  %1314 = vst.msk [vmem:[#allocation4 + $0x100] sm:$0xff] %vm1281, %v1154
  %1315 = vst.msk [vmem:[#allocation4 + $0x108] sm:$0xff] %vm1281, %v1156
  %1316 = vst.msk [vmem:[#allocation4 + $0x110] sm:$0xff] %vm1281, %v1158
  %1317 = vst.msk [vmem:[#allocation4 + $0x118] sm:$0xff] %vm1281, %v1160
  %1318 = vst.msk [vmem:[#allocation4 + $0x120] sm:$0xff] %vm1281, %v1162
  %1319 = vst.msk [vmem:[#allocation4 + $0x128] sm:$0xff] %vm1281, %v1164
  %1320 = vst.msk [vmem:[#allocation4 + $0x130] sm:$0xff] %vm1281, %v1166
  %1321 = vst.msk [vmem:[#allocation4 + $0x138] sm:$0xff] %vm1281, %v1168
  %1322 = vst.msk [vmem:[#allocation4 + $0x140] sm:$0xff] %vm1281, %v1170
  %1323 = vst.msk [vmem:[#allocation4 + $0x148] sm:$0xff] %vm1281, %v1172
  %1324 = vst.msk [vmem:[#allocation4 + $0x150] sm:$0xff] %vm1281, %v1174
  %1325 = vst.msk [vmem:[#allocation4 + $0x158] sm:$0xff] %vm1281, %v1176
  %1326 = vst.msk [vmem:[#allocation4 + $0x160] sm:$0xff] %vm1281, %v1178
  %1327 = vst.msk [vmem:[#allocation4 + $0x168] sm:$0xff] %vm1281, %v1180
  %1328 = vst.msk [vmem:[#allocation4 + $0x170] sm:$0xff] %vm1281, %v1182
  %1329 = vst.msk [vmem:[#allocation4 + $0x178] sm:$0xff] %vm1281, %v1184
  %1330 = vst.msk [vmem:[#allocation4 + $0x180] sm:$0xff] %vm1281, %v1186
  %1331 = vst.msk [vmem:[#allocation4 + $0x188] sm:$0xff] %vm1281, %v1188
  %1332 = vst.msk [vmem:[#allocation4 + $0x190] sm:$0xff] %vm1281, %v1190
  %1333 = vst.msk [vmem:[#allocation4 + $0x198] sm:$0xff] %vm1281, %v1192
  %1334 = vst.msk [vmem:[#allocation4 + $0x1a0] sm:$0xff] %vm1281, %v1194
  %1335 = vst.msk [vmem:[#allocation4 + $0x1a8] sm:$0xff] %vm1281, %v1196
  %1336 = vst.msk [vmem:[#allocation4 + $0x1b0] sm:$0xff] %vm1281, %v1198
  %1337 = vst.msk [vmem:[#allocation4 + $0x1b8] sm:$0xff] %vm1281, %v1200
  %1338 = vst.msk [vmem:[#allocation4 + $0x1c0] sm:$0xff] %vm1281, %v1202
  %1339 = vst.msk [vmem:[#allocation4 + $0x1c8] sm:$0xff] %vm1281, %v1204
  %1340 = vst.msk [vmem:[#allocation4 + $0x1d0] sm:$0xff] %vm1281, %v1206
  %1341 = vst.msk [vmem:[#allocation4 + $0x1d8] sm:$0xff] %vm1281, %v1208
  %1342 = vst.msk [vmem:[#allocation4 + $0x1e0] sm:$0xff] %vm1281, %v1210
  %1343 = vst.msk [vmem:[#allocation4 + $0x1e8] sm:$0xff] %vm1281, %v1212
  %1344 = vst.msk [vmem:[#allocation4 + $0x1f0] sm:$0xff] %vm1281, %v1214
  %1345 = vst.msk [vmem:[#allocation4 + $0x1f8] sm:$0xff] %vm1281, %v1216
  %1350 = vrot.lane.b32.xlu0 %v245, 12
  %v1351 = vpop.permute.xlu0 %1350
  %1352 = vrot.lane.b32.xlu0 %v246, 12
  %v1353 = vpop.permute.xlu0 %1352
  %1354 = vrot.lane.b32.xlu0 %v248, 12
  %v1355 = vpop.permute.xlu0 %1354
  %1356 = vrot.lane.b32.xlu0 %v249, 12
  %v1357 = vpop.permute.xlu0 %1356
  %1358 = vrot.lane.b32.xlu0 %v251, 12
  %v1359 = vpop.permute.xlu0 %1358
  %1360 = vrot.lane.b32.xlu0 %v252, 12
  %v1361 = vpop.permute.xlu0 %1360
  %1362 = vrot.lane.b32.xlu0 %v254, 12
  %v1363 = vpop.permute.xlu0 %1362
  %1364 = vrot.lane.b32.xlu0 %v255, 12
  %v1365 = vpop.permute.xlu0 %1364
  %1366 = vrot.lane.b32.xlu0 %v257, 12
  %v1367 = vpop.permute.xlu0 %1366
  %1368 = vrot.lane.b32.xlu0 %v258, 12
  %v1369 = vpop.permute.xlu0 %1368
  %1370 = vrot.lane.b32.xlu0 %v260, 12
  %v1371 = vpop.permute.xlu0 %1370
  %1372 = vrot.lane.b32.xlu0 %v261, 12
  %v1373 = vpop.permute.xlu0 %1372
  %1374 = vrot.lane.b32.xlu0 %v263, 12
  %v1375 = vpop.permute.xlu0 %1374
  %1376 = vrot.lane.b32.xlu0 %v264, 12
  %v1377 = vpop.permute.xlu0 %1376
  %1378 = vrot.lane.b32.xlu0 %v266, 12
  %v1379 = vpop.permute.xlu0 %1378
  %1380 = vrot.lane.b32.xlu0 %v267, 12
  %v1381 = vpop.permute.xlu0 %1380
  %1382 = vrot.lane.b32.xlu0 %v269, 12
  %v1383 = vpop.permute.xlu0 %1382
  %1384 = vrot.lane.b32.xlu0 %v270, 12
  %v1385 = vpop.permute.xlu0 %1384
  %1386 = vrot.lane.b32.xlu0 %v272, 12
  %v1387 = vpop.permute.xlu0 %1386
  %1388 = vrot.lane.b32.xlu0 %v273, 12
  %v1389 = vpop.permute.xlu0 %1388
  %1390 = vrot.lane.b32.xlu0 %v275, 12
  %v1391 = vpop.permute.xlu0 %1390
  %1392 = vrot.lane.b32.xlu0 %v276, 12
  %v1393 = vpop.permute.xlu0 %1392
  %1394 = vrot.lane.b32.xlu0 %v278, 12
  %v1395 = vpop.permute.xlu0 %1394
  %1396 = vrot.lane.b32.xlu0 %v279, 12
  %v1397 = vpop.permute.xlu0 %1396
  %1398 = vrot.lane.b32.xlu0 %v281, 12
  %v1399 = vpop.permute.xlu0 %1398
  %1400 = vrot.lane.b32.xlu0 %v282, 12
  %v1401 = vpop.permute.xlu0 %1400
  %1402 = vrot.lane.b32.xlu0 %v284, 12
  %v1403 = vpop.permute.xlu0 %1402
  %1404 = vrot.lane.b32.xlu0 %v285, 12
  %v1405 = vpop.permute.xlu0 %1404
  %1406 = vrot.lane.b32.xlu0 %v287, 12
  %v1407 = vpop.permute.xlu0 %1406
  %1408 = vrot.lane.b32.xlu0 %v288, 12
  %v1409 = vpop.permute.xlu0 %1408
  %1410 = vrot.lane.b32.xlu0 %v290, 12
  %v1411 = vpop.permute.xlu0 %1410
  %1412 = vrot.lane.b32.xlu0 %v291, 12
  %v1413 = vpop.permute.xlu0 %1412
  %1414 = vrot.lane.b32.xlu0 %v299, 12
  %v1415 = vpop.permute.xlu0 %1414
  %1416 = vrot.lane.b32.xlu0 %v300, 12
  %v1417 = vpop.permute.xlu0 %1416
  %1418 = vrot.lane.b32.xlu0 %v302, 12
  %v1419 = vpop.permute.xlu0 %1418
  %1420 = vrot.lane.b32.xlu0 %v303, 12
  %v1421 = vpop.permute.xlu0 %1420
  %1422 = vrot.lane.b32.xlu0 %v305, 12
  %v1423 = vpop.permute.xlu0 %1422
  %1424 = vrot.lane.b32.xlu0 %v306, 12
  %v1425 = vpop.permute.xlu0 %1424
  %1426 = vrot.lane.b32.xlu0 %v308, 12
  %v1427 = vpop.permute.xlu0 %1426
  %1428 = vrot.lane.b32.xlu0 %v309, 12
  %v1429 = vpop.permute.xlu0 %1428
  %1430 = vrot.lane.b32.xlu0 %v311, 12
  %v1431 = vpop.permute.xlu0 %1430
  %1432 = vrot.lane.b32.xlu0 %v312, 12
  %v1433 = vpop.permute.xlu0 %1432
  %1434 = vrot.lane.b32.xlu0 %v314, 12
  %v1435 = vpop.permute.xlu0 %1434
  %1436 = vrot.lane.b32.xlu0 %v315, 12
  %v1437 = vpop.permute.xlu0 %1436
  %1438 = vrot.lane.b32.xlu0 %v317, 12
  %v1439 = vpop.permute.xlu0 %1438
  %1440 = vrot.lane.b32.xlu0 %v318, 12
  %v1441 = vpop.permute.xlu0 %1440
  %1442 = vrot.lane.b32.xlu0 %v320, 12
  %v1443 = vpop.permute.xlu0 %1442
  %1444 = vrot.lane.b32.xlu0 %v321, 12
  %v1445 = vpop.permute.xlu0 %1444
  %1446 = vrot.lane.b32.xlu0 %v323, 12
  %v1447 = vpop.permute.xlu0 %1446
  %1448 = vrot.lane.b32.xlu0 %v324, 12
  %v1449 = vpop.permute.xlu0 %1448
  %1450 = vrot.lane.b32.xlu0 %v326, 12
  %v1451 = vpop.permute.xlu0 %1450
  %1452 = vrot.lane.b32.xlu0 %v327, 12
  %v1453 = vpop.permute.xlu0 %1452
  %1454 = vrot.lane.b32.xlu0 %v329, 12
  %v1455 = vpop.permute.xlu0 %1454
  %1456 = vrot.lane.b32.xlu0 %v330, 12
  %v1457 = vpop.permute.xlu0 %1456
  %1458 = vrot.lane.b32.xlu0 %v332, 12
  %v1459 = vpop.permute.xlu0 %1458
  %1460 = vrot.lane.b32.xlu0 %v333, 12
  %v1461 = vpop.permute.xlu0 %1460
  %1462 = vrot.lane.b32.xlu0 %v335, 12
  %v1463 = vpop.permute.xlu0 %1462
  %1464 = vrot.lane.b32.xlu0 %v336, 12
  %v1465 = vpop.permute.xlu0 %1464
  %1466 = vrot.lane.b32.xlu0 %v338, 12
  %v1467 = vpop.permute.xlu0 %1466
  %1468 = vrot.lane.b32.xlu0 %v339, 12
  %v1469 = vpop.permute.xlu0 %1468
  %1470 = vrot.lane.b32.xlu0 %v341, 12
  %v1471 = vpop.permute.xlu0 %1470
  %1472 = vrot.lane.b32.xlu0 %v342, 12
  %v1473 = vpop.permute.xlu0 %1472
  %1474 = vrot.lane.b32.xlu0 %v344, 12
  %v1475 = vpop.permute.xlu0 %1474
  %1476 = vrot.lane.b32.xlu0 %v345, 12
  %v1477 = vpop.permute.xlu0 %1476
  %vm1542 = vcmask 130144
  %1543 = vst.msk [vmem:[#allocation4] sm:$0xff] %vm1542, %v1351
  %1544 = vst.msk [vmem:[#allocation4 + $0x8] sm:$0xff] %vm1542, %v1353
  %1545 = vst.msk [vmem:[#allocation4 + $0x10] sm:$0xff] %vm1542, %v1355
  %1546 = vst.msk [vmem:[#allocation4 + $0x18] sm:$0xff] %vm1542, %v1357
  %1547 = vst.msk [vmem:[#allocation4 + $0x20] sm:$0xff] %vm1542, %v1359
  %1548 = vst.msk [vmem:[#allocation4 + $0x28] sm:$0xff] %vm1542, %v1361
  %1549 = vst.msk [vmem:[#allocation4 + $0x30] sm:$0xff] %vm1542, %v1363
  %1550 = vst.msk [vmem:[#allocation4 + $0x38] sm:$0xff] %vm1542, %v1365
  %1551 = vst.msk [vmem:[#allocation4 + $0x40] sm:$0xff] %vm1542, %v1367
  %1552 = vst.msk [vmem:[#allocation4 + $0x48] sm:$0xff] %vm1542, %v1369
  %1553 = vst.msk [vmem:[#allocation4 + $0x50] sm:$0xff] %vm1542, %v1371
  %1554 = vst.msk [vmem:[#allocation4 + $0x58] sm:$0xff] %vm1542, %v1373
  %1555 = vst.msk [vmem:[#allocation4 + $0x60] sm:$0xff] %vm1542, %v1375
  %1556 = vst.msk [vmem:[#allocation4 + $0x68] sm:$0xff] %vm1542, %v1377
  %1557 = vst.msk [vmem:[#allocation4 + $0x70] sm:$0xff] %vm1542, %v1379
  %1558 = vst.msk [vmem:[#allocation4 + $0x78] sm:$0xff] %vm1542, %v1381
  %1559 = vst.msk [vmem:[#allocation4 + $0x80] sm:$0xff] %vm1542, %v1383
  %1560 = vst.msk [vmem:[#allocation4 + $0x88] sm:$0xff] %vm1542, %v1385
  %1561 = vst.msk [vmem:[#allocation4 + $0x90] sm:$0xff] %vm1542, %v1387
  %1562 = vst.msk [vmem:[#allocation4 + $0x98] sm:$0xff] %vm1542, %v1389
  %1563 = vst.msk [vmem:[#allocation4 + $0xa0] sm:$0xff] %vm1542, %v1391
  %1564 = vst.msk [vmem:[#allocation4 + $0xa8] sm:$0xff] %vm1542, %v1393
  %1565 = vst.msk [vmem:[#allocation4 + $0xb0] sm:$0xff] %vm1542, %v1395
  %1566 = vst.msk [vmem:[#allocation4 + $0xb8] sm:$0xff] %vm1542, %v1397
  %1567 = vst.msk [vmem:[#allocation4 + $0xc0] sm:$0xff] %vm1542, %v1399
  %1568 = vst.msk [vmem:[#allocation4 + $0xc8] sm:$0xff] %vm1542, %v1401
  %1569 = vst.msk [vmem:[#allocation4 + $0xd0] sm:$0xff] %vm1542, %v1403
  %1570 = vst.msk [vmem:[#allocation4 + $0xd8] sm:$0xff] %vm1542, %v1405
  %1571 = vst.msk [vmem:[#allocation4 + $0xe0] sm:$0xff] %vm1542, %v1407
  %1572 = vst.msk [vmem:[#allocation4 + $0xe8] sm:$0xff] %vm1542, %v1409
  %1573 = vst.msk [vmem:[#allocation4 + $0xf0] sm:$0xff] %vm1542, %v1411
  %1574 = vst.msk [vmem:[#allocation4 + $0xf8] sm:$0xff] %vm1542, %v1413
  %1575 = vst.msk [vmem:[#allocation4 + $0x100] sm:$0xff] %vm1542, %v1415
  %1576 = vst.msk [vmem:[#allocation4 + $0x108] sm:$0xff] %vm1542, %v1417
  %1577 = vst.msk [vmem:[#allocation4 + $0x110] sm:$0xff] %vm1542, %v1419
  %1578 = vst.msk [vmem:[#allocation4 + $0x118] sm:$0xff] %vm1542, %v1421
  %1579 = vst.msk [vmem:[#allocation4 + $0x120] sm:$0xff] %vm1542, %v1423
  %1580 = vst.msk [vmem:[#allocation4 + $0x128] sm:$0xff] %vm1542, %v1425
  %1581 = vst.msk [vmem:[#allocation4 + $0x130] sm:$0xff] %vm1542, %v1427
  %1582 = vst.msk [vmem:[#allocation4 + $0x138] sm:$0xff] %vm1542, %v1429
  %1583 = vst.msk [vmem:[#allocation4 + $0x140] sm:$0xff] %vm1542, %v1431
  %1584 = vst.msk [vmem:[#allocation4 + $0x148] sm:$0xff] %vm1542, %v1433
  %1585 = vst.msk [vmem:[#allocation4 + $0x150] sm:$0xff] %vm1542, %v1435
  %1586 = vst.msk [vmem:[#allocation4 + $0x158] sm:$0xff] %vm1542, %v1437
  %1587 = vst.msk [vmem:[#allocation4 + $0x160] sm:$0xff] %vm1542, %v1439
  %1588 = vst.msk [vmem:[#allocation4 + $0x168] sm:$0xff] %vm1542, %v1441
  %1589 = vst.msk [vmem:[#allocation4 + $0x170] sm:$0xff] %vm1542, %v1443
  %1590 = vst.msk [vmem:[#allocation4 + $0x178] sm:$0xff] %vm1542, %v1445
  %1591 = vst.msk [vmem:[#allocation4 + $0x180] sm:$0xff] %vm1542, %v1447
  %1592 = vst.msk [vmem:[#allocation4 + $0x188] sm:$0xff] %vm1542, %v1449
  %1593 = vst.msk [vmem:[#allocation4 + $0x190] sm:$0xff] %vm1542, %v1451
  %1594 = vst.msk [vmem:[#allocation4 + $0x198] sm:$0xff] %vm1542, %v1453
  %1595 = vst.msk [vmem:[#allocation4 + $0x1a0] sm:$0xff] %vm1542, %v1455
  %1596 = vst.msk [vmem:[#allocation4 + $0x1a8] sm:$0xff] %vm1542, %v1457
  %1597 = vst.msk [vmem:[#allocation4 + $0x1b0] sm:$0xff] %vm1542, %v1459
  %1598 = vst.msk [vmem:[#allocation4 + $0x1b8] sm:$0xff] %vm1542, %v1461
  %1599 = vst.msk [vmem:[#allocation4 + $0x1c0] sm:$0xff] %vm1542, %v1463
  %1600 = vst.msk [vmem:[#allocation4 + $0x1c8] sm:$0xff] %vm1542, %v1465
  %1601 = vst.msk [vmem:[#allocation4 + $0x1d0] sm:$0xff] %vm1542, %v1467
  %1602 = vst.msk [vmem:[#allocation4 + $0x1d8] sm:$0xff] %vm1542, %v1469
  %1603 = vst.msk [vmem:[#allocation4 + $0x1e0] sm:$0xff] %vm1542, %v1471
  %1604 = vst.msk [vmem:[#allocation4 + $0x1e8] sm:$0xff] %vm1542, %v1473
  %1605 = vst.msk [vmem:[#allocation4 + $0x1f0] sm:$0xff] %vm1542, %v1475
  %1606 = vst.msk [vmem:[#allocation4 + $0x1f8] sm:$0xff] %vm1542, %v1477
  %v1609 = vrot.slane %v290, 1
  %v1610 = vrot.slane %v291, 1
  %v1611 = vsel %vm510, %v1609, %v1610
  %v1612 = vrot.slane %v292, 1
  %v1613 = vsel %vm510, %v1610, %v1612
  %v1614 = vrot.slane %v344, 1
  %v1615 = vrot.slane %v345, 1
  %v1616 = vsel %vm510, %v1614, %v1615
  %v1617 = vrot.slane %v346, 1
  %v1618 = vsel %vm510, %v1615, %v1617
  %1619 = vrot.lane.b32.xlu0 %v518, 16
  %v1620 = vpop.permute.xlu0 %1619
  %1621 = vrot.lane.b32.xlu0 %v520, 16
  %v1622 = vpop.permute.xlu0 %1621
  %1623 = vrot.lane.b32.xlu0 %v523, 16
  %v1624 = vpop.permute.xlu0 %1623
  %1625 = vrot.lane.b32.xlu0 %v525, 16
  %v1626 = vpop.permute.xlu0 %1625
  %1627 = vrot.lane.b32.xlu0 %v528, 16
  %v1628 = vpop.permute.xlu0 %1627
  %1629 = vrot.lane.b32.xlu0 %v530, 16
  %v1630 = vpop.permute.xlu0 %1629
  %1631 = vrot.lane.b32.xlu0 %v533, 16
  %v1632 = vpop.permute.xlu0 %1631
  %1633 = vrot.lane.b32.xlu0 %v535, 16
  %v1634 = vpop.permute.xlu0 %1633
  %1635 = vrot.lane.b32.xlu0 %v538, 16
  %v1636 = vpop.permute.xlu0 %1635
  %1637 = vrot.lane.b32.xlu0 %v540, 16
  %v1638 = vpop.permute.xlu0 %1637
  %1639 = vrot.lane.b32.xlu0 %v543, 16
  %v1640 = vpop.permute.xlu0 %1639
  %1641 = vrot.lane.b32.xlu0 %v545, 16
  %v1642 = vpop.permute.xlu0 %1641
  %1643 = vrot.lane.b32.xlu0 %v548, 16
  %v1644 = vpop.permute.xlu0 %1643
  %1645 = vrot.lane.b32.xlu0 %v550, 16
  %v1646 = vpop.permute.xlu0 %1645
  %1647 = vrot.lane.b32.xlu0 %v553, 16
  %v1648 = vpop.permute.xlu0 %1647
  %1649 = vrot.lane.b32.xlu0 %v555, 16
  %v1650 = vpop.permute.xlu0 %1649
  %1651 = vrot.lane.b32.xlu0 %v558, 16
  %v1652 = vpop.permute.xlu0 %1651
  %1653 = vrot.lane.b32.xlu0 %v560, 16
  %v1654 = vpop.permute.xlu0 %1653
  %1655 = vrot.lane.b32.xlu0 %v563, 16
  %v1656 = vpop.permute.xlu0 %1655
  %1657 = vrot.lane.b32.xlu0 %v565, 16
  %v1658 = vpop.permute.xlu0 %1657
  %1659 = vrot.lane.b32.xlu0 %v568, 16
  %v1660 = vpop.permute.xlu0 %1659
  %1661 = vrot.lane.b32.xlu0 %v570, 16
  %v1662 = vpop.permute.xlu0 %1661
  %1663 = vrot.lane.b32.xlu0 %v573, 16
  %v1664 = vpop.permute.xlu0 %1663
  %1665 = vrot.lane.b32.xlu0 %v575, 16
  %v1666 = vpop.permute.xlu0 %1665
  %1667 = vrot.lane.b32.xlu0 %v578, 16
  %v1668 = vpop.permute.xlu0 %1667
  %1669 = vrot.lane.b32.xlu0 %v580, 16
  %v1670 = vpop.permute.xlu0 %1669
  %1671 = vrot.lane.b32.xlu0 %v583, 16
  %v1672 = vpop.permute.xlu0 %1671
  %1673 = vrot.lane.b32.xlu0 %v585, 16
  %v1674 = vpop.permute.xlu0 %1673
  %1675 = vrot.lane.b32.xlu0 %v588, 16
  %v1676 = vpop.permute.xlu0 %1675
  %1677 = vrot.lane.b32.xlu0 %v590, 16
  %v1678 = vpop.permute.xlu0 %1677
  %1679 = vrot.lane.b32.xlu0 %v1611, 16
  %v1680 = vpop.permute.xlu0 %1679
  %1681 = vrot.lane.b32.xlu0 %v1613, 16
  %v1682 = vpop.permute.xlu0 %1681
  %1683 = vrot.lane.b32.xlu0 %v598, 16
  %v1684 = vpop.permute.xlu0 %1683
  %1685 = vrot.lane.b32.xlu0 %v600, 16
  %v1686 = vpop.permute.xlu0 %1685
  %1687 = vrot.lane.b32.xlu0 %v603, 16
  %v1688 = vpop.permute.xlu0 %1687
  %1689 = vrot.lane.b32.xlu0 %v605, 16
  %v1690 = vpop.permute.xlu0 %1689
  %1691 = vrot.lane.b32.xlu0 %v608, 16
  %v1692 = vpop.permute.xlu0 %1691
  %1693 = vrot.lane.b32.xlu0 %v610, 16
  %v1694 = vpop.permute.xlu0 %1693
  %1695 = vrot.lane.b32.xlu0 %v613, 16
  %v1696 = vpop.permute.xlu0 %1695
  %1697 = vrot.lane.b32.xlu0 %v615, 16
  %v1698 = vpop.permute.xlu0 %1697
  %1699 = vrot.lane.b32.xlu0 %v618, 16
  %v1700 = vpop.permute.xlu0 %1699
  %1701 = vrot.lane.b32.xlu0 %v620, 16
  %v1702 = vpop.permute.xlu0 %1701
  %1703 = vrot.lane.b32.xlu0 %v623, 16
  %v1704 = vpop.permute.xlu0 %1703
  %1705 = vrot.lane.b32.xlu0 %v625, 16
  %v1706 = vpop.permute.xlu0 %1705
  %1707 = vrot.lane.b32.xlu0 %v628, 16
  %v1708 = vpop.permute.xlu0 %1707
  %1709 = vrot.lane.b32.xlu0 %v630, 16
  %v1710 = vpop.permute.xlu0 %1709
  %1711 = vrot.lane.b32.xlu0 %v633, 16
  %v1712 = vpop.permute.xlu0 %1711
  %1713 = vrot.lane.b32.xlu0 %v635, 16
  %v1714 = vpop.permute.xlu0 %1713
  %1715 = vrot.lane.b32.xlu0 %v638, 16
  %v1716 = vpop.permute.xlu0 %1715
  %1717 = vrot.lane.b32.xlu0 %v640, 16
  %v1718 = vpop.permute.xlu0 %1717
  %1719 = vrot.lane.b32.xlu0 %v643, 16
  %v1720 = vpop.permute.xlu0 %1719
  %1721 = vrot.lane.b32.xlu0 %v645, 16
  %v1722 = vpop.permute.xlu0 %1721
  %1723 = vrot.lane.b32.xlu0 %v648, 16
  %v1724 = vpop.permute.xlu0 %1723
  %1725 = vrot.lane.b32.xlu0 %v650, 16
  %v1726 = vpop.permute.xlu0 %1725
  %1727 = vrot.lane.b32.xlu0 %v653, 16
  %v1728 = vpop.permute.xlu0 %1727
  %1729 = vrot.lane.b32.xlu0 %v655, 16
  %v1730 = vpop.permute.xlu0 %1729
  %1731 = vrot.lane.b32.xlu0 %v658, 16
  %v1732 = vpop.permute.xlu0 %1731
  %1733 = vrot.lane.b32.xlu0 %v660, 16
  %v1734 = vpop.permute.xlu0 %1733
  %1735 = vrot.lane.b32.xlu0 %v663, 16
  %v1736 = vpop.permute.xlu0 %1735
  %1737 = vrot.lane.b32.xlu0 %v665, 16
  %v1738 = vpop.permute.xlu0 %1737
  %1739 = vrot.lane.b32.xlu0 %v668, 16
  %v1740 = vpop.permute.xlu0 %1739
  %1741 = vrot.lane.b32.xlu0 %v670, 16
  %v1742 = vpop.permute.xlu0 %1741
  %1743 = vrot.lane.b32.xlu0 %v1616, 16
  %v1744 = vpop.permute.xlu0 %1743
  %1745 = vrot.lane.b32.xlu0 %v1618, 16
  %v1746 = vpop.permute.xlu0 %1745
  %vm1811 = vcmask 162944
  %1812 = vst.msk [vmem:[#allocation4] sm:$0xff] %vm1811, %v1620
  %1813 = vst.msk [vmem:[#allocation4 + $0x8] sm:$0xff] %vm1811, %v1622
  %1814 = vst.msk [vmem:[#allocation4 + $0x10] sm:$0xff] %vm1811, %v1624
  %1815 = vst.msk [vmem:[#allocation4 + $0x18] sm:$0xff] %vm1811, %v1626
  %1816 = vst.msk [vmem:[#allocation4 + $0x20] sm:$0xff] %vm1811, %v1628
  %1817 = vst.msk [vmem:[#allocation4 + $0x28] sm:$0xff] %vm1811, %v1630
  %1818 = vst.msk [vmem:[#allocation4 + $0x30] sm:$0xff] %vm1811, %v1632
  %1819 = vst.msk [vmem:[#allocation4 + $0x38] sm:$0xff] %vm1811, %v1634
  %1820 = vst.msk [vmem:[#allocation4 + $0x40] sm:$0xff] %vm1811, %v1636
  %1821 = vst.msk [vmem:[#allocation4 + $0x48] sm:$0xff] %vm1811, %v1638
  %1822 = vst.msk [vmem:[#allocation4 + $0x50] sm:$0xff] %vm1811, %v1640
  %1823 = vst.msk [vmem:[#allocation4 + $0x58] sm:$0xff] %vm1811, %v1642
  %1824 = vst.msk [vmem:[#allocation4 + $0x60] sm:$0xff] %vm1811, %v1644
  %1825 = vst.msk [vmem:[#allocation4 + $0x68] sm:$0xff] %vm1811, %v1646
  %1826 = vst.msk [vmem:[#allocation4 + $0x70] sm:$0xff] %vm1811, %v1648
  %1827 = vst.msk [vmem:[#allocation4 + $0x78] sm:$0xff] %vm1811, %v1650
  %1828 = vst.msk [vmem:[#allocation4 + $0x80] sm:$0xff] %vm1811, %v1652
  %1829 = vst.msk [vmem:[#allocation4 + $0x88] sm:$0xff] %vm1811, %v1654
  %1830 = vst.msk [vmem:[#allocation4 + $0x90] sm:$0xff] %vm1811, %v1656
  %1831 = vst.msk [vmem:[#allocation4 + $0x98] sm:$0xff] %vm1811, %v1658
  %1832 = vst.msk [vmem:[#allocation4 + $0xa0] sm:$0xff] %vm1811, %v1660
  %1833 = vst.msk [vmem:[#allocation4 + $0xa8] sm:$0xff] %vm1811, %v1662
  %1834 = vst.msk [vmem:[#allocation4 + $0xb0] sm:$0xff] %vm1811, %v1664
  %1835 = vst.msk [vmem:[#allocation4 + $0xb8] sm:$0xff] %vm1811, %v1666
  %1836 = vst.msk [vmem:[#allocation4 + $0xc0] sm:$0xff] %vm1811, %v1668
  %1837 = vst.msk [vmem:[#allocation4 + $0xc8] sm:$0xff] %vm1811, %v1670
  %1838 = vst.msk [vmem:[#allocation4 + $0xd0] sm:$0xff] %vm1811, %v1672
  %1839 = vst.msk [vmem:[#allocation4 + $0xd8] sm:$0xff] %vm1811, %v1674
  %1840 = vst.msk [vmem:[#allocation4 + $0xe0] sm:$0xff] %vm1811, %v1676
  %1841 = vst.msk [vmem:[#allocation4 + $0xe8] sm:$0xff] %vm1811, %v1678
  %1842 = vst.msk [vmem:[#allocation4 + $0xf0] sm:$0xff] %vm1811, %v1680
  %1843 = vst.msk [vmem:[#allocation4 + $0xf8] sm:$0xff] %vm1811, %v1682
  %1844 = vst.msk [vmem:[#allocation4 + $0x100] sm:$0xff] %vm1811, %v1684
  %1845 = vst.msk [vmem:[#allocation4 + $0x108] sm:$0xff] %vm1811, %v1686
  %1846 = vst.msk [vmem:[#allocation4 + $0x110] sm:$0xff] %vm1811, %v1688
  %1847 = vst.msk [vmem:[#allocation4 + $0x118] sm:$0xff] %vm1811, %v1690
  %1848 = vst.msk [vmem:[#allocation4 + $0x120] sm:$0xff] %vm1811, %v1692
  %1849 = vst.msk [vmem:[#allocation4 + $0x128] sm:$0xff] %vm1811, %v1694
  %1850 = vst.msk [vmem:[#allocation4 + $0x130] sm:$0xff] %vm1811, %v1696
  %1851 = vst.msk [vmem:[#allocation4 + $0x138] sm:$0xff] %vm1811, %v1698
  %1852 = vst.msk [vmem:[#allocation4 + $0x140] sm:$0xff] %vm1811, %v1700
  %1853 = vst.msk [vmem:[#allocation4 + $0x148] sm:$0xff] %vm1811, %v1702
  %1854 = vst.msk [vmem:[#allocation4 + $0x150] sm:$0xff] %vm1811, %v1704
  %1855 = vst.msk [vmem:[#allocation4 + $0x158] sm:$0xff] %vm1811, %v1706
  %1856 = vst.msk [vmem:[#allocation4 + $0x160] sm:$0xff] %vm1811, %v1708
  %1857 = vst.msk [vmem:[#allocation4 + $0x168] sm:$0xff] %vm1811, %v1710
  %1858 = vst.msk [vmem:[#allocation4 + $0x170] sm:$0xff] %vm1811, %v1712
  %1859 = vst.msk [vmem:[#allocation4 + $0x178] sm:$0xff] %vm1811, %v1714
  %1860 = vst.msk [vmem:[#allocation4 + $0x180] sm:$0xff] %vm1811, %v1716
  %1861 = vst.msk [vmem:[#allocation4 + $0x188] sm:$0xff] %vm1811, %v1718
  %1862 = vst.msk [vmem:[#allocation4 + $0x190] sm:$0xff] %vm1811, %v1720
  %1863 = vst.msk [vmem:[#allocation4 + $0x198] sm:$0xff] %vm1811, %v1722
  %1864 = vst.msk [vmem:[#allocation4 + $0x1a0] sm:$0xff] %vm1811, %v1724
  %1865 = vst.msk [vmem:[#allocation4 + $0x1a8] sm:$0xff] %vm1811, %v1726
  %1866 = vst.msk [vmem:[#allocation4 + $0x1b0] sm:$0xff] %vm1811, %v1728
  %1867 = vst.msk [vmem:[#allocation4 + $0x1b8] sm:$0xff] %vm1811, %v1730
  %1868 = vst.msk [vmem:[#allocation4 + $0x1c0] sm:$0xff] %vm1811, %v1732
  %1869 = vst.msk [vmem:[#allocation4 + $0x1c8] sm:$0xff] %vm1811, %v1734
  %1870 = vst.msk [vmem:[#allocation4 + $0x1d0] sm:$0xff] %vm1811, %v1736
  %1871 = vst.msk [vmem:[#allocation4 + $0x1d8] sm:$0xff] %vm1811, %v1738
  %1872 = vst.msk [vmem:[#allocation4 + $0x1e0] sm:$0xff] %vm1811, %v1740
  %1873 = vst.msk [vmem:[#allocation4 + $0x1e8] sm:$0xff] %vm1811, %v1742
  %1874 = vst.msk [vmem:[#allocation4 + $0x1f0] sm:$0xff] %vm1811, %v1744
  %1875 = vst.msk [vmem:[#allocation4 + $0x1f8] sm:$0xff] %vm1811, %v1746
  %v1876 = vrot.slane %v290, 2
  %v1877 = vrot.slane %v291, 2
  %v1878 = vsel %vm928, %v1876, %v1877
  %v1879 = vrot.slane %v292, 2
  %v1880 = vsel %vm928, %v1877, %v1879
  %v1881 = vrot.slane %v344, 2
  %v1882 = vrot.slane %v345, 2
  %v1883 = vsel %vm928, %v1881, %v1882
  %v1884 = vrot.slane %v346, 2
  %v1885 = vsel %vm928, %v1882, %v1884
  %1886 = vrot.lane.b32.xlu0 %v936, 20
  %v1887 = vpop.permute.xlu0 %1886
  %1888 = vrot.lane.b32.xlu0 %v938, 20
  %v1889 = vpop.permute.xlu0 %1888
  %1890 = vrot.lane.b32.xlu0 %v941, 20
  %v1891 = vpop.permute.xlu0 %1890
  %1892 = vrot.lane.b32.xlu0 %v943, 20
  %v1893 = vpop.permute.xlu0 %1892
  %1894 = vrot.lane.b32.xlu0 %v946, 20
  %v1895 = vpop.permute.xlu0 %1894
  %1896 = vrot.lane.b32.xlu0 %v948, 20
  %v1897 = vpop.permute.xlu0 %1896
  %1898 = vrot.lane.b32.xlu0 %v951, 20
  %v1899 = vpop.permute.xlu0 %1898
  %1900 = vrot.lane.b32.xlu0 %v953, 20
  %v1901 = vpop.permute.xlu0 %1900
  %1902 = vrot.lane.b32.xlu0 %v956, 20
  %v1903 = vpop.permute.xlu0 %1902
  %1904 = vrot.lane.b32.xlu0 %v958, 20
  %v1905 = vpop.permute.xlu0 %1904
  %1906 = vrot.lane.b32.xlu0 %v961, 20
  %v1907 = vpop.permute.xlu0 %1906
  %1908 = vrot.lane.b32.xlu0 %v963, 20
  %v1909 = vpop.permute.xlu0 %1908
  %1910 = vrot.lane.b32.xlu0 %v966, 20
  %v1911 = vpop.permute.xlu0 %1910
  %1912 = vrot.lane.b32.xlu0 %v968, 20
  %v1913 = vpop.permute.xlu0 %1912
  %1914 = vrot.lane.b32.xlu0 %v971, 20
  %v1915 = vpop.permute.xlu0 %1914
  %1916 = vrot.lane.b32.xlu0 %v973, 20
  %v1917 = vpop.permute.xlu0 %1916
  %1918 = vrot.lane.b32.xlu0 %v976, 20
  %v1919 = vpop.permute.xlu0 %1918
  %1920 = vrot.lane.b32.xlu0 %v978, 20
  %v1921 = vpop.permute.xlu0 %1920
  %1922 = vrot.lane.b32.xlu0 %v981, 20
  %v1923 = vpop.permute.xlu0 %1922
  %1924 = vrot.lane.b32.xlu0 %v983, 20
  %v1925 = vpop.permute.xlu0 %1924
  %1926 = vrot.lane.b32.xlu0 %v986, 20
  %v1927 = vpop.permute.xlu0 %1926
  %1928 = vrot.lane.b32.xlu0 %v988, 20
  %v1929 = vpop.permute.xlu0 %1928
  %1930 = vrot.lane.b32.xlu0 %v991, 20
  %v1931 = vpop.permute.xlu0 %1930
  %1932 = vrot.lane.b32.xlu0 %v993, 20
  %v1933 = vpop.permute.xlu0 %1932
  %1934 = vrot.lane.b32.xlu0 %v996, 20
  %v1935 = vpop.permute.xlu0 %1934
  %1936 = vrot.lane.b32.xlu0 %v998, 20
  %v1937 = vpop.permute.xlu0 %1936
  %1938 = vrot.lane.b32.xlu0 %v1001, 20
  %v1939 = vpop.permute.xlu0 %1938
  %1940 = vrot.lane.b32.xlu0 %v1003, 20
  %v1941 = vpop.permute.xlu0 %1940
  %1942 = vrot.lane.b32.xlu0 %v1006, 20
  %v1943 = vpop.permute.xlu0 %1942
  %1944 = vrot.lane.b32.xlu0 %v1008, 20
  %v1945 = vpop.permute.xlu0 %1944
  %1946 = vrot.lane.b32.xlu0 %v1878, 20
  %v1947 = vpop.permute.xlu0 %1946
  %1948 = vrot.lane.b32.xlu0 %v1880, 20
  %v1949 = vpop.permute.xlu0 %1948
  %1950 = vrot.lane.b32.xlu0 %v1016, 20
  %v1951 = vpop.permute.xlu0 %1950
  %1952 = vrot.lane.b32.xlu0 %v1018, 20
  %v1953 = vpop.permute.xlu0 %1952
  %1954 = vrot.lane.b32.xlu0 %v1021, 20
  %v1955 = vpop.permute.xlu0 %1954
  %1956 = vrot.lane.b32.xlu0 %v1023, 20
  %v1957 = vpop.permute.xlu0 %1956
  %1958 = vrot.lane.b32.xlu0 %v1026, 20
  %v1959 = vpop.permute.xlu0 %1958
  %1960 = vrot.lane.b32.xlu0 %v1028, 20
  %v1961 = vpop.permute.xlu0 %1960
  %1962 = vrot.lane.b32.xlu0 %v1031, 20
  %v1963 = vpop.permute.xlu0 %1962
  %1964 = vrot.lane.b32.xlu0 %v1033, 20
  %v1965 = vpop.permute.xlu0 %1964
  %1966 = vrot.lane.b32.xlu0 %v1036, 20
  %v1967 = vpop.permute.xlu0 %1966
  %1968 = vrot.lane.b32.xlu0 %v1038, 20
  %v1969 = vpop.permute.xlu0 %1968
  %1970 = vrot.lane.b32.xlu0 %v1041, 20
  %v1971 = vpop.permute.xlu0 %1970
  %1972 = vrot.lane.b32.xlu0 %v1043, 20
  %v1973 = vpop.permute.xlu0 %1972
  %1974 = vrot.lane.b32.xlu0 %v1046, 20
  %v1975 = vpop.permute.xlu0 %1974
  %1976 = vrot.lane.b32.xlu0 %v1048, 20
  %v1977 = vpop.permute.xlu0 %1976
  %1978 = vrot.lane.b32.xlu0 %v1051, 20
  %v1979 = vpop.permute.xlu0 %1978
  %1980 = vrot.lane.b32.xlu0 %v1053, 20
  %v1981 = vpop.permute.xlu0 %1980
  %1982 = vrot.lane.b32.xlu0 %v1056, 20
  %v1983 = vpop.permute.xlu0 %1982
  %1984 = vrot.lane.b32.xlu0 %v1058, 20
  %v1985 = vpop.permute.xlu0 %1984
  %1986 = vrot.lane.b32.xlu0 %v1061, 20
  %v1987 = vpop.permute.xlu0 %1986
  %1988 = vrot.lane.b32.xlu0 %v1063, 20
  %v1989 = vpop.permute.xlu0 %1988
  %1990 = vrot.lane.b32.xlu0 %v1066, 20
  %v1991 = vpop.permute.xlu0 %1990
  %1992 = vrot.lane.b32.xlu0 %v1068, 20
  %v1993 = vpop.permute.xlu0 %1992
  %1994 = vrot.lane.b32.xlu0 %v1071, 20
  %v1995 = vpop.permute.xlu0 %1994
  %1996 = vrot.lane.b32.xlu0 %v1073, 20
  %v1997 = vpop.permute.xlu0 %1996
  %1998 = vrot.lane.b32.xlu0 %v1076, 20
  %v1999 = vpop.permute.xlu0 %1998
  %2000 = vrot.lane.b32.xlu0 %v1078, 20
  %v2001 = vpop.permute.xlu0 %2000
  %2002 = vrot.lane.b32.xlu0 %v1081, 20
  %v2003 = vpop.permute.xlu0 %2002
  %2004 = vrot.lane.b32.xlu0 %v1083, 20
  %v2005 = vpop.permute.xlu0 %2004
  %2006 = vrot.lane.b32.xlu0 %v1086, 20
  %v2007 = vpop.permute.xlu0 %2006
  %2008 = vrot.lane.b32.xlu0 %v1088, 20
  %v2009 = vpop.permute.xlu0 %2008
  %2010 = vrot.lane.b32.xlu0 %v1883, 20
  %v2011 = vpop.permute.xlu0 %2010
  %2012 = vrot.lane.b32.xlu0 %v1885, 20
  %v2013 = vpop.permute.xlu0 %2012
  %vm2078 = vcmask 195744
  %2079 = vst.msk [vmem:[#allocation4] sm:$0xff] %vm2078, %v1887
  %2080 = vst.msk [vmem:[#allocation4 + $0x8] sm:$0xff] %vm2078, %v1889
  %2081 = vst.msk [vmem:[#allocation4 + $0x10] sm:$0xff] %vm2078, %v1891
  %2082 = vst.msk [vmem:[#allocation4 + $0x18] sm:$0xff] %vm2078, %v1893
  %2083 = vst.msk [vmem:[#allocation4 + $0x20] sm:$0xff] %vm2078, %v1895
  %2084 = vst.msk [vmem:[#allocation4 + $0x28] sm:$0xff] %vm2078, %v1897
  %2085 = vst.msk [vmem:[#allocation4 + $0x30] sm:$0xff] %vm2078, %v1899
  %2086 = vst.msk [vmem:[#allocation4 + $0x38] sm:$0xff] %vm2078, %v1901
  %2087 = vst.msk [vmem:[#allocation4 + $0x40] sm:$0xff] %vm2078, %v1903
  %2088 = vst.msk [vmem:[#allocation4 + $0x48] sm:$0xff] %vm2078, %v1905
  %2089 = vst.msk [vmem:[#allocation4 + $0x50] sm:$0xff] %vm2078, %v1907
  %2090 = vst.msk [vmem:[#allocation4 + $0x58] sm:$0xff] %vm2078, %v1909
  %2091 = vst.msk [vmem:[#allocation4 + $0x60] sm:$0xff] %vm2078, %v1911
  %2092 = vst.msk [vmem:[#allocation4 + $0x68] sm:$0xff] %vm2078, %v1913
  %2093 = vst.msk [vmem:[#allocation4 + $0x70] sm:$0xff] %vm2078, %v1915
  %2094 = vst.msk [vmem:[#allocation4 + $0x78] sm:$0xff] %vm2078, %v1917
  %2095 = vst.msk [vmem:[#allocation4 + $0x80] sm:$0xff] %vm2078, %v1919
  %2096 = vst.msk [vmem:[#allocation4 + $0x88] sm:$0xff] %vm2078, %v1921
  %2097 = vst.msk [vmem:[#allocation4 + $0x90] sm:$0xff] %vm2078, %v1923
  %2098 = vst.msk [vmem:[#allocation4 + $0x98] sm:$0xff] %vm2078, %v1925
  %2099 = vst.msk [vmem:[#allocation4 + $0xa0] sm:$0xff] %vm2078, %v1927
  %2100 = vst.msk [vmem:[#allocation4 + $0xa8] sm:$0xff] %vm2078, %v1929
  %2101 = vst.msk [vmem:[#allocation4 + $0xb0] sm:$0xff] %vm2078, %v1931
  %2102 = vst.msk [vmem:[#allocation4 + $0xb8] sm:$0xff] %vm2078, %v1933
  %2103 = vst.msk [vmem:[#allocation4 + $0xc0] sm:$0xff] %vm2078, %v1935
  %2104 = vst.msk [vmem:[#allocation4 + $0xc8] sm:$0xff] %vm2078, %v1937
  %2105 = vst.msk [vmem:[#allocation4 + $0xd0] sm:$0xff] %vm2078, %v1939
  %2106 = vst.msk [vmem:[#allocation4 + $0xd8] sm:$0xff] %vm2078, %v1941
  %2107 = vst.msk [vmem:[#allocation4 + $0xe0] sm:$0xff] %vm2078, %v1943
  %2108 = vst.msk [vmem:[#allocation4 + $0xe8] sm:$0xff] %vm2078, %v1945
  %2109 = vst.msk [vmem:[#allocation4 + $0xf0] sm:$0xff] %vm2078, %v1947
  %2110 = vst.msk [vmem:[#allocation4 + $0xf8] sm:$0xff] %vm2078, %v1949
  %2111 = vst.msk [vmem:[#allocation4 + $0x100] sm:$0xff] %vm2078, %v1951
  %2112 = vst.msk [vmem:[#allocation4 + $0x108] sm:$0xff] %vm2078, %v1953
  %2113 = vst.msk [vmem:[#allocation4 + $0x110] sm:$0xff] %vm2078, %v1955
  %2114 = vst.msk [vmem:[#allocation4 + $0x118] sm:$0xff] %vm2078, %v1957
  %2115 = vst.msk [vmem:[#allocation4 + $0x120] sm:$0xff] %vm2078, %v1959
  %2116 = vst.msk [vmem:[#allocation4 + $0x128] sm:$0xff] %vm2078, %v1961
  %2117 = vst.msk [vmem:[#allocation4 + $0x130] sm:$0xff] %vm2078, %v1963
  %2118 = vst.msk [vmem:[#allocation4 + $0x138] sm:$0xff] %vm2078, %v1965
  %2119 = vst.msk [vmem:[#allocation4 + $0x140] sm:$0xff] %vm2078, %v1967
  %2120 = vst.msk [vmem:[#allocation4 + $0x148] sm:$0xff] %vm2078, %v1969
  %2121 = vst.msk [vmem:[#allocation4 + $0x150] sm:$0xff] %vm2078, %v1971
  %2122 = vst.msk [vmem:[#allocation4 + $0x158] sm:$0xff] %vm2078, %v1973
  %2123 = vst.msk [vmem:[#allocation4 + $0x160] sm:$0xff] %vm2078, %v1975
  %2124 = vst.msk [vmem:[#allocation4 + $0x168] sm:$0xff] %vm2078, %v1977
  %2125 = vst.msk [vmem:[#allocation4 + $0x170] sm:$0xff] %vm2078, %v1979
  %2126 = vst.msk [vmem:[#allocation4 + $0x178] sm:$0xff] %vm2078, %v1981
  %2127 = vst.msk [vmem:[#allocation4 + $0x180] sm:$0xff] %vm2078, %v1983
  %2128 = vst.msk [vmem:[#allocation4 + $0x188] sm:$0xff] %vm2078, %v1985
  %2129 = vst.msk [vmem:[#allocation4 + $0x190] sm:$0xff] %vm2078, %v1987
  %2130 = vst.msk [vmem:[#allocation4 + $0x198] sm:$0xff] %vm2078, %v1989
  %2131 = vst.msk [vmem:[#allocation4 + $0x1a0] sm:$0xff] %vm2078, %v1991
  %2132 = vst.msk [vmem:[#allocation4 + $0x1a8] sm:$0xff] %vm2078, %v1993
  %2133 = vst.msk [vmem:[#allocation4 + $0x1b0] sm:$0xff] %vm2078, %v1995
  %2134 = vst.msk [vmem:[#allocation4 + $0x1b8] sm:$0xff] %vm2078, %v1997
  %2135 = vst.msk [vmem:[#allocation4 + $0x1c0] sm:$0xff] %vm2078, %v1999
  %2136 = vst.msk [vmem:[#allocation4 + $0x1c8] sm:$0xff] %vm2078, %v2001
  %2137 = vst.msk [vmem:[#allocation4 + $0x1d0] sm:$0xff] %vm2078, %v2003
  %2138 = vst.msk [vmem:[#allocation4 + $0x1d8] sm:$0xff] %vm2078, %v2005
  %2139 = vst.msk [vmem:[#allocation4 + $0x1e0] sm:$0xff] %vm2078, %v2007
  %2140 = vst.msk [vmem:[#allocation4 + $0x1e8] sm:$0xff] %vm2078, %v2009
  %2141 = vst.msk [vmem:[#allocation4 + $0x1f0] sm:$0xff] %vm2078, %v2011
  %2142 = vst.msk [vmem:[#allocation4 + $0x1f8] sm:$0xff] %vm2078, %v2013
  %2147 = vrot.lane.b32.xlu0 %v248, 24
  %v2148 = vpop.permute.xlu0 %2147
  %2149 = vrot.lane.b32.xlu0 %v249, 24
  %v2150 = vpop.permute.xlu0 %2149
  %2151 = vrot.lane.b32.xlu0 %v251, 24
  %v2152 = vpop.permute.xlu0 %2151
  %2153 = vrot.lane.b32.xlu0 %v252, 24
  %v2154 = vpop.permute.xlu0 %2153
  %2155 = vrot.lane.b32.xlu0 %v254, 24
  %v2156 = vpop.permute.xlu0 %2155
  %2157 = vrot.lane.b32.xlu0 %v255, 24
  %v2158 = vpop.permute.xlu0 %2157
  %2159 = vrot.lane.b32.xlu0 %v257, 24
  %v2160 = vpop.permute.xlu0 %2159
  %2161 = vrot.lane.b32.xlu0 %v258, 24
  %v2162 = vpop.permute.xlu0 %2161
  %2163 = vrot.lane.b32.xlu0 %v260, 24
  %v2164 = vpop.permute.xlu0 %2163
  %2165 = vrot.lane.b32.xlu0 %v261, 24
  %v2166 = vpop.permute.xlu0 %2165
  %2167 = vrot.lane.b32.xlu0 %v263, 24
  %v2168 = vpop.permute.xlu0 %2167
  %2169 = vrot.lane.b32.xlu0 %v264, 24
  %v2170 = vpop.permute.xlu0 %2169
  %2171 = vrot.lane.b32.xlu0 %v266, 24
  %v2172 = vpop.permute.xlu0 %2171
  %2173 = vrot.lane.b32.xlu0 %v267, 24
  %v2174 = vpop.permute.xlu0 %2173
  %2175 = vrot.lane.b32.xlu0 %v269, 24
  %v2176 = vpop.permute.xlu0 %2175
  %2177 = vrot.lane.b32.xlu0 %v270, 24
  %v2178 = vpop.permute.xlu0 %2177
  %2179 = vrot.lane.b32.xlu0 %v272, 24
  %v2180 = vpop.permute.xlu0 %2179
  %2181 = vrot.lane.b32.xlu0 %v273, 24
  %v2182 = vpop.permute.xlu0 %2181
  %2183 = vrot.lane.b32.xlu0 %v275, 24
  %v2184 = vpop.permute.xlu0 %2183
  %2185 = vrot.lane.b32.xlu0 %v276, 24
  %v2186 = vpop.permute.xlu0 %2185
  %2187 = vrot.lane.b32.xlu0 %v278, 24
  %v2188 = vpop.permute.xlu0 %2187
  %2189 = vrot.lane.b32.xlu0 %v279, 24
  %v2190 = vpop.permute.xlu0 %2189
  %2191 = vrot.lane.b32.xlu0 %v281, 24
  %v2192 = vpop.permute.xlu0 %2191
  %2193 = vrot.lane.b32.xlu0 %v282, 24
  %v2194 = vpop.permute.xlu0 %2193
  %2195 = vrot.lane.b32.xlu0 %v284, 24
  %v2196 = vpop.permute.xlu0 %2195
  %2197 = vrot.lane.b32.xlu0 %v285, 24
  %v2198 = vpop.permute.xlu0 %2197
  %2199 = vrot.lane.b32.xlu0 %v287, 24
  %v2200 = vpop.permute.xlu0 %2199
  %2201 = vrot.lane.b32.xlu0 %v288, 24
  %v2202 = vpop.permute.xlu0 %2201
  %2203 = vrot.lane.b32.xlu0 %v290, 24
  %v2204 = vpop.permute.xlu0 %2203
  %2205 = vrot.lane.b32.xlu0 %v291, 24
  %v2206 = vpop.permute.xlu0 %2205
  %2207 = vrot.lane.b32.xlu0 %v293, 24
  %v2208 = vpop.permute.xlu0 %2207
  %2209 = vrot.lane.b32.xlu0 %v294, 24
  %v2210 = vpop.permute.xlu0 %2209
  %2211 = vrot.lane.b32.xlu0 %v302, 24
  %v2212 = vpop.permute.xlu0 %2211
  %2213 = vrot.lane.b32.xlu0 %v303, 24
  %v2214 = vpop.permute.xlu0 %2213
  %2215 = vrot.lane.b32.xlu0 %v305, 24
  %v2216 = vpop.permute.xlu0 %2215
  %2217 = vrot.lane.b32.xlu0 %v306, 24
  %v2218 = vpop.permute.xlu0 %2217
  %2219 = vrot.lane.b32.xlu0 %v308, 24
  %v2220 = vpop.permute.xlu0 %2219
  %2221 = vrot.lane.b32.xlu0 %v309, 24
  %v2222 = vpop.permute.xlu0 %2221
  %2223 = vrot.lane.b32.xlu0 %v311, 24
  %v2224 = vpop.permute.xlu0 %2223
  %2225 = vrot.lane.b32.xlu0 %v312, 24
  %v2226 = vpop.permute.xlu0 %2225
  %2227 = vrot.lane.b32.xlu0 %v314, 24
  %v2228 = vpop.permute.xlu0 %2227
  %2229 = vrot.lane.b32.xlu0 %v315, 24
  %v2230 = vpop.permute.xlu0 %2229
  %2231 = vrot.lane.b32.xlu0 %v317, 24
  %v2232 = vpop.permute.xlu0 %2231
  %2233 = vrot.lane.b32.xlu0 %v318, 24
  %v2234 = vpop.permute.xlu0 %2233
  %2235 = vrot.lane.b32.xlu0 %v320, 24
  %v2236 = vpop.permute.xlu0 %2235
  %2237 = vrot.lane.b32.xlu0 %v321, 24
  %v2238 = vpop.permute.xlu0 %2237
  %2239 = vrot.lane.b32.xlu0 %v323, 24
  %v2240 = vpop.permute.xlu0 %2239
  %2241 = vrot.lane.b32.xlu0 %v324, 24
  %v2242 = vpop.permute.xlu0 %2241
  %2243 = vrot.lane.b32.xlu0 %v326, 24
  %v2244 = vpop.permute.xlu0 %2243
  %2245 = vrot.lane.b32.xlu0 %v327, 24
  %v2246 = vpop.permute.xlu0 %2245
  %2247 = vrot.lane.b32.xlu0 %v329, 24
  %v2248 = vpop.permute.xlu0 %2247
  %2249 = vrot.lane.b32.xlu0 %v330, 24
  %v2250 = vpop.permute.xlu0 %2249
  %2251 = vrot.lane.b32.xlu0 %v332, 24
  %v2252 = vpop.permute.xlu0 %2251
  %2253 = vrot.lane.b32.xlu0 %v333, 24
  %v2254 = vpop.permute.xlu0 %2253
  %2255 = vrot.lane.b32.xlu0 %v335, 24
  %v2256 = vpop.permute.xlu0 %2255
  %2257 = vrot.lane.b32.xlu0 %v336, 24
  %v2258 = vpop.permute.xlu0 %2257
  %2259 = vrot.lane.b32.xlu0 %v338, 24
  %v2260 = vpop.permute.xlu0 %2259
  %2261 = vrot.lane.b32.xlu0 %v339, 24
  %v2262 = vpop.permute.xlu0 %2261
  %2263 = vrot.lane.b32.xlu0 %v341, 24
  %v2264 = vpop.permute.xlu0 %2263
  %2265 = vrot.lane.b32.xlu0 %v342, 24
  %v2266 = vpop.permute.xlu0 %2265
  %2267 = vrot.lane.b32.xlu0 %v344, 24
  %v2268 = vpop.permute.xlu0 %2267
  %2269 = vrot.lane.b32.xlu0 %v345, 24
  %v2270 = vpop.permute.xlu0 %2269
  %2271 = vrot.lane.b32.xlu0 %v347, 24
  %v2272 = vpop.permute.xlu0 %2271
  %2273 = vrot.lane.b32.xlu0 %v348, 24
  %v2274 = vpop.permute.xlu0 %2273
  %vm2339 = vcmask 228544
  %2340 = vst.msk [vmem:[#allocation4] sm:$0xff] %vm2339, %v2148
  %2341 = vst.msk [vmem:[#allocation4 + $0x8] sm:$0xff] %vm2339, %v2150
  %2342 = vst.msk [vmem:[#allocation4 + $0x10] sm:$0xff] %vm2339, %v2152
  %2343 = vst.msk [vmem:[#allocation4 + $0x18] sm:$0xff] %vm2339, %v2154
  %2344 = vst.msk [vmem:[#allocation4 + $0x20] sm:$0xff] %vm2339, %v2156
  %2345 = vst.msk [vmem:[#allocation4 + $0x28] sm:$0xff] %vm2339, %v2158
  %2346 = vst.msk [vmem:[#allocation4 + $0x30] sm:$0xff] %vm2339, %v2160
  %2347 = vst.msk [vmem:[#allocation4 + $0x38] sm:$0xff] %vm2339, %v2162
  %2348 = vst.msk [vmem:[#allocation4 + $0x40] sm:$0xff] %vm2339, %v2164
  %2349 = vst.msk [vmem:[#allocation4 + $0x48] sm:$0xff] %vm2339, %v2166
  %2350 = vst.msk [vmem:[#allocation4 + $0x50] sm:$0xff] %vm2339, %v2168
  %2351 = vst.msk [vmem:[#allocation4 + $0x58] sm:$0xff] %vm2339, %v2170
  %2352 = vst.msk [vmem:[#allocation4 + $0x60] sm:$0xff] %vm2339, %v2172
  %2353 = vst.msk [vmem:[#allocation4 + $0x68] sm:$0xff] %vm2339, %v2174
  %2354 = vst.msk [vmem:[#allocation4 + $0x70] sm:$0xff] %vm2339, %v2176
  %2355 = vst.msk [vmem:[#allocation4 + $0x78] sm:$0xff] %vm2339, %v2178
  %2356 = vst.msk [vmem:[#allocation4 + $0x80] sm:$0xff] %vm2339, %v2180
  %2357 = vst.msk [vmem:[#allocation4 + $0x88] sm:$0xff] %vm2339, %v2182
  %2358 = vst.msk [vmem:[#allocation4 + $0x90] sm:$0xff] %vm2339, %v2184
  %2359 = vst.msk [vmem:[#allocation4 + $0x98] sm:$0xff] %vm2339, %v2186
  %2360 = vst.msk [vmem:[#allocation4 + $0xa0] sm:$0xff] %vm2339, %v2188
  %2361 = vst.msk [vmem:[#allocation4 + $0xa8] sm:$0xff] %vm2339, %v2190
  %2362 = vst.msk [vmem:[#allocation4 + $0xb0] sm:$0xff] %vm2339, %v2192
  %2363 = vst.msk [vmem:[#allocation4 + $0xb8] sm:$0xff] %vm2339, %v2194
  %2364 = vst.msk [vmem:[#allocation4 + $0xc0] sm:$0xff] %vm2339, %v2196
  %2365 = vst.msk [vmem:[#allocation4 + $0xc8] sm:$0xff] %vm2339, %v2198
  %2366 = vst.msk [vmem:[#allocation4 + $0xd0] sm:$0xff] %vm2339, %v2200
  %2367 = vst.msk [vmem:[#allocation4 + $0xd8] sm:$0xff] %vm2339, %v2202
  %2368 = vst.msk [vmem:[#allocation4 + $0xe0] sm:$0xff] %vm2339, %v2204
  %2369 = vst.msk [vmem:[#allocation4 + $0xe8] sm:$0xff] %vm2339, %v2206
  %2370 = vst.msk [vmem:[#allocation4 + $0xf0] sm:$0xff] %vm2339, %v2208
  %2371 = vst.msk [vmem:[#allocation4 + $0xf8] sm:$0xff] %vm2339, %v2210
  %2372 = vst.msk [vmem:[#allocation4 + $0x100] sm:$0xff] %vm2339, %v2212
  %2373 = vst.msk [vmem:[#allocation4 + $0x108] sm:$0xff] %vm2339, %v2214
  %2374 = vst.msk [vmem:[#allocation4 + $0x110] sm:$0xff] %vm2339, %v2216
  %2375 = vst.msk [vmem:[#allocation4 + $0x118] sm:$0xff] %vm2339, %v2218
  %2376 = vst.msk [vmem:[#allocation4 + $0x120] sm:$0xff] %vm2339, %v2220
  %2377 = vst.msk [vmem:[#allocation4 + $0x128] sm:$0xff] %vm2339, %v2222
  %2378 = vst.msk [vmem:[#allocation4 + $0x130] sm:$0xff] %vm2339, %v2224
  %2379 = vst.msk [vmem:[#allocation4 + $0x138] sm:$0xff] %vm2339, %v2226
  %2380 = vst.msk [vmem:[#allocation4 + $0x140] sm:$0xff] %vm2339, %v2228
  %2381 = vst.msk [vmem:[#allocation4 + $0x148] sm:$0xff] %vm2339, %v2230
  %2382 = vst.msk [vmem:[#allocation4 + $0x150] sm:$0xff] %vm2339, %v2232
  %2383 = vst.msk [vmem:[#allocation4 + $0x158] sm:$0xff] %vm2339, %v2234
  %2384 = vst.msk [vmem:[#allocation4 + $0x160] sm:$0xff] %vm2339, %v2236
  %2385 = vst.msk [vmem:[#allocation4 + $0x168] sm:$0xff] %vm2339, %v2238
  %2386 = vst.msk [vmem:[#allocation4 + $0x170] sm:$0xff] %vm2339, %v2240
  %2387 = vst.msk [vmem:[#allocation4 + $0x178] sm:$0xff] %vm2339, %v2242
  %2388 = vst.msk [vmem:[#allocation4 + $0x180] sm:$0xff] %vm2339, %v2244
  %2389 = vst.msk [vmem:[#allocation4 + $0x188] sm:$0xff] %vm2339, %v2246
  %2390 = vst.msk [vmem:[#allocation4 + $0x190] sm:$0xff] %vm2339, %v2248
  %2391 = vst.msk [vmem:[#allocation4 + $0x198] sm:$0xff] %vm2339, %v2250
  %2392 = vst.msk [vmem:[#allocation4 + $0x1a0] sm:$0xff] %vm2339, %v2252
  %2393 = vst.msk [vmem:[#allocation4 + $0x1a8] sm:$0xff] %vm2339, %v2254
  %2394 = vst.msk [vmem:[#allocation4 + $0x1b0] sm:$0xff] %vm2339, %v2256
  %2395 = vst.msk [vmem:[#allocation4 + $0x1b8] sm:$0xff] %vm2339, %v2258
  %2396 = vst.msk [vmem:[#allocation4 + $0x1c0] sm:$0xff] %vm2339, %v2260
  %2397 = vst.msk [vmem:[#allocation4 + $0x1c8] sm:$0xff] %vm2339, %v2262
  %2398 = vst.msk [vmem:[#allocation4 + $0x1d0] sm:$0xff] %vm2339, %v2264
  %2399 = vst.msk [vmem:[#allocation4 + $0x1d8] sm:$0xff] %vm2339, %v2266
  %2400 = vst.msk [vmem:[#allocation4 + $0x1e0] sm:$0xff] %vm2339, %v2268
  %2401 = vst.msk [vmem:[#allocation4 + $0x1e8] sm:$0xff] %vm2339, %v2270
  %2402 = vst.msk [vmem:[#allocation4 + $0x1f0] sm:$0xff] %vm2339, %v2272
  %2403 = vst.msk [vmem:[#allocation4 + $0x1f8] sm:$0xff] %vm2339, %v2274
  %v2406 = vrot.slane %v293, 1
  %v2407 = vrot.slane %v294, 1
  %v2408 = vsel %vm510, %v2406, %v2407
  %v2409 = vrot.slane %v295, 1
  %v2410 = vsel %vm510, %v2407, %v2409
  %v2411 = vrot.slane %v347, 1
  %v2412 = vrot.slane %v348, 1
  %v2413 = vsel %vm510, %v2411, %v2412
  %v2414 = vrot.slane %v349, 1
  %v2415 = vsel %vm510, %v2412, %v2414
  %2416 = vrot.lane.b32.xlu0 %v523, 28
  %v2417 = vpop.permute.xlu0 %2416
  %2418 = vrot.lane.b32.xlu0 %v525, 28
  %v2419 = vpop.permute.xlu0 %2418
  %2420 = vrot.lane.b32.xlu0 %v528, 28
  %v2421 = vpop.permute.xlu0 %2420
  %2422 = vrot.lane.b32.xlu0 %v530, 28
  %v2423 = vpop.permute.xlu0 %2422
  %2424 = vrot.lane.b32.xlu0 %v533, 28
  %v2425 = vpop.permute.xlu0 %2424
  %2426 = vrot.lane.b32.xlu0 %v535, 28
  %v2427 = vpop.permute.xlu0 %2426
  %2428 = vrot.lane.b32.xlu0 %v538, 28
  %v2429 = vpop.permute.xlu0 %2428
  %2430 = vrot.lane.b32.xlu0 %v540, 28
  %v2431 = vpop.permute.xlu0 %2430
  %2432 = vrot.lane.b32.xlu0 %v543, 28
  %v2433 = vpop.permute.xlu0 %2432
  %2434 = vrot.lane.b32.xlu0 %v545, 28
  %v2435 = vpop.permute.xlu0 %2434
  %2436 = vrot.lane.b32.xlu0 %v548, 28
  %v2437 = vpop.permute.xlu0 %2436
  %2438 = vrot.lane.b32.xlu0 %v550, 28
  %v2439 = vpop.permute.xlu0 %2438
  %2440 = vrot.lane.b32.xlu0 %v553, 28
  %v2441 = vpop.permute.xlu0 %2440
  %2442 = vrot.lane.b32.xlu0 %v555, 28
  %v2443 = vpop.permute.xlu0 %2442
  %2444 = vrot.lane.b32.xlu0 %v558, 28
  %v2445 = vpop.permute.xlu0 %2444
  %2446 = vrot.lane.b32.xlu0 %v560, 28
  %v2447 = vpop.permute.xlu0 %2446
  %2448 = vrot.lane.b32.xlu0 %v563, 28
  %v2449 = vpop.permute.xlu0 %2448
  %2450 = vrot.lane.b32.xlu0 %v565, 28
  %v2451 = vpop.permute.xlu0 %2450
  %2452 = vrot.lane.b32.xlu0 %v568, 28
  %v2453 = vpop.permute.xlu0 %2452
  %2454 = vrot.lane.b32.xlu0 %v570, 28
  %v2455 = vpop.permute.xlu0 %2454
  %2456 = vrot.lane.b32.xlu0 %v573, 28
  %v2457 = vpop.permute.xlu0 %2456
  %2458 = vrot.lane.b32.xlu0 %v575, 28
  %v2459 = vpop.permute.xlu0 %2458
  %2460 = vrot.lane.b32.xlu0 %v578, 28
  %v2461 = vpop.permute.xlu0 %2460
  %2462 = vrot.lane.b32.xlu0 %v580, 28
  %v2463 = vpop.permute.xlu0 %2462
  %2464 = vrot.lane.b32.xlu0 %v583, 28
  %v2465 = vpop.permute.xlu0 %2464
  %2466 = vrot.lane.b32.xlu0 %v585, 28
  %v2467 = vpop.permute.xlu0 %2466
  %2468 = vrot.lane.b32.xlu0 %v588, 28
  %v2469 = vpop.permute.xlu0 %2468
  %2470 = vrot.lane.b32.xlu0 %v590, 28
  %v2471 = vpop.permute.xlu0 %2470
  %2472 = vrot.lane.b32.xlu0 %v1611, 28
  %v2473 = vpop.permute.xlu0 %2472
  %2474 = vrot.lane.b32.xlu0 %v1613, 28
  %v2475 = vpop.permute.xlu0 %2474
  %2476 = vrot.lane.b32.xlu0 %v2408, 28
  %v2477 = vpop.permute.xlu0 %2476
  %2478 = vrot.lane.b32.xlu0 %v2410, 28
  %v2479 = vpop.permute.xlu0 %2478
  %2480 = vrot.lane.b32.xlu0 %v603, 28
  %v2481 = vpop.permute.xlu0 %2480
  %2482 = vrot.lane.b32.xlu0 %v605, 28
  %v2483 = vpop.permute.xlu0 %2482
  %2484 = vrot.lane.b32.xlu0 %v608, 28
  %v2485 = vpop.permute.xlu0 %2484
  %2486 = vrot.lane.b32.xlu0 %v610, 28
  %v2487 = vpop.permute.xlu0 %2486
  %2488 = vrot.lane.b32.xlu0 %v613, 28
  %v2489 = vpop.permute.xlu0 %2488
  %2490 = vrot.lane.b32.xlu0 %v615, 28
  %v2491 = vpop.permute.xlu0 %2490
  %2492 = vrot.lane.b32.xlu0 %v618, 28
  %v2493 = vpop.permute.xlu0 %2492
  %2494 = vrot.lane.b32.xlu0 %v620, 28
  %v2495 = vpop.permute.xlu0 %2494
  %2496 = vrot.lane.b32.xlu0 %v623, 28
  %v2497 = vpop.permute.xlu0 %2496
  %2498 = vrot.lane.b32.xlu0 %v625, 28
  %v2499 = vpop.permute.xlu0 %2498
  %2500 = vrot.lane.b32.xlu0 %v628, 28
  %v2501 = vpop.permute.xlu0 %2500
  %2502 = vrot.lane.b32.xlu0 %v630, 28
  %v2503 = vpop.permute.xlu0 %2502
  %2504 = vrot.lane.b32.xlu0 %v633, 28
  %v2505 = vpop.permute.xlu0 %2504
  %2506 = vrot.lane.b32.xlu0 %v635, 28
  %v2507 = vpop.permute.xlu0 %2506
  %2508 = vrot.lane.b32.xlu0 %v638, 28
  %v2509 = vpop.permute.xlu0 %2508
  %2510 = vrot.lane.b32.xlu0 %v640, 28
  %v2511 = vpop.permute.xlu0 %2510
  %2512 = vrot.lane.b32.xlu0 %v643, 28
  %v2513 = vpop.permute.xlu0 %2512
  %2514 = vrot.lane.b32.xlu0 %v645, 28
  %v2515 = vpop.permute.xlu0 %2514
  %2516 = vrot.lane.b32.xlu0 %v648, 28
  %v2517 = vpop.permute.xlu0 %2516
  %2518 = vrot.lane.b32.xlu0 %v650, 28
  %v2519 = vpop.permute.xlu0 %2518
  %2520 = vrot.lane.b32.xlu0 %v653, 28
  %v2521 = vpop.permute.xlu0 %2520
  %2522 = vrot.lane.b32.xlu0 %v655, 28
  %v2523 = vpop.permute.xlu0 %2522
  %2524 = vrot.lane.b32.xlu0 %v658, 28
  %v2525 = vpop.permute.xlu0 %2524
  %2526 = vrot.lane.b32.xlu0 %v660, 28
  %v2527 = vpop.permute.xlu0 %2526
  %2528 = vrot.lane.b32.xlu0 %v663, 28
  %v2529 = vpop.permute.xlu0 %2528
  %2530 = vrot.lane.b32.xlu0 %v665, 28
  %v2531 = vpop.permute.xlu0 %2530
  %2532 = vrot.lane.b32.xlu0 %v668, 28
  %v2533 = vpop.permute.xlu0 %2532
  %2534 = vrot.lane.b32.xlu0 %v670, 28
  %v2535 = vpop.permute.xlu0 %2534
  %2536 = vrot.lane.b32.xlu0 %v1616, 28
  %v2537 = vpop.permute.xlu0 %2536
  %2538 = vrot.lane.b32.xlu0 %v1618, 28
  %v2539 = vpop.permute.xlu0 %2538
  %2540 = vrot.lane.b32.xlu0 %v2413, 28
  %v2541 = vpop.permute.xlu0 %2540
  %2542 = vrot.lane.b32.xlu0 %v2415, 28
  %v2543 = vpop.permute.xlu0 %2542
  %vm2608 = vcmask 261344
  %2609 = vst.msk [vmem:[#allocation4] sm:$0xff] %vm2608, %v2417
  %2610 = vst.msk [vmem:[#allocation4 + $0x8] sm:$0xff] %vm2608, %v2419
  %2611 = vst.msk [vmem:[#allocation4 + $0x10] sm:$0xff] %vm2608, %v2421
  %2612 = vst.msk [vmem:[#allocation4 + $0x18] sm:$0xff] %vm2608, %v2423
  %2613 = vst.msk [vmem:[#allocation4 + $0x20] sm:$0xff] %vm2608, %v2425
  %2614 = vst.msk [vmem:[#allocation4 + $0x28] sm:$0xff] %vm2608, %v2427
  %2615 = vst.msk [vmem:[#allocation4 + $0x30] sm:$0xff] %vm2608, %v2429
  %2616 = vst.msk [vmem:[#allocation4 + $0x38] sm:$0xff] %vm2608, %v2431
  %2617 = vst.msk [vmem:[#allocation4 + $0x40] sm:$0xff] %vm2608, %v2433
  %2618 = vst.msk [vmem:[#allocation4 + $0x48] sm:$0xff] %vm2608, %v2435
  %2619 = vst.msk [vmem:[#allocation4 + $0x50] sm:$0xff] %vm2608, %v2437
  %2620 = vst.msk [vmem:[#allocation4 + $0x58] sm:$0xff] %vm2608, %v2439
  %2621 = vst.msk [vmem:[#allocation4 + $0x60] sm:$0xff] %vm2608, %v2441
  %2622 = vst.msk [vmem:[#allocation4 + $0x68] sm:$0xff] %vm2608, %v2443
  %2623 = vst.msk [vmem:[#allocation4 + $0x70] sm:$0xff] %vm2608, %v2445
  %2624 = vst.msk [vmem:[#allocation4 + $0x78] sm:$0xff] %vm2608, %v2447
  %2625 = vst.msk [vmem:[#allocation4 + $0x80] sm:$0xff] %vm2608, %v2449
  %2626 = vst.msk [vmem:[#allocation4 + $0x88] sm:$0xff] %vm2608, %v2451
  %2627 = vst.msk [vmem:[#allocation4 + $0x90] sm:$0xff] %vm2608, %v2453
  %2628 = vst.msk [vmem:[#allocation4 + $0x98] sm:$0xff] %vm2608, %v2455
  %2629 = vst.msk [vmem:[#allocation4 + $0xa0] sm:$0xff] %vm2608, %v2457
  %2630 = vst.msk [vmem:[#allocation4 + $0xa8] sm:$0xff] %vm2608, %v2459
  %2631 = vst.msk [vmem:[#allocation4 + $0xb0] sm:$0xff] %vm2608, %v2461
  %2632 = vst.msk [vmem:[#allocation4 + $0xb8] sm:$0xff] %vm2608, %v2463
  %2633 = vst.msk [vmem:[#allocation4 + $0xc0] sm:$0xff] %vm2608, %v2465
  %2634 = vst.msk [vmem:[#allocation4 + $0xc8] sm:$0xff] %vm2608, %v2467
  %2635 = vst.msk [vmem:[#allocation4 + $0xd0] sm:$0xff] %vm2608, %v2469
  %2636 = vst.msk [vmem:[#allocation4 + $0xd8] sm:$0xff] %vm2608, %v2471
  %2637 = vst.msk [vmem:[#allocation4 + $0xe0] sm:$0xff] %vm2608, %v2473
  %2638 = vst.msk [vmem:[#allocation4 + $0xe8] sm:$0xff] %vm2608, %v2475
  %2639 = vst.msk [vmem:[#allocation4 + $0xf0] sm:$0xff] %vm2608, %v2477
  %2640 = vst.msk [vmem:[#allocation4 + $0xf8] sm:$0xff] %vm2608, %v2479
  %2641 = vst.msk [vmem:[#allocation4 + $0x100] sm:$0xff] %vm2608, %v2481
  %2642 = vst.msk [vmem:[#allocation4 + $0x108] sm:$0xff] %vm2608, %v2483
  %2643 = vst.msk [vmem:[#allocation4 + $0x110] sm:$0xff] %vm2608, %v2485
  %2644 = vst.msk [vmem:[#allocation4 + $0x118] sm:$0xff] %vm2608, %v2487
  %2645 = vst.msk [vmem:[#allocation4 + $0x120] sm:$0xff] %vm2608, %v2489
  %2646 = vst.msk [vmem:[#allocation4 + $0x128] sm:$0xff] %vm2608, %v2491
  %2647 = vst.msk [vmem:[#allocation4 + $0x130] sm:$0xff] %vm2608, %v2493
  %2648 = vst.msk [vmem:[#allocation4 + $0x138] sm:$0xff] %vm2608, %v2495
  %2649 = vst.msk [vmem:[#allocation4 + $0x140] sm:$0xff] %vm2608, %v2497
  %2650 = vst.msk [vmem:[#allocation4 + $0x148] sm:$0xff] %vm2608, %v2499
  %2651 = vst.msk [vmem:[#allocation4 + $0x150] sm:$0xff] %vm2608, %v2501
  %2652 = vst.msk [vmem:[#allocation4 + $0x158] sm:$0xff] %vm2608, %v2503
  %2653 = vst.msk [vmem:[#allocation4 + $0x160] sm:$0xff] %vm2608, %v2505
  %2654 = vst.msk [vmem:[#allocation4 + $0x168] sm:$0xff] %vm2608, %v2507
  %2655 = vst.msk [vmem:[#allocation4 + $0x170] sm:$0xff] %vm2608, %v2509
  %2656 = vst.msk [vmem:[#allocation4 + $0x178] sm:$0xff] %vm2608, %v2511
  %2657 = vst.msk [vmem:[#allocation4 + $0x180] sm:$0xff] %vm2608, %v2513
  %2658 = vst.msk [vmem:[#allocation4 + $0x188] sm:$0xff] %vm2608, %v2515
  %2659 = vst.msk [vmem:[#allocation4 + $0x190] sm:$0xff] %vm2608, %v2517
  %2660 = vst.msk [vmem:[#allocation4 + $0x198] sm:$0xff] %vm2608, %v2519
  %2661 = vst.msk [vmem:[#allocation4 + $0x1a0] sm:$0xff] %vm2608, %v2521
  %2662 = vst.msk [vmem:[#allocation4 + $0x1a8] sm:$0xff] %vm2608, %v2523
  %2663 = vst.msk [vmem:[#allocation4 + $0x1b0] sm:$0xff] %vm2608, %v2525
  %2664 = vst.msk [vmem:[#allocation4 + $0x1b8] sm:$0xff] %vm2608, %v2527
  %2665 = vst.msk [vmem:[#allocation4 + $0x1c0] sm:$0xff] %vm2608, %v2529
  %2666 = vst.msk [vmem:[#allocation4 + $0x1c8] sm:$0xff] %vm2608, %v2531
  %2667 = vst.msk [vmem:[#allocation4 + $0x1d0] sm:$0xff] %vm2608, %v2533
  %2668 = vst.msk [vmem:[#allocation4 + $0x1d8] sm:$0xff] %vm2608, %v2535
  %2669 = vst.msk [vmem:[#allocation4 + $0x1e0] sm:$0xff] %vm2608, %v2537
  %2670 = vst.msk [vmem:[#allocation4 + $0x1e8] sm:$0xff] %vm2608, %v2539
  %2671 = vst.msk [vmem:[#allocation4 + $0x1f0] sm:$0xff] %vm2608, %v2541
  %2672 = vst.msk [vmem:[#allocation4 + $0x1f8] sm:$0xff] %vm2608, %v2543
  %v2673 = vrot.slane %v293, 2
  %v2674 = vrot.slane %v294, 2
  %v2675 = vsel %vm928, %v2673, %v2674
  %v2676 = vrot.slane %v295, 2
  %v2677 = vsel %vm928, %v2674, %v2676
  %v2678 = vrot.slane %v347, 2
  %v2679 = vrot.slane %v348, 2
  %v2680 = vsel %vm928, %v2678, %v2679
  %v2681 = vrot.slane %v349, 2
  %v2682 = vsel %vm928, %v2679, %v2681
  %2683 = vrot.lane.b32.xlu0 %v941, 32
  %v2684 = vpop.permute.xlu0 %2683
  %2685 = vrot.lane.b32.xlu0 %v943, 32
  %v2686 = vpop.permute.xlu0 %2685
  %2687 = vrot.lane.b32.xlu0 %v946, 32
  %v2688 = vpop.permute.xlu0 %2687
  %2689 = vrot.lane.b32.xlu0 %v948, 32
  %v2690 = vpop.permute.xlu0 %2689
  %2691 = vrot.lane.b32.xlu0 %v951, 32
  %v2692 = vpop.permute.xlu0 %2691
  %2693 = vrot.lane.b32.xlu0 %v953, 32
  %v2694 = vpop.permute.xlu0 %2693
  %2695 = vrot.lane.b32.xlu0 %v956, 32
  %v2696 = vpop.permute.xlu0 %2695
  %2697 = vrot.lane.b32.xlu0 %v958, 32
  %v2698 = vpop.permute.xlu0 %2697
  %2699 = vrot.lane.b32.xlu0 %v961, 32
  %v2700 = vpop.permute.xlu0 %2699
  %2701 = vrot.lane.b32.xlu0 %v963, 32
  %v2702 = vpop.permute.xlu0 %2701
  %2703 = vrot.lane.b32.xlu0 %v966, 32
  %v2704 = vpop.permute.xlu0 %2703
  %2705 = vrot.lane.b32.xlu0 %v968, 32
  %v2706 = vpop.permute.xlu0 %2705
  %2707 = vrot.lane.b32.xlu0 %v971, 32
  %v2708 = vpop.permute.xlu0 %2707
  %2709 = vrot.lane.b32.xlu0 %v973, 32
  %v2710 = vpop.permute.xlu0 %2709
  %2711 = vrot.lane.b32.xlu0 %v976, 32
  %v2712 = vpop.permute.xlu0 %2711
  %2713 = vrot.lane.b32.xlu0 %v978, 32
  %v2714 = vpop.permute.xlu0 %2713
  %2715 = vrot.lane.b32.xlu0 %v981, 32
  %v2716 = vpop.permute.xlu0 %2715
  %2717 = vrot.lane.b32.xlu0 %v983, 32
  %v2718 = vpop.permute.xlu0 %2717
  %2719 = vrot.lane.b32.xlu0 %v986, 32
  %v2720 = vpop.permute.xlu0 %2719
  %2721 = vrot.lane.b32.xlu0 %v988, 32
  %v2722 = vpop.permute.xlu0 %2721
  %2723 = vrot.lane.b32.xlu0 %v991, 32
  %v2724 = vpop.permute.xlu0 %2723
  %2725 = vrot.lane.b32.xlu0 %v993, 32
  %v2726 = vpop.permute.xlu0 %2725
  %2727 = vrot.lane.b32.xlu0 %v996, 32
  %v2728 = vpop.permute.xlu0 %2727
  %2729 = vrot.lane.b32.xlu0 %v998, 32
  %v2730 = vpop.permute.xlu0 %2729
  %2731 = vrot.lane.b32.xlu0 %v1001, 32
  %v2732 = vpop.permute.xlu0 %2731
  %2733 = vrot.lane.b32.xlu0 %v1003, 32
  %v2734 = vpop.permute.xlu0 %2733
  %2735 = vrot.lane.b32.xlu0 %v1006, 32
  %v2736 = vpop.permute.xlu0 %2735
  %2737 = vrot.lane.b32.xlu0 %v1008, 32
  %v2738 = vpop.permute.xlu0 %2737
  %2739 = vrot.lane.b32.xlu0 %v1878, 32
  %v2740 = vpop.permute.xlu0 %2739
  %2741 = vrot.lane.b32.xlu0 %v1880, 32
  %v2742 = vpop.permute.xlu0 %2741
  %2743 = vrot.lane.b32.xlu0 %v2675, 32
  %v2744 = vpop.permute.xlu0 %2743
  %2745 = vrot.lane.b32.xlu0 %v2677, 32
  %v2746 = vpop.permute.xlu0 %2745
  %2747 = vrot.lane.b32.xlu0 %v1021, 32
  %v2748 = vpop.permute.xlu0 %2747
  %2749 = vrot.lane.b32.xlu0 %v1023, 32
  %v2750 = vpop.permute.xlu0 %2749
  %2751 = vrot.lane.b32.xlu0 %v1026, 32
  %v2752 = vpop.permute.xlu0 %2751
  %2753 = vrot.lane.b32.xlu0 %v1028, 32
  %v2754 = vpop.permute.xlu0 %2753
  %2755 = vrot.lane.b32.xlu0 %v1031, 32
  %v2756 = vpop.permute.xlu0 %2755
  %2757 = vrot.lane.b32.xlu0 %v1033, 32
  %v2758 = vpop.permute.xlu0 %2757
  %2759 = vrot.lane.b32.xlu0 %v1036, 32
  %v2760 = vpop.permute.xlu0 %2759
  %2761 = vrot.lane.b32.xlu0 %v1038, 32
  %v2762 = vpop.permute.xlu0 %2761
  %2763 = vrot.lane.b32.xlu0 %v1041, 32
  %v2764 = vpop.permute.xlu0 %2763
  %2765 = vrot.lane.b32.xlu0 %v1043, 32
  %v2766 = vpop.permute.xlu0 %2765
  %2767 = vrot.lane.b32.xlu0 %v1046, 32
  %v2768 = vpop.permute.xlu0 %2767
  %2769 = vrot.lane.b32.xlu0 %v1048, 32
  %v2770 = vpop.permute.xlu0 %2769
  %2771 = vrot.lane.b32.xlu0 %v1051, 32
  %v2772 = vpop.permute.xlu0 %2771
  %2773 = vrot.lane.b32.xlu0 %v1053, 32
  %v2774 = vpop.permute.xlu0 %2773
  %2775 = vrot.lane.b32.xlu0 %v1056, 32
  %v2776 = vpop.permute.xlu0 %2775
  %2777 = vrot.lane.b32.xlu0 %v1058, 32
  %v2778 = vpop.permute.xlu0 %2777
  %2779 = vrot.lane.b32.xlu0 %v1061, 32
  %v2780 = vpop.permute.xlu0 %2779
  %2781 = vrot.lane.b32.xlu0 %v1063, 32
  %v2782 = vpop.permute.xlu0 %2781
  %2783 = vrot.lane.b32.xlu0 %v1066, 32
  %v2784 = vpop.permute.xlu0 %2783
  %2785 = vrot.lane.b32.xlu0 %v1068, 32
  %v2786 = vpop.permute.xlu0 %2785
  %2787 = vrot.lane.b32.xlu0 %v1071, 32
  %v2788 = vpop.permute.xlu0 %2787
  %2789 = vrot.lane.b32.xlu0 %v1073, 32
  %v2790 = vpop.permute.xlu0 %2789
  %2791 = vrot.lane.b32.xlu0 %v1076, 32
  %v2792 = vpop.permute.xlu0 %2791
  %2793 = vrot.lane.b32.xlu0 %v1078, 32
  %v2794 = vpop.permute.xlu0 %2793
  %2795 = vrot.lane.b32.xlu0 %v1081, 32
  %v2796 = vpop.permute.xlu0 %2795
  %2797 = vrot.lane.b32.xlu0 %v1083, 32
  %v2798 = vpop.permute.xlu0 %2797
  %2799 = vrot.lane.b32.xlu0 %v1086, 32
  %v2800 = vpop.permute.xlu0 %2799
  %2801 = vrot.lane.b32.xlu0 %v1088, 32
  %v2802 = vpop.permute.xlu0 %2801
  %2803 = vrot.lane.b32.xlu0 %v1883, 32
  %v2804 = vpop.permute.xlu0 %2803
  %2805 = vrot.lane.b32.xlu0 %v1885, 32
  %v2806 = vpop.permute.xlu0 %2805
  %2807 = vrot.lane.b32.xlu0 %v2680, 32
  %v2808 = vpop.permute.xlu0 %2807
  %2809 = vrot.lane.b32.xlu0 %v2682, 32
  %v2810 = vpop.permute.xlu0 %2809
  %vm2875 = vcmask 294144
  %2876 = vst.msk [vmem:[#allocation4] sm:$0xff] %vm2875, %v2684
  %2877 = vst.msk [vmem:[#allocation4 + $0x8] sm:$0xff] %vm2875, %v2686
  %2878 = vst.msk [vmem:[#allocation4 + $0x10] sm:$0xff] %vm2875, %v2688
  %2879 = vst.msk [vmem:[#allocation4 + $0x18] sm:$0xff] %vm2875, %v2690
  %2880 = vst.msk [vmem:[#allocation4 + $0x20] sm:$0xff] %vm2875, %v2692
  %2881 = vst.msk [vmem:[#allocation4 + $0x28] sm:$0xff] %vm2875, %v2694
  %2882 = vst.msk [vmem:[#allocation4 + $0x30] sm:$0xff] %vm2875, %v2696
  %2883 = vst.msk [vmem:[#allocation4 + $0x38] sm:$0xff] %vm2875, %v2698
  %2884 = vst.msk [vmem:[#allocation4 + $0x40] sm:$0xff] %vm2875, %v2700
  %2885 = vst.msk [vmem:[#allocation4 + $0x48] sm:$0xff] %vm2875, %v2702
  %2886 = vst.msk [vmem:[#allocation4 + $0x50] sm:$0xff] %vm2875, %v2704
  %2887 = vst.msk [vmem:[#allocation4 + $0x58] sm:$0xff] %vm2875, %v2706
  %2888 = vst.msk [vmem:[#allocation4 + $0x60] sm:$0xff] %vm2875, %v2708
  %2889 = vst.msk [vmem:[#allocation4 + $0x68] sm:$0xff] %vm2875, %v2710
  %2890 = vst.msk [vmem:[#allocation4 + $0x70] sm:$0xff] %vm2875, %v2712
  %2891 = vst.msk [vmem:[#allocation4 + $0x78] sm:$0xff] %vm2875, %v2714
  %2892 = vst.msk [vmem:[#allocation4 + $0x80] sm:$0xff] %vm2875, %v2716
  %2893 = vst.msk [vmem:[#allocation4 + $0x88] sm:$0xff] %vm2875, %v2718
  %2894 = vst.msk [vmem:[#allocation4 + $0x90] sm:$0xff] %vm2875, %v2720
  %2895 = vst.msk [vmem:[#allocation4 + $0x98] sm:$0xff] %vm2875, %v2722
  %2896 = vst.msk [vmem:[#allocation4 + $0xa0] sm:$0xff] %vm2875, %v2724
  %2897 = vst.msk [vmem:[#allocation4 + $0xa8] sm:$0xff] %vm2875, %v2726
  %2898 = vst.msk [vmem:[#allocation4 + $0xb0] sm:$0xff] %vm2875, %v2728
  %2899 = vst.msk [vmem:[#allocation4 + $0xb8] sm:$0xff] %vm2875, %v2730
  %2900 = vst.msk [vmem:[#allocation4 + $0xc0] sm:$0xff] %vm2875, %v2732
  %2901 = vst.msk [vmem:[#allocation4 + $0xc8] sm:$0xff] %vm2875, %v2734
  %2902 = vst.msk [vmem:[#allocation4 + $0xd0] sm:$0xff] %vm2875, %v2736
  %2903 = vst.msk [vmem:[#allocation4 + $0xd8] sm:$0xff] %vm2875, %v2738
  %2904 = vst.msk [vmem:[#allocation4 + $0xe0] sm:$0xff] %vm2875, %v2740
  %2905 = vst.msk [vmem:[#allocation4 + $0xe8] sm:$0xff] %vm2875, %v2742
  %2906 = vst.msk [vmem:[#allocation4 + $0xf0] sm:$0xff] %vm2875, %v2744
  %2907 = vst.msk [vmem:[#allocation4 + $0xf8] sm:$0xff] %vm2875, %v2746
  %2908 = vst.msk [vmem:[#allocation4 + $0x100] sm:$0xff] %vm2875, %v2748
  %2909 = vst.msk [vmem:[#allocation4 + $0x108] sm:$0xff] %vm2875, %v2750
  %2910 = vst.msk [vmem:[#allocation4 + $0x110] sm:$0xff] %vm2875, %v2752
  %2911 = vst.msk [vmem:[#allocation4 + $0x118] sm:$0xff] %vm2875, %v2754
  %2912 = vst.msk [vmem:[#allocation4 + $0x120] sm:$0xff] %vm2875, %v2756
  %2913 = vst.msk [vmem:[#allocation4 + $0x128] sm:$0xff] %vm2875, %v2758
  %2914 = vst.msk [vmem:[#allocation4 + $0x130] sm:$0xff] %vm2875, %v2760
  %2915 = vst.msk [vmem:[#allocation4 + $0x138] sm:$0xff] %vm2875, %v2762
  %2916 = vst.msk [vmem:[#allocation4 + $0x140] sm:$0xff] %vm2875, %v2764
  %2917 = vst.msk [vmem:[#allocation4 + $0x148] sm:$0xff] %vm2875, %v2766
  %2918 = vst.msk [vmem:[#allocation4 + $0x150] sm:$0xff] %vm2875, %v2768
  %2919 = vst.msk [vmem:[#allocation4 + $0x158] sm:$0xff] %vm2875, %v2770
  %2920 = vst.msk [vmem:[#allocation4 + $0x160] sm:$0xff] %vm2875, %v2772
  %2921 = vst.msk [vmem:[#allocation4 + $0x168] sm:$0xff] %vm2875, %v2774
  %2922 = vst.msk [vmem:[#allocation4 + $0x170] sm:$0xff] %vm2875, %v2776
  %2923 = vst.msk [vmem:[#allocation4 + $0x178] sm:$0xff] %vm2875, %v2778
  %2924 = vst.msk [vmem:[#allocation4 + $0x180] sm:$0xff] %vm2875, %v2780
  %2925 = vst.msk [vmem:[#allocation4 + $0x188] sm:$0xff] %vm2875, %v2782
  %2926 = vst.msk [vmem:[#allocation4 + $0x190] sm:$0xff] %vm2875, %v2784
  %2927 = vst.msk [vmem:[#allocation4 + $0x198] sm:$0xff] %vm2875, %v2786
  %2928 = vst.msk [vmem:[#allocation4 + $0x1a0] sm:$0xff] %vm2875, %v2788
  %2929 = vst.msk [vmem:[#allocation4 + $0x1a8] sm:$0xff] %vm2875, %v2790
  %2930 = vst.msk [vmem:[#allocation4 + $0x1b0] sm:$0xff] %vm2875, %v2792
  %2931 = vst.msk [vmem:[#allocation4 + $0x1b8] sm:$0xff] %vm2875, %v2794
  %2932 = vst.msk [vmem:[#allocation4 + $0x1c0] sm:$0xff] %vm2875, %v2796
  %2933 = vst.msk [vmem:[#allocation4 + $0x1c8] sm:$0xff] %vm2875, %v2798
  %2934 = vst.msk [vmem:[#allocation4 + $0x1d0] sm:$0xff] %vm2875, %v2800
  %2935 = vst.msk [vmem:[#allocation4 + $0x1d8] sm:$0xff] %vm2875, %v2802
  %2936 = vst.msk [vmem:[#allocation4 + $0x1e0] sm:$0xff] %vm2875, %v2804
  %2937 = vst.msk [vmem:[#allocation4 + $0x1e8] sm:$0xff] %vm2875, %v2806
  %2938 = vst.msk [vmem:[#allocation4 + $0x1f0] sm:$0xff] %vm2875, %v2808
  %2939 = vst.msk [vmem:[#allocation4 + $0x1f8] sm:$0xff] %vm2875, %v2810
  %v2940 = vld [vmem:[#allocation4] sm:$0xff]
  %v2941 = vld [vmem:[#allocation4 + $0x8] sm:$0xff]
  %v2942 = vld [vmem:[#allocation4 + $0x10] sm:$0xff]
  %v2943 = vld [vmem:[#allocation4 + $0x18] sm:$0xff]
  %v2944 = vld [vmem:[#allocation4 + $0x20] sm:$0xff]
  %v2945 = vld [vmem:[#allocation4 + $0x28] sm:$0xff]
  %v2946 = vld [vmem:[#allocation4 + $0x30] sm:$0xff]
  %v2947 = vld [vmem:[#allocation4 + $0x38] sm:$0xff]
  %v2948 = vld [vmem:[#allocation4 + $0x40] sm:$0xff]
  %v2949 = vld [vmem:[#allocation4 + $0x48] sm:$0xff]
  %v2950 = vld [vmem:[#allocation4 + $0x50] sm:$0xff]
  %v2951 = vld [vmem:[#allocation4 + $0x58] sm:$0xff]
  %v2952 = vld [vmem:[#allocation4 + $0x60] sm:$0xff]
  %v2953 = vld [vmem:[#allocation4 + $0x68] sm:$0xff]
  %v2954 = vld [vmem:[#allocation4 + $0x70] sm:$0xff]
  %v2955 = vld [vmem:[#allocation4 + $0x78] sm:$0xff]
  %v2956 = vld [vmem:[#allocation4 + $0x80] sm:$0xff]
  %v2957 = vld [vmem:[#allocation4 + $0x88] sm:$0xff]
  %v2958 = vld [vmem:[#allocation4 + $0x90] sm:$0xff]
  %v2959 = vld [vmem:[#allocation4 + $0x98] sm:$0xff]
  %v2960 = vld [vmem:[#allocation4 + $0xa0] sm:$0xff]
  %v2961 = vld [vmem:[#allocation4 + $0xa8] sm:$0xff]
  %v2962 = vld [vmem:[#allocation4 + $0xb0] sm:$0xff]
  %v2963 = vld [vmem:[#allocation4 + $0xb8] sm:$0xff]
  %v2964 = vld [vmem:[#allocation4 + $0xc0] sm:$0xff]
  %v2965 = vld [vmem:[#allocation4 + $0xc8] sm:$0xff]
  %v2966 = vld [vmem:[#allocation4 + $0xd0] sm:$0xff]
  %v2967 = vld [vmem:[#allocation4 + $0xd8] sm:$0xff]
  %v2968 = vld [vmem:[#allocation4 + $0xe0] sm:$0xff]
  %v2969 = vld [vmem:[#allocation4 + $0xe8] sm:$0xff]
  %v2970 = vld [vmem:[#allocation4 + $0xf0] sm:$0xff]
  %v2971 = vld [vmem:[#allocation4 + $0xf8] sm:$0xff]
  %v2972 = vld [vmem:[#allocation4 + $0x100] sm:$0xff]
  %v2973 = vld [vmem:[#allocation4 + $0x108] sm:$0xff]
  %v2974 = vld [vmem:[#allocation4 + $0x110] sm:$0xff]
  %v2975 = vld [vmem:[#allocation4 + $0x118] sm:$0xff]
  %v2976 = vld [vmem:[#allocation4 + $0x120] sm:$0xff]
  %v2977 = vld [vmem:[#allocation4 + $0x128] sm:$0xff]
  %v2978 = vld [vmem:[#allocation4 + $0x130] sm:$0xff]
  %v2979 = vld [vmem:[#allocation4 + $0x138] sm:$0xff]
  %v2980 = vld [vmem:[#allocation4 + $0x140] sm:$0xff]
  %v2981 = vld [vmem:[#allocation4 + $0x148] sm:$0xff]
  %v2982 = vld [vmem:[#allocation4 + $0x150] sm:$0xff]
  %v2983 = vld [vmem:[#allocation4 + $0x158] sm:$0xff]
  %v2984 = vld [vmem:[#allocation4 + $0x160] sm:$0xff]
  %v2985 = vld [vmem:[#allocation4 + $0x168] sm:$0xff]
  %v2986 = vld [vmem:[#allocation4 + $0x170] sm:$0xff]
  %v2987 = vld [vmem:[#allocation4 + $0x178] sm:$0xff]
  %v2988 = vld [vmem:[#allocation4 + $0x180] sm:$0xff]
  %v2989 = vld [vmem:[#allocation4 + $0x188] sm:$0xff]
  %v2990 = vld [vmem:[#allocation4 + $0x190] sm:$0xff]
  %v2991 = vld [vmem:[#allocation4 + $0x198] sm:$0xff]
  %v2992 = vld [vmem:[#allocation4 + $0x1a0] sm:$0xff]
  %v2993 = vld [vmem:[#allocation4 + $0x1a8] sm:$0xff]
  %v2994 = vld [vmem:[#allocation4 + $0x1b0] sm:$0xff]
  %v2995 = vld [vmem:[#allocation4 + $0x1b8] sm:$0xff]
  %v2996 = vld [vmem:[#allocation4 + $0x1c0] sm:$0xff]
  %v2997 = vld [vmem:[#allocation4 + $0x1c8] sm:$0xff]
  %v2998 = vld [vmem:[#allocation4 + $0x1d0] sm:$0xff]
  %v2999 = vld [vmem:[#allocation4 + $0x1d8] sm:$0xff]
  %v3000 = vld [vmem:[#allocation4 + $0x1e0] sm:$0xff]
  %v3001 = vld [vmem:[#allocation4 + $0x1e8] sm:$0xff]
  %v3002 = vld [vmem:[#allocation4 + $0x1f0] sm:$0xff]
  %v3003 = vld [vmem:[#allocation4 + $0x1f8] sm:$0xff]
  %v3004 = vpack.c.bf16 %v2941, %v2940
  %v3005 = vpack.c.bf16 %v2943, %v2942
  %v3006 = vpack.c.bf16 %v2945, %v2944
  %v3007 = vpack.c.bf16 %v2947, %v2946
  %v3008 = vpack.c.bf16 %v2949, %v2948
  %v3009 = vpack.c.bf16 %v2951, %v2950
  %v3010 = vpack.c.bf16 %v2953, %v2952
  %v3011 = vpack.c.bf16 %v2955, %v2954
  %v3012 = vpack.c.bf16 %v2957, %v2956
  %v3013 = vpack.c.bf16 %v2959, %v2958
  %v3014 = vpack.c.bf16 %v2961, %v2960
  %v3015 = vpack.c.bf16 %v2963, %v2962
  %v3016 = vpack.c.bf16 %v2965, %v2964
  %v3017 = vpack.c.bf16 %v2967, %v2966
  %v3018 = vpack.c.bf16 %v2969, %v2968
  %v3019 = vpack.c.bf16 %v2971, %v2970
  %v3020 = vpack.c.bf16 %v2973, %v2972
  %v3021 = vpack.c.bf16 %v2975, %v2974
  %v3022 = vpack.c.bf16 %v2977, %v2976
  %v3023 = vpack.c.bf16 %v2979, %v2978
  %v3024 = vpack.c.bf16 %v2981, %v2980
  %v3025 = vpack.c.bf16 %v2983, %v2982
  %v3026 = vpack.c.bf16 %v2985, %v2984
  %v3027 = vpack.c.bf16 %v2987, %v2986
  %v3028 = vpack.c.bf16 %v2989, %v2988
  %v3029 = vpack.c.bf16 %v2991, %v2990
  %v3030 = vpack.c.bf16 %v2993, %v2992
  %v3031 = vpack.c.bf16 %v2995, %v2994
  %v3032 = vpack.c.bf16 %v2997, %v2996
  %v3033 = vpack.c.bf16 %v2999, %v2998
  %v3034 = vpack.c.bf16 %v3001, %v3000
  %v3035 = vpack.c.bf16 %v3003, %v3002
  %v3036 = vld [vmem:[%s1] sm:$0xf]
  %v3037 = vld [vmem:[%s1 + $0x4] sm:$0xf]
  %v3038 = vld [vmem:[%s1 + $0x8] sm:$0xf]
  %v3039 = vld [vmem:[%s1 + $0xc] sm:$0xf]
  %v3040 = vld [vmem:[%s1 + $0x10] sm:$0x3]
  %v3046 = vunpack.c.l.b16 %v3036
  %v3047 = vunpack.c.l.b16 %v3037
  %v3048 = vunpack.c.l.b16 %v3038
  %v3049 = vunpack.c.l.b16 %v3039
  %v3050 = vunpack.c.l.b16 %v3040
  %v3051 = vpack.c.b16 %v3047, %v3046
  %v3052 = vpack.c.b16 %v3049, %v3048
  %v3053 = vpack.c.b16 %v3050, %v3050
  %vm3056 = vcmask 293888
  %v3058 = vsel %vm3056, %v3004, 0
  %v3061 = vsel %vm3056, %v3005, 0
  %v3064 = vsel %vm3056, %v3006, 0
  %v3067 = vsel %vm3056, %v3007, 0
  %v3070 = vsel %vm3056, %v3008, 0
  %v3073 = vsel %vm3056, %v3009, 0
  %v3076 = vsel %vm3056, %v3010, 0
  %v3079 = vsel %vm3056, %v3011, 0
  %v3082 = vsel %vm3056, %v3012, 0
  %v3085 = vsel %vm3056, %v3013, 0
  %v3088 = vsel %vm3056, %v3014, 0
  %v3091 = vsel %vm3056, %v3015, 0
  %v3094 = vsel %vm3056, %v3016, 0
  %v3097 = vsel %vm3056, %v3017, 0
  %v3100 = vsel %vm3056, %v3018, 0
  %v3103 = vsel %vm3056, %v3019, 0
  %v3106 = vsel %vm3056, %v3020, 0
  %v3109 = vsel %vm3056, %v3021, 0
  %v3112 = vsel %vm3056, %v3022, 0
  %v3115 = vsel %vm3056, %v3023, 0
  %v3118 = vsel %vm3056, %v3024, 0
  %v3121 = vsel %vm3056, %v3025, 0
  %v3124 = vsel %vm3056, %v3026, 0
  %v3127 = vsel %vm3056, %v3027, 0
  %v3130 = vsel %vm3056, %v3028, 0
  %v3133 = vsel %vm3056, %v3029, 0
  %v3136 = vsel %vm3056, %v3030, 0
  %v3139 = vsel %vm3056, %v3031, 0
  %v3142 = vsel %vm3056, %v3032, 0
  %v3145 = vsel %vm3056, %v3033, 0
  %v3148 = vsel %vm3056, %v3034, 0
  %v3151 = vsel %vm3056, %v3035, 0
  %vm3153 = vcmask 1041408
  %v3155 = vsel %vm3153, %v3053, 0
  %3157 = vmatpush.bf16.msra.mxu0 0
  %3158 = vmatpush.bf16.msra.mxu0 0
  %3159 = vmatpush.bf16.msra.mxu0 0
  %3160 = vmatpush.bf16.msra.mxu0 0
  %3161 = vmatpush.bf16.msra.mxu0 0
  %3162 = vmatpush.bf16.msra.mxu0 %v3155
  %3163 = vmatpush.bf16.msra.mxu0 %v3052
  %3164 = vmatpush.bf16.msra.mxu0 %v3051
  %3165 = vmatmul.bf16.gmra.mxu0 %v3058
  %v3166 = vpop.f32.mrf.mxu0
  %v3167 = vadd.f32 0.0, %v3166
  %v3168 = vpop.f32.mrf.mxu0
  %v3169 = vadd.f32 0.0, %v3168
  %3170 = vmatmul.bf16.gmra.mxu0 %v3061
  %v3171 = vpop.f32.mrf.mxu0
  %v3172 = vadd.f32 0.0, %v3171
  %v3173 = vpop.f32.mrf.mxu0
  %v3174 = vadd.f32 0.0, %v3173
  %3175 = vmatmul.bf16.gmra.mxu0 %v3064
  %v3176 = vpop.f32.mrf.mxu0
  %v3177 = vadd.f32 0.0, %v3176
  %v3178 = vpop.f32.mrf.mxu0
  %v3179 = vadd.f32 0.0, %v3178
  %3180 = vmatmul.bf16.gmra.mxu0 %v3067
  %v3181 = vpop.f32.mrf.mxu0
  %v3182 = vadd.f32 0.0, %v3181
  %v3183 = vpop.f32.mrf.mxu0
  %v3184 = vadd.f32 0.0, %v3183
  %3185 = vmatmul.bf16.gmra.mxu0 %v3070
  %v3186 = vpop.f32.mrf.mxu0
  %v3187 = vadd.f32 0.0, %v3186
  %v3188 = vpop.f32.mrf.mxu0
  %v3189 = vadd.f32 0.0, %v3188
  %3190 = vmatmul.bf16.gmra.mxu0 %v3073
  %v3191 = vpop.f32.mrf.mxu0
  %v3192 = vadd.f32 0.0, %v3191
  %v3193 = vpop.f32.mrf.mxu0
  %v3194 = vadd.f32 0.0, %v3193
  %3195 = vmatmul.bf16.gmra.mxu0 %v3076
  %v3196 = vpop.f32.mrf.mxu0
  %v3197 = vadd.f32 0.0, %v3196
  %v3198 = vpop.f32.mrf.mxu0
  %v3199 = vadd.f32 0.0, %v3198
  %3200 = vmatmul.bf16.gmra.mxu0 %v3079
  %v3201 = vpop.f32.mrf.mxu0
  %v3202 = vadd.f32 0.0, %v3201
  %v3203 = vpop.f32.mrf.mxu0
  %v3204 = vadd.f32 0.0, %v3203
  %3205 = vmatmul.bf16.gmra.mxu0 %v3082
  %v3206 = vpop.f32.mrf.mxu0
  %v3207 = vadd.f32 0.0, %v3206
  %v3208 = vpop.f32.mrf.mxu0
  %v3209 = vadd.f32 0.0, %v3208
  %3210 = vmatmul.bf16.gmra.mxu0 %v3085
  %v3211 = vpop.f32.mrf.mxu0
  %v3212 = vadd.f32 0.0, %v3211
  %v3213 = vpop.f32.mrf.mxu0
  %v3214 = vadd.f32 0.0, %v3213
  %3215 = vmatmul.bf16.gmra.mxu0 %v3088
  %v3216 = vpop.f32.mrf.mxu0
  %v3217 = vadd.f32 0.0, %v3216
  %v3218 = vpop.f32.mrf.mxu0
  %v3219 = vadd.f32 0.0, %v3218
  %3220 = vmatmul.bf16.gmra.mxu0 %v3091
  %v3221 = vpop.f32.mrf.mxu0
  %v3222 = vadd.f32 0.0, %v3221
  %v3223 = vpop.f32.mrf.mxu0
  %v3224 = vadd.f32 0.0, %v3223
  %3225 = vmatmul.bf16.gmra.mxu0 %v3094
  %v3226 = vpop.f32.mrf.mxu0
  %v3227 = vadd.f32 0.0, %v3226
  %v3228 = vpop.f32.mrf.mxu0
  %v3229 = vadd.f32 0.0, %v3228
  %3230 = vmatmul.bf16.gmra.mxu0 %v3097
  %v3231 = vpop.f32.mrf.mxu0
  %v3232 = vadd.f32 0.0, %v3231
  %v3233 = vpop.f32.mrf.mxu0
  %v3234 = vadd.f32 0.0, %v3233
  %3235 = vmatmul.bf16.gmra.mxu0 %v3100
  %v3236 = vpop.f32.mrf.mxu0
  %v3237 = vadd.f32 0.0, %v3236
  %v3238 = vpop.f32.mrf.mxu0
  %v3239 = vadd.f32 0.0, %v3238
  %3240 = vmatmul.bf16.gmra.mxu0 %v3103
  %v3241 = vpop.f32.mrf.mxu0
  %v3242 = vadd.f32 0.0, %v3241
  %v3243 = vpop.f32.mrf.mxu0
  %v3244 = vadd.f32 0.0, %v3243
  %3245 = vmatmul.bf16.gmra.mxu0 %v3106
  %v3246 = vpop.f32.mrf.mxu0
  %v3247 = vadd.f32 0.0, %v3246
  %v3248 = vpop.f32.mrf.mxu0
  %v3249 = vadd.f32 0.0, %v3248
  %3250 = vmatmul.bf16.gmra.mxu0 %v3109
  %v3251 = vpop.f32.mrf.mxu0
  %v3252 = vadd.f32 0.0, %v3251
  %v3253 = vpop.f32.mrf.mxu0
  %v3254 = vadd.f32 0.0, %v3253
  %3255 = vmatmul.bf16.gmra.mxu0 %v3112
  %v3256 = vpop.f32.mrf.mxu0
  %v3257 = vadd.f32 0.0, %v3256
  %v3258 = vpop.f32.mrf.mxu0
  %v3259 = vadd.f32 0.0, %v3258
  %3260 = vmatmul.bf16.gmra.mxu0 %v3115
  %v3261 = vpop.f32.mrf.mxu0
  %v3262 = vadd.f32 0.0, %v3261
  %v3263 = vpop.f32.mrf.mxu0
  %v3264 = vadd.f32 0.0, %v3263
  %3265 = vmatmul.bf16.gmra.mxu0 %v3118
  %v3266 = vpop.f32.mrf.mxu0
  %v3267 = vadd.f32 0.0, %v3266
  %v3268 = vpop.f32.mrf.mxu0
  %v3269 = vadd.f32 0.0, %v3268
  %3270 = vmatmul.bf16.gmra.mxu0 %v3121
  %v3271 = vpop.f32.mrf.mxu0
  %v3272 = vadd.f32 0.0, %v3271
  %v3273 = vpop.f32.mrf.mxu0
  %v3274 = vadd.f32 0.0, %v3273
  %3275 = vmatmul.bf16.gmra.mxu0 %v3124
  %v3276 = vpop.f32.mrf.mxu0
  %v3277 = vadd.f32 0.0, %v3276
  %v3278 = vpop.f32.mrf.mxu0
  %v3279 = vadd.f32 0.0, %v3278
  %3280 = vmatmul.bf16.gmra.mxu0 %v3127
  %v3281 = vpop.f32.mrf.mxu0
  %v3282 = vadd.f32 0.0, %v3281
  %v3283 = vpop.f32.mrf.mxu0
  %v3284 = vadd.f32 0.0, %v3283
  %3285 = vmatmul.bf16.gmra.mxu0 %v3130
  %v3286 = vpop.f32.mrf.mxu0
  %v3287 = vadd.f32 0.0, %v3286
  %v3288 = vpop.f32.mrf.mxu0
  %v3289 = vadd.f32 0.0, %v3288
  %3290 = vmatmul.bf16.gmra.mxu0 %v3133
  %v3291 = vpop.f32.mrf.mxu0
  %v3292 = vadd.f32 0.0, %v3291
  %v3293 = vpop.f32.mrf.mxu0
  %v3294 = vadd.f32 0.0, %v3293
  %3295 = vmatmul.bf16.gmra.mxu0 %v3136
  %v3296 = vpop.f32.mrf.mxu0
  %v3297 = vadd.f32 0.0, %v3296
  %v3298 = vpop.f32.mrf.mxu0
  %v3299 = vadd.f32 0.0, %v3298
  %3300 = vmatmul.bf16.gmra.mxu0 %v3139
  %v3301 = vpop.f32.mrf.mxu0
  %v3302 = vadd.f32 0.0, %v3301
  %v3303 = vpop.f32.mrf.mxu0
  %v3304 = vadd.f32 0.0, %v3303
  %3305 = vmatmul.bf16.gmra.mxu0 %v3142
  %v3306 = vpop.f32.mrf.mxu0
  %v3307 = vadd.f32 0.0, %v3306
  %v3308 = vpop.f32.mrf.mxu0
  %v3309 = vadd.f32 0.0, %v3308
  %3310 = vmatmul.bf16.gmra.mxu0 %v3145
  %v3311 = vpop.f32.mrf.mxu0
  %v3312 = vadd.f32 0.0, %v3311
  %v3313 = vpop.f32.mrf.mxu0
  %v3314 = vadd.f32 0.0, %v3313
  %3315 = vmatmul.bf16.gmra.mxu0 %v3148
  %v3316 = vpop.f32.mrf.mxu0
  %v3317 = vadd.f32 0.0, %v3316
  %v3318 = vpop.f32.mrf.mxu0
  %v3319 = vadd.f32 0.0, %v3318
  %3320 = vmatmul.bf16.gmra.mxu0 %v3151
  %v3321 = vpop.f32.mrf.mxu0
  %v3322 = vadd.f32 0.0, %v3321
  %v3323 = vpop.f32.mrf.mxu0
  %v3324 = vadd.f32 0.0, %v3323
  %3325 = vdwg.mxu0
  %v3326 = vld [vmem:[%s3] sm:$0x1]
  %v3327 = vld [vmem:[%s4] sm:$0x1]
  %vm3328 = vcmask 64512
  %v3329 = vsel %vm3328, %v3167, 0.0
  %v3330 = vsel %vm3328, %v3169, 0.0
  %v3331 = vadd.f32 %v3329, %v3330
  %v3332 = vsel %vm3328, %v3172, 0.0
  %v3333 = vadd.f32 %v3331, %v3332
  %v3334 = vsel %vm3328, %v3174, 0.0
  %v3335 = vadd.f32 %v3333, %v3334
  %v3336 = vsel %vm3328, %v3177, 0.0
  %v3337 = vadd.f32 %v3335, %v3336
  %v3338 = vsel %vm3328, %v3179, 0.0
  %v3339 = vadd.f32 %v3337, %v3338
  %v3340 = vsel %vm3328, %v3182, 0.0
  %v3341 = vadd.f32 %v3339, %v3340
  %v3342 = vsel %vm3328, %v3184, 0.0
  %v3343 = vadd.f32 %v3341, %v3342
  %v3344 = vsel %vm3328, %v3187, 0.0
  %v3345 = vadd.f32 %v3343, %v3344
  %v3346 = vsel %vm3328, %v3189, 0.0
  %v3347 = vadd.f32 %v3345, %v3346
  %v3348 = vsel %vm3328, %v3192, 0.0
  %v3349 = vadd.f32 %v3347, %v3348
  %v3350 = vsel %vm3328, %v3194, 0.0
  %v3351 = vadd.f32 %v3349, %v3350
  %v3352 = vsel %vm3328, %v3197, 0.0
  %v3353 = vadd.f32 %v3351, %v3352
  %v3354 = vsel %vm3328, %v3199, 0.0
  %v3355 = vadd.f32 %v3353, %v3354
  %v3356 = vsel %vm3328, %v3202, 0.0
  %v3357 = vadd.f32 %v3355, %v3356
  %v3358 = vsel %vm3328, %v3204, 0.0
  %v3359 = vadd.f32 %v3357, %v3358
  %v3360 = vsel %vm3328, %v3207, 0.0
  %v3361 = vadd.f32 %v3359, %v3360
  %v3362 = vsel %vm3328, %v3209, 0.0
  %v3363 = vadd.f32 %v3361, %v3362
  %v3364 = vsel %vm3328, %v3212, 0.0
  %v3365 = vadd.f32 %v3363, %v3364
  %v3366 = vsel %vm3328, %v3214, 0.0
  %v3367 = vadd.f32 %v3365, %v3366
  %v3368 = vsel %vm3328, %v3217, 0.0
  %v3369 = vadd.f32 %v3367, %v3368
  %v3370 = vsel %vm3328, %v3219, 0.0
  %v3371 = vadd.f32 %v3369, %v3370
  %v3372 = vsel %vm3328, %v3222, 0.0
  %v3373 = vadd.f32 %v3371, %v3372
  %v3374 = vsel %vm3328, %v3224, 0.0
  %v3375 = vadd.f32 %v3373, %v3374
  %v3376 = vsel %vm3328, %v3227, 0.0
  %v3377 = vadd.f32 %v3375, %v3376
  %v3378 = vsel %vm3328, %v3229, 0.0
  %v3379 = vadd.f32 %v3377, %v3378
  %v3380 = vsel %vm3328, %v3232, 0.0
  %v3381 = vadd.f32 %v3379, %v3380
  %v3382 = vsel %vm3328, %v3234, 0.0
  %v3383 = vadd.f32 %v3381, %v3382
  %v3384 = vsel %vm3328, %v3237, 0.0
  %v3385 = vadd.f32 %v3383, %v3384
  %v3386 = vsel %vm3328, %v3239, 0.0
  %v3387 = vadd.f32 %v3385, %v3386
  %v3388 = vsel %vm3328, %v3242, 0.0
  %v3389 = vadd.f32 %v3387, %v3388
  %v3390 = vsel %vm3328, %v3244, 0.0
  %v3391 = vadd.f32 %v3389, %v3390
  %v3392 = vsel %vm3328, %v3247, 0.0
  %v3393 = vadd.f32 %v3391, %v3392
  %v3394 = vsel %vm3328, %v3249, 0.0
  %v3395 = vadd.f32 %v3393, %v3394
  %v3396 = vsel %vm3328, %v3252, 0.0
  %v3397 = vadd.f32 %v3395, %v3396
  %v3398 = vsel %vm3328, %v3254, 0.0
  %v3399 = vadd.f32 %v3397, %v3398
  %v3400 = vsel %vm3328, %v3257, 0.0
  %v3401 = vadd.f32 %v3399, %v3400
  %v3402 = vsel %vm3328, %v3259, 0.0
  %v3403 = vadd.f32 %v3401, %v3402
  %v3404 = vsel %vm3328, %v3262, 0.0
  %v3405 = vadd.f32 %v3403, %v3404
  %v3406 = vsel %vm3328, %v3264, 0.0
  %v3407 = vadd.f32 %v3405, %v3406
  %v3408 = vsel %vm3328, %v3267, 0.0
  %v3409 = vadd.f32 %v3407, %v3408
  %v3410 = vsel %vm3328, %v3269, 0.0
  %v3411 = vadd.f32 %v3409, %v3410
  %v3412 = vsel %vm3328, %v3272, 0.0
  %v3413 = vadd.f32 %v3411, %v3412
  %v3414 = vsel %vm3328, %v3274, 0.0
  %v3415 = vadd.f32 %v3413, %v3414
  %v3416 = vsel %vm3328, %v3277, 0.0
  %v3417 = vadd.f32 %v3415, %v3416
  %v3418 = vsel %vm3328, %v3279, 0.0
  %v3419 = vadd.f32 %v3417, %v3418
  %v3420 = vsel %vm3328, %v3282, 0.0
  %v3421 = vadd.f32 %v3419, %v3420
  %v3422 = vsel %vm3328, %v3284, 0.0
  %v3423 = vadd.f32 %v3421, %v3422
  %v3424 = vsel %vm3328, %v3287, 0.0
  %v3425 = vadd.f32 %v3423, %v3424
  %v3426 = vsel %vm3328, %v3289, 0.0
  %v3427 = vadd.f32 %v3425, %v3426
  %v3428 = vsel %vm3328, %v3292, 0.0
  %v3429 = vadd.f32 %v3427, %v3428
  %v3430 = vsel %vm3328, %v3294, 0.0
  %v3431 = vadd.f32 %v3429, %v3430
  %v3432 = vsel %vm3328, %v3297, 0.0
  %v3433 = vadd.f32 %v3431, %v3432
  %v3434 = vsel %vm3328, %v3299, 0.0
  %v3435 = vadd.f32 %v3433, %v3434
  %v3436 = vsel %vm3328, %v3302, 0.0
  %v3437 = vadd.f32 %v3435, %v3436
  %v3438 = vsel %vm3328, %v3304, 0.0
  %v3439 = vadd.f32 %v3437, %v3438
  %v3440 = vsel %vm3328, %v3307, 0.0
  %v3441 = vadd.f32 %v3439, %v3440
  %v3442 = vsel %vm3328, %v3309, 0.0
  %v3443 = vadd.f32 %v3441, %v3442
  %v3444 = vsel %vm3328, %v3312, 0.0
  %v3445 = vadd.f32 %v3443, %v3444
  %v3446 = vsel %vm3328, %v3314, 0.0
  %v3447 = vadd.f32 %v3445, %v3446
  %v3448 = vsel %vm3328, %v3317, 0.0
  %v3449 = vadd.f32 %v3447, %v3448
  %v3450 = vsel %vm3328, %v3319, 0.0
  %v3451 = vadd.f32 %v3449, %v3450
  %v3452 = vsel %vm3328, %v3322, 0.0
  %v3453 = vadd.f32 %v3451, %v3452
  %v3454 = vsel %vm3328, %v3324, 0.0
  %v3455 = vadd.f32 %v3453, %v3454
  %v3456 = vrot.slane %v3455, 4
  %v3457 = vadd.f32 %v3455, %v3456
  %v3458 = vrot.slane %v3457, 2
  %v3459 = vadd.f32 %v3457, %v3458
  %v3460 = vrot.slane %v3459, 1
  %v3461 = vadd.f32 %v3459, %v3460
  %v3462 = vmul.f32 %v3461, 0.001953125
  %v3463 = vmul.f32 %v3167, %v3167
  %v3464 = vmul.f32 %v3169, %v3169
  %v3465 = vmul.f32 %v3172, %v3172
  %v3466 = vmul.f32 %v3174, %v3174
  %v3467 = vmul.f32 %v3177, %v3177
  %v3468 = vmul.f32 %v3179, %v3179
  %v3469 = vmul.f32 %v3182, %v3182
  %v3470 = vmul.f32 %v3184, %v3184
  %v3471 = vmul.f32 %v3187, %v3187
  %v3472 = vmul.f32 %v3189, %v3189
  %v3473 = vmul.f32 %v3192, %v3192
  %v3474 = vmul.f32 %v3194, %v3194
  %v3475 = vmul.f32 %v3197, %v3197
  %v3476 = vmul.f32 %v3199, %v3199
  %v3477 = vmul.f32 %v3202, %v3202
  %v3478 = vmul.f32 %v3204, %v3204
  %v3479 = vmul.f32 %v3207, %v3207
  %v3480 = vmul.f32 %v3209, %v3209
  %v3481 = vmul.f32 %v3212, %v3212
  %v3482 = vmul.f32 %v3214, %v3214
  %v3483 = vmul.f32 %v3217, %v3217
  %v3484 = vmul.f32 %v3219, %v3219
  %v3485 = vmul.f32 %v3222, %v3222
  %v3486 = vmul.f32 %v3224, %v3224
  %v3487 = vmul.f32 %v3227, %v3227
  %v3488 = vmul.f32 %v3229, %v3229
  %v3489 = vmul.f32 %v3232, %v3232
  %v3490 = vmul.f32 %v3234, %v3234
  %v3491 = vmul.f32 %v3237, %v3237
  %v3492 = vmul.f32 %v3239, %v3239
  %v3493 = vmul.f32 %v3242, %v3242
  %v3494 = vmul.f32 %v3244, %v3244
  %v3495 = vmul.f32 %v3247, %v3247
  %v3496 = vmul.f32 %v3249, %v3249
  %v3497 = vmul.f32 %v3252, %v3252
  %v3498 = vmul.f32 %v3254, %v3254
  %v3499 = vmul.f32 %v3257, %v3257
  %v3500 = vmul.f32 %v3259, %v3259
  %v3501 = vmul.f32 %v3262, %v3262
  %v3502 = vmul.f32 %v3264, %v3264
  %v3503 = vmul.f32 %v3267, %v3267
  %v3504 = vmul.f32 %v3269, %v3269
  %v3505 = vmul.f32 %v3272, %v3272
  %v3506 = vmul.f32 %v3274, %v3274
  %v3507 = vmul.f32 %v3277, %v3277
  %v3508 = vmul.f32 %v3279, %v3279
  %v3509 = vmul.f32 %v3282, %v3282
  %v3510 = vmul.f32 %v3284, %v3284
  %v3511 = vmul.f32 %v3287, %v3287
  %v3512 = vmul.f32 %v3289, %v3289
  %v3513 = vmul.f32 %v3292, %v3292
  %v3514 = vmul.f32 %v3294, %v3294
  %v3515 = vmul.f32 %v3297, %v3297
  %v3516 = vmul.f32 %v3299, %v3299
  %v3517 = vmul.f32 %v3302, %v3302
  %v3518 = vmul.f32 %v3304, %v3304
  %v3519 = vmul.f32 %v3307, %v3307
  %v3520 = vmul.f32 %v3309, %v3309
  %v3521 = vmul.f32 %v3312, %v3312
  %v3522 = vmul.f32 %v3314, %v3314
  %v3523 = vmul.f32 %v3317, %v3317
  %v3524 = vmul.f32 %v3319, %v3319
  %v3525 = vmul.f32 %v3322, %v3322
  %v3526 = vmul.f32 %v3324, %v3324
  %v3527 = vsel %vm3328, %v3463, 0.0
  %v3528 = vsel %vm3328, %v3464, 0.0
  %v3529 = vadd.f32 %v3527, %v3528
  %v3530 = vsel %vm3328, %v3465, 0.0
  %v3531 = vadd.f32 %v3529, %v3530
  %v3532 = vsel %vm3328, %v3466, 0.0
  %v3533 = vadd.f32 %v3531, %v3532
  %v3534 = vsel %vm3328, %v3467, 0.0
  %v3535 = vadd.f32 %v3533, %v3534
  %v3536 = vsel %vm3328, %v3468, 0.0
  %v3537 = vadd.f32 %v3535, %v3536
  %v3538 = vsel %vm3328, %v3469, 0.0
  %v3539 = vadd.f32 %v3537, %v3538
  %v3540 = vsel %vm3328, %v3470, 0.0
  %v3541 = vadd.f32 %v3539, %v3540
  %v3542 = vsel %vm3328, %v3471, 0.0
  %v3543 = vadd.f32 %v3541, %v3542
  %v3544 = vsel %vm3328, %v3472, 0.0
  %v3545 = vadd.f32 %v3543, %v3544
  %v3546 = vsel %vm3328, %v3473, 0.0
  %v3547 = vadd.f32 %v3545, %v3546
  %v3548 = vsel %vm3328, %v3474, 0.0
  %v3549 = vadd.f32 %v3547, %v3548
  %v3550 = vsel %vm3328, %v3475, 0.0
  %v3551 = vadd.f32 %v3549, %v3550
  %v3552 = vsel %vm3328, %v3476, 0.0
  %v3553 = vadd.f32 %v3551, %v3552
  %v3554 = vsel %vm3328, %v3477, 0.0
  %v3555 = vadd.f32 %v3553, %v3554
  %v3556 = vsel %vm3328, %v3478, 0.0
  %v3557 = vadd.f32 %v3555, %v3556
  %v3558 = vsel %vm3328, %v3479, 0.0
  %v3559 = vadd.f32 %v3557, %v3558
  %v3560 = vsel %vm3328, %v3480, 0.0
  %v3561 = vadd.f32 %v3559, %v3560
  %v3562 = vsel %vm3328, %v3481, 0.0
  %v3563 = vadd.f32 %v3561, %v3562
  %v3564 = vsel %vm3328, %v3482, 0.0
  %v3565 = vadd.f32 %v3563, %v3564
  %v3566 = vsel %vm3328, %v3483, 0.0
  %v3567 = vadd.f32 %v3565, %v3566
  %v3568 = vsel %vm3328, %v3484, 0.0
  %v3569 = vadd.f32 %v3567, %v3568
  %v3570 = vsel %vm3328, %v3485, 0.0
  %v3571 = vadd.f32 %v3569, %v3570
  %v3572 = vsel %vm3328, %v3486, 0.0
  %v3573 = vadd.f32 %v3571, %v3572
  %v3574 = vsel %vm3328, %v3487, 0.0
  %v3575 = vadd.f32 %v3573, %v3574
  %v3576 = vsel %vm3328, %v3488, 0.0
  %v3577 = vadd.f32 %v3575, %v3576
  %v3578 = vsel %vm3328, %v3489, 0.0
  %v3579 = vadd.f32 %v3577, %v3578
  %v3580 = vsel %vm3328, %v3490, 0.0
  %v3581 = vadd.f32 %v3579, %v3580
  %v3582 = vsel %vm3328, %v3491, 0.0
  %v3583 = vadd.f32 %v3581, %v3582
  %v3584 = vsel %vm3328, %v3492, 0.0
  %v3585 = vadd.f32 %v3583, %v3584
  %v3586 = vsel %vm3328, %v3493, 0.0
  %v3587 = vadd.f32 %v3585, %v3586
  %v3588 = vsel %vm3328, %v3494, 0.0
  %v3589 = vadd.f32 %v3587, %v3588
  %v3590 = vsel %vm3328, %v3495, 0.0
  %v3591 = vadd.f32 %v3589, %v3590
  %v3592 = vsel %vm3328, %v3496, 0.0
  %v3593 = vadd.f32 %v3591, %v3592
  %v3594 = vsel %vm3328, %v3497, 0.0
  %v3595 = vadd.f32 %v3593, %v3594
  %v3596 = vsel %vm3328, %v3498, 0.0
  %v3597 = vadd.f32 %v3595, %v3596
  %v3598 = vsel %vm3328, %v3499, 0.0
  %v3599 = vadd.f32 %v3597, %v3598
  %v3600 = vsel %vm3328, %v3500, 0.0
  %v3601 = vadd.f32 %v3599, %v3600
  %v3602 = vsel %vm3328, %v3501, 0.0
  %v3603 = vadd.f32 %v3601, %v3602
  %v3604 = vsel %vm3328, %v3502, 0.0
  %v3605 = vadd.f32 %v3603, %v3604
  %v3606 = vsel %vm3328, %v3503, 0.0
  %v3607 = vadd.f32 %v3605, %v3606
  %v3608 = vsel %vm3328, %v3504, 0.0
  %v3609 = vadd.f32 %v3607, %v3608
  %v3610 = vsel %vm3328, %v3505, 0.0
  %v3611 = vadd.f32 %v3609, %v3610
  %v3612 = vsel %vm3328, %v3506, 0.0
  %v3613 = vadd.f32 %v3611, %v3612
  %v3614 = vsel %vm3328, %v3507, 0.0
  %v3615 = vadd.f32 %v3613, %v3614
  %v3616 = vsel %vm3328, %v3508, 0.0
  %v3617 = vadd.f32 %v3615, %v3616
  %v3618 = vsel %vm3328, %v3509, 0.0
  %v3619 = vadd.f32 %v3617, %v3618
  %v3620 = vsel %vm3328, %v3510, 0.0
  %v3621 = vadd.f32 %v3619, %v3620
  %v3622 = vsel %vm3328, %v3511, 0.0
  %v3623 = vadd.f32 %v3621, %v3622
  %v3624 = vsel %vm3328, %v3512, 0.0
  %v3625 = vadd.f32 %v3623, %v3624
  %v3626 = vsel %vm3328, %v3513, 0.0
  %v3627 = vadd.f32 %v3625, %v3626
  %v3628 = vsel %vm3328, %v3514, 0.0
  %v3629 = vadd.f32 %v3627, %v3628
  %v3630 = vsel %vm3328, %v3515, 0.0
  %v3631 = vadd.f32 %v3629, %v3630
  %v3632 = vsel %vm3328, %v3516, 0.0
  %v3633 = vadd.f32 %v3631, %v3632
  %v3634 = vsel %vm3328, %v3517, 0.0
  %v3635 = vadd.f32 %v3633, %v3634
  %v3636 = vsel %vm3328, %v3518, 0.0
  %v3637 = vadd.f32 %v3635, %v3636
  %v3638 = vsel %vm3328, %v3519, 0.0
  %v3639 = vadd.f32 %v3637, %v3638
  %v3640 = vsel %vm3328, %v3520, 0.0
  %v3641 = vadd.f32 %v3639, %v3640
  %v3642 = vsel %vm3328, %v3521, 0.0
  %v3643 = vadd.f32 %v3641, %v3642
  %v3644 = vsel %vm3328, %v3522, 0.0
  %v3645 = vadd.f32 %v3643, %v3644
  %v3646 = vsel %vm3328, %v3523, 0.0
  %v3647 = vadd.f32 %v3645, %v3646
  %v3648 = vsel %vm3328, %v3524, 0.0
  %v3649 = vadd.f32 %v3647, %v3648
  %v3650 = vsel %vm3328, %v3525, 0.0
  %v3651 = vadd.f32 %v3649, %v3650
  %v3652 = vsel %vm3328, %v3526, 0.0
  %v3653 = vadd.f32 %v3651, %v3652
  %v3654 = vrot.slane %v3653, 4
  %v3655 = vadd.f32 %v3653, %v3654
  %v3656 = vrot.slane %v3655, 2
  %v3657 = vadd.f32 %v3655, %v3656
  %v3658 = vrot.slane %v3657, 1
  %v3659 = vadd.f32 %v3657, %v3658
  %v3660 = vmul.f32 %v3659, 0.001953125
  %v3661 = vmul.f32 %v3462, %v3462
  %v3662 = vsub.f32 %v3660, %v3661
  %v3663 = vsub.f32 %v3167, %v3462
  %v3664 = vsub.f32 %v3169, %v3462
  %v3665 = vsub.f32 %v3172, %v3462
  %v3666 = vsub.f32 %v3174, %v3462
  %v3667 = vsub.f32 %v3177, %v3462
  %v3668 = vsub.f32 %v3179, %v3462
  %v3669 = vsub.f32 %v3182, %v3462
  %v3670 = vsub.f32 %v3184, %v3462
  %v3671 = vsub.f32 %v3187, %v3462
  %v3672 = vsub.f32 %v3189, %v3462
  %v3673 = vsub.f32 %v3192, %v3462
  %v3674 = vsub.f32 %v3194, %v3462
  %v3675 = vsub.f32 %v3197, %v3462
  %v3676 = vsub.f32 %v3199, %v3462
  %v3677 = vsub.f32 %v3202, %v3462
  %v3678 = vsub.f32 %v3204, %v3462
  %v3679 = vsub.f32 %v3207, %v3462
  %v3680 = vsub.f32 %v3209, %v3462
  %v3681 = vsub.f32 %v3212, %v3462
  %v3682 = vsub.f32 %v3214, %v3462
  %v3683 = vsub.f32 %v3217, %v3462
  %v3684 = vsub.f32 %v3219, %v3462
  %v3685 = vsub.f32 %v3222, %v3462
  %v3686 = vsub.f32 %v3224, %v3462
  %v3687 = vsub.f32 %v3227, %v3462
  %v3688 = vsub.f32 %v3229, %v3462
  %v3689 = vsub.f32 %v3232, %v3462
  %v3690 = vsub.f32 %v3234, %v3462
  %v3691 = vsub.f32 %v3237, %v3462
  %v3692 = vsub.f32 %v3239, %v3462
  %v3693 = vsub.f32 %v3242, %v3462
  %v3694 = vsub.f32 %v3244, %v3462
  %v3695 = vsub.f32 %v3247, %v3462
  %v3696 = vsub.f32 %v3249, %v3462
  %v3697 = vsub.f32 %v3252, %v3462
  %v3698 = vsub.f32 %v3254, %v3462
  %v3699 = vsub.f32 %v3257, %v3462
  %v3700 = vsub.f32 %v3259, %v3462
  %v3701 = vsub.f32 %v3262, %v3462
  %v3702 = vsub.f32 %v3264, %v3462
  %v3703 = vsub.f32 %v3267, %v3462
  %v3704 = vsub.f32 %v3269, %v3462
  %v3705 = vsub.f32 %v3272, %v3462
  %v3706 = vsub.f32 %v3274, %v3462
  %v3707 = vsub.f32 %v3277, %v3462
  %v3708 = vsub.f32 %v3279, %v3462
  %v3709 = vsub.f32 %v3282, %v3462
  %v3710 = vsub.f32 %v3284, %v3462
  %v3711 = vsub.f32 %v3287, %v3462
  %v3712 = vsub.f32 %v3289, %v3462
  %v3713 = vsub.f32 %v3292, %v3462
  %v3714 = vsub.f32 %v3294, %v3462
  %v3715 = vsub.f32 %v3297, %v3462
  %v3716 = vsub.f32 %v3299, %v3462
  %v3717 = vsub.f32 %v3302, %v3462
  %v3718 = vsub.f32 %v3304, %v3462
  %v3719 = vsub.f32 %v3307, %v3462
  %v3720 = vsub.f32 %v3309, %v3462
  %v3721 = vsub.f32 %v3312, %v3462
  %v3722 = vsub.f32 %v3314, %v3462
  %v3723 = vsub.f32 %v3317, %v3462
  %v3724 = vsub.f32 %v3319, %v3462
  %v3725 = vsub.f32 %v3322, %v3462
  %v3726 = vsub.f32 %v3324, %v3462
  %v3727 = vadd.f32 %v3662, 1e-05
  %v3728 = vrsqrt.pop %v3727
  %v3729 = vmul.f32 %v3728, %v3727
  %v3730 = vmul.f32 %v3729, %v3728
  %v3731 = vmul.f32 0.5, %v3730
  %v3732 = vsub.f32 1.5, %v3731
  %v3733 = vmul.f32 %v3728, %v3732
  %vm3734 = vweird.f32 %v3727
  %vm3735 = vweird.f32 %v3728
  %vm3736 = vmor %vm3734, %vm3735
  %v3737 = vsel %vm3736, %v3728, %v3733
  %v3738 = vmul.f32 %v3663, %v3737
  %v3739 = vmul.f32 %v3664, %v3737
  %v3740 = vmul.f32 %v3665, %v3737
  %v3741 = vmul.f32 %v3666, %v3737
  %v3742 = vmul.f32 %v3667, %v3737
  %v3743 = vmul.f32 %v3668, %v3737
  %v3744 = vmul.f32 %v3669, %v3737
  %v3745 = vmul.f32 %v3670, %v3737
  %v3746 = vmul.f32 %v3671, %v3737
  %v3747 = vmul.f32 %v3672, %v3737
  %v3748 = vmul.f32 %v3673, %v3737
  %v3749 = vmul.f32 %v3674, %v3737
  %v3750 = vmul.f32 %v3675, %v3737
  %v3751 = vmul.f32 %v3676, %v3737
  %v3752 = vmul.f32 %v3677, %v3737
  %v3753 = vmul.f32 %v3678, %v3737
  %v3754 = vmul.f32 %v3679, %v3737
  %v3755 = vmul.f32 %v3680, %v3737
  %v3756 = vmul.f32 %v3681, %v3737
  %v3757 = vmul.f32 %v3682, %v3737
  %v3758 = vmul.f32 %v3683, %v3737
  %v3759 = vmul.f32 %v3684, %v3737
  %v3760 = vmul.f32 %v3685, %v3737
  %v3761 = vmul.f32 %v3686, %v3737
  %v3762 = vmul.f32 %v3687, %v3737
  %v3763 = vmul.f32 %v3688, %v3737
  %v3764 = vmul.f32 %v3689, %v3737
  %v3765 = vmul.f32 %v3690, %v3737
  %v3766 = vmul.f32 %v3691, %v3737
  %v3767 = vmul.f32 %v3692, %v3737
  %v3768 = vmul.f32 %v3693, %v3737
  %v3769 = vmul.f32 %v3694, %v3737
  %v3770 = vmul.f32 %v3695, %v3737
  %v3771 = vmul.f32 %v3696, %v3737
  %v3772 = vmul.f32 %v3697, %v3737
  %v3773 = vmul.f32 %v3698, %v3737
  %v3774 = vmul.f32 %v3699, %v3737
  %v3775 = vmul.f32 %v3700, %v3737
  %v3776 = vmul.f32 %v3701, %v3737
  %v3777 = vmul.f32 %v3702, %v3737
  %v3778 = vmul.f32 %v3703, %v3737
  %v3779 = vmul.f32 %v3704, %v3737
  %v3780 = vmul.f32 %v3705, %v3737
  %v3781 = vmul.f32 %v3706, %v3737
  %v3782 = vmul.f32 %v3707, %v3737
  %v3783 = vmul.f32 %v3708, %v3737
  %v3784 = vmul.f32 %v3709, %v3737
  %v3785 = vmul.f32 %v3710, %v3737
  %v3786 = vmul.f32 %v3711, %v3737
  %v3787 = vmul.f32 %v3712, %v3737
  %v3788 = vmul.f32 %v3713, %v3737
  %v3789 = vmul.f32 %v3714, %v3737
  %v3790 = vmul.f32 %v3715, %v3737
  %v3791 = vmul.f32 %v3716, %v3737
  %v3792 = vmul.f32 %v3717, %v3737
  %v3793 = vmul.f32 %v3718, %v3737
  %v3794 = vmul.f32 %v3719, %v3737
  %v3795 = vmul.f32 %v3720, %v3737
  %v3796 = vmul.f32 %v3721, %v3737
  %v3797 = vmul.f32 %v3722, %v3737
  %v3798 = vmul.f32 %v3723, %v3737
  %v3799 = vmul.f32 %v3724, %v3737
  %v3800 = vmul.f32 %v3725, %v3737
  %v3801 = vmul.f32 %v3726, %v3737
  %v3803 = vperm.slane %v3326, 0
  %v3805 = vmul.f32 %v3738, %v3803
  %v3806 = vmul.f32 %v3739, %v3803
  %v3807 = vmul.f32 %v3740, %v3803
  %v3808 = vmul.f32 %v3741, %v3803
  %v3809 = vmul.f32 %v3742, %v3803
  %v3810 = vmul.f32 %v3743, %v3803
  %v3811 = vmul.f32 %v3744, %v3803
  %v3812 = vmul.f32 %v3745, %v3803
  %v3813 = vmul.f32 %v3746, %v3803
  %v3814 = vmul.f32 %v3747, %v3803
  %v3815 = vmul.f32 %v3748, %v3803
  %v3816 = vmul.f32 %v3749, %v3803
  %v3817 = vmul.f32 %v3750, %v3803
  %v3818 = vmul.f32 %v3751, %v3803
  %v3819 = vmul.f32 %v3752, %v3803
  %v3820 = vmul.f32 %v3753, %v3803
  %v3821 = vmul.f32 %v3754, %v3803
  %v3822 = vmul.f32 %v3755, %v3803
  %v3823 = vmul.f32 %v3756, %v3803
  %v3824 = vmul.f32 %v3757, %v3803
  %v3825 = vmul.f32 %v3758, %v3803
  %v3826 = vmul.f32 %v3759, %v3803
  %v3827 = vmul.f32 %v3760, %v3803
  %v3828 = vmul.f32 %v3761, %v3803
  %v3829 = vmul.f32 %v3762, %v3803
  %v3830 = vmul.f32 %v3763, %v3803
  %v3831 = vmul.f32 %v3764, %v3803
  %v3832 = vmul.f32 %v3765, %v3803
  %v3833 = vmul.f32 %v3766, %v3803
  %v3834 = vmul.f32 %v3767, %v3803
  %v3835 = vmul.f32 %v3768, %v3803
  %v3836 = vmul.f32 %v3769, %v3803
  %v3837 = vmul.f32 %v3770, %v3803
  %v3838 = vmul.f32 %v3771, %v3803
  %v3839 = vmul.f32 %v3772, %v3803
  %v3840 = vmul.f32 %v3773, %v3803
  %v3841 = vmul.f32 %v3774, %v3803
  %v3842 = vmul.f32 %v3775, %v3803
  %v3843 = vmul.f32 %v3776, %v3803
  %v3844 = vmul.f32 %v3777, %v3803
  %v3845 = vmul.f32 %v3778, %v3803
  %v3846 = vmul.f32 %v3779, %v3803
  %v3847 = vmul.f32 %v3780, %v3803
  %v3848 = vmul.f32 %v3781, %v3803
  %v3849 = vmul.f32 %v3782, %v3803
  %v3850 = vmul.f32 %v3783, %v3803
  %v3851 = vmul.f32 %v3784, %v3803
  %v3852 = vmul.f32 %v3785, %v3803
  %v3853 = vmul.f32 %v3786, %v3803
  %v3854 = vmul.f32 %v3787, %v3803
  %v3855 = vmul.f32 %v3788, %v3803
  %v3856 = vmul.f32 %v3789, %v3803
  %v3857 = vmul.f32 %v3790, %v3803
  %v3858 = vmul.f32 %v3791, %v3803
  %v3859 = vmul.f32 %v3792, %v3803
  %v3860 = vmul.f32 %v3793, %v3803
  %v3861 = vmul.f32 %v3794, %v3803
  %v3862 = vmul.f32 %v3795, %v3803
  %v3863 = vmul.f32 %v3796, %v3803
  %v3864 = vmul.f32 %v3797, %v3803
  %v3865 = vmul.f32 %v3798, %v3803
  %v3866 = vmul.f32 %v3799, %v3803
  %v3867 = vmul.f32 %v3800, %v3803
  %v3868 = vmul.f32 %v3801, %v3803
  %v3870 = vperm.slane %v3327, 0
  %v3872 = vadd.f32 %v3805, %v3870
  %v3873 = vadd.f32 %v3806, %v3870
  %v3874 = vadd.f32 %v3807, %v3870
  %v3875 = vadd.f32 %v3808, %v3870
  %v3876 = vadd.f32 %v3809, %v3870
  %v3877 = vadd.f32 %v3810, %v3870
  %v3878 = vadd.f32 %v3811, %v3870
  %v3879 = vadd.f32 %v3812, %v3870
  %v3880 = vadd.f32 %v3813, %v3870
  %v3881 = vadd.f32 %v3814, %v3870
  %v3882 = vadd.f32 %v3815, %v3870
  %v3883 = vadd.f32 %v3816, %v3870
  %v3884 = vadd.f32 %v3817, %v3870
  %v3885 = vadd.f32 %v3818, %v3870
  %v3886 = vadd.f32 %v3819, %v3870
  %v3887 = vadd.f32 %v3820, %v3870
  %v3888 = vadd.f32 %v3821, %v3870
  %v3889 = vadd.f32 %v3822, %v3870
  %v3890 = vadd.f32 %v3823, %v3870
  %v3891 = vadd.f32 %v3824, %v3870
  %v3892 = vadd.f32 %v3825, %v3870
  %v3893 = vadd.f32 %v3826, %v3870
  %v3894 = vadd.f32 %v3827, %v3870
  %v3895 = vadd.f32 %v3828, %v3870
  %v3896 = vadd.f32 %v3829, %v3870
  %v3897 = vadd.f32 %v3830, %v3870
  %v3898 = vadd.f32 %v3831, %v3870
  %v3899 = vadd.f32 %v3832, %v3870
  %v3900 = vadd.f32 %v3833, %v3870
  %v3901 = vadd.f32 %v3834, %v3870
  %v3902 = vadd.f32 %v3835, %v3870
  %v3903 = vadd.f32 %v3836, %v3870
  %v3904 = vadd.f32 %v3837, %v3870
  %v3905 = vadd.f32 %v3838, %v3870
  %v3906 = vadd.f32 %v3839, %v3870
  %v3907 = vadd.f32 %v3840, %v3870
  %v3908 = vadd.f32 %v3841, %v3870
  %v3909 = vadd.f32 %v3842, %v3870
  %v3910 = vadd.f32 %v3843, %v3870
  %v3911 = vadd.f32 %v3844, %v3870
  %v3912 = vadd.f32 %v3845, %v3870
  %v3913 = vadd.f32 %v3846, %v3870
  %v3914 = vadd.f32 %v3847, %v3870
  %v3915 = vadd.f32 %v3848, %v3870
  %v3916 = vadd.f32 %v3849, %v3870
  %v3917 = vadd.f32 %v3850, %v3870
  %v3918 = vadd.f32 %v3851, %v3870
  %v3919 = vadd.f32 %v3852, %v3870
  %v3920 = vadd.f32 %v3853, %v3870
  %v3921 = vadd.f32 %v3854, %v3870
  %v3922 = vadd.f32 %v3855, %v3870
  %v3923 = vadd.f32 %v3856, %v3870
  %v3924 = vadd.f32 %v3857, %v3870
  %v3925 = vadd.f32 %v3858, %v3870
  %v3926 = vadd.f32 %v3859, %v3870
  %v3927 = vadd.f32 %v3860, %v3870
  %v3928 = vadd.f32 %v3861, %v3870
  %v3929 = vadd.f32 %v3862, %v3870
  %v3930 = vadd.f32 %v3863, %v3870
  %v3931 = vadd.f32 %v3864, %v3870
  %v3932 = vadd.f32 %v3865, %v3870
  %v3933 = vadd.f32 %v3866, %v3870
  %v3934 = vadd.f32 %v3867, %v3870
  %v3935 = vadd.f32 %v3868, %v3870
  %v3936 = vmax.f32 %v3872, 0.0
  %v3937 = vmax.f32 %v3873, 0.0
  %v3938 = vmax.f32 %v3874, 0.0
  %v3939 = vmax.f32 %v3875, 0.0
  %v3940 = vmax.f32 %v3876, 0.0
  %v3941 = vmax.f32 %v3877, 0.0
  %v3942 = vmax.f32 %v3878, 0.0
  %v3943 = vmax.f32 %v3879, 0.0
  %v3944 = vmax.f32 %v3880, 0.0
  %v3945 = vmax.f32 %v3881, 0.0
  %v3946 = vmax.f32 %v3882, 0.0
  %v3947 = vmax.f32 %v3883, 0.0
  %v3948 = vmax.f32 %v3884, 0.0
  %v3949 = vmax.f32 %v3885, 0.0
  %v3950 = vmax.f32 %v3886, 0.0
  %v3951 = vmax.f32 %v3887, 0.0
  %v3952 = vmax.f32 %v3888, 0.0
  %v3953 = vmax.f32 %v3889, 0.0
  %v3954 = vmax.f32 %v3890, 0.0
  %v3955 = vmax.f32 %v3891, 0.0
  %v3956 = vmax.f32 %v3892, 0.0
  %v3957 = vmax.f32 %v3893, 0.0
  %v3958 = vmax.f32 %v3894, 0.0
  %v3959 = vmax.f32 %v3895, 0.0
  %v3960 = vmax.f32 %v3896, 0.0
  %v3961 = vmax.f32 %v3897, 0.0
  %v3962 = vmax.f32 %v3898, 0.0
  %v3963 = vmax.f32 %v3899, 0.0
  %v3964 = vmax.f32 %v3900, 0.0
  %v3965 = vmax.f32 %v3901, 0.0
  %v3966 = vmax.f32 %v3902, 0.0
  %v3967 = vmax.f32 %v3903, 0.0
  %v3968 = vmax.f32 %v3904, 0.0
  %v3969 = vmax.f32 %v3905, 0.0
  %v3970 = vmax.f32 %v3906, 0.0
  %v3971 = vmax.f32 %v3907, 0.0
  %v3972 = vmax.f32 %v3908, 0.0
  %v3973 = vmax.f32 %v3909, 0.0
  %v3974 = vmax.f32 %v3910, 0.0
  %v3975 = vmax.f32 %v3911, 0.0
  %v3976 = vmax.f32 %v3912, 0.0
  %v3977 = vmax.f32 %v3913, 0.0
  %v3978 = vmax.f32 %v3914, 0.0
  %v3979 = vmax.f32 %v3915, 0.0
  %v3980 = vmax.f32 %v3916, 0.0
  %v3981 = vmax.f32 %v3917, 0.0
  %v3982 = vmax.f32 %v3918, 0.0
  %v3983 = vmax.f32 %v3919, 0.0
  %v3984 = vmax.f32 %v3920, 0.0
  %v3985 = vmax.f32 %v3921, 0.0
  %v3986 = vmax.f32 %v3922, 0.0
  %v3987 = vmax.f32 %v3923, 0.0
  %v3988 = vmax.f32 %v3924, 0.0
  %v3989 = vmax.f32 %v3925, 0.0
  %v3990 = vmax.f32 %v3926, 0.0
  %v3991 = vmax.f32 %v3927, 0.0
  %v3992 = vmax.f32 %v3928, 0.0
  %v3993 = vmax.f32 %v3929, 0.0
  %v3994 = vmax.f32 %v3930, 0.0
  %v3995 = vmax.f32 %v3931, 0.0
  %v3996 = vmax.f32 %v3932, 0.0
  %v3997 = vmax.f32 %v3933, 0.0
  %v3998 = vmax.f32 %v3934, 0.0
  %v3999 = vmax.f32 %v3935, 0.0
  %4000 = vst.msk [vmem:[#allocation3] sm:$0xff] %vm3328, 0.0
  %4001 = vst.msk [vmem:[#allocation3 + $0x8] sm:$0xff] %vm3328, 0.0
  %vm4002 = vcmask 58368
  %4003 = vst.msk [vmem:[#allocation3 + $0x10] sm:$0x3] %vm4002, 0.0
  %4004 = vst.msk [vmem:[#allocation3 + $0x1b0] sm:$0xff] %vm3328, 0.0
  %4005 = vst.msk [vmem:[#allocation3 + $0x1b8] sm:$0xff] %vm3328, 0.0
  %4006 = vst.msk [vmem:[#allocation3 + $0x1c0] sm:$0x3] %vm4002, 0.0
  %s4007 = scalar_lea.vmem [#allocation3], 408
  %4008 = vst.msk [vmem:[%s4007] sm:$0xff] %vm3328, 0.0
  %4009 = vst.msk [vmem:[%s4007 + $0x8] sm:$0xff] %vm3328, 0.0
  %4010 = vst.msk [vmem:[%s4007 + $0x10] sm:$0x3] %vm4002, 0.0
  %4011 = vst.msk [vmem:[%s4007 + $0x1b0] sm:$0xff] %vm3328, 0.0
  %4012 = vst.msk [vmem:[%s4007 + $0x1b8] sm:$0xff] %vm3328, 0.0
  %4013 = vst.msk [vmem:[%s4007 + $0x1c0] sm:$0x3] %vm4002, 0.0
  %s4014 = scalar_lea.vmem [#allocation3], 24
  %vm4015 = vcmask 57344
  %4016 = vst.msk [vmem:[%s4014] sm:$0x1] %vm4015, 0.0
  %4017 = vst.msk [vmem:[%s4014 + $0x18] sm:$0x1] %vm4015, 0.0
  %4018 = vst.msk [vmem:[%s4014 + $0x30] sm:$0x1] %vm4015, 0.0
  %4019 = vst.msk [vmem:[%s4014 + $0x48] sm:$0x1] %vm4015, 0.0
  %4020 = vst.msk [vmem:[%s4014 + $0x60] sm:$0x1] %vm4015, 0.0
  %4021 = vst.msk [vmem:[%s4014 + $0x78] sm:$0x1] %vm4015, 0.0
  %4022 = vst.msk [vmem:[%s4014 + $0x90] sm:$0x1] %vm4015, 0.0
  %4023 = vst.msk [vmem:[%s4014 + $0xa8] sm:$0x1] %vm4015, 0.0
  %4024 = vst.msk [vmem:[%s4014 + $0xc0] sm:$0x1] %vm4015, 0.0
  %4025 = vst.msk [vmem:[%s4014 + $0xd8] sm:$0x1] %vm4015, 0.0
  %4026 = vst.msk [vmem:[%s4014 + $0xf0] sm:$0x1] %vm4015, 0.0
  %4027 = vst.msk [vmem:[%s4014 + $0x108] sm:$0x1] %vm4015, 0.0
  %4028 = vst.msk [vmem:[%s4014 + $0x120] sm:$0x1] %vm4015, 0.0
  %4029 = vst.msk [vmem:[%s4014 + $0x138] sm:$0x1] %vm4015, 0.0
  %4030 = vst.msk [vmem:[%s4014 + $0x150] sm:$0x1] %vm4015, 0.0
  %4031 = vst.msk [vmem:[%s4014 + $0x168] sm:$0x1] %vm4015, 0.0
  %4032 = vst.msk [vmem:[%s4014 + $0x1b0] sm:$0x1] %vm4015, 0.0
  %4033 = vst.msk [vmem:[%s4014 + $0x1c8] sm:$0x1] %vm4015, 0.0
  %4034 = vst.msk [vmem:[%s4014 + $0x1e0] sm:$0x1] %vm4015, 0.0
  %4035 = vst.msk [vmem:[%s4014 + $0x1f8] sm:$0x1] %vm4015, 0.0
  %4036 = vst.msk [vmem:[%s4014 + $0x210] sm:$0x1] %vm4015, 0.0
  %4037 = vst.msk [vmem:[%s4014 + $0x228] sm:$0x1] %vm4015, 0.0
  %4038 = vst.msk [vmem:[%s4014 + $0x240] sm:$0x1] %vm4015, 0.0
  %4039 = vst.msk [vmem:[%s4014 + $0x258] sm:$0x1] %vm4015, 0.0
  %4040 = vst.msk [vmem:[%s4014 + $0x270] sm:$0x1] %vm4015, 0.0
  %4041 = vst.msk [vmem:[%s4014 + $0x288] sm:$0x1] %vm4015, 0.0
  %4042 = vst.msk [vmem:[%s4014 + $0x2a0] sm:$0x1] %vm4015, 0.0
  %4043 = vst.msk [vmem:[%s4014 + $0x2b8] sm:$0x1] %vm4015, 0.0
  %4044 = vst.msk [vmem:[%s4014 + $0x2d0] sm:$0x1] %vm4015, 0.0
  %4045 = vst.msk [vmem:[%s4014 + $0x2e8] sm:$0x1] %vm4015, 0.0
  %4046 = vst.msk [vmem:[%s4014 + $0x300] sm:$0x1] %vm4015, 0.0
  %4047 = vst.msk [vmem:[%s4014 + $0x318] sm:$0x1] %vm4015, 0.0
  %4048 = vst.msk [vmem:[%s4014 + $0x11] sm:$0x1] %vm4015, 0.0
  %4049 = vst.msk [vmem:[%s4014 + $0x29] sm:$0x1] %vm4015, 0.0
  %4050 = vst.msk [vmem:[%s4014 + $0x41] sm:$0x1] %vm4015, 0.0
  %4051 = vst.msk [vmem:[%s4014 + $0x59] sm:$0x1] %vm4015, 0.0
  %4052 = vst.msk [vmem:[%s4014 + $0x71] sm:$0x1] %vm4015, 0.0
  %4053 = vst.msk [vmem:[%s4014 + $0x89] sm:$0x1] %vm4015, 0.0
  %4054 = vst.msk [vmem:[%s4014 + $0xa1] sm:$0x1] %vm4015, 0.0
  %4055 = vst.msk [vmem:[%s4014 + $0xb9] sm:$0x1] %vm4015, 0.0
  %4056 = vst.msk [vmem:[%s4014 + $0xd1] sm:$0x1] %vm4015, 0.0
  %4057 = vst.msk [vmem:[%s4014 + $0xe9] sm:$0x1] %vm4015, 0.0
  %4058 = vst.msk [vmem:[%s4014 + $0x101] sm:$0x1] %vm4015, 0.0
  %4059 = vst.msk [vmem:[%s4014 + $0x119] sm:$0x1] %vm4015, 0.0
  %4060 = vst.msk [vmem:[%s4014 + $0x131] sm:$0x1] %vm4015, 0.0
  %4061 = vst.msk [vmem:[%s4014 + $0x149] sm:$0x1] %vm4015, 0.0
  %4062 = vst.msk [vmem:[%s4014 + $0x161] sm:$0x1] %vm4015, 0.0
  %4063 = vst.msk [vmem:[%s4014 + $0x179] sm:$0x1] %vm4015, 0.0
  %4064 = vst.msk [vmem:[%s4014 + $0x1c1] sm:$0x1] %vm4015, 0.0
  %4065 = vst.msk [vmem:[%s4014 + $0x1d9] sm:$0x1] %vm4015, 0.0
  %4066 = vst.msk [vmem:[%s4014 + $0x1f1] sm:$0x1] %vm4015, 0.0
  %4067 = vst.msk [vmem:[%s4014 + $0x209] sm:$0x1] %vm4015, 0.0
  %4068 = vst.msk [vmem:[%s4014 + $0x221] sm:$0x1] %vm4015, 0.0
  %4069 = vst.msk [vmem:[%s4014 + $0x239] sm:$0x1] %vm4015, 0.0
  %4070 = vst.msk [vmem:[%s4014 + $0x251] sm:$0x1] %vm4015, 0.0
  %4071 = vst.msk [vmem:[%s4014 + $0x269] sm:$0x1] %vm4015, 0.0
  %4072 = vst.msk [vmem:[%s4014 + $0x281] sm:$0x1] %vm4015, 0.0
  %4073 = vst.msk [vmem:[%s4014 + $0x299] sm:$0x1] %vm4015, 0.0
  %4074 = vst.msk [vmem:[%s4014 + $0x2b1] sm:$0x1] %vm4015, 0.0
  %4075 = vst.msk [vmem:[%s4014 + $0x2c9] sm:$0x1] %vm4015, 0.0
  %4076 = vst.msk [vmem:[%s4014 + $0x2e1] sm:$0x1] %vm4015, 0.0
  %4077 = vst.msk [vmem:[%s4014 + $0x2f9] sm:$0x1] %vm4015, 0.0
  %4078 = vst.msk [vmem:[%s4014 + $0x311] sm:$0x1] %vm4015, 0.0
  %4079 = vst.msk [vmem:[%s4014 + $0x329] sm:$0x1] %vm4015, 0.0
  %4080 = vst.msk [vmem:[%s4014 + $0x1] sm:$0xff] %vm3328, %v3936
  %4081 = vst.msk [vmem:[%s4014 + $0x9] sm:$0xff] %vm3328, %v3937
  %4082 = vst.msk [vmem:[%s4014 + $0x19] sm:$0xff] %vm3328, %v3938
  %4083 = vst.msk [vmem:[%s4014 + $0x21] sm:$0xff] %vm3328, %v3939
  %4084 = vst.msk [vmem:[%s4014 + $0x31] sm:$0xff] %vm3328, %v3940
  %4085 = vst.msk [vmem:[%s4014 + $0x39] sm:$0xff] %vm3328, %v3941
  %4086 = vst.msk [vmem:[%s4014 + $0x49] sm:$0xff] %vm3328, %v3942
  %4087 = vst.msk [vmem:[%s4014 + $0x51] sm:$0xff] %vm3328, %v3943
  %4088 = vst.msk [vmem:[%s4014 + $0x61] sm:$0xff] %vm3328, %v3944
  %4089 = vst.msk [vmem:[%s4014 + $0x69] sm:$0xff] %vm3328, %v3945
  %4090 = vst.msk [vmem:[%s4014 + $0x79] sm:$0xff] %vm3328, %v3946
  %4091 = vst.msk [vmem:[%s4014 + $0x81] sm:$0xff] %vm3328, %v3947
  %4092 = vst.msk [vmem:[%s4014 + $0x91] sm:$0xff] %vm3328, %v3948
  %4093 = vst.msk [vmem:[%s4014 + $0x99] sm:$0xff] %vm3328, %v3949
  %4094 = vst.msk [vmem:[%s4014 + $0xa9] sm:$0xff] %vm3328, %v3950
  %4095 = vst.msk [vmem:[%s4014 + $0xb1] sm:$0xff] %vm3328, %v3951
  %4096 = vst.msk [vmem:[%s4014 + $0xc1] sm:$0xff] %vm3328, %v3952
  %4097 = vst.msk [vmem:[%s4014 + $0xc9] sm:$0xff] %vm3328, %v3953
  %4098 = vst.msk [vmem:[%s4014 + $0xd9] sm:$0xff] %vm3328, %v3954
  %4099 = vst.msk [vmem:[%s4014 + $0xe1] sm:$0xff] %vm3328, %v3955
  %4100 = vst.msk [vmem:[%s4014 + $0xf1] sm:$0xff] %vm3328, %v3956
  %4101 = vst.msk [vmem:[%s4014 + $0xf9] sm:$0xff] %vm3328, %v3957
  %4102 = vst.msk [vmem:[%s4014 + $0x109] sm:$0xff] %vm3328, %v3958
  %4103 = vst.msk [vmem:[%s4014 + $0x111] sm:$0xff] %vm3328, %v3959
  %4104 = vst.msk [vmem:[%s4014 + $0x121] sm:$0xff] %vm3328, %v3960
  %4105 = vst.msk [vmem:[%s4014 + $0x129] sm:$0xff] %vm3328, %v3961
  %4106 = vst.msk [vmem:[%s4014 + $0x139] sm:$0xff] %vm3328, %v3962
  %4107 = vst.msk [vmem:[%s4014 + $0x141] sm:$0xff] %vm3328, %v3963
  %4108 = vst.msk [vmem:[%s4014 + $0x151] sm:$0xff] %vm3328, %v3964
  %4109 = vst.msk [vmem:[%s4014 + $0x159] sm:$0xff] %vm3328, %v3965
  %4110 = vst.msk [vmem:[%s4014 + $0x169] sm:$0xff] %vm3328, %v3966
  %4111 = vst.msk [vmem:[%s4014 + $0x171] sm:$0xff] %vm3328, %v3967
  %4112 = vst.msk [vmem:[%s4014 + $0x1b1] sm:$0xff] %vm3328, %v3968
  %4113 = vst.msk [vmem:[%s4014 + $0x1b9] sm:$0xff] %vm3328, %v3969
  %4114 = vst.msk [vmem:[%s4014 + $0x1c9] sm:$0xff] %vm3328, %v3970
  %4115 = vst.msk [vmem:[%s4014 + $0x1d1] sm:$0xff] %vm3328, %v3971
  %4116 = vst.msk [vmem:[%s4014 + $0x1e1] sm:$0xff] %vm3328, %v3972
  %4117 = vst.msk [vmem:[%s4014 + $0x1e9] sm:$0xff] %vm3328, %v3973
  %4118 = vst.msk [vmem:[%s4014 + $0x1f9] sm:$0xff] %vm3328, %v3974
  %4119 = vst.msk [vmem:[%s4014 + $0x201] sm:$0xff] %vm3328, %v3975
  %4120 = vst.msk [vmem:[%s4014 + $0x211] sm:$0xff] %vm3328, %v3976
  %4121 = vst.msk [vmem:[%s4014 + $0x219] sm:$0xff] %vm3328, %v3977
  %4122 = vst.msk [vmem:[%s4014 + $0x229] sm:$0xff] %vm3328, %v3978
  %4123 = vst.msk [vmem:[%s4014 + $0x231] sm:$0xff] %vm3328, %v3979
  %4124 = vst.msk [vmem:[%s4014 + $0x241] sm:$0xff] %vm3328, %v3980
  %4125 = vst.msk [vmem:[%s4014 + $0x249] sm:$0xff] %vm3328, %v3981
  %4126 = vst.msk [vmem:[%s4014 + $0x259] sm:$0xff] %vm3328, %v3982
  %4127 = vst.msk [vmem:[%s4014 + $0x261] sm:$0xff] %vm3328, %v3983
  %4128 = vst.msk [vmem:[%s4014 + $0x271] sm:$0xff] %vm3328, %v3984
  %4129 = vst.msk [vmem:[%s4014 + $0x279] sm:$0xff] %vm3328, %v3985
  %4130 = vst.msk [vmem:[%s4014 + $0x289] sm:$0xff] %vm3328, %v3986
  %4131 = vst.msk [vmem:[%s4014 + $0x291] sm:$0xff] %vm3328, %v3987
  %4132 = vst.msk [vmem:[%s4014 + $0x2a1] sm:$0xff] %vm3328, %v3988
  %4133 = vst.msk [vmem:[%s4014 + $0x2a9] sm:$0xff] %vm3328, %v3989
  %4134 = vst.msk [vmem:[%s4014 + $0x2b9] sm:$0xff] %vm3328, %v3990
  %4135 = vst.msk [vmem:[%s4014 + $0x2c1] sm:$0xff] %vm3328, %v3991
  %4136 = vst.msk [vmem:[%s4014 + $0x2d1] sm:$0xff] %vm3328, %v3992
  %4137 = vst.msk [vmem:[%s4014 + $0x2d9] sm:$0xff] %vm3328, %v3993
  %4138 = vst.msk [vmem:[%s4014 + $0x2e9] sm:$0xff] %vm3328, %v3994
  %4139 = vst.msk [vmem:[%s4014 + $0x2f1] sm:$0xff] %vm3328, %v3995
  %4140 = vst.msk [vmem:[%s4014 + $0x301] sm:$0xff] %vm3328, %v3996
  %4141 = vst.msk [vmem:[%s4014 + $0x309] sm:$0xff] %vm3328, %v3997
  %4142 = vst.msk [vmem:[%s4014 + $0x319] sm:$0xff] %vm3328, %v3998
  %4143 = vst.msk [vmem:[%s4014 + $0x321] sm:$0xff] %vm3328, %v3999
  %v4144 = vld [vmem:[#allocation3] sm:$0xff]
  %v4145 = vld [vmem:[#allocation3 + $0x8] sm:$0xff]
  %v4146 = vld [vmem:[#allocation3 + $0x10] sm:$0x3]
  %v4147 = vld [vmem:[#allocation3 + $0x18] sm:$0xff]
  %v4148 = vld [vmem:[#allocation3 + $0x20] sm:$0xff]
  %v4149 = vld [vmem:[#allocation3 + $0x28] sm:$0x3]
  %v4150 = vld [vmem:[#allocation3 + $0x30] sm:$0xff]
  %v4151 = vld [vmem:[#allocation3 + $0x38] sm:$0xff]
  %v4152 = vld [vmem:[#allocation3 + $0x40] sm:$0x3]
  %v4153 = vld [vmem:[#allocation3 + $0x48] sm:$0xff]
  %v4154 = vld [vmem:[#allocation3 + $0x50] sm:$0xff]
  %v4155 = vld [vmem:[#allocation3 + $0x58] sm:$0x3]
  %v4156 = vld [vmem:[#allocation3 + $0x60] sm:$0xff]
  %v4157 = vld [vmem:[#allocation3 + $0x68] sm:$0xff]
  %v4158 = vld [vmem:[#allocation3 + $0x70] sm:$0x3]
  %v4159 = vld [vmem:[#allocation3 + $0x78] sm:$0xff]
  %v4160 = vld [vmem:[#allocation3 + $0x80] sm:$0xff]
  %v4161 = vld [vmem:[#allocation3 + $0x88] sm:$0x3]
  %v4162 = vld [vmem:[#allocation3 + $0x90] sm:$0xff]
  %v4163 = vld [vmem:[#allocation3 + $0x98] sm:$0xff]
  %v4164 = vld [vmem:[#allocation3 + $0xa0] sm:$0x3]
  %v4165 = vld [vmem:[#allocation3 + $0xa8] sm:$0xff]
  %v4166 = vld [vmem:[#allocation3 + $0xb0] sm:$0xff]
  %v4167 = vld [vmem:[#allocation3 + $0xb8] sm:$0x3]
  %v4168 = vld [vmem:[#allocation3 + $0xc0] sm:$0xff]
  %v4169 = vld [vmem:[#allocation3 + $0xc8] sm:$0xff]
  %v4170 = vld [vmem:[#allocation3 + $0xd0] sm:$0x3]
  %v4171 = vld [vmem:[#allocation3 + $0xd8] sm:$0xff]
  %v4172 = vld [vmem:[#allocation3 + $0xe0] sm:$0xff]
  %v4173 = vld [vmem:[#allocation3 + $0xe8] sm:$0x3]
  %v4174 = vld [vmem:[#allocation3 + $0xf0] sm:$0xff]
  %v4175 = vld [vmem:[#allocation3 + $0xf8] sm:$0xff]
  %v4176 = vld [vmem:[#allocation3 + $0x100] sm:$0x3]
  %v4177 = vld [vmem:[#allocation3 + $0x108] sm:$0xff]
  %v4178 = vld [vmem:[#allocation3 + $0x110] sm:$0xff]
  %v4179 = vld [vmem:[#allocation3 + $0x118] sm:$0x3]
  %v4180 = vld [vmem:[#allocation3 + $0x120] sm:$0xff]
  %v4181 = vld [vmem:[#allocation3 + $0x128] sm:$0xff]
  %v4182 = vld [vmem:[#allocation3 + $0x130] sm:$0x3]
  %v4183 = vld [vmem:[#allocation3 + $0x138] sm:$0xff]
  %v4184 = vld [vmem:[#allocation3 + $0x140] sm:$0xff]
  %v4185 = vld [vmem:[#allocation3 + $0x148] sm:$0x3]
  %v4186 = vld [vmem:[#allocation3 + $0x150] sm:$0xff]
  %v4187 = vld [vmem:[#allocation3 + $0x158] sm:$0xff]
  %v4188 = vld [vmem:[#allocation3 + $0x160] sm:$0x3]
  %v4189 = vld [vmem:[#allocation3 + $0x168] sm:$0xff]
  %v4190 = vld [vmem:[#allocation3 + $0x170] sm:$0xff]
  %v4191 = vld [vmem:[#allocation3 + $0x178] sm:$0x3]
  %v4192 = vld [vmem:[#allocation3 + $0x180] sm:$0xff]
  %v4193 = vld [vmem:[#allocation3 + $0x188] sm:$0xff]
  %v4194 = vld [vmem:[#allocation3 + $0x190] sm:$0x3]
  %v4195 = vld [vmem:[#allocation3 + $0x198] sm:$0xff]
  %v4196 = vld [vmem:[#allocation3 + $0x1a0] sm:$0xff]
  %v4197 = vld [vmem:[#allocation3 + $0x1a8] sm:$0x3]
  %v4198 = vld [vmem:[#allocation3 + $0x1b0] sm:$0xff]
  %v4199 = vld [vmem:[#allocation3 + $0x1b8] sm:$0xff]
  %v4200 = vld [vmem:[#allocation3 + $0x1c0] sm:$0x3]
  %v4201 = vld [vmem:[#allocation3 + $0x1c8] sm:$0xff]
  %v4202 = vld [vmem:[#allocation3 + $0x1d0] sm:$0xff]
  %v4203 = vld [vmem:[#allocation3 + $0x1d8] sm:$0x3]
  %v4204 = vld [vmem:[#allocation3 + $0x1e0] sm:$0xff]
  %v4205 = vld [vmem:[#allocation3 + $0x1e8] sm:$0xff]
  %v4206 = vld [vmem:[#allocation3 + $0x1f0] sm:$0x3]
  %v4207 = vld [vmem:[#allocation3 + $0x1f8] sm:$0xff]
  %v4208 = vld [vmem:[#allocation3 + $0x200] sm:$0xff]
  %v4209 = vld [vmem:[#allocation3 + $0x208] sm:$0x3]
  %v4210 = vld [vmem:[#allocation3 + $0x210] sm:$0xff]
  %v4211 = vld [vmem:[#allocation3 + $0x218] sm:$0xff]
  %v4212 = vld [vmem:[#allocation3 + $0x220] sm:$0x3]
  %v4213 = vld [vmem:[#allocation3 + $0x228] sm:$0xff]
  %v4214 = vld [vmem:[#allocation3 + $0x230] sm:$0xff]
  %v4215 = vld [vmem:[#allocation3 + $0x238] sm:$0x3]
  %v4216 = vld [vmem:[#allocation3 + $0x240] sm:$0xff]
  %v4217 = vld [vmem:[#allocation3 + $0x248] sm:$0xff]
  %v4218 = vld [vmem:[#allocation3 + $0x250] sm:$0x3]
  %v4219 = vld [vmem:[#allocation3 + $0x258] sm:$0xff]
  %v4220 = vld [vmem:[#allocation3 + $0x260] sm:$0xff]
  %v4221 = vld [vmem:[#allocation3 + $0x268] sm:$0x3]
  %v4222 = vld [vmem:[#allocation3 + $0x270] sm:$0xff]
  %v4223 = vld [vmem:[#allocation3 + $0x278] sm:$0xff]
  %v4224 = vld [vmem:[#allocation3 + $0x280] sm:$0x3]
  %v4225 = vld [vmem:[#allocation3 + $0x288] sm:$0xff]
  %v4226 = vld [vmem:[#allocation3 + $0x290] sm:$0xff]
  %v4227 = vld [vmem:[#allocation3 + $0x298] sm:$0x3]
  %v4228 = vld [vmem:[#allocation3 + $0x2a0] sm:$0xff]
  %v4229 = vld [vmem:[#allocation3 + $0x2a8] sm:$0xff]
  %v4230 = vld [vmem:[#allocation3 + $0x2b0] sm:$0x3]
  %v4231 = vld [vmem:[#allocation3 + $0x2b8] sm:$0xff]
  %v4232 = vld [vmem:[#allocation3 + $0x2c0] sm:$0xff]
  %v4233 = vld [vmem:[#allocation3 + $0x2c8] sm:$0x3]
  %v4234 = vld [vmem:[#allocation3 + $0x2d0] sm:$0xff]
  %v4235 = vld [vmem:[#allocation3 + $0x2d8] sm:$0xff]
  %v4236 = vld [vmem:[#allocation3 + $0x2e0] sm:$0x3]
  %v4237 = vld [vmem:[#allocation3 + $0x2e8] sm:$0xff]
  %v4238 = vld [vmem:[#allocation3 + $0x2f0] sm:$0xff]
  %v4239 = vld [vmem:[#allocation3 + $0x2f8] sm:$0x3]
  %v4240 = vld [vmem:[#allocation3 + $0x300] sm:$0xff]
  %v4241 = vld [vmem:[#allocation3 + $0x308] sm:$0xff]
  %v4242 = vld [vmem:[#allocation3 + $0x310] sm:$0x3]
  %v4243 = vld [vmem:[#allocation3 + $0x318] sm:$0xff]
  %v4244 = vld [vmem:[#allocation3 + $0x320] sm:$0xff]
  %v4245 = vld [vmem:[#allocation3 + $0x328] sm:$0x3]
  %v4246 = vld [vmem:[#allocation3 + $0x330] sm:$0xff]
  %v4247 = vld [vmem:[#allocation3 + $0x338] sm:$0xff]
  %v4248 = vld [vmem:[#allocation3 + $0x340] sm:$0x3]
  %v4249 = vld [vmem:[#allocation3 + $0x348] sm:$0xff]
  %v4250 = vld [vmem:[#allocation3 + $0x350] sm:$0xff]
  %v4251 = vld [vmem:[#allocation3 + $0x358] sm:$0x3]
  %4252 = vst.msk [vmem:[#allocation5] sm:$0xff] %vm3328, %v4144
  %4253 = vst.msk [vmem:[#allocation5 + $0x8] sm:$0xff] %vm3328, %v4145
  %4254 = vst.msk [vmem:[#allocation5 + $0x10] sm:$0xff] %vm3328, %v4147
  %4255 = vst.msk [vmem:[#allocation5 + $0x18] sm:$0xff] %vm3328, %v4148
  %4256 = vst.msk [vmem:[#allocation5 + $0x20] sm:$0xff] %vm3328, %v4150
  %4257 = vst.msk [vmem:[#allocation5 + $0x28] sm:$0xff] %vm3328, %v4151
  %4258 = vst.msk [vmem:[#allocation5 + $0x30] sm:$0xff] %vm3328, %v4153
  %4259 = vst.msk [vmem:[#allocation5 + $0x38] sm:$0xff] %vm3328, %v4154
  %4260 = vst.msk [vmem:[#allocation5 + $0x40] sm:$0xff] %vm3328, %v4156
  %4261 = vst.msk [vmem:[#allocation5 + $0x48] sm:$0xff] %vm3328, %v4157
  %4262 = vst.msk [vmem:[#allocation5 + $0x50] sm:$0xff] %vm3328, %v4159
  %4263 = vst.msk [vmem:[#allocation5 + $0x58] sm:$0xff] %vm3328, %v4160
  %4264 = vst.msk [vmem:[#allocation5 + $0x60] sm:$0xff] %vm3328, %v4162
  %4265 = vst.msk [vmem:[#allocation5 + $0x68] sm:$0xff] %vm3328, %v4163
  %4266 = vst.msk [vmem:[#allocation5 + $0x70] sm:$0xff] %vm3328, %v4165
  %4267 = vst.msk [vmem:[#allocation5 + $0x78] sm:$0xff] %vm3328, %v4166
  %4268 = vst.msk [vmem:[#allocation5 + $0x80] sm:$0xff] %vm3328, %v4168
  %4269 = vst.msk [vmem:[#allocation5 + $0x88] sm:$0xff] %vm3328, %v4169
  %4270 = vst.msk [vmem:[#allocation5 + $0x90] sm:$0xff] %vm3328, %v4171
  %4271 = vst.msk [vmem:[#allocation5 + $0x98] sm:$0xff] %vm3328, %v4172
  %4272 = vst.msk [vmem:[#allocation5 + $0xa0] sm:$0xff] %vm3328, %v4174
  %4273 = vst.msk [vmem:[#allocation5 + $0xa8] sm:$0xff] %vm3328, %v4175
  %4274 = vst.msk [vmem:[#allocation5 + $0xb0] sm:$0xff] %vm3328, %v4177
  %4275 = vst.msk [vmem:[#allocation5 + $0xb8] sm:$0xff] %vm3328, %v4178
  %4276 = vst.msk [vmem:[#allocation5 + $0xc0] sm:$0xff] %vm3328, %v4180
  %4277 = vst.msk [vmem:[#allocation5 + $0xc8] sm:$0xff] %vm3328, %v4181
  %4278 = vst.msk [vmem:[#allocation5 + $0xd0] sm:$0xff] %vm3328, %v4183
  %4279 = vst.msk [vmem:[#allocation5 + $0xd8] sm:$0xff] %vm3328, %v4184
  %4280 = vst.msk [vmem:[#allocation5 + $0xe0] sm:$0xff] %vm3328, %v4186
  %4281 = vst.msk [vmem:[#allocation5 + $0xe8] sm:$0xff] %vm3328, %v4187
  %4282 = vst.msk [vmem:[#allocation5 + $0xf0] sm:$0xff] %vm3328, %v4189
  %4283 = vst.msk [vmem:[#allocation5 + $0xf8] sm:$0xff] %vm3328, %v4190
  %4284 = vst.msk [vmem:[#allocation5 + $0x100] sm:$0xff] %vm3328, %v4198
  %4285 = vst.msk [vmem:[#allocation5 + $0x108] sm:$0xff] %vm3328, %v4199
  %4286 = vst.msk [vmem:[#allocation5 + $0x110] sm:$0xff] %vm3328, %v4201
  %4287 = vst.msk [vmem:[#allocation5 + $0x118] sm:$0xff] %vm3328, %v4202
  %4288 = vst.msk [vmem:[#allocation5 + $0x120] sm:$0xff] %vm3328, %v4204
  %4289 = vst.msk [vmem:[#allocation5 + $0x128] sm:$0xff] %vm3328, %v4205
  %4290 = vst.msk [vmem:[#allocation5 + $0x130] sm:$0xff] %vm3328, %v4207
  %4291 = vst.msk [vmem:[#allocation5 + $0x138] sm:$0xff] %vm3328, %v4208
  %4292 = vst.msk [vmem:[#allocation5 + $0x140] sm:$0xff] %vm3328, %v4210
  %4293 = vst.msk [vmem:[#allocation5 + $0x148] sm:$0xff] %vm3328, %v4211
  %4294 = vst.msk [vmem:[#allocation5 + $0x150] sm:$0xff] %vm3328, %v4213
  %4295 = vst.msk [vmem:[#allocation5 + $0x158] sm:$0xff] %vm3328, %v4214
  %4296 = vst.msk [vmem:[#allocation5 + $0x160] sm:$0xff] %vm3328, %v4216
  %4297 = vst.msk [vmem:[#allocation5 + $0x168] sm:$0xff] %vm3328, %v4217
  %4298 = vst.msk [vmem:[#allocation5 + $0x170] sm:$0xff] %vm3328, %v4219
  %4299 = vst.msk [vmem:[#allocation5 + $0x178] sm:$0xff] %vm3328, %v4220
  %4300 = vst.msk [vmem:[#allocation5 + $0x180] sm:$0xff] %vm3328, %v4222
  %4301 = vst.msk [vmem:[#allocation5 + $0x188] sm:$0xff] %vm3328, %v4223
  %4302 = vst.msk [vmem:[#allocation5 + $0x190] sm:$0xff] %vm3328, %v4225
  %4303 = vst.msk [vmem:[#allocation5 + $0x198] sm:$0xff] %vm3328, %v4226
  %4304 = vst.msk [vmem:[#allocation5 + $0x1a0] sm:$0xff] %vm3328, %v4228
  %4305 = vst.msk [vmem:[#allocation5 + $0x1a8] sm:$0xff] %vm3328, %v4229
  %4306 = vst.msk [vmem:[#allocation5 + $0x1b0] sm:$0xff] %vm3328, %v4231
  %4307 = vst.msk [vmem:[#allocation5 + $0x1b8] sm:$0xff] %vm3328, %v4232
  %4308 = vst.msk [vmem:[#allocation5 + $0x1c0] sm:$0xff] %vm3328, %v4234
  %4309 = vst.msk [vmem:[#allocation5 + $0x1c8] sm:$0xff] %vm3328, %v4235
  %4310 = vst.msk [vmem:[#allocation5 + $0x1d0] sm:$0xff] %vm3328, %v4237
  %4311 = vst.msk [vmem:[#allocation5 + $0x1d8] sm:$0xff] %vm3328, %v4238
  %4312 = vst.msk [vmem:[#allocation5 + $0x1e0] sm:$0xff] %vm3328, %v4240
  %4313 = vst.msk [vmem:[#allocation5 + $0x1e8] sm:$0xff] %vm3328, %v4241
  %4314 = vst.msk [vmem:[#allocation5 + $0x1f0] sm:$0xff] %vm3328, %v4243
  %4315 = vst.msk [vmem:[#allocation5 + $0x1f8] sm:$0xff] %vm3328, %v4244
  %v4412 = vrot.slane %v4144, 1
  %v4413 = vrot.slane %v4145, 1
  %v4414 = vsel %vm510, %v4412, %v4413
  %v4415 = vrot.slane %v4146, 1
  %v4416 = vsel %vm510, %v4413, %v4415
  %v4417 = vrot.slane %v4147, 1
  %v4418 = vrot.slane %v4148, 1
  %v4419 = vsel %vm510, %v4417, %v4418
  %v4420 = vrot.slane %v4149, 1
  %v4421 = vsel %vm510, %v4418, %v4420
  %v4422 = vrot.slane %v4150, 1
  %v4423 = vrot.slane %v4151, 1
  %v4424 = vsel %vm510, %v4422, %v4423
  %v4425 = vrot.slane %v4152, 1
  %v4426 = vsel %vm510, %v4423, %v4425
  %v4427 = vrot.slane %v4153, 1
  %v4428 = vrot.slane %v4154, 1
  %v4429 = vsel %vm510, %v4427, %v4428
  %v4430 = vrot.slane %v4155, 1
  %v4431 = vsel %vm510, %v4428, %v4430
  %v4432 = vrot.slane %v4156, 1
  %v4433 = vrot.slane %v4157, 1
  %v4434 = vsel %vm510, %v4432, %v4433
  %v4435 = vrot.slane %v4158, 1
  %v4436 = vsel %vm510, %v4433, %v4435
  %v4437 = vrot.slane %v4159, 1
  %v4438 = vrot.slane %v4160, 1
  %v4439 = vsel %vm510, %v4437, %v4438
  %v4440 = vrot.slane %v4161, 1
  %v4441 = vsel %vm510, %v4438, %v4440
  %v4442 = vrot.slane %v4162, 1
  %v4443 = vrot.slane %v4163, 1
  %v4444 = vsel %vm510, %v4442, %v4443
  %v4445 = vrot.slane %v4164, 1
  %v4446 = vsel %vm510, %v4443, %v4445
  %v4447 = vrot.slane %v4165, 1
  %v4448 = vrot.slane %v4166, 1
  %v4449 = vsel %vm510, %v4447, %v4448
  %v4450 = vrot.slane %v4167, 1
  %v4451 = vsel %vm510, %v4448, %v4450
  %v4452 = vrot.slane %v4168, 1
  %v4453 = vrot.slane %v4169, 1
  %v4454 = vsel %vm510, %v4452, %v4453
  %v4455 = vrot.slane %v4170, 1
  %v4456 = vsel %vm510, %v4453, %v4455
  %v4457 = vrot.slane %v4171, 1
  %v4458 = vrot.slane %v4172, 1
  %v4459 = vsel %vm510, %v4457, %v4458
  %v4460 = vrot.slane %v4173, 1
  %v4461 = vsel %vm510, %v4458, %v4460
  %v4462 = vrot.slane %v4174, 1
  %v4463 = vrot.slane %v4175, 1
  %v4464 = vsel %vm510, %v4462, %v4463
  %v4465 = vrot.slane %v4176, 1
  %v4466 = vsel %vm510, %v4463, %v4465
  %v4467 = vrot.slane %v4177, 1
  %v4468 = vrot.slane %v4178, 1
  %v4469 = vsel %vm510, %v4467, %v4468
  %v4470 = vrot.slane %v4179, 1
  %v4471 = vsel %vm510, %v4468, %v4470
  %v4472 = vrot.slane %v4180, 1
  %v4473 = vrot.slane %v4181, 1
  %v4474 = vsel %vm510, %v4472, %v4473
  %v4475 = vrot.slane %v4182, 1
  %v4476 = vsel %vm510, %v4473, %v4475
  %v4477 = vrot.slane %v4183, 1
  %v4478 = vrot.slane %v4184, 1
  %v4479 = vsel %vm510, %v4477, %v4478
  %v4480 = vrot.slane %v4185, 1
  %v4481 = vsel %vm510, %v4478, %v4480
  %v4482 = vrot.slane %v4186, 1
  %v4483 = vrot.slane %v4187, 1
  %v4484 = vsel %vm510, %v4482, %v4483
  %v4485 = vrot.slane %v4188, 1
  %v4486 = vsel %vm510, %v4483, %v4485
  %v4487 = vrot.slane %v4189, 1
  %v4488 = vrot.slane %v4190, 1
  %v4489 = vsel %vm510, %v4487, %v4488
  %v4490 = vrot.slane %v4191, 1
  %v4491 = vsel %vm510, %v4488, %v4490
  %v4492 = vrot.slane %v4198, 1
  %v4493 = vrot.slane %v4199, 1
  %v4494 = vsel %vm510, %v4492, %v4493
  %v4495 = vrot.slane %v4200, 1
  %v4496 = vsel %vm510, %v4493, %v4495
  %v4497 = vrot.slane %v4201, 1
  %v4498 = vrot.slane %v4202, 1
  %v4499 = vsel %vm510, %v4497, %v4498
  %v4500 = vrot.slane %v4203, 1
  %v4501 = vsel %vm510, %v4498, %v4500
  %v4502 = vrot.slane %v4204, 1
  %v4503 = vrot.slane %v4205, 1
  %v4504 = vsel %vm510, %v4502, %v4503
  %v4505 = vrot.slane %v4206, 1
  %v4506 = vsel %vm510, %v4503, %v4505
  %v4507 = vrot.slane %v4207, 1
  %v4508 = vrot.slane %v4208, 1
  %v4509 = vsel %vm510, %v4507, %v4508
  %v4510 = vrot.slane %v4209, 1
  %v4511 = vsel %vm510, %v4508, %v4510
  %v4512 = vrot.slane %v4210, 1
  %v4513 = vrot.slane %v4211, 1
  %v4514 = vsel %vm510, %v4512, %v4513
  %v4515 = vrot.slane %v4212, 1
  %v4516 = vsel %vm510, %v4513, %v4515
  %v4517 = vrot.slane %v4213, 1
  %v4518 = vrot.slane %v4214, 1
  %v4519 = vsel %vm510, %v4517, %v4518
  %v4520 = vrot.slane %v4215, 1
  %v4521 = vsel %vm510, %v4518, %v4520
  %v4522 = vrot.slane %v4216, 1
  %v4523 = vrot.slane %v4217, 1
  %v4524 = vsel %vm510, %v4522, %v4523
  %v4525 = vrot.slane %v4218, 1
  %v4526 = vsel %vm510, %v4523, %v4525
  %v4527 = vrot.slane %v4219, 1
  %v4528 = vrot.slane %v4220, 1
  %v4529 = vsel %vm510, %v4527, %v4528
  %v4530 = vrot.slane %v4221, 1
  %v4531 = vsel %vm510, %v4528, %v4530
  %v4532 = vrot.slane %v4222, 1
  %v4533 = vrot.slane %v4223, 1
  %v4534 = vsel %vm510, %v4532, %v4533
  %v4535 = vrot.slane %v4224, 1
  %v4536 = vsel %vm510, %v4533, %v4535
  %v4537 = vrot.slane %v4225, 1
  %v4538 = vrot.slane %v4226, 1
  %v4539 = vsel %vm510, %v4537, %v4538
  %v4540 = vrot.slane %v4227, 1
  %v4541 = vsel %vm510, %v4538, %v4540
  %v4542 = vrot.slane %v4228, 1
  %v4543 = vrot.slane %v4229, 1
  %v4544 = vsel %vm510, %v4542, %v4543
  %v4545 = vrot.slane %v4230, 1
  %v4546 = vsel %vm510, %v4543, %v4545
  %v4547 = vrot.slane %v4231, 1
  %v4548 = vrot.slane %v4232, 1
  %v4549 = vsel %vm510, %v4547, %v4548
  %v4550 = vrot.slane %v4233, 1
  %v4551 = vsel %vm510, %v4548, %v4550
  %v4552 = vrot.slane %v4234, 1
  %v4553 = vrot.slane %v4235, 1
  %v4554 = vsel %vm510, %v4552, %v4553
  %v4555 = vrot.slane %v4236, 1
  %v4556 = vsel %vm510, %v4553, %v4555
  %v4557 = vrot.slane %v4237, 1
  %v4558 = vrot.slane %v4238, 1
  %v4559 = vsel %vm510, %v4557, %v4558
  %v4560 = vrot.slane %v4239, 1
  %v4561 = vsel %vm510, %v4558, %v4560
  %v4562 = vrot.slane %v4240, 1
  %v4563 = vrot.slane %v4241, 1
  %v4564 = vsel %vm510, %v4562, %v4563
  %v4565 = vrot.slane %v4242, 1
  %v4566 = vsel %vm510, %v4563, %v4565
  %v4567 = vrot.slane %v4243, 1
  %v4568 = vrot.slane %v4244, 1
  %v4569 = vsel %vm510, %v4567, %v4568
  %v4570 = vrot.slane %v4245, 1
  %v4571 = vsel %vm510, %v4568, %v4570
  %4572 = vrot.lane.b32.xlu0 %v4414, 8
  %v4573 = vpop.permute.xlu0 %4572
  %4574 = vrot.lane.b32.xlu0 %v4416, 8
  %v4575 = vpop.permute.xlu0 %4574
  %4576 = vrot.lane.b32.xlu0 %v4419, 8
  %v4577 = vpop.permute.xlu0 %4576
  %4578 = vrot.lane.b32.xlu0 %v4421, 8
  %v4579 = vpop.permute.xlu0 %4578
  %4580 = vrot.lane.b32.xlu0 %v4424, 8
  %v4581 = vpop.permute.xlu0 %4580
  %4582 = vrot.lane.b32.xlu0 %v4426, 8
  %v4583 = vpop.permute.xlu0 %4582
  %4584 = vrot.lane.b32.xlu0 %v4429, 8
  %v4585 = vpop.permute.xlu0 %4584
  %4586 = vrot.lane.b32.xlu0 %v4431, 8
  %v4587 = vpop.permute.xlu0 %4586
  %4588 = vrot.lane.b32.xlu0 %v4434, 8
  %v4589 = vpop.permute.xlu0 %4588
  %4590 = vrot.lane.b32.xlu0 %v4436, 8
  %v4591 = vpop.permute.xlu0 %4590
  %4592 = vrot.lane.b32.xlu0 %v4439, 8
  %v4593 = vpop.permute.xlu0 %4592
  %4594 = vrot.lane.b32.xlu0 %v4441, 8
  %v4595 = vpop.permute.xlu0 %4594
  %4596 = vrot.lane.b32.xlu0 %v4444, 8
  %v4597 = vpop.permute.xlu0 %4596
  %4598 = vrot.lane.b32.xlu0 %v4446, 8
  %v4599 = vpop.permute.xlu0 %4598
  %4600 = vrot.lane.b32.xlu0 %v4449, 8
  %v4601 = vpop.permute.xlu0 %4600
  %4602 = vrot.lane.b32.xlu0 %v4451, 8
  %v4603 = vpop.permute.xlu0 %4602
  %4604 = vrot.lane.b32.xlu0 %v4454, 8
  %v4605 = vpop.permute.xlu0 %4604
  %4606 = vrot.lane.b32.xlu0 %v4456, 8
  %v4607 = vpop.permute.xlu0 %4606
  %4608 = vrot.lane.b32.xlu0 %v4459, 8
  %v4609 = vpop.permute.xlu0 %4608
  %4610 = vrot.lane.b32.xlu0 %v4461, 8
  %v4611 = vpop.permute.xlu0 %4610
  %4612 = vrot.lane.b32.xlu0 %v4464, 8
  %v4613 = vpop.permute.xlu0 %4612
  %4614 = vrot.lane.b32.xlu0 %v4466, 8
  %v4615 = vpop.permute.xlu0 %4614
  %4616 = vrot.lane.b32.xlu0 %v4469, 8
  %v4617 = vpop.permute.xlu0 %4616
  %4618 = vrot.lane.b32.xlu0 %v4471, 8
  %v4619 = vpop.permute.xlu0 %4618
  %4620 = vrot.lane.b32.xlu0 %v4474, 8
  %v4621 = vpop.permute.xlu0 %4620
  %4622 = vrot.lane.b32.xlu0 %v4476, 8
  %v4623 = vpop.permute.xlu0 %4622
  %4624 = vrot.lane.b32.xlu0 %v4479, 8
  %v4625 = vpop.permute.xlu0 %4624
  %4626 = vrot.lane.b32.xlu0 %v4481, 8
  %v4627 = vpop.permute.xlu0 %4626
  %4628 = vrot.lane.b32.xlu0 %v4484, 8
  %v4629 = vpop.permute.xlu0 %4628
  %4630 = vrot.lane.b32.xlu0 %v4486, 8
  %v4631 = vpop.permute.xlu0 %4630
  %4632 = vrot.lane.b32.xlu0 %v4489, 8
  %v4633 = vpop.permute.xlu0 %4632
  %4634 = vrot.lane.b32.xlu0 %v4491, 8
  %v4635 = vpop.permute.xlu0 %4634
  %4636 = vrot.lane.b32.xlu0 %v4494, 8
  %v4637 = vpop.permute.xlu0 %4636
  %4638 = vrot.lane.b32.xlu0 %v4496, 8
  %v4639 = vpop.permute.xlu0 %4638
  %4640 = vrot.lane.b32.xlu0 %v4499, 8
  %v4641 = vpop.permute.xlu0 %4640
  %4642 = vrot.lane.b32.xlu0 %v4501, 8
  %v4643 = vpop.permute.xlu0 %4642
  %4644 = vrot.lane.b32.xlu0 %v4504, 8
  %v4645 = vpop.permute.xlu0 %4644
  %4646 = vrot.lane.b32.xlu0 %v4506, 8
  %v4647 = vpop.permute.xlu0 %4646
  %4648 = vrot.lane.b32.xlu0 %v4509, 8
  %v4649 = vpop.permute.xlu0 %4648
  %4650 = vrot.lane.b32.xlu0 %v4511, 8
  %v4651 = vpop.permute.xlu0 %4650
  %4652 = vrot.lane.b32.xlu0 %v4514, 8
  %v4653 = vpop.permute.xlu0 %4652
  %4654 = vrot.lane.b32.xlu0 %v4516, 8
  %v4655 = vpop.permute.xlu0 %4654
  %4656 = vrot.lane.b32.xlu0 %v4519, 8
  %v4657 = vpop.permute.xlu0 %4656
  %4658 = vrot.lane.b32.xlu0 %v4521, 8
  %v4659 = vpop.permute.xlu0 %4658
  %4660 = vrot.lane.b32.xlu0 %v4524, 8
  %v4661 = vpop.permute.xlu0 %4660
  %4662 = vrot.lane.b32.xlu0 %v4526, 8
  %v4663 = vpop.permute.xlu0 %4662
  %4664 = vrot.lane.b32.xlu0 %v4529, 8
  %v4665 = vpop.permute.xlu0 %4664
  %4666 = vrot.lane.b32.xlu0 %v4531, 8
  %v4667 = vpop.permute.xlu0 %4666
  %4668 = vrot.lane.b32.xlu0 %v4534, 8
  %v4669 = vpop.permute.xlu0 %4668
  %4670 = vrot.lane.b32.xlu0 %v4536, 8
  %v4671 = vpop.permute.xlu0 %4670
  %4672 = vrot.lane.b32.xlu0 %v4539, 8
  %v4673 = vpop.permute.xlu0 %4672
  %4674 = vrot.lane.b32.xlu0 %v4541, 8
  %v4675 = vpop.permute.xlu0 %4674
  %4676 = vrot.lane.b32.xlu0 %v4544, 8
  %v4677 = vpop.permute.xlu0 %4676
  %4678 = vrot.lane.b32.xlu0 %v4546, 8
  %v4679 = vpop.permute.xlu0 %4678
  %4680 = vrot.lane.b32.xlu0 %v4549, 8
  %v4681 = vpop.permute.xlu0 %4680
  %4682 = vrot.lane.b32.xlu0 %v4551, 8
  %v4683 = vpop.permute.xlu0 %4682
  %4684 = vrot.lane.b32.xlu0 %v4554, 8
  %v4685 = vpop.permute.xlu0 %4684
  %4686 = vrot.lane.b32.xlu0 %v4556, 8
  %v4687 = vpop.permute.xlu0 %4686
  %4688 = vrot.lane.b32.xlu0 %v4559, 8
  %v4689 = vpop.permute.xlu0 %4688
  %4690 = vrot.lane.b32.xlu0 %v4561, 8
  %v4691 = vpop.permute.xlu0 %4690
  %4692 = vrot.lane.b32.xlu0 %v4564, 8
  %v4693 = vpop.permute.xlu0 %4692
  %4694 = vrot.lane.b32.xlu0 %v4566, 8
  %v4695 = vpop.permute.xlu0 %4694
  %4696 = vrot.lane.b32.xlu0 %v4569, 8
  %v4697 = vpop.permute.xlu0 %4696
  %4698 = vrot.lane.b32.xlu0 %v4571, 8
  %v4699 = vpop.permute.xlu0 %4698
  %vm4764 = vcmask 130112
  %4765 = vst.msk [vmem:[#allocation5] sm:$0xff] %vm4764, %v4573
  %4766 = vst.msk [vmem:[#allocation5 + $0x8] sm:$0xff] %vm4764, %v4575
  %4767 = vst.msk [vmem:[#allocation5 + $0x10] sm:$0xff] %vm4764, %v4577
  %4768 = vst.msk [vmem:[#allocation5 + $0x18] sm:$0xff] %vm4764, %v4579
  %4769 = vst.msk [vmem:[#allocation5 + $0x20] sm:$0xff] %vm4764, %v4581
  %4770 = vst.msk [vmem:[#allocation5 + $0x28] sm:$0xff] %vm4764, %v4583
  %4771 = vst.msk [vmem:[#allocation5 + $0x30] sm:$0xff] %vm4764, %v4585
  %4772 = vst.msk [vmem:[#allocation5 + $0x38] sm:$0xff] %vm4764, %v4587
  %4773 = vst.msk [vmem:[#allocation5 + $0x40] sm:$0xff] %vm4764, %v4589
  %4774 = vst.msk [vmem:[#allocation5 + $0x48] sm:$0xff] %vm4764, %v4591
  %4775 = vst.msk [vmem:[#allocation5 + $0x50] sm:$0xff] %vm4764, %v4593
  %4776 = vst.msk [vmem:[#allocation5 + $0x58] sm:$0xff] %vm4764, %v4595
  %4777 = vst.msk [vmem:[#allocation5 + $0x60] sm:$0xff] %vm4764, %v4597
  %4778 = vst.msk [vmem:[#allocation5 + $0x68] sm:$0xff] %vm4764, %v4599
  %4779 = vst.msk [vmem:[#allocation5 + $0x70] sm:$0xff] %vm4764, %v4601
  %4780 = vst.msk [vmem:[#allocation5 + $0x78] sm:$0xff] %vm4764, %v4603
  %4781 = vst.msk [vmem:[#allocation5 + $0x80] sm:$0xff] %vm4764, %v4605
  %4782 = vst.msk [vmem:[#allocation5 + $0x88] sm:$0xff] %vm4764, %v4607
  %4783 = vst.msk [vmem:[#allocation5 + $0x90] sm:$0xff] %vm4764, %v4609
  %4784 = vst.msk [vmem:[#allocation5 + $0x98] sm:$0xff] %vm4764, %v4611
  %4785 = vst.msk [vmem:[#allocation5 + $0xa0] sm:$0xff] %vm4764, %v4613
  %4786 = vst.msk [vmem:[#allocation5 + $0xa8] sm:$0xff] %vm4764, %v4615
  %4787 = vst.msk [vmem:[#allocation5 + $0xb0] sm:$0xff] %vm4764, %v4617
  %4788 = vst.msk [vmem:[#allocation5 + $0xb8] sm:$0xff] %vm4764, %v4619
  %4789 = vst.msk [vmem:[#allocation5 + $0xc0] sm:$0xff] %vm4764, %v4621
  %4790 = vst.msk [vmem:[#allocation5 + $0xc8] sm:$0xff] %vm4764, %v4623
  %4791 = vst.msk [vmem:[#allocation5 + $0xd0] sm:$0xff] %vm4764, %v4625
  %4792 = vst.msk [vmem:[#allocation5 + $0xd8] sm:$0xff] %vm4764, %v4627
  %4793 = vst.msk [vmem:[#allocation5 + $0xe0] sm:$0xff] %vm4764, %v4629
  %4794 = vst.msk [vmem:[#allocation5 + $0xe8] sm:$0xff] %vm4764, %v4631
  %4795 = vst.msk [vmem:[#allocation5 + $0xf0] sm:$0xff] %vm4764, %v4633
  %4796 = vst.msk [vmem:[#allocation5 + $0xf8] sm:$0xff] %vm4764, %v4635
  %4797 = vst.msk [vmem:[#allocation5 + $0x100] sm:$0xff] %vm4764, %v4637
  %4798 = vst.msk [vmem:[#allocation5 + $0x108] sm:$0xff] %vm4764, %v4639
  %4799 = vst.msk [vmem:[#allocation5 + $0x110] sm:$0xff] %vm4764, %v4641
  %4800 = vst.msk [vmem:[#allocation5 + $0x118] sm:$0xff] %vm4764, %v4643
  %4801 = vst.msk [vmem:[#allocation5 + $0x120] sm:$0xff] %vm4764, %v4645
  %4802 = vst.msk [vmem:[#allocation5 + $0x128] sm:$0xff] %vm4764, %v4647
  %4803 = vst.msk [vmem:[#allocation5 + $0x130] sm:$0xff] %vm4764, %v4649
  %4804 = vst.msk [vmem:[#allocation5 + $0x138] sm:$0xff] %vm4764, %v4651
  %4805 = vst.msk [vmem:[#allocation5 + $0x140] sm:$0xff] %vm4764, %v4653
  %4806 = vst.msk [vmem:[#allocation5 + $0x148] sm:$0xff] %vm4764, %v4655
  %4807 = vst.msk [vmem:[#allocation5 + $0x150] sm:$0xff] %vm4764, %v4657
  %4808 = vst.msk [vmem:[#allocation5 + $0x158] sm:$0xff] %vm4764, %v4659
  %4809 = vst.msk [vmem:[#allocation5 + $0x160] sm:$0xff] %vm4764, %v4661
  %4810 = vst.msk [vmem:[#allocation5 + $0x168] sm:$0xff] %vm4764, %v4663
  %4811 = vst.msk [vmem:[#allocation5 + $0x170] sm:$0xff] %vm4764, %v4665
  %4812 = vst.msk [vmem:[#allocation5 + $0x178] sm:$0xff] %vm4764, %v4667
  %4813 = vst.msk [vmem:[#allocation5 + $0x180] sm:$0xff] %vm4764, %v4669
  %4814 = vst.msk [vmem:[#allocation5 + $0x188] sm:$0xff] %vm4764, %v4671
  %4815 = vst.msk [vmem:[#allocation5 + $0x190] sm:$0xff] %vm4764, %v4673
  %4816 = vst.msk [vmem:[#allocation5 + $0x198] sm:$0xff] %vm4764, %v4675
  %4817 = vst.msk [vmem:[#allocation5 + $0x1a0] sm:$0xff] %vm4764, %v4677
  %4818 = vst.msk [vmem:[#allocation5 + $0x1a8] sm:$0xff] %vm4764, %v4679
  %4819 = vst.msk [vmem:[#allocation5 + $0x1b0] sm:$0xff] %vm4764, %v4681
  %4820 = vst.msk [vmem:[#allocation5 + $0x1b8] sm:$0xff] %vm4764, %v4683
  %4821 = vst.msk [vmem:[#allocation5 + $0x1c0] sm:$0xff] %vm4764, %v4685
  %4822 = vst.msk [vmem:[#allocation5 + $0x1c8] sm:$0xff] %vm4764, %v4687
  %4823 = vst.msk [vmem:[#allocation5 + $0x1d0] sm:$0xff] %vm4764, %v4689
  %4824 = vst.msk [vmem:[#allocation5 + $0x1d8] sm:$0xff] %vm4764, %v4691
  %4825 = vst.msk [vmem:[#allocation5 + $0x1e0] sm:$0xff] %vm4764, %v4693
  %4826 = vst.msk [vmem:[#allocation5 + $0x1e8] sm:$0xff] %vm4764, %v4695
  %4827 = vst.msk [vmem:[#allocation5 + $0x1f0] sm:$0xff] %vm4764, %v4697
  %4828 = vst.msk [vmem:[#allocation5 + $0x1f8] sm:$0xff] %vm4764, %v4699
  %v4829 = vrot.slane %v4144, 2
  %v4830 = vrot.slane %v4145, 2
  %v4831 = vsel %vm928, %v4829, %v4830
  %v4832 = vrot.slane %v4146, 2
  %v4833 = vsel %vm928, %v4830, %v4832
  %v4834 = vrot.slane %v4147, 2
  %v4835 = vrot.slane %v4148, 2
  %v4836 = vsel %vm928, %v4834, %v4835
  %v4837 = vrot.slane %v4149, 2
  %v4838 = vsel %vm928, %v4835, %v4837
  %v4839 = vrot.slane %v4150, 2
  %v4840 = vrot.slane %v4151, 2
  %v4841 = vsel %vm928, %v4839, %v4840
  %v4842 = vrot.slane %v4152, 2
  %v4843 = vsel %vm928, %v4840, %v4842
  %v4844 = vrot.slane %v4153, 2
  %v4845 = vrot.slane %v4154, 2
  %v4846 = vsel %vm928, %v4844, %v4845
  %v4847 = vrot.slane %v4155, 2
  %v4848 = vsel %vm928, %v4845, %v4847
  %v4849 = vrot.slane %v4156, 2
  %v4850 = vrot.slane %v4157, 2
  %v4851 = vsel %vm928, %v4849, %v4850
  %v4852 = vrot.slane %v4158, 2
  %v4853 = vsel %vm928, %v4850, %v4852
  %v4854 = vrot.slane %v4159, 2
  %v4855 = vrot.slane %v4160, 2
  %v4856 = vsel %vm928, %v4854, %v4855
  %v4857 = vrot.slane %v4161, 2
  %v4858 = vsel %vm928, %v4855, %v4857
  %v4859 = vrot.slane %v4162, 2
  %v4860 = vrot.slane %v4163, 2
  %v4861 = vsel %vm928, %v4859, %v4860
  %v4862 = vrot.slane %v4164, 2
  %v4863 = vsel %vm928, %v4860, %v4862
  %v4864 = vrot.slane %v4165, 2
  %v4865 = vrot.slane %v4166, 2
  %v4866 = vsel %vm928, %v4864, %v4865
  %v4867 = vrot.slane %v4167, 2
  %v4868 = vsel %vm928, %v4865, %v4867
  %v4869 = vrot.slane %v4168, 2
  %v4870 = vrot.slane %v4169, 2
  %v4871 = vsel %vm928, %v4869, %v4870
  %v4872 = vrot.slane %v4170, 2
  %v4873 = vsel %vm928, %v4870, %v4872
  %v4874 = vrot.slane %v4171, 2
  %v4875 = vrot.slane %v4172, 2
  %v4876 = vsel %vm928, %v4874, %v4875
  %v4877 = vrot.slane %v4173, 2
  %v4878 = vsel %vm928, %v4875, %v4877
  %v4879 = vrot.slane %v4174, 2
  %v4880 = vrot.slane %v4175, 2
  %v4881 = vsel %vm928, %v4879, %v4880
  %v4882 = vrot.slane %v4176, 2
  %v4883 = vsel %vm928, %v4880, %v4882
  %v4884 = vrot.slane %v4177, 2
  %v4885 = vrot.slane %v4178, 2
  %v4886 = vsel %vm928, %v4884, %v4885
  %v4887 = vrot.slane %v4179, 2
  %v4888 = vsel %vm928, %v4885, %v4887
  %v4889 = vrot.slane %v4180, 2
  %v4890 = vrot.slane %v4181, 2
  %v4891 = vsel %vm928, %v4889, %v4890
  %v4892 = vrot.slane %v4182, 2
  %v4893 = vsel %vm928, %v4890, %v4892
  %v4894 = vrot.slane %v4183, 2
  %v4895 = vrot.slane %v4184, 2
  %v4896 = vsel %vm928, %v4894, %v4895
  %v4897 = vrot.slane %v4185, 2
  %v4898 = vsel %vm928, %v4895, %v4897
  %v4899 = vrot.slane %v4186, 2
  %v4900 = vrot.slane %v4187, 2
  %v4901 = vsel %vm928, %v4899, %v4900
  %v4902 = vrot.slane %v4188, 2
  %v4903 = vsel %vm928, %v4900, %v4902
  %v4904 = vrot.slane %v4189, 2
  %v4905 = vrot.slane %v4190, 2
  %v4906 = vsel %vm928, %v4904, %v4905
  %v4907 = vrot.slane %v4191, 2
  %v4908 = vsel %vm928, %v4905, %v4907
  %v4909 = vrot.slane %v4198, 2
  %v4910 = vrot.slane %v4199, 2
  %v4911 = vsel %vm928, %v4909, %v4910
  %v4912 = vrot.slane %v4200, 2
  %v4913 = vsel %vm928, %v4910, %v4912
  %v4914 = vrot.slane %v4201, 2
  %v4915 = vrot.slane %v4202, 2
  %v4916 = vsel %vm928, %v4914, %v4915
  %v4917 = vrot.slane %v4203, 2
  %v4918 = vsel %vm928, %v4915, %v4917
  %v4919 = vrot.slane %v4204, 2
  %v4920 = vrot.slane %v4205, 2
  %v4921 = vsel %vm928, %v4919, %v4920
  %v4922 = vrot.slane %v4206, 2
  %v4923 = vsel %vm928, %v4920, %v4922
  %v4924 = vrot.slane %v4207, 2
  %v4925 = vrot.slane %v4208, 2
  %v4926 = vsel %vm928, %v4924, %v4925
  %v4927 = vrot.slane %v4209, 2
  %v4928 = vsel %vm928, %v4925, %v4927
  %v4929 = vrot.slane %v4210, 2
  %v4930 = vrot.slane %v4211, 2
  %v4931 = vsel %vm928, %v4929, %v4930
  %v4932 = vrot.slane %v4212, 2
  %v4933 = vsel %vm928, %v4930, %v4932
  %v4934 = vrot.slane %v4213, 2
  %v4935 = vrot.slane %v4214, 2
  %v4936 = vsel %vm928, %v4934, %v4935
  %v4937 = vrot.slane %v4215, 2
  %v4938 = vsel %vm928, %v4935, %v4937
  %v4939 = vrot.slane %v4216, 2
  %v4940 = vrot.slane %v4217, 2
  %v4941 = vsel %vm928, %v4939, %v4940
  %v4942 = vrot.slane %v4218, 2
  %v4943 = vsel %vm928, %v4940, %v4942
  %v4944 = vrot.slane %v4219, 2
  %v4945 = vrot.slane %v4220, 2
  %v4946 = vsel %vm928, %v4944, %v4945
  %v4947 = vrot.slane %v4221, 2
  %v4948 = vsel %vm928, %v4945, %v4947
  %v4949 = vrot.slane %v4222, 2
  %v4950 = vrot.slane %v4223, 2
  %v4951 = vsel %vm928, %v4949, %v4950
  %v4952 = vrot.slane %v4224, 2
  %v4953 = vsel %vm928, %v4950, %v4952
  %v4954 = vrot.slane %v4225, 2
  %v4955 = vrot.slane %v4226, 2
  %v4956 = vsel %vm928, %v4954, %v4955
  %v4957 = vrot.slane %v4227, 2
  %v4958 = vsel %vm928, %v4955, %v4957
  %v4959 = vrot.slane %v4228, 2
  %v4960 = vrot.slane %v4229, 2
  %v4961 = vsel %vm928, %v4959, %v4960
  %v4962 = vrot.slane %v4230, 2
  %v4963 = vsel %vm928, %v4960, %v4962
  %v4964 = vrot.slane %v4231, 2
  %v4965 = vrot.slane %v4232, 2
  %v4966 = vsel %vm928, %v4964, %v4965
  %v4967 = vrot.slane %v4233, 2
  %v4968 = vsel %vm928, %v4965, %v4967
  %v4969 = vrot.slane %v4234, 2
  %v4970 = vrot.slane %v4235, 2
  %v4971 = vsel %vm928, %v4969, %v4970
  %v4972 = vrot.slane %v4236, 2
  %v4973 = vsel %vm928, %v4970, %v4972
  %v4974 = vrot.slane %v4237, 2
  %v4975 = vrot.slane %v4238, 2
  %v4976 = vsel %vm928, %v4974, %v4975
  %v4977 = vrot.slane %v4239, 2
  %v4978 = vsel %vm928, %v4975, %v4977
  %v4979 = vrot.slane %v4240, 2
  %v4980 = vrot.slane %v4241, 2
  %v4981 = vsel %vm928, %v4979, %v4980
  %v4982 = vrot.slane %v4242, 2
  %v4983 = vsel %vm928, %v4980, %v4982
  %v4984 = vrot.slane %v4243, 2
  %v4985 = vrot.slane %v4244, 2
  %v4986 = vsel %vm928, %v4984, %v4985
  %v4987 = vrot.slane %v4245, 2
  %v4988 = vsel %vm928, %v4985, %v4987
  %4989 = vrot.lane.b32.xlu0 %v4831, 16
  %v4990 = vpop.permute.xlu0 %4989
  %4991 = vrot.lane.b32.xlu0 %v4833, 16
  %v4992 = vpop.permute.xlu0 %4991
  %4993 = vrot.lane.b32.xlu0 %v4836, 16
  %v4994 = vpop.permute.xlu0 %4993
  %4995 = vrot.lane.b32.xlu0 %v4838, 16
  %v4996 = vpop.permute.xlu0 %4995
  %4997 = vrot.lane.b32.xlu0 %v4841, 16
  %v4998 = vpop.permute.xlu0 %4997
  %4999 = vrot.lane.b32.xlu0 %v4843, 16
  %v5000 = vpop.permute.xlu0 %4999
  %5001 = vrot.lane.b32.xlu0 %v4846, 16
  %v5002 = vpop.permute.xlu0 %5001
  %5003 = vrot.lane.b32.xlu0 %v4848, 16
  %v5004 = vpop.permute.xlu0 %5003
  %5005 = vrot.lane.b32.xlu0 %v4851, 16
  %v5006 = vpop.permute.xlu0 %5005
  %5007 = vrot.lane.b32.xlu0 %v4853, 16
  %v5008 = vpop.permute.xlu0 %5007
  %5009 = vrot.lane.b32.xlu0 %v4856, 16
  %v5010 = vpop.permute.xlu0 %5009
  %5011 = vrot.lane.b32.xlu0 %v4858, 16
  %v5012 = vpop.permute.xlu0 %5011
  %5013 = vrot.lane.b32.xlu0 %v4861, 16
  %v5014 = vpop.permute.xlu0 %5013
  %5015 = vrot.lane.b32.xlu0 %v4863, 16
  %v5016 = vpop.permute.xlu0 %5015
  %5017 = vrot.lane.b32.xlu0 %v4866, 16
  %v5018 = vpop.permute.xlu0 %5017
  %5019 = vrot.lane.b32.xlu0 %v4868, 16
  %v5020 = vpop.permute.xlu0 %5019
  %5021 = vrot.lane.b32.xlu0 %v4871, 16
  %v5022 = vpop.permute.xlu0 %5021
  %5023 = vrot.lane.b32.xlu0 %v4873, 16
  %v5024 = vpop.permute.xlu0 %5023
  %5025 = vrot.lane.b32.xlu0 %v4876, 16
  %v5026 = vpop.permute.xlu0 %5025
  %5027 = vrot.lane.b32.xlu0 %v4878, 16
  %v5028 = vpop.permute.xlu0 %5027
  %5029 = vrot.lane.b32.xlu0 %v4881, 16
  %v5030 = vpop.permute.xlu0 %5029
  %5031 = vrot.lane.b32.xlu0 %v4883, 16
  %v5032 = vpop.permute.xlu0 %5031
  %5033 = vrot.lane.b32.xlu0 %v4886, 16
  %v5034 = vpop.permute.xlu0 %5033
  %5035 = vrot.lane.b32.xlu0 %v4888, 16
  %v5036 = vpop.permute.xlu0 %5035
  %5037 = vrot.lane.b32.xlu0 %v4891, 16
  %v5038 = vpop.permute.xlu0 %5037
  %5039 = vrot.lane.b32.xlu0 %v4893, 16
  %v5040 = vpop.permute.xlu0 %5039
  %5041 = vrot.lane.b32.xlu0 %v4896, 16
  %v5042 = vpop.permute.xlu0 %5041
  %5043 = vrot.lane.b32.xlu0 %v4898, 16
  %v5044 = vpop.permute.xlu0 %5043
  %5045 = vrot.lane.b32.xlu0 %v4901, 16
  %v5046 = vpop.permute.xlu0 %5045
  %5047 = vrot.lane.b32.xlu0 %v4903, 16
  %v5048 = vpop.permute.xlu0 %5047
  %5049 = vrot.lane.b32.xlu0 %v4906, 16
  %v5050 = vpop.permute.xlu0 %5049
  %5051 = vrot.lane.b32.xlu0 %v4908, 16
  %v5052 = vpop.permute.xlu0 %5051
  %5053 = vrot.lane.b32.xlu0 %v4911, 16
  %v5054 = vpop.permute.xlu0 %5053
  %5055 = vrot.lane.b32.xlu0 %v4913, 16
  %v5056 = vpop.permute.xlu0 %5055
  %5057 = vrot.lane.b32.xlu0 %v4916, 16
  %v5058 = vpop.permute.xlu0 %5057
  %5059 = vrot.lane.b32.xlu0 %v4918, 16
  %v5060 = vpop.permute.xlu0 %5059
  %5061 = vrot.lane.b32.xlu0 %v4921, 16
  %v5062 = vpop.permute.xlu0 %5061
  %5063 = vrot.lane.b32.xlu0 %v4923, 16
  %v5064 = vpop.permute.xlu0 %5063
  %5065 = vrot.lane.b32.xlu0 %v4926, 16
  %v5066 = vpop.permute.xlu0 %5065
  %5067 = vrot.lane.b32.xlu0 %v4928, 16
  %v5068 = vpop.permute.xlu0 %5067
  %5069 = vrot.lane.b32.xlu0 %v4931, 16
  %v5070 = vpop.permute.xlu0 %5069
  %5071 = vrot.lane.b32.xlu0 %v4933, 16
  %v5072 = vpop.permute.xlu0 %5071
  %5073 = vrot.lane.b32.xlu0 %v4936, 16
  %v5074 = vpop.permute.xlu0 %5073
  %5075 = vrot.lane.b32.xlu0 %v4938, 16
  %v5076 = vpop.permute.xlu0 %5075
  %5077 = vrot.lane.b32.xlu0 %v4941, 16
  %v5078 = vpop.permute.xlu0 %5077
  %5079 = vrot.lane.b32.xlu0 %v4943, 16
  %v5080 = vpop.permute.xlu0 %5079
  %5081 = vrot.lane.b32.xlu0 %v4946, 16
  %v5082 = vpop.permute.xlu0 %5081
  %5083 = vrot.lane.b32.xlu0 %v4948, 16
  %v5084 = vpop.permute.xlu0 %5083
  %5085 = vrot.lane.b32.xlu0 %v4951, 16
  %v5086 = vpop.permute.xlu0 %5085
  %5087 = vrot.lane.b32.xlu0 %v4953, 16
  %v5088 = vpop.permute.xlu0 %5087
  %5089 = vrot.lane.b32.xlu0 %v4956, 16
  %v5090 = vpop.permute.xlu0 %5089
  %5091 = vrot.lane.b32.xlu0 %v4958, 16
  %v5092 = vpop.permute.xlu0 %5091
  %5093 = vrot.lane.b32.xlu0 %v4961, 16
  %v5094 = vpop.permute.xlu0 %5093
  %5095 = vrot.lane.b32.xlu0 %v4963, 16
  %v5096 = vpop.permute.xlu0 %5095
  %5097 = vrot.lane.b32.xlu0 %v4966, 16
  %v5098 = vpop.permute.xlu0 %5097
  %5099 = vrot.lane.b32.xlu0 %v4968, 16
  %v5100 = vpop.permute.xlu0 %5099
  %5101 = vrot.lane.b32.xlu0 %v4971, 16
  %v5102 = vpop.permute.xlu0 %5101
  %5103 = vrot.lane.b32.xlu0 %v4973, 16
  %v5104 = vpop.permute.xlu0 %5103
  %5105 = vrot.lane.b32.xlu0 %v4976, 16
  %v5106 = vpop.permute.xlu0 %5105
  %5107 = vrot.lane.b32.xlu0 %v4978, 16
  %v5108 = vpop.permute.xlu0 %5107
  %5109 = vrot.lane.b32.xlu0 %v4981, 16
  %v5110 = vpop.permute.xlu0 %5109
  %5111 = vrot.lane.b32.xlu0 %v4983, 16
  %v5112 = vpop.permute.xlu0 %5111
  %5113 = vrot.lane.b32.xlu0 %v4986, 16
  %v5114 = vpop.permute.xlu0 %5113
  %5115 = vrot.lane.b32.xlu0 %v4988, 16
  %v5116 = vpop.permute.xlu0 %5115
  %vm5181 = vcmask 195712
  %5182 = vst.msk [vmem:[#allocation5] sm:$0xff] %vm5181, %v4990
  %5183 = vst.msk [vmem:[#allocation5 + $0x8] sm:$0xff] %vm5181, %v4992
  %5184 = vst.msk [vmem:[#allocation5 + $0x10] sm:$0xff] %vm5181, %v4994
  %5185 = vst.msk [vmem:[#allocation5 + $0x18] sm:$0xff] %vm5181, %v4996
  %5186 = vst.msk [vmem:[#allocation5 + $0x20] sm:$0xff] %vm5181, %v4998
  %5187 = vst.msk [vmem:[#allocation5 + $0x28] sm:$0xff] %vm5181, %v5000
  %5188 = vst.msk [vmem:[#allocation5 + $0x30] sm:$0xff] %vm5181, %v5002
  %5189 = vst.msk [vmem:[#allocation5 + $0x38] sm:$0xff] %vm5181, %v5004
  %5190 = vst.msk [vmem:[#allocation5 + $0x40] sm:$0xff] %vm5181, %v5006
  %5191 = vst.msk [vmem:[#allocation5 + $0x48] sm:$0xff] %vm5181, %v5008
  %5192 = vst.msk [vmem:[#allocation5 + $0x50] sm:$0xff] %vm5181, %v5010
  %5193 = vst.msk [vmem:[#allocation5 + $0x58] sm:$0xff] %vm5181, %v5012
  %5194 = vst.msk [vmem:[#allocation5 + $0x60] sm:$0xff] %vm5181, %v5014
  %5195 = vst.msk [vmem:[#allocation5 + $0x68] sm:$0xff] %vm5181, %v5016
  %5196 = vst.msk [vmem:[#allocation5 + $0x70] sm:$0xff] %vm5181, %v5018
  %5197 = vst.msk [vmem:[#allocation5 + $0x78] sm:$0xff] %vm5181, %v5020
  %5198 = vst.msk [vmem:[#allocation5 + $0x80] sm:$0xff] %vm5181, %v5022
  %5199 = vst.msk [vmem:[#allocation5 + $0x88] sm:$0xff] %vm5181, %v5024
  %5200 = vst.msk [vmem:[#allocation5 + $0x90] sm:$0xff] %vm5181, %v5026
  %5201 = vst.msk [vmem:[#allocation5 + $0x98] sm:$0xff] %vm5181, %v5028
  %5202 = vst.msk [vmem:[#allocation5 + $0xa0] sm:$0xff] %vm5181, %v5030
  %5203 = vst.msk [vmem:[#allocation5 + $0xa8] sm:$0xff] %vm5181, %v5032
  %5204 = vst.msk [vmem:[#allocation5 + $0xb0] sm:$0xff] %vm5181, %v5034
  %5205 = vst.msk [vmem:[#allocation5 + $0xb8] sm:$0xff] %vm5181, %v5036
  %5206 = vst.msk [vmem:[#allocation5 + $0xc0] sm:$0xff] %vm5181, %v5038
  %5207 = vst.msk [vmem:[#allocation5 + $0xc8] sm:$0xff] %vm5181, %v5040
  %5208 = vst.msk [vmem:[#allocation5 + $0xd0] sm:$0xff] %vm5181, %v5042
  %5209 = vst.msk [vmem:[#allocation5 + $0xd8] sm:$0xff] %vm5181, %v5044
  %5210 = vst.msk [vmem:[#allocation5 + $0xe0] sm:$0xff] %vm5181, %v5046
  %5211 = vst.msk [vmem:[#allocation5 + $0xe8] sm:$0xff] %vm5181, %v5048
  %5212 = vst.msk [vmem:[#allocation5 + $0xf0] sm:$0xff] %vm5181, %v5050
  %5213 = vst.msk [vmem:[#allocation5 + $0xf8] sm:$0xff] %vm5181, %v5052
  %5214 = vst.msk [vmem:[#allocation5 + $0x100] sm:$0xff] %vm5181, %v5054
  %5215 = vst.msk [vmem:[#allocation5 + $0x108] sm:$0xff] %vm5181, %v5056
  %5216 = vst.msk [vmem:[#allocation5 + $0x110] sm:$0xff] %vm5181, %v5058
  %5217 = vst.msk [vmem:[#allocation5 + $0x118] sm:$0xff] %vm5181, %v5060
  %5218 = vst.msk [vmem:[#allocation5 + $0x120] sm:$0xff] %vm5181, %v5062
  %5219 = vst.msk [vmem:[#allocation5 + $0x128] sm:$0xff] %vm5181, %v5064
  %5220 = vst.msk [vmem:[#allocation5 + $0x130] sm:$0xff] %vm5181, %v5066
  %5221 = vst.msk [vmem:[#allocation5 + $0x138] sm:$0xff] %vm5181, %v5068
  %5222 = vst.msk [vmem:[#allocation5 + $0x140] sm:$0xff] %vm5181, %v5070
  %5223 = vst.msk [vmem:[#allocation5 + $0x148] sm:$0xff] %vm5181, %v5072
  %5224 = vst.msk [vmem:[#allocation5 + $0x150] sm:$0xff] %vm5181, %v5074
  %5225 = vst.msk [vmem:[#allocation5 + $0x158] sm:$0xff] %vm5181, %v5076
  %5226 = vst.msk [vmem:[#allocation5 + $0x160] sm:$0xff] %vm5181, %v5078
  %5227 = vst.msk [vmem:[#allocation5 + $0x168] sm:$0xff] %vm5181, %v5080
  %5228 = vst.msk [vmem:[#allocation5 + $0x170] sm:$0xff] %vm5181, %v5082
  %5229 = vst.msk [vmem:[#allocation5 + $0x178] sm:$0xff] %vm5181, %v5084
  %5230 = vst.msk [vmem:[#allocation5 + $0x180] sm:$0xff] %vm5181, %v5086
  %5231 = vst.msk [vmem:[#allocation5 + $0x188] sm:$0xff] %vm5181, %v5088
  %5232 = vst.msk [vmem:[#allocation5 + $0x190] sm:$0xff] %vm5181, %v5090
  %5233 = vst.msk [vmem:[#allocation5 + $0x198] sm:$0xff] %vm5181, %v5092
  %5234 = vst.msk [vmem:[#allocation5 + $0x1a0] sm:$0xff] %vm5181, %v5094
  %5235 = vst.msk [vmem:[#allocation5 + $0x1a8] sm:$0xff] %vm5181, %v5096
  %5236 = vst.msk [vmem:[#allocation5 + $0x1b0] sm:$0xff] %vm5181, %v5098
  %5237 = vst.msk [vmem:[#allocation5 + $0x1b8] sm:$0xff] %vm5181, %v5100
  %5238 = vst.msk [vmem:[#allocation5 + $0x1c0] sm:$0xff] %vm5181, %v5102
  %5239 = vst.msk [vmem:[#allocation5 + $0x1c8] sm:$0xff] %vm5181, %v5104
  %5240 = vst.msk [vmem:[#allocation5 + $0x1d0] sm:$0xff] %vm5181, %v5106
  %5241 = vst.msk [vmem:[#allocation5 + $0x1d8] sm:$0xff] %vm5181, %v5108
  %5242 = vst.msk [vmem:[#allocation5 + $0x1e0] sm:$0xff] %vm5181, %v5110
  %5243 = vst.msk [vmem:[#allocation5 + $0x1e8] sm:$0xff] %vm5181, %v5112
  %5244 = vst.msk [vmem:[#allocation5 + $0x1f0] sm:$0xff] %vm5181, %v5114
  %5245 = vst.msk [vmem:[#allocation5 + $0x1f8] sm:$0xff] %vm5181, %v5116
  %5250 = vrot.lane.b32.xlu0 %v4147, 24
  %v5251 = vpop.permute.xlu0 %5250
  %5252 = vrot.lane.b32.xlu0 %v4148, 24
  %v5253 = vpop.permute.xlu0 %5252
  %5254 = vrot.lane.b32.xlu0 %v4150, 24
  %v5255 = vpop.permute.xlu0 %5254
  %5256 = vrot.lane.b32.xlu0 %v4151, 24
  %v5257 = vpop.permute.xlu0 %5256
  %5258 = vrot.lane.b32.xlu0 %v4153, 24
  %v5259 = vpop.permute.xlu0 %5258
  %5260 = vrot.lane.b32.xlu0 %v4154, 24
  %v5261 = vpop.permute.xlu0 %5260
  %5262 = vrot.lane.b32.xlu0 %v4156, 24
  %v5263 = vpop.permute.xlu0 %5262
  %5264 = vrot.lane.b32.xlu0 %v4157, 24
  %v5265 = vpop.permute.xlu0 %5264
  %5266 = vrot.lane.b32.xlu0 %v4159, 24
  %v5267 = vpop.permute.xlu0 %5266
  %5268 = vrot.lane.b32.xlu0 %v4160, 24
  %v5269 = vpop.permute.xlu0 %5268
  %5270 = vrot.lane.b32.xlu0 %v4162, 24
  %v5271 = vpop.permute.xlu0 %5270
  %5272 = vrot.lane.b32.xlu0 %v4163, 24
  %v5273 = vpop.permute.xlu0 %5272
  %5274 = vrot.lane.b32.xlu0 %v4165, 24
  %v5275 = vpop.permute.xlu0 %5274
  %5276 = vrot.lane.b32.xlu0 %v4166, 24
  %v5277 = vpop.permute.xlu0 %5276
  %5278 = vrot.lane.b32.xlu0 %v4168, 24
  %v5279 = vpop.permute.xlu0 %5278
  %5280 = vrot.lane.b32.xlu0 %v4169, 24
  %v5281 = vpop.permute.xlu0 %5280
  %5282 = vrot.lane.b32.xlu0 %v4171, 24
  %v5283 = vpop.permute.xlu0 %5282
  %5284 = vrot.lane.b32.xlu0 %v4172, 24
  %v5285 = vpop.permute.xlu0 %5284
  %5286 = vrot.lane.b32.xlu0 %v4174, 24
  %v5287 = vpop.permute.xlu0 %5286
  %5288 = vrot.lane.b32.xlu0 %v4175, 24
  %v5289 = vpop.permute.xlu0 %5288
  %5290 = vrot.lane.b32.xlu0 %v4177, 24
  %v5291 = vpop.permute.xlu0 %5290
  %5292 = vrot.lane.b32.xlu0 %v4178, 24
  %v5293 = vpop.permute.xlu0 %5292
  %5294 = vrot.lane.b32.xlu0 %v4180, 24
  %v5295 = vpop.permute.xlu0 %5294
  %5296 = vrot.lane.b32.xlu0 %v4181, 24
  %v5297 = vpop.permute.xlu0 %5296
  %5298 = vrot.lane.b32.xlu0 %v4183, 24
  %v5299 = vpop.permute.xlu0 %5298
  %5300 = vrot.lane.b32.xlu0 %v4184, 24
  %v5301 = vpop.permute.xlu0 %5300
  %5302 = vrot.lane.b32.xlu0 %v4186, 24
  %v5303 = vpop.permute.xlu0 %5302
  %5304 = vrot.lane.b32.xlu0 %v4187, 24
  %v5305 = vpop.permute.xlu0 %5304
  %5306 = vrot.lane.b32.xlu0 %v4189, 24
  %v5307 = vpop.permute.xlu0 %5306
  %5308 = vrot.lane.b32.xlu0 %v4190, 24
  %v5309 = vpop.permute.xlu0 %5308
  %5310 = vrot.lane.b32.xlu0 %v4192, 24
  %v5311 = vpop.permute.xlu0 %5310
  %5312 = vrot.lane.b32.xlu0 %v4193, 24
  %v5313 = vpop.permute.xlu0 %5312
  %5314 = vrot.lane.b32.xlu0 %v4201, 24
  %v5315 = vpop.permute.xlu0 %5314
  %5316 = vrot.lane.b32.xlu0 %v4202, 24
  %v5317 = vpop.permute.xlu0 %5316
  %5318 = vrot.lane.b32.xlu0 %v4204, 24
  %v5319 = vpop.permute.xlu0 %5318
  %5320 = vrot.lane.b32.xlu0 %v4205, 24
  %v5321 = vpop.permute.xlu0 %5320
  %5322 = vrot.lane.b32.xlu0 %v4207, 24
  %v5323 = vpop.permute.xlu0 %5322
  %5324 = vrot.lane.b32.xlu0 %v4208, 24
  %v5325 = vpop.permute.xlu0 %5324
  %5326 = vrot.lane.b32.xlu0 %v4210, 24
  %v5327 = vpop.permute.xlu0 %5326
  %5328 = vrot.lane.b32.xlu0 %v4211, 24
  %v5329 = vpop.permute.xlu0 %5328
  %5330 = vrot.lane.b32.xlu0 %v4213, 24
  %v5331 = vpop.permute.xlu0 %5330
  %5332 = vrot.lane.b32.xlu0 %v4214, 24
  %v5333 = vpop.permute.xlu0 %5332
  %5334 = vrot.lane.b32.xlu0 %v4216, 24
  %v5335 = vpop.permute.xlu0 %5334
  %5336 = vrot.lane.b32.xlu0 %v4217, 24
  %v5337 = vpop.permute.xlu0 %5336
  %5338 = vrot.lane.b32.xlu0 %v4219, 24
  %v5339 = vpop.permute.xlu0 %5338
  %5340 = vrot.lane.b32.xlu0 %v4220, 24
  %v5341 = vpop.permute.xlu0 %5340
  %5342 = vrot.lane.b32.xlu0 %v4222, 24
  %v5343 = vpop.permute.xlu0 %5342
  %5344 = vrot.lane.b32.xlu0 %v4223, 24
  %v5345 = vpop.permute.xlu0 %5344
  %5346 = vrot.lane.b32.xlu0 %v4225, 24
  %v5347 = vpop.permute.xlu0 %5346
  %5348 = vrot.lane.b32.xlu0 %v4226, 24
  %v5349 = vpop.permute.xlu0 %5348
  %5350 = vrot.lane.b32.xlu0 %v4228, 24
  %v5351 = vpop.permute.xlu0 %5350
  %5352 = vrot.lane.b32.xlu0 %v4229, 24
  %v5353 = vpop.permute.xlu0 %5352
  %5354 = vrot.lane.b32.xlu0 %v4231, 24
  %v5355 = vpop.permute.xlu0 %5354
  %5356 = vrot.lane.b32.xlu0 %v4232, 24
  %v5357 = vpop.permute.xlu0 %5356
  %5358 = vrot.lane.b32.xlu0 %v4234, 24
  %v5359 = vpop.permute.xlu0 %5358
  %5360 = vrot.lane.b32.xlu0 %v4235, 24
  %v5361 = vpop.permute.xlu0 %5360
  %5362 = vrot.lane.b32.xlu0 %v4237, 24
  %v5363 = vpop.permute.xlu0 %5362
  %5364 = vrot.lane.b32.xlu0 %v4238, 24
  %v5365 = vpop.permute.xlu0 %5364
  %5366 = vrot.lane.b32.xlu0 %v4240, 24
  %v5367 = vpop.permute.xlu0 %5366
  %5368 = vrot.lane.b32.xlu0 %v4241, 24
  %v5369 = vpop.permute.xlu0 %5368
  %5370 = vrot.lane.b32.xlu0 %v4243, 24
  %v5371 = vpop.permute.xlu0 %5370
  %5372 = vrot.lane.b32.xlu0 %v4244, 24
  %v5373 = vpop.permute.xlu0 %5372
  %5374 = vrot.lane.b32.xlu0 %v4246, 24
  %v5375 = vpop.permute.xlu0 %5374
  %5376 = vrot.lane.b32.xlu0 %v4247, 24
  %v5377 = vpop.permute.xlu0 %5376
  %vm5442 = vcmask 261312
  %5443 = vst.msk [vmem:[#allocation5] sm:$0xff] %vm5442, %v5251
  %5444 = vst.msk [vmem:[#allocation5 + $0x8] sm:$0xff] %vm5442, %v5253
  %5445 = vst.msk [vmem:[#allocation5 + $0x10] sm:$0xff] %vm5442, %v5255
  %5446 = vst.msk [vmem:[#allocation5 + $0x18] sm:$0xff] %vm5442, %v5257
  %5447 = vst.msk [vmem:[#allocation5 + $0x20] sm:$0xff] %vm5442, %v5259
  %5448 = vst.msk [vmem:[#allocation5 + $0x28] sm:$0xff] %vm5442, %v5261
  %5449 = vst.msk [vmem:[#allocation5 + $0x30] sm:$0xff] %vm5442, %v5263
  %5450 = vst.msk [vmem:[#allocation5 + $0x38] sm:$0xff] %vm5442, %v5265
  %5451 = vst.msk [vmem:[#allocation5 + $0x40] sm:$0xff] %vm5442, %v5267
  %5452 = vst.msk [vmem:[#allocation5 + $0x48] sm:$0xff] %vm5442, %v5269
  %5453 = vst.msk [vmem:[#allocation5 + $0x50] sm:$0xff] %vm5442, %v5271
  %5454 = vst.msk [vmem:[#allocation5 + $0x58] sm:$0xff] %vm5442, %v5273
  %5455 = vst.msk [vmem:[#allocation5 + $0x60] sm:$0xff] %vm5442, %v5275
  %5456 = vst.msk [vmem:[#allocation5 + $0x68] sm:$0xff] %vm5442, %v5277
  %5457 = vst.msk [vmem:[#allocation5 + $0x70] sm:$0xff] %vm5442, %v5279
  %5458 = vst.msk [vmem:[#allocation5 + $0x78] sm:$0xff] %vm5442, %v5281
  %5459 = vst.msk [vmem:[#allocation5 + $0x80] sm:$0xff] %vm5442, %v5283
  %5460 = vst.msk [vmem:[#allocation5 + $0x88] sm:$0xff] %vm5442, %v5285
  %5461 = vst.msk [vmem:[#allocation5 + $0x90] sm:$0xff] %vm5442, %v5287
  %5462 = vst.msk [vmem:[#allocation5 + $0x98] sm:$0xff] %vm5442, %v5289
  %5463 = vst.msk [vmem:[#allocation5 + $0xa0] sm:$0xff] %vm5442, %v5291
  %5464 = vst.msk [vmem:[#allocation5 + $0xa8] sm:$0xff] %vm5442, %v5293
  %5465 = vst.msk [vmem:[#allocation5 + $0xb0] sm:$0xff] %vm5442, %v5295
  %5466 = vst.msk [vmem:[#allocation5 + $0xb8] sm:$0xff] %vm5442, %v5297
  %5467 = vst.msk [vmem:[#allocation5 + $0xc0] sm:$0xff] %vm5442, %v5299
  %5468 = vst.msk [vmem:[#allocation5 + $0xc8] sm:$0xff] %vm5442, %v5301
  %5469 = vst.msk [vmem:[#allocation5 + $0xd0] sm:$0xff] %vm5442, %v5303
  %5470 = vst.msk [vmem:[#allocation5 + $0xd8] sm:$0xff] %vm5442, %v5305
  %5471 = vst.msk [vmem:[#allocation5 + $0xe0] sm:$0xff] %vm5442, %v5307
  %5472 = vst.msk [vmem:[#allocation5 + $0xe8] sm:$0xff] %vm5442, %v5309
  %5473 = vst.msk [vmem:[#allocation5 + $0xf0] sm:$0xff] %vm5442, %v5311
  %5474 = vst.msk [vmem:[#allocation5 + $0xf8] sm:$0xff] %vm5442, %v5313
  %5475 = vst.msk [vmem:[#allocation5 + $0x100] sm:$0xff] %vm5442, %v5315
  %5476 = vst.msk [vmem:[#allocation5 + $0x108] sm:$0xff] %vm5442, %v5317
  %5477 = vst.msk [vmem:[#allocation5 + $0x110] sm:$0xff] %vm5442, %v5319
  %5478 = vst.msk [vmem:[#allocation5 + $0x118] sm:$0xff] %vm5442, %v5321
  %5479 = vst.msk [vmem:[#allocation5 + $0x120] sm:$0xff] %vm5442, %v5323
  %5480 = vst.msk [vmem:[#allocation5 + $0x128] sm:$0xff] %vm5442, %v5325
  %5481 = vst.msk [vmem:[#allocation5 + $0x130] sm:$0xff] %vm5442, %v5327
  %5482 = vst.msk [vmem:[#allocation5 + $0x138] sm:$0xff] %vm5442, %v5329
  %5483 = vst.msk [vmem:[#allocation5 + $0x140] sm:$0xff] %vm5442, %v5331
  %5484 = vst.msk [vmem:[#allocation5 + $0x148] sm:$0xff] %vm5442, %v5333
  %5485 = vst.msk [vmem:[#allocation5 + $0x150] sm:$0xff] %vm5442, %v5335
  %5486 = vst.msk [vmem:[#allocation5 + $0x158] sm:$0xff] %vm5442, %v5337
  %5487 = vst.msk [vmem:[#allocation5 + $0x160] sm:$0xff] %vm5442, %v5339
  %5488 = vst.msk [vmem:[#allocation5 + $0x168] sm:$0xff] %vm5442, %v5341
  %5489 = vst.msk [vmem:[#allocation5 + $0x170] sm:$0xff] %vm5442, %v5343
  %5490 = vst.msk [vmem:[#allocation5 + $0x178] sm:$0xff] %vm5442, %v5345
  %5491 = vst.msk [vmem:[#allocation5 + $0x180] sm:$0xff] %vm5442, %v5347
  %5492 = vst.msk [vmem:[#allocation5 + $0x188] sm:$0xff] %vm5442, %v5349
  %5493 = vst.msk [vmem:[#allocation5 + $0x190] sm:$0xff] %vm5442, %v5351
  %5494 = vst.msk [vmem:[#allocation5 + $0x198] sm:$0xff] %vm5442, %v5353
  %5495 = vst.msk [vmem:[#allocation5 + $0x1a0] sm:$0xff] %vm5442, %v5355
  %5496 = vst.msk [vmem:[#allocation5 + $0x1a8] sm:$0xff] %vm5442, %v5357
  %5497 = vst.msk [vmem:[#allocation5 + $0x1b0] sm:$0xff] %vm5442, %v5359
  %5498 = vst.msk [vmem:[#allocation5 + $0x1b8] sm:$0xff] %vm5442, %v5361
  %5499 = vst.msk [vmem:[#allocation5 + $0x1c0] sm:$0xff] %vm5442, %v5363
  %5500 = vst.msk [vmem:[#allocation5 + $0x1c8] sm:$0xff] %vm5442, %v5365
  %5501 = vst.msk [vmem:[#allocation5 + $0x1d0] sm:$0xff] %vm5442, %v5367
  %5502 = vst.msk [vmem:[#allocation5 + $0x1d8] sm:$0xff] %vm5442, %v5369
  %5503 = vst.msk [vmem:[#allocation5 + $0x1e0] sm:$0xff] %vm5442, %v5371
  %5504 = vst.msk [vmem:[#allocation5 + $0x1e8] sm:$0xff] %vm5442, %v5373
  %5505 = vst.msk [vmem:[#allocation5 + $0x1f0] sm:$0xff] %vm5442, %v5375
  %5506 = vst.msk [vmem:[#allocation5 + $0x1f8] sm:$0xff] %vm5442, %v5377
  %v5509 = vrot.slane %v4192, 1
  %v5510 = vrot.slane %v4193, 1
  %v5511 = vsel %vm510, %v5509, %v5510
  %v5512 = vrot.slane %v4194, 1
  %v5513 = vsel %vm510, %v5510, %v5512
  %v5514 = vrot.slane %v4246, 1
  %v5515 = vrot.slane %v4247, 1
  %v5516 = vsel %vm510, %v5514, %v5515
  %v5517 = vrot.slane %v4248, 1
  %v5518 = vsel %vm510, %v5515, %v5517
  %5519 = vrot.lane.b32.xlu0 %v4419, 32
  %v5520 = vpop.permute.xlu0 %5519
  %5521 = vrot.lane.b32.xlu0 %v4421, 32
  %v5522 = vpop.permute.xlu0 %5521
  %5523 = vrot.lane.b32.xlu0 %v4424, 32
  %v5524 = vpop.permute.xlu0 %5523
  %5525 = vrot.lane.b32.xlu0 %v4426, 32
  %v5526 = vpop.permute.xlu0 %5525
  %5527 = vrot.lane.b32.xlu0 %v4429, 32
  %v5528 = vpop.permute.xlu0 %5527
  %5529 = vrot.lane.b32.xlu0 %v4431, 32
  %v5530 = vpop.permute.xlu0 %5529
  %5531 = vrot.lane.b32.xlu0 %v4434, 32
  %v5532 = vpop.permute.xlu0 %5531
  %5533 = vrot.lane.b32.xlu0 %v4436, 32
  %v5534 = vpop.permute.xlu0 %5533
  %5535 = vrot.lane.b32.xlu0 %v4439, 32
  %v5536 = vpop.permute.xlu0 %5535
  %5537 = vrot.lane.b32.xlu0 %v4441, 32
  %v5538 = vpop.permute.xlu0 %5537
  %5539 = vrot.lane.b32.xlu0 %v4444, 32
  %v5540 = vpop.permute.xlu0 %5539
  %5541 = vrot.lane.b32.xlu0 %v4446, 32
  %v5542 = vpop.permute.xlu0 %5541
  %5543 = vrot.lane.b32.xlu0 %v4449, 32
  %v5544 = vpop.permute.xlu0 %5543
  %5545 = vrot.lane.b32.xlu0 %v4451, 32
  %v5546 = vpop.permute.xlu0 %5545
  %5547 = vrot.lane.b32.xlu0 %v4454, 32
  %v5548 = vpop.permute.xlu0 %5547
  %5549 = vrot.lane.b32.xlu0 %v4456, 32
  %v5550 = vpop.permute.xlu0 %5549
  %5551 = vrot.lane.b32.xlu0 %v4459, 32
  %v5552 = vpop.permute.xlu0 %5551
  %5553 = vrot.lane.b32.xlu0 %v4461, 32
  %v5554 = vpop.permute.xlu0 %5553
  %5555 = vrot.lane.b32.xlu0 %v4464, 32
  %v5556 = vpop.permute.xlu0 %5555
  %5557 = vrot.lane.b32.xlu0 %v4466, 32
  %v5558 = vpop.permute.xlu0 %5557
  %5559 = vrot.lane.b32.xlu0 %v4469, 32
  %v5560 = vpop.permute.xlu0 %5559
  %5561 = vrot.lane.b32.xlu0 %v4471, 32
  %v5562 = vpop.permute.xlu0 %5561
  %5563 = vrot.lane.b32.xlu0 %v4474, 32
  %v5564 = vpop.permute.xlu0 %5563
  %5565 = vrot.lane.b32.xlu0 %v4476, 32
  %v5566 = vpop.permute.xlu0 %5565
  %5567 = vrot.lane.b32.xlu0 %v4479, 32
  %v5568 = vpop.permute.xlu0 %5567
  %5569 = vrot.lane.b32.xlu0 %v4481, 32
  %v5570 = vpop.permute.xlu0 %5569
  %5571 = vrot.lane.b32.xlu0 %v4484, 32
  %v5572 = vpop.permute.xlu0 %5571
  %5573 = vrot.lane.b32.xlu0 %v4486, 32
  %v5574 = vpop.permute.xlu0 %5573
  %5575 = vrot.lane.b32.xlu0 %v4489, 32
  %v5576 = vpop.permute.xlu0 %5575
  %5577 = vrot.lane.b32.xlu0 %v4491, 32
  %v5578 = vpop.permute.xlu0 %5577
  %5579 = vrot.lane.b32.xlu0 %v5511, 32
  %v5580 = vpop.permute.xlu0 %5579
  %5581 = vrot.lane.b32.xlu0 %v5513, 32
  %v5582 = vpop.permute.xlu0 %5581
  %5583 = vrot.lane.b32.xlu0 %v4499, 32
  %v5584 = vpop.permute.xlu0 %5583
  %5585 = vrot.lane.b32.xlu0 %v4501, 32
  %v5586 = vpop.permute.xlu0 %5585
  %5587 = vrot.lane.b32.xlu0 %v4504, 32
  %v5588 = vpop.permute.xlu0 %5587
  %5589 = vrot.lane.b32.xlu0 %v4506, 32
  %v5590 = vpop.permute.xlu0 %5589
  %5591 = vrot.lane.b32.xlu0 %v4509, 32
  %v5592 = vpop.permute.xlu0 %5591
  %5593 = vrot.lane.b32.xlu0 %v4511, 32
  %v5594 = vpop.permute.xlu0 %5593
  %5595 = vrot.lane.b32.xlu0 %v4514, 32
  %v5596 = vpop.permute.xlu0 %5595
  %5597 = vrot.lane.b32.xlu0 %v4516, 32
  %v5598 = vpop.permute.xlu0 %5597
  %5599 = vrot.lane.b32.xlu0 %v4519, 32
  %v5600 = vpop.permute.xlu0 %5599
  %5601 = vrot.lane.b32.xlu0 %v4521, 32
  %v5602 = vpop.permute.xlu0 %5601
  %5603 = vrot.lane.b32.xlu0 %v4524, 32
  %v5604 = vpop.permute.xlu0 %5603
  %5605 = vrot.lane.b32.xlu0 %v4526, 32
  %v5606 = vpop.permute.xlu0 %5605
  %5607 = vrot.lane.b32.xlu0 %v4529, 32
  %v5608 = vpop.permute.xlu0 %5607
  %5609 = vrot.lane.b32.xlu0 %v4531, 32
  %v5610 = vpop.permute.xlu0 %5609
  %5611 = vrot.lane.b32.xlu0 %v4534, 32
  %v5612 = vpop.permute.xlu0 %5611
  %5613 = vrot.lane.b32.xlu0 %v4536, 32
  %v5614 = vpop.permute.xlu0 %5613
  %5615 = vrot.lane.b32.xlu0 %v4539, 32
  %v5616 = vpop.permute.xlu0 %5615
  %5617 = vrot.lane.b32.xlu0 %v4541, 32
  %v5618 = vpop.permute.xlu0 %5617
  %5619 = vrot.lane.b32.xlu0 %v4544, 32
  %v5620 = vpop.permute.xlu0 %5619
  %5621 = vrot.lane.b32.xlu0 %v4546, 32
  %v5622 = vpop.permute.xlu0 %5621
  %5623 = vrot.lane.b32.xlu0 %v4549, 32
  %v5624 = vpop.permute.xlu0 %5623
  %5625 = vrot.lane.b32.xlu0 %v4551, 32
  %v5626 = vpop.permute.xlu0 %5625
  %5627 = vrot.lane.b32.xlu0 %v4554, 32
  %v5628 = vpop.permute.xlu0 %5627
  %5629 = vrot.lane.b32.xlu0 %v4556, 32
  %v5630 = vpop.permute.xlu0 %5629
  %5631 = vrot.lane.b32.xlu0 %v4559, 32
  %v5632 = vpop.permute.xlu0 %5631
  %5633 = vrot.lane.b32.xlu0 %v4561, 32
  %v5634 = vpop.permute.xlu0 %5633
  %5635 = vrot.lane.b32.xlu0 %v4564, 32
  %v5636 = vpop.permute.xlu0 %5635
  %5637 = vrot.lane.b32.xlu0 %v4566, 32
  %v5638 = vpop.permute.xlu0 %5637
  %5639 = vrot.lane.b32.xlu0 %v4569, 32
  %v5640 = vpop.permute.xlu0 %5639
  %5641 = vrot.lane.b32.xlu0 %v4571, 32
  %v5642 = vpop.permute.xlu0 %5641
  %5643 = vrot.lane.b32.xlu0 %v5516, 32
  %v5644 = vpop.permute.xlu0 %5643
  %5645 = vrot.lane.b32.xlu0 %v5518, 32
  %v5646 = vpop.permute.xlu0 %5645
  %vm5711 = vcmask 326912
  %5712 = vst.msk [vmem:[#allocation5] sm:$0xff] %vm5711, %v5520
  %5713 = vst.msk [vmem:[#allocation5 + $0x8] sm:$0xff] %vm5711, %v5522
  %5714 = vst.msk [vmem:[#allocation5 + $0x10] sm:$0xff] %vm5711, %v5524
  %5715 = vst.msk [vmem:[#allocation5 + $0x18] sm:$0xff] %vm5711, %v5526
  %5716 = vst.msk [vmem:[#allocation5 + $0x20] sm:$0xff] %vm5711, %v5528
  %5717 = vst.msk [vmem:[#allocation5 + $0x28] sm:$0xff] %vm5711, %v5530
  %5718 = vst.msk [vmem:[#allocation5 + $0x30] sm:$0xff] %vm5711, %v5532
  %5719 = vst.msk [vmem:[#allocation5 + $0x38] sm:$0xff] %vm5711, %v5534
  %5720 = vst.msk [vmem:[#allocation5 + $0x40] sm:$0xff] %vm5711, %v5536
  %5721 = vst.msk [vmem:[#allocation5 + $0x48] sm:$0xff] %vm5711, %v5538
  %5722 = vst.msk [vmem:[#allocation5 + $0x50] sm:$0xff] %vm5711, %v5540
  %5723 = vst.msk [vmem:[#allocation5 + $0x58] sm:$0xff] %vm5711, %v5542
  %5724 = vst.msk [vmem:[#allocation5 + $0x60] sm:$0xff] %vm5711, %v5544
  %5725 = vst.msk [vmem:[#allocation5 + $0x68] sm:$0xff] %vm5711, %v5546
  %5726 = vst.msk [vmem:[#allocation5 + $0x70] sm:$0xff] %vm5711, %v5548
  %5727 = vst.msk [vmem:[#allocation5 + $0x78] sm:$0xff] %vm5711, %v5550
  %5728 = vst.msk [vmem:[#allocation5 + $0x80] sm:$0xff] %vm5711, %v5552
  %5729 = vst.msk [vmem:[#allocation5 + $0x88] sm:$0xff] %vm5711, %v5554
  %5730 = vst.msk [vmem:[#allocation5 + $0x90] sm:$0xff] %vm5711, %v5556
  %5731 = vst.msk [vmem:[#allocation5 + $0x98] sm:$0xff] %vm5711, %v5558
  %5732 = vst.msk [vmem:[#allocation5 + $0xa0] sm:$0xff] %vm5711, %v5560
  %5733 = vst.msk [vmem:[#allocation5 + $0xa8] sm:$0xff] %vm5711, %v5562
  %5734 = vst.msk [vmem:[#allocation5 + $0xb0] sm:$0xff] %vm5711, %v5564
  %5735 = vst.msk [vmem:[#allocation5 + $0xb8] sm:$0xff] %vm5711, %v5566
  %5736 = vst.msk [vmem:[#allocation5 + $0xc0] sm:$0xff] %vm5711, %v5568
  %5737 = vst.msk [vmem:[#allocation5 + $0xc8] sm:$0xff] %vm5711, %v5570
  %5738 = vst.msk [vmem:[#allocation5 + $0xd0] sm:$0xff] %vm5711, %v5572
  %5739 = vst.msk [vmem:[#allocation5 + $0xd8] sm:$0xff] %vm5711, %v5574
  %5740 = vst.msk [vmem:[#allocation5 + $0xe0] sm:$0xff] %vm5711, %v5576
  %5741 = vst.msk [vmem:[#allocation5 + $0xe8] sm:$0xff] %vm5711, %v5578
  %5742 = vst.msk [vmem:[#allocation5 + $0xf0] sm:$0xff] %vm5711, %v5580
  %5743 = vst.msk [vmem:[#allocation5 + $0xf8] sm:$0xff] %vm5711, %v5582
  %5744 = vst.msk [vmem:[#allocation5 + $0x100] sm:$0xff] %vm5711, %v5584
  %5745 = vst.msk [vmem:[#allocation5 + $0x108] sm:$0xff] %vm5711, %v5586
  %5746 = vst.msk [vmem:[#allocation5 + $0x110] sm:$0xff] %vm5711, %v5588
  %5747 = vst.msk [vmem:[#allocation5 + $0x118] sm:$0xff] %vm5711, %v5590
  %5748 = vst.msk [vmem:[#allocation5 + $0x120] sm:$0xff] %vm5711, %v5592
  %5749 = vst.msk [vmem:[#allocation5 + $0x128] sm:$0xff] %vm5711, %v5594
  %5750 = vst.msk [vmem:[#allocation5 + $0x130] sm:$0xff] %vm5711, %v5596
  %5751 = vst.msk [vmem:[#allocation5 + $0x138] sm:$0xff] %vm5711, %v5598
  %5752 = vst.msk [vmem:[#allocation5 + $0x140] sm:$0xff] %vm5711, %v5600
  %5753 = vst.msk [vmem:[#allocation5 + $0x148] sm:$0xff] %vm5711, %v5602
  %5754 = vst.msk [vmem:[#allocation5 + $0x150] sm:$0xff] %vm5711, %v5604
  %5755 = vst.msk [vmem:[#allocation5 + $0x158] sm:$0xff] %vm5711, %v5606
  %5756 = vst.msk [vmem:[#allocation5 + $0x160] sm:$0xff] %vm5711, %v5608
  %5757 = vst.msk [vmem:[#allocation5 + $0x168] sm:$0xff] %vm5711, %v5610
  %5758 = vst.msk [vmem:[#allocation5 + $0x170] sm:$0xff] %vm5711, %v5612
  %5759 = vst.msk [vmem:[#allocation5 + $0x178] sm:$0xff] %vm5711, %v5614
  %5760 = vst.msk [vmem:[#allocation5 + $0x180] sm:$0xff] %vm5711, %v5616
  %5761 = vst.msk [vmem:[#allocation5 + $0x188] sm:$0xff] %vm5711, %v5618
  %5762 = vst.msk [vmem:[#allocation5 + $0x190] sm:$0xff] %vm5711, %v5620
  %5763 = vst.msk [vmem:[#allocation5 + $0x198] sm:$0xff] %vm5711, %v5622
  %5764 = vst.msk [vmem:[#allocation5 + $0x1a0] sm:$0xff] %vm5711, %v5624
  %5765 = vst.msk [vmem:[#allocation5 + $0x1a8] sm:$0xff] %vm5711, %v5626
  %5766 = vst.msk [vmem:[#allocation5 + $0x1b0] sm:$0xff] %vm5711, %v5628
  %5767 = vst.msk [vmem:[#allocation5 + $0x1b8] sm:$0xff] %vm5711, %v5630
  %5768 = vst.msk [vmem:[#allocation5 + $0x1c0] sm:$0xff] %vm5711, %v5632
  %5769 = vst.msk [vmem:[#allocation5 + $0x1c8] sm:$0xff] %vm5711, %v5634
  %5770 = vst.msk [vmem:[#allocation5 + $0x1d0] sm:$0xff] %vm5711, %v5636
  %5771 = vst.msk [vmem:[#allocation5 + $0x1d8] sm:$0xff] %vm5711, %v5638
  %5772 = vst.msk [vmem:[#allocation5 + $0x1e0] sm:$0xff] %vm5711, %v5640
  %5773 = vst.msk [vmem:[#allocation5 + $0x1e8] sm:$0xff] %vm5711, %v5642
  %5774 = vst.msk [vmem:[#allocation5 + $0x1f0] sm:$0xff] %vm5711, %v5644
  %5775 = vst.msk [vmem:[#allocation5 + $0x1f8] sm:$0xff] %vm5711, %v5646
  %v5776 = vrot.slane %v4192, 2
  %v5777 = vrot.slane %v4193, 2
  %v5778 = vsel %vm928, %v5776, %v5777
  %v5779 = vrot.slane %v4194, 2
  %v5780 = vsel %vm928, %v5777, %v5779
  %v5781 = vrot.slane %v4246, 2
  %v5782 = vrot.slane %v4247, 2
  %v5783 = vsel %vm928, %v5781, %v5782
  %v5784 = vrot.slane %v4248, 2
  %v5785 = vsel %vm928, %v5782, %v5784
  %5786 = vrot.lane.b32.xlu0 %v4836, 40
  %v5787 = vpop.permute.xlu0 %5786
  %5788 = vrot.lane.b32.xlu0 %v4838, 40
  %v5789 = vpop.permute.xlu0 %5788
  %5790 = vrot.lane.b32.xlu0 %v4841, 40
  %v5791 = vpop.permute.xlu0 %5790
  %5792 = vrot.lane.b32.xlu0 %v4843, 40
  %v5793 = vpop.permute.xlu0 %5792
  %5794 = vrot.lane.b32.xlu0 %v4846, 40
  %v5795 = vpop.permute.xlu0 %5794
  %5796 = vrot.lane.b32.xlu0 %v4848, 40
  %v5797 = vpop.permute.xlu0 %5796
  %5798 = vrot.lane.b32.xlu0 %v4851, 40
  %v5799 = vpop.permute.xlu0 %5798
  %5800 = vrot.lane.b32.xlu0 %v4853, 40
  %v5801 = vpop.permute.xlu0 %5800
  %5802 = vrot.lane.b32.xlu0 %v4856, 40
  %v5803 = vpop.permute.xlu0 %5802
  %5804 = vrot.lane.b32.xlu0 %v4858, 40
  %v5805 = vpop.permute.xlu0 %5804
  %5806 = vrot.lane.b32.xlu0 %v4861, 40
  %v5807 = vpop.permute.xlu0 %5806
  %5808 = vrot.lane.b32.xlu0 %v4863, 40
  %v5809 = vpop.permute.xlu0 %5808
  %5810 = vrot.lane.b32.xlu0 %v4866, 40
  %v5811 = vpop.permute.xlu0 %5810
  %5812 = vrot.lane.b32.xlu0 %v4868, 40
  %v5813 = vpop.permute.xlu0 %5812
  %5814 = vrot.lane.b32.xlu0 %v4871, 40
  %v5815 = vpop.permute.xlu0 %5814
  %5816 = vrot.lane.b32.xlu0 %v4873, 40
  %v5817 = vpop.permute.xlu0 %5816
  %5818 = vrot.lane.b32.xlu0 %v4876, 40
  %v5819 = vpop.permute.xlu0 %5818
  %5820 = vrot.lane.b32.xlu0 %v4878, 40
  %v5821 = vpop.permute.xlu0 %5820
  %5822 = vrot.lane.b32.xlu0 %v4881, 40
  %v5823 = vpop.permute.xlu0 %5822
  %5824 = vrot.lane.b32.xlu0 %v4883, 40
  %v5825 = vpop.permute.xlu0 %5824
  %5826 = vrot.lane.b32.xlu0 %v4886, 40
  %v5827 = vpop.permute.xlu0 %5826
  %5828 = vrot.lane.b32.xlu0 %v4888, 40
  %v5829 = vpop.permute.xlu0 %5828
  %5830 = vrot.lane.b32.xlu0 %v4891, 40
  %v5831 = vpop.permute.xlu0 %5830
  %5832 = vrot.lane.b32.xlu0 %v4893, 40
  %v5833 = vpop.permute.xlu0 %5832
  %5834 = vrot.lane.b32.xlu0 %v4896, 40
  %v5835 = vpop.permute.xlu0 %5834
  %5836 = vrot.lane.b32.xlu0 %v4898, 40
  %v5837 = vpop.permute.xlu0 %5836
  %5838 = vrot.lane.b32.xlu0 %v4901, 40
  %v5839 = vpop.permute.xlu0 %5838
  %5840 = vrot.lane.b32.xlu0 %v4903, 40
  %v5841 = vpop.permute.xlu0 %5840
  %5842 = vrot.lane.b32.xlu0 %v4906, 40
  %v5843 = vpop.permute.xlu0 %5842
  %5844 = vrot.lane.b32.xlu0 %v4908, 40
  %v5845 = vpop.permute.xlu0 %5844
  %5846 = vrot.lane.b32.xlu0 %v5778, 40
  %v5847 = vpop.permute.xlu0 %5846
  %5848 = vrot.lane.b32.xlu0 %v5780, 40
  %v5849 = vpop.permute.xlu0 %5848
  %5850 = vrot.lane.b32.xlu0 %v4916, 40
  %v5851 = vpop.permute.xlu0 %5850
  %5852 = vrot.lane.b32.xlu0 %v4918, 40
  %v5853 = vpop.permute.xlu0 %5852
  %5854 = vrot.lane.b32.xlu0 %v4921, 40
  %v5855 = vpop.permute.xlu0 %5854
  %5856 = vrot.lane.b32.xlu0 %v4923, 40
  %v5857 = vpop.permute.xlu0 %5856
  %5858 = vrot.lane.b32.xlu0 %v4926, 40
  %v5859 = vpop.permute.xlu0 %5858
  %5860 = vrot.lane.b32.xlu0 %v4928, 40
  %v5861 = vpop.permute.xlu0 %5860
  %5862 = vrot.lane.b32.xlu0 %v4931, 40
  %v5863 = vpop.permute.xlu0 %5862
  %5864 = vrot.lane.b32.xlu0 %v4933, 40
  %v5865 = vpop.permute.xlu0 %5864
  %5866 = vrot.lane.b32.xlu0 %v4936, 40
  %v5867 = vpop.permute.xlu0 %5866
  %5868 = vrot.lane.b32.xlu0 %v4938, 40
  %v5869 = vpop.permute.xlu0 %5868
  %5870 = vrot.lane.b32.xlu0 %v4941, 40
  %v5871 = vpop.permute.xlu0 %5870
  %5872 = vrot.lane.b32.xlu0 %v4943, 40
  %v5873 = vpop.permute.xlu0 %5872
  %5874 = vrot.lane.b32.xlu0 %v4946, 40
  %v5875 = vpop.permute.xlu0 %5874
  %5876 = vrot.lane.b32.xlu0 %v4948, 40
  %v5877 = vpop.permute.xlu0 %5876
  %5878 = vrot.lane.b32.xlu0 %v4951, 40
  %v5879 = vpop.permute.xlu0 %5878
  %5880 = vrot.lane.b32.xlu0 %v4953, 40
  %v5881 = vpop.permute.xlu0 %5880
  %5882 = vrot.lane.b32.xlu0 %v4956, 40
  %v5883 = vpop.permute.xlu0 %5882
  %5884 = vrot.lane.b32.xlu0 %v4958, 40
  %v5885 = vpop.permute.xlu0 %5884
  %5886 = vrot.lane.b32.xlu0 %v4961, 40
  %v5887 = vpop.permute.xlu0 %5886
  %5888 = vrot.lane.b32.xlu0 %v4963, 40
  %v5889 = vpop.permute.xlu0 %5888
  %5890 = vrot.lane.b32.xlu0 %v4966, 40
  %v5891 = vpop.permute.xlu0 %5890
  %5892 = vrot.lane.b32.xlu0 %v4968, 40
  %v5893 = vpop.permute.xlu0 %5892
  %5894 = vrot.lane.b32.xlu0 %v4971, 40
  %v5895 = vpop.permute.xlu0 %5894
  %5896 = vrot.lane.b32.xlu0 %v4973, 40
  %v5897 = vpop.permute.xlu0 %5896
  %5898 = vrot.lane.b32.xlu0 %v4976, 40
  %v5899 = vpop.permute.xlu0 %5898
  %5900 = vrot.lane.b32.xlu0 %v4978, 40
  %v5901 = vpop.permute.xlu0 %5900
  %5902 = vrot.lane.b32.xlu0 %v4981, 40
  %v5903 = vpop.permute.xlu0 %5902
  %5904 = vrot.lane.b32.xlu0 %v4983, 40
  %v5905 = vpop.permute.xlu0 %5904
  %5906 = vrot.lane.b32.xlu0 %v4986, 40
  %v5907 = vpop.permute.xlu0 %5906
  %5908 = vrot.lane.b32.xlu0 %v4988, 40
  %v5909 = vpop.permute.xlu0 %5908
  %5910 = vrot.lane.b32.xlu0 %v5783, 40
  %v5911 = vpop.permute.xlu0 %5910
  %5912 = vrot.lane.b32.xlu0 %v5785, 40
  %v5913 = vpop.permute.xlu0 %5912
  %vm5978 = vcmask 392512
  %5979 = vst.msk [vmem:[#allocation5] sm:$0xff] %vm5978, %v5787
  %5980 = vst.msk [vmem:[#allocation5 + $0x8] sm:$0xff] %vm5978, %v5789
  %5981 = vst.msk [vmem:[#allocation5 + $0x10] sm:$0xff] %vm5978, %v5791
  %5982 = vst.msk [vmem:[#allocation5 + $0x18] sm:$0xff] %vm5978, %v5793
  %5983 = vst.msk [vmem:[#allocation5 + $0x20] sm:$0xff] %vm5978, %v5795
  %5984 = vst.msk [vmem:[#allocation5 + $0x28] sm:$0xff] %vm5978, %v5797
  %5985 = vst.msk [vmem:[#allocation5 + $0x30] sm:$0xff] %vm5978, %v5799
  %5986 = vst.msk [vmem:[#allocation5 + $0x38] sm:$0xff] %vm5978, %v5801
  %5987 = vst.msk [vmem:[#allocation5 + $0x40] sm:$0xff] %vm5978, %v5803
  %5988 = vst.msk [vmem:[#allocation5 + $0x48] sm:$0xff] %vm5978, %v5805
  %5989 = vst.msk [vmem:[#allocation5 + $0x50] sm:$0xff] %vm5978, %v5807
  %5990 = vst.msk [vmem:[#allocation5 + $0x58] sm:$0xff] %vm5978, %v5809
  %5991 = vst.msk [vmem:[#allocation5 + $0x60] sm:$0xff] %vm5978, %v5811
  %5992 = vst.msk [vmem:[#allocation5 + $0x68] sm:$0xff] %vm5978, %v5813
  %5993 = vst.msk [vmem:[#allocation5 + $0x70] sm:$0xff] %vm5978, %v5815
  %5994 = vst.msk [vmem:[#allocation5 + $0x78] sm:$0xff] %vm5978, %v5817
  %5995 = vst.msk [vmem:[#allocation5 + $0x80] sm:$0xff] %vm5978, %v5819
  %5996 = vst.msk [vmem:[#allocation5 + $0x88] sm:$0xff] %vm5978, %v5821
  %5997 = vst.msk [vmem:[#allocation5 + $0x90] sm:$0xff] %vm5978, %v5823
  %5998 = vst.msk [vmem:[#allocation5 + $0x98] sm:$0xff] %vm5978, %v5825
  %5999 = vst.msk [vmem:[#allocation5 + $0xa0] sm:$0xff] %vm5978, %v5827
  %6000 = vst.msk [vmem:[#allocation5 + $0xa8] sm:$0xff] %vm5978, %v5829
  %6001 = vst.msk [vmem:[#allocation5 + $0xb0] sm:$0xff] %vm5978, %v5831
  %6002 = vst.msk [vmem:[#allocation5 + $0xb8] sm:$0xff] %vm5978, %v5833
  %6003 = vst.msk [vmem:[#allocation5 + $0xc0] sm:$0xff] %vm5978, %v5835
  %6004 = vst.msk [vmem:[#allocation5 + $0xc8] sm:$0xff] %vm5978, %v5837
  %6005 = vst.msk [vmem:[#allocation5 + $0xd0] sm:$0xff] %vm5978, %v5839
  %6006 = vst.msk [vmem:[#allocation5 + $0xd8] sm:$0xff] %vm5978, %v5841
  %6007 = vst.msk [vmem:[#allocation5 + $0xe0] sm:$0xff] %vm5978, %v5843
  %6008 = vst.msk [vmem:[#allocation5 + $0xe8] sm:$0xff] %vm5978, %v5845
  %6009 = vst.msk [vmem:[#allocation5 + $0xf0] sm:$0xff] %vm5978, %v5847
  %6010 = vst.msk [vmem:[#allocation5 + $0xf8] sm:$0xff] %vm5978, %v5849
  %6011 = vst.msk [vmem:[#allocation5 + $0x100] sm:$0xff] %vm5978, %v5851
  %6012 = vst.msk [vmem:[#allocation5 + $0x108] sm:$0xff] %vm5978, %v5853
  %6013 = vst.msk [vmem:[#allocation5 + $0x110] sm:$0xff] %vm5978, %v5855
  %6014 = vst.msk [vmem:[#allocation5 + $0x118] sm:$0xff] %vm5978, %v5857
  %6015 = vst.msk [vmem:[#allocation5 + $0x120] sm:$0xff] %vm5978, %v5859
  %6016 = vst.msk [vmem:[#allocation5 + $0x128] sm:$0xff] %vm5978, %v5861
  %6017 = vst.msk [vmem:[#allocation5 + $0x130] sm:$0xff] %vm5978, %v5863
  %6018 = vst.msk [vmem:[#allocation5 + $0x138] sm:$0xff] %vm5978, %v5865
  %6019 = vst.msk [vmem:[#allocation5 + $0x140] sm:$0xff] %vm5978, %v5867
  %6020 = vst.msk [vmem:[#allocation5 + $0x148] sm:$0xff] %vm5978, %v5869
  %6021 = vst.msk [vmem:[#allocation5 + $0x150] sm:$0xff] %vm5978, %v5871
  %6022 = vst.msk [vmem:[#allocation5 + $0x158] sm:$0xff] %vm5978, %v5873
  %6023 = vst.msk [vmem:[#allocation5 + $0x160] sm:$0xff] %vm5978, %v5875
  %6024 = vst.msk [vmem:[#allocation5 + $0x168] sm:$0xff] %vm5978, %v5877
  %6025 = vst.msk [vmem:[#allocation5 + $0x170] sm:$0xff] %vm5978, %v5879
  %6026 = vst.msk [vmem:[#allocation5 + $0x178] sm:$0xff] %vm5978, %v5881
  %6027 = vst.msk [vmem:[#allocation5 + $0x180] sm:$0xff] %vm5978, %v5883
  %6028 = vst.msk [vmem:[#allocation5 + $0x188] sm:$0xff] %vm5978, %v5885
  %6029 = vst.msk [vmem:[#allocation5 + $0x190] sm:$0xff] %vm5978, %v5887
  %6030 = vst.msk [vmem:[#allocation5 + $0x198] sm:$0xff] %vm5978, %v5889
  %6031 = vst.msk [vmem:[#allocation5 + $0x1a0] sm:$0xff] %vm5978, %v5891
  %6032 = vst.msk [vmem:[#allocation5 + $0x1a8] sm:$0xff] %vm5978, %v5893
  %6033 = vst.msk [vmem:[#allocation5 + $0x1b0] sm:$0xff] %vm5978, %v5895
  %6034 = vst.msk [vmem:[#allocation5 + $0x1b8] sm:$0xff] %vm5978, %v5897
  %6035 = vst.msk [vmem:[#allocation5 + $0x1c0] sm:$0xff] %vm5978, %v5899
  %6036 = vst.msk [vmem:[#allocation5 + $0x1c8] sm:$0xff] %vm5978, %v5901
  %6037 = vst.msk [vmem:[#allocation5 + $0x1d0] sm:$0xff] %vm5978, %v5903
  %6038 = vst.msk [vmem:[#allocation5 + $0x1d8] sm:$0xff] %vm5978, %v5905
  %6039 = vst.msk [vmem:[#allocation5 + $0x1e0] sm:$0xff] %vm5978, %v5907
  %6040 = vst.msk [vmem:[#allocation5 + $0x1e8] sm:$0xff] %vm5978, %v5909
  %6041 = vst.msk [vmem:[#allocation5 + $0x1f0] sm:$0xff] %vm5978, %v5911
  %6042 = vst.msk [vmem:[#allocation5 + $0x1f8] sm:$0xff] %vm5978, %v5913
  %6047 = vrot.lane.b32.xlu0 %v4150, 48
  %v6048 = vpop.permute.xlu0 %6047
  %6049 = vrot.lane.b32.xlu0 %v4151, 48
  %v6050 = vpop.permute.xlu0 %6049
  %6051 = vrot.lane.b32.xlu0 %v4153, 48
  %v6052 = vpop.permute.xlu0 %6051
  %6053 = vrot.lane.b32.xlu0 %v4154, 48
  %v6054 = vpop.permute.xlu0 %6053
  %6055 = vrot.lane.b32.xlu0 %v4156, 48
  %v6056 = vpop.permute.xlu0 %6055
  %6057 = vrot.lane.b32.xlu0 %v4157, 48
  %v6058 = vpop.permute.xlu0 %6057
  %6059 = vrot.lane.b32.xlu0 %v4159, 48
  %v6060 = vpop.permute.xlu0 %6059
  %6061 = vrot.lane.b32.xlu0 %v4160, 48
  %v6062 = vpop.permute.xlu0 %6061
  %6063 = vrot.lane.b32.xlu0 %v4162, 48
  %v6064 = vpop.permute.xlu0 %6063
  %6065 = vrot.lane.b32.xlu0 %v4163, 48
  %v6066 = vpop.permute.xlu0 %6065
  %6067 = vrot.lane.b32.xlu0 %v4165, 48
  %v6068 = vpop.permute.xlu0 %6067
  %6069 = vrot.lane.b32.xlu0 %v4166, 48
  %v6070 = vpop.permute.xlu0 %6069
  %6071 = vrot.lane.b32.xlu0 %v4168, 48
  %v6072 = vpop.permute.xlu0 %6071
  %6073 = vrot.lane.b32.xlu0 %v4169, 48
  %v6074 = vpop.permute.xlu0 %6073
  %6075 = vrot.lane.b32.xlu0 %v4171, 48
  %v6076 = vpop.permute.xlu0 %6075
  %6077 = vrot.lane.b32.xlu0 %v4172, 48
  %v6078 = vpop.permute.xlu0 %6077
  %6079 = vrot.lane.b32.xlu0 %v4174, 48
  %v6080 = vpop.permute.xlu0 %6079
  %6081 = vrot.lane.b32.xlu0 %v4175, 48
  %v6082 = vpop.permute.xlu0 %6081
  %6083 = vrot.lane.b32.xlu0 %v4177, 48
  %v6084 = vpop.permute.xlu0 %6083
  %6085 = vrot.lane.b32.xlu0 %v4178, 48
  %v6086 = vpop.permute.xlu0 %6085
  %6087 = vrot.lane.b32.xlu0 %v4180, 48
  %v6088 = vpop.permute.xlu0 %6087
  %6089 = vrot.lane.b32.xlu0 %v4181, 48
  %v6090 = vpop.permute.xlu0 %6089
  %6091 = vrot.lane.b32.xlu0 %v4183, 48
  %v6092 = vpop.permute.xlu0 %6091
  %6093 = vrot.lane.b32.xlu0 %v4184, 48
  %v6094 = vpop.permute.xlu0 %6093
  %6095 = vrot.lane.b32.xlu0 %v4186, 48
  %v6096 = vpop.permute.xlu0 %6095
  %6097 = vrot.lane.b32.xlu0 %v4187, 48
  %v6098 = vpop.permute.xlu0 %6097
  %6099 = vrot.lane.b32.xlu0 %v4189, 48
  %v6100 = vpop.permute.xlu0 %6099
  %6101 = vrot.lane.b32.xlu0 %v4190, 48
  %v6102 = vpop.permute.xlu0 %6101
  %6103 = vrot.lane.b32.xlu0 %v4192, 48
  %v6104 = vpop.permute.xlu0 %6103
  %6105 = vrot.lane.b32.xlu0 %v4193, 48
  %v6106 = vpop.permute.xlu0 %6105
  %6107 = vrot.lane.b32.xlu0 %v4195, 48
  %v6108 = vpop.permute.xlu0 %6107
  %6109 = vrot.lane.b32.xlu0 %v4196, 48
  %v6110 = vpop.permute.xlu0 %6109
  %6111 = vrot.lane.b32.xlu0 %v4204, 48
  %v6112 = vpop.permute.xlu0 %6111
  %6113 = vrot.lane.b32.xlu0 %v4205, 48
  %v6114 = vpop.permute.xlu0 %6113
  %6115 = vrot.lane.b32.xlu0 %v4207, 48
  %v6116 = vpop.permute.xlu0 %6115
  %6117 = vrot.lane.b32.xlu0 %v4208, 48
  %v6118 = vpop.permute.xlu0 %6117
  %6119 = vrot.lane.b32.xlu0 %v4210, 48
  %v6120 = vpop.permute.xlu0 %6119
  %6121 = vrot.lane.b32.xlu0 %v4211, 48
  %v6122 = vpop.permute.xlu0 %6121
  %6123 = vrot.lane.b32.xlu0 %v4213, 48
  %v6124 = vpop.permute.xlu0 %6123
  %6125 = vrot.lane.b32.xlu0 %v4214, 48
  %v6126 = vpop.permute.xlu0 %6125
  %6127 = vrot.lane.b32.xlu0 %v4216, 48
  %v6128 = vpop.permute.xlu0 %6127
  %6129 = vrot.lane.b32.xlu0 %v4217, 48
  %v6130 = vpop.permute.xlu0 %6129
  %6131 = vrot.lane.b32.xlu0 %v4219, 48
  %v6132 = vpop.permute.xlu0 %6131
  %6133 = vrot.lane.b32.xlu0 %v4220, 48
  %v6134 = vpop.permute.xlu0 %6133
  %6135 = vrot.lane.b32.xlu0 %v4222, 48
  %v6136 = vpop.permute.xlu0 %6135
  %6137 = vrot.lane.b32.xlu0 %v4223, 48
  %v6138 = vpop.permute.xlu0 %6137
  %6139 = vrot.lane.b32.xlu0 %v4225, 48
  %v6140 = vpop.permute.xlu0 %6139
  %6141 = vrot.lane.b32.xlu0 %v4226, 48
  %v6142 = vpop.permute.xlu0 %6141
  %6143 = vrot.lane.b32.xlu0 %v4228, 48
  %v6144 = vpop.permute.xlu0 %6143
  %6145 = vrot.lane.b32.xlu0 %v4229, 48
  %v6146 = vpop.permute.xlu0 %6145
  %6147 = vrot.lane.b32.xlu0 %v4231, 48
  %v6148 = vpop.permute.xlu0 %6147
  %6149 = vrot.lane.b32.xlu0 %v4232, 48
  %v6150 = vpop.permute.xlu0 %6149
  %6151 = vrot.lane.b32.xlu0 %v4234, 48
  %v6152 = vpop.permute.xlu0 %6151
  %6153 = vrot.lane.b32.xlu0 %v4235, 48
  %v6154 = vpop.permute.xlu0 %6153
  %6155 = vrot.lane.b32.xlu0 %v4237, 48
  %v6156 = vpop.permute.xlu0 %6155
  %6157 = vrot.lane.b32.xlu0 %v4238, 48
  %v6158 = vpop.permute.xlu0 %6157
  %6159 = vrot.lane.b32.xlu0 %v4240, 48
  %v6160 = vpop.permute.xlu0 %6159
  %6161 = vrot.lane.b32.xlu0 %v4241, 48
  %v6162 = vpop.permute.xlu0 %6161
  %6163 = vrot.lane.b32.xlu0 %v4243, 48
  %v6164 = vpop.permute.xlu0 %6163
  %6165 = vrot.lane.b32.xlu0 %v4244, 48
  %v6166 = vpop.permute.xlu0 %6165
  %6167 = vrot.lane.b32.xlu0 %v4246, 48
  %v6168 = vpop.permute.xlu0 %6167
  %6169 = vrot.lane.b32.xlu0 %v4247, 48
  %v6170 = vpop.permute.xlu0 %6169
  %6171 = vrot.lane.b32.xlu0 %v4249, 48
  %v6172 = vpop.permute.xlu0 %6171
  %6173 = vrot.lane.b32.xlu0 %v4250, 48
  %v6174 = vpop.permute.xlu0 %6173
  %vm6239 = vcmask 458112
  %6240 = vst.msk [vmem:[#allocation5] sm:$0xff] %vm6239, %v6048
  %6241 = vst.msk [vmem:[#allocation5 + $0x8] sm:$0xff] %vm6239, %v6050
  %6242 = vst.msk [vmem:[#allocation5 + $0x10] sm:$0xff] %vm6239, %v6052
  %6243 = vst.msk [vmem:[#allocation5 + $0x18] sm:$0xff] %vm6239, %v6054
  %6244 = vst.msk [vmem:[#allocation5 + $0x20] sm:$0xff] %vm6239, %v6056
  %6245 = vst.msk [vmem:[#allocation5 + $0x28] sm:$0xff] %vm6239, %v6058
  %6246 = vst.msk [vmem:[#allocation5 + $0x30] sm:$0xff] %vm6239, %v6060
  %6247 = vst.msk [vmem:[#allocation5 + $0x38] sm:$0xff] %vm6239, %v6062
  %6248 = vst.msk [vmem:[#allocation5 + $0x40] sm:$0xff] %vm6239, %v6064
  %6249 = vst.msk [vmem:[#allocation5 + $0x48] sm:$0xff] %vm6239, %v6066
  %6250 = vst.msk [vmem:[#allocation5 + $0x50] sm:$0xff] %vm6239, %v6068
  %6251 = vst.msk [vmem:[#allocation5 + $0x58] sm:$0xff] %vm6239, %v6070
  %6252 = vst.msk [vmem:[#allocation5 + $0x60] sm:$0xff] %vm6239, %v6072
  %6253 = vst.msk [vmem:[#allocation5 + $0x68] sm:$0xff] %vm6239, %v6074
  %6254 = vst.msk [vmem:[#allocation5 + $0x70] sm:$0xff] %vm6239, %v6076
  %6255 = vst.msk [vmem:[#allocation5 + $0x78] sm:$0xff] %vm6239, %v6078
  %6256 = vst.msk [vmem:[#allocation5 + $0x80] sm:$0xff] %vm6239, %v6080
  %6257 = vst.msk [vmem:[#allocation5 + $0x88] sm:$0xff] %vm6239, %v6082
  %6258 = vst.msk [vmem:[#allocation5 + $0x90] sm:$0xff] %vm6239, %v6084
  %6259 = vst.msk [vmem:[#allocation5 + $0x98] sm:$0xff] %vm6239, %v6086
  %6260 = vst.msk [vmem:[#allocation5 + $0xa0] sm:$0xff] %vm6239, %v6088
  %6261 = vst.msk [vmem:[#allocation5 + $0xa8] sm:$0xff] %vm6239, %v6090
  %6262 = vst.msk [vmem:[#allocation5 + $0xb0] sm:$0xff] %vm6239, %v6092
  %6263 = vst.msk [vmem:[#allocation5 + $0xb8] sm:$0xff] %vm6239, %v6094
  %6264 = vst.msk [vmem:[#allocation5 + $0xc0] sm:$0xff] %vm6239, %v6096
  %6265 = vst.msk [vmem:[#allocation5 + $0xc8] sm:$0xff] %vm6239, %v6098
  %6266 = vst.msk [vmem:[#allocation5 + $0xd0] sm:$0xff] %vm6239, %v6100
  %6267 = vst.msk [vmem:[#allocation5 + $0xd8] sm:$0xff] %vm6239, %v6102
  %6268 = vst.msk [vmem:[#allocation5 + $0xe0] sm:$0xff] %vm6239, %v6104
  %6269 = vst.msk [vmem:[#allocation5 + $0xe8] sm:$0xff] %vm6239, %v6106
  %6270 = vst.msk [vmem:[#allocation5 + $0xf0] sm:$0xff] %vm6239, %v6108
  %6271 = vst.msk [vmem:[#allocation5 + $0xf8] sm:$0xff] %vm6239, %v6110
  %6272 = vst.msk [vmem:[#allocation5 + $0x100] sm:$0xff] %vm6239, %v6112
  %6273 = vst.msk [vmem:[#allocation5 + $0x108] sm:$0xff] %vm6239, %v6114
  %6274 = vst.msk [vmem:[#allocation5 + $0x110] sm:$0xff] %vm6239, %v6116
  %6275 = vst.msk [vmem:[#allocation5 + $0x118] sm:$0xff] %vm6239, %v6118
  %6276 = vst.msk [vmem:[#allocation5 + $0x120] sm:$0xff] %vm6239, %v6120
  %6277 = vst.msk [vmem:[#allocation5 + $0x128] sm:$0xff] %vm6239, %v6122
  %6278 = vst.msk [vmem:[#allocation5 + $0x130] sm:$0xff] %vm6239, %v6124
  %6279 = vst.msk [vmem:[#allocation5 + $0x138] sm:$0xff] %vm6239, %v6126
  %6280 = vst.msk [vmem:[#allocation5 + $0x140] sm:$0xff] %vm6239, %v6128
  %6281 = vst.msk [vmem:[#allocation5 + $0x148] sm:$0xff] %vm6239, %v6130
  %6282 = vst.msk [vmem:[#allocation5 + $0x150] sm:$0xff] %vm6239, %v6132
  %6283 = vst.msk [vmem:[#allocation5 + $0x158] sm:$0xff] %vm6239, %v6134
  %6284 = vst.msk [vmem:[#allocation5 + $0x160] sm:$0xff] %vm6239, %v6136
  %6285 = vst.msk [vmem:[#allocation5 + $0x168] sm:$0xff] %vm6239, %v6138
  %6286 = vst.msk [vmem:[#allocation5 + $0x170] sm:$0xff] %vm6239, %v6140
  %6287 = vst.msk [vmem:[#allocation5 + $0x178] sm:$0xff] %vm6239, %v6142
  %6288 = vst.msk [vmem:[#allocation5 + $0x180] sm:$0xff] %vm6239, %v6144
  %6289 = vst.msk [vmem:[#allocation5 + $0x188] sm:$0xff] %vm6239, %v6146
  %6290 = vst.msk [vmem:[#allocation5 + $0x190] sm:$0xff] %vm6239, %v6148
  %6291 = vst.msk [vmem:[#allocation5 + $0x198] sm:$0xff] %vm6239, %v6150
  %6292 = vst.msk [vmem:[#allocation5 + $0x1a0] sm:$0xff] %vm6239, %v6152
  %6293 = vst.msk [vmem:[#allocation5 + $0x1a8] sm:$0xff] %vm6239, %v6154
  %6294 = vst.msk [vmem:[#allocation5 + $0x1b0] sm:$0xff] %vm6239, %v6156
  %6295 = vst.msk [vmem:[#allocation5 + $0x1b8] sm:$0xff] %vm6239, %v6158
  %6296 = vst.msk [vmem:[#allocation5 + $0x1c0] sm:$0xff] %vm6239, %v6160
  %6297 = vst.msk [vmem:[#allocation5 + $0x1c8] sm:$0xff] %vm6239, %v6162
  %6298 = vst.msk [vmem:[#allocation5 + $0x1d0] sm:$0xff] %vm6239, %v6164
  %6299 = vst.msk [vmem:[#allocation5 + $0x1d8] sm:$0xff] %vm6239, %v6166
  %6300 = vst.msk [vmem:[#allocation5 + $0x1e0] sm:$0xff] %vm6239, %v6168
  %6301 = vst.msk [vmem:[#allocation5 + $0x1e8] sm:$0xff] %vm6239, %v6170
  %6302 = vst.msk [vmem:[#allocation5 + $0x1f0] sm:$0xff] %vm6239, %v6172
  %6303 = vst.msk [vmem:[#allocation5 + $0x1f8] sm:$0xff] %vm6239, %v6174
  %v6306 = vrot.slane %v4195, 1
  %v6307 = vrot.slane %v4196, 1
  %v6308 = vsel %vm510, %v6306, %v6307
  %v6309 = vrot.slane %v4197, 1
  %v6310 = vsel %vm510, %v6307, %v6309
  %v6311 = vrot.slane %v4249, 1
  %v6312 = vrot.slane %v4250, 1
  %v6313 = vsel %vm510, %v6311, %v6312
  %v6314 = vrot.slane %v4251, 1
  %v6315 = vsel %vm510, %v6312, %v6314
  %6316 = vrot.lane.b32.xlu0 %v4424, 56
  %v6317 = vpop.permute.xlu0 %6316
  %6318 = vrot.lane.b32.xlu0 %v4426, 56
  %v6319 = vpop.permute.xlu0 %6318
  %6320 = vrot.lane.b32.xlu0 %v4429, 56
  %v6321 = vpop.permute.xlu0 %6320
  %6322 = vrot.lane.b32.xlu0 %v4431, 56
  %v6323 = vpop.permute.xlu0 %6322
  %6324 = vrot.lane.b32.xlu0 %v4434, 56
  %v6325 = vpop.permute.xlu0 %6324
  %6326 = vrot.lane.b32.xlu0 %v4436, 56
  %v6327 = vpop.permute.xlu0 %6326
  %6328 = vrot.lane.b32.xlu0 %v4439, 56
  %v6329 = vpop.permute.xlu0 %6328
  %6330 = vrot.lane.b32.xlu0 %v4441, 56
  %v6331 = vpop.permute.xlu0 %6330
  %6332 = vrot.lane.b32.xlu0 %v4444, 56
  %v6333 = vpop.permute.xlu0 %6332
  %6334 = vrot.lane.b32.xlu0 %v4446, 56
  %v6335 = vpop.permute.xlu0 %6334
  %6336 = vrot.lane.b32.xlu0 %v4449, 56
  %v6337 = vpop.permute.xlu0 %6336
  %6338 = vrot.lane.b32.xlu0 %v4451, 56
  %v6339 = vpop.permute.xlu0 %6338
  %6340 = vrot.lane.b32.xlu0 %v4454, 56
  %v6341 = vpop.permute.xlu0 %6340
  %6342 = vrot.lane.b32.xlu0 %v4456, 56
  %v6343 = vpop.permute.xlu0 %6342
  %6344 = vrot.lane.b32.xlu0 %v4459, 56
  %v6345 = vpop.permute.xlu0 %6344
  %6346 = vrot.lane.b32.xlu0 %v4461, 56
  %v6347 = vpop.permute.xlu0 %6346
  %6348 = vrot.lane.b32.xlu0 %v4464, 56
  %v6349 = vpop.permute.xlu0 %6348
  %6350 = vrot.lane.b32.xlu0 %v4466, 56
  %v6351 = vpop.permute.xlu0 %6350
  %6352 = vrot.lane.b32.xlu0 %v4469, 56
  %v6353 = vpop.permute.xlu0 %6352
  %6354 = vrot.lane.b32.xlu0 %v4471, 56
  %v6355 = vpop.permute.xlu0 %6354
  %6356 = vrot.lane.b32.xlu0 %v4474, 56
  %v6357 = vpop.permute.xlu0 %6356
  %6358 = vrot.lane.b32.xlu0 %v4476, 56
  %v6359 = vpop.permute.xlu0 %6358
  %6360 = vrot.lane.b32.xlu0 %v4479, 56
  %v6361 = vpop.permute.xlu0 %6360
  %6362 = vrot.lane.b32.xlu0 %v4481, 56
  %v6363 = vpop.permute.xlu0 %6362
  %6364 = vrot.lane.b32.xlu0 %v4484, 56
  %v6365 = vpop.permute.xlu0 %6364
  %6366 = vrot.lane.b32.xlu0 %v4486, 56
  %v6367 = vpop.permute.xlu0 %6366
  %6368 = vrot.lane.b32.xlu0 %v4489, 56
  %v6369 = vpop.permute.xlu0 %6368
  %6370 = vrot.lane.b32.xlu0 %v4491, 56
  %v6371 = vpop.permute.xlu0 %6370
  %6372 = vrot.lane.b32.xlu0 %v5511, 56
  %v6373 = vpop.permute.xlu0 %6372
  %6374 = vrot.lane.b32.xlu0 %v5513, 56
  %v6375 = vpop.permute.xlu0 %6374
  %6376 = vrot.lane.b32.xlu0 %v6308, 56
  %v6377 = vpop.permute.xlu0 %6376
  %6378 = vrot.lane.b32.xlu0 %v6310, 56
  %v6379 = vpop.permute.xlu0 %6378
  %6380 = vrot.lane.b32.xlu0 %v4504, 56
  %v6381 = vpop.permute.xlu0 %6380
  %6382 = vrot.lane.b32.xlu0 %v4506, 56
  %v6383 = vpop.permute.xlu0 %6382
  %6384 = vrot.lane.b32.xlu0 %v4509, 56
  %v6385 = vpop.permute.xlu0 %6384
  %6386 = vrot.lane.b32.xlu0 %v4511, 56
  %v6387 = vpop.permute.xlu0 %6386
  %6388 = vrot.lane.b32.xlu0 %v4514, 56
  %v6389 = vpop.permute.xlu0 %6388
  %6390 = vrot.lane.b32.xlu0 %v4516, 56
  %v6391 = vpop.permute.xlu0 %6390
  %6392 = vrot.lane.b32.xlu0 %v4519, 56
  %v6393 = vpop.permute.xlu0 %6392
  %6394 = vrot.lane.b32.xlu0 %v4521, 56
  %v6395 = vpop.permute.xlu0 %6394
  %6396 = vrot.lane.b32.xlu0 %v4524, 56
  %v6397 = vpop.permute.xlu0 %6396
  %6398 = vrot.lane.b32.xlu0 %v4526, 56
  %v6399 = vpop.permute.xlu0 %6398
  %6400 = vrot.lane.b32.xlu0 %v4529, 56
  %v6401 = vpop.permute.xlu0 %6400
  %6402 = vrot.lane.b32.xlu0 %v4531, 56
  %v6403 = vpop.permute.xlu0 %6402
  %6404 = vrot.lane.b32.xlu0 %v4534, 56
  %v6405 = vpop.permute.xlu0 %6404
  %6406 = vrot.lane.b32.xlu0 %v4536, 56
  %v6407 = vpop.permute.xlu0 %6406
  %6408 = vrot.lane.b32.xlu0 %v4539, 56
  %v6409 = vpop.permute.xlu0 %6408
  %6410 = vrot.lane.b32.xlu0 %v4541, 56
  %v6411 = vpop.permute.xlu0 %6410
  %6412 = vrot.lane.b32.xlu0 %v4544, 56
  %v6413 = vpop.permute.xlu0 %6412
  %6414 = vrot.lane.b32.xlu0 %v4546, 56
  %v6415 = vpop.permute.xlu0 %6414
  %6416 = vrot.lane.b32.xlu0 %v4549, 56
  %v6417 = vpop.permute.xlu0 %6416
  %6418 = vrot.lane.b32.xlu0 %v4551, 56
  %v6419 = vpop.permute.xlu0 %6418
  %6420 = vrot.lane.b32.xlu0 %v4554, 56
  %v6421 = vpop.permute.xlu0 %6420
  %6422 = vrot.lane.b32.xlu0 %v4556, 56
  %v6423 = vpop.permute.xlu0 %6422
  %6424 = vrot.lane.b32.xlu0 %v4559, 56
  %v6425 = vpop.permute.xlu0 %6424
  %6426 = vrot.lane.b32.xlu0 %v4561, 56
  %v6427 = vpop.permute.xlu0 %6426
  %6428 = vrot.lane.b32.xlu0 %v4564, 56
  %v6429 = vpop.permute.xlu0 %6428
  %6430 = vrot.lane.b32.xlu0 %v4566, 56
  %v6431 = vpop.permute.xlu0 %6430
  %6432 = vrot.lane.b32.xlu0 %v4569, 56
  %v6433 = vpop.permute.xlu0 %6432
  %6434 = vrot.lane.b32.xlu0 %v4571, 56
  %v6435 = vpop.permute.xlu0 %6434
  %6436 = vrot.lane.b32.xlu0 %v5516, 56
  %v6437 = vpop.permute.xlu0 %6436
  %6438 = vrot.lane.b32.xlu0 %v5518, 56
  %v6439 = vpop.permute.xlu0 %6438
  %6440 = vrot.lane.b32.xlu0 %v6313, 56
  %v6441 = vpop.permute.xlu0 %6440
  %6442 = vrot.lane.b32.xlu0 %v6315, 56
  %v6443 = vpop.permute.xlu0 %6442
  %vm6508 = vcmask 523712
  %6509 = vst.msk [vmem:[#allocation5] sm:$0xff] %vm6508, %v6317
  %6510 = vst.msk [vmem:[#allocation5 + $0x8] sm:$0xff] %vm6508, %v6319
  %6511 = vst.msk [vmem:[#allocation5 + $0x10] sm:$0xff] %vm6508, %v6321
  %6512 = vst.msk [vmem:[#allocation5 + $0x18] sm:$0xff] %vm6508, %v6323
  %6513 = vst.msk [vmem:[#allocation5 + $0x20] sm:$0xff] %vm6508, %v6325
  %6514 = vst.msk [vmem:[#allocation5 + $0x28] sm:$0xff] %vm6508, %v6327
  %6515 = vst.msk [vmem:[#allocation5 + $0x30] sm:$0xff] %vm6508, %v6329
  %6516 = vst.msk [vmem:[#allocation5 + $0x38] sm:$0xff] %vm6508, %v6331
  %6517 = vst.msk [vmem:[#allocation5 + $0x40] sm:$0xff] %vm6508, %v6333
  %6518 = vst.msk [vmem:[#allocation5 + $0x48] sm:$0xff] %vm6508, %v6335
  %6519 = vst.msk [vmem:[#allocation5 + $0x50] sm:$0xff] %vm6508, %v6337
  %6520 = vst.msk [vmem:[#allocation5 + $0x58] sm:$0xff] %vm6508, %v6339
  %6521 = vst.msk [vmem:[#allocation5 + $0x60] sm:$0xff] %vm6508, %v6341
  %6522 = vst.msk [vmem:[#allocation5 + $0x68] sm:$0xff] %vm6508, %v6343
  %6523 = vst.msk [vmem:[#allocation5 + $0x70] sm:$0xff] %vm6508, %v6345
  %6524 = vst.msk [vmem:[#allocation5 + $0x78] sm:$0xff] %vm6508, %v6347
  %6525 = vst.msk [vmem:[#allocation5 + $0x80] sm:$0xff] %vm6508, %v6349
  %6526 = vst.msk [vmem:[#allocation5 + $0x88] sm:$0xff] %vm6508, %v6351
  %6527 = vst.msk [vmem:[#allocation5 + $0x90] sm:$0xff] %vm6508, %v6353
  %6528 = vst.msk [vmem:[#allocation5 + $0x98] sm:$0xff] %vm6508, %v6355
  %6529 = vst.msk [vmem:[#allocation5 + $0xa0] sm:$0xff] %vm6508, %v6357
  %6530 = vst.msk [vmem:[#allocation5 + $0xa8] sm:$0xff] %vm6508, %v6359
  %6531 = vst.msk [vmem:[#allocation5 + $0xb0] sm:$0xff] %vm6508, %v6361
  %6532 = vst.msk [vmem:[#allocation5 + $0xb8] sm:$0xff] %vm6508, %v6363
  %6533 = vst.msk [vmem:[#allocation5 + $0xc0] sm:$0xff] %vm6508, %v6365
  %6534 = vst.msk [vmem:[#allocation5 + $0xc8] sm:$0xff] %vm6508, %v6367
  %6535 = vst.msk [vmem:[#allocation5 + $0xd0] sm:$0xff] %vm6508, %v6369
  %6536 = vst.msk [vmem:[#allocation5 + $0xd8] sm:$0xff] %vm6508, %v6371
  %6537 = vst.msk [vmem:[#allocation5 + $0xe0] sm:$0xff] %vm6508, %v6373
  %6538 = vst.msk [vmem:[#allocation5 + $0xe8] sm:$0xff] %vm6508, %v6375
  %6539 = vst.msk [vmem:[#allocation5 + $0xf0] sm:$0xff] %vm6508, %v6377
  %6540 = vst.msk [vmem:[#allocation5 + $0xf8] sm:$0xff] %vm6508, %v6379
  %6541 = vst.msk [vmem:[#allocation5 + $0x100] sm:$0xff] %vm6508, %v6381
  %6542 = vst.msk [vmem:[#allocation5 + $0x108] sm:$0xff] %vm6508, %v6383
  %6543 = vst.msk [vmem:[#allocation5 + $0x110] sm:$0xff] %vm6508, %v6385
  %6544 = vst.msk [vmem:[#allocation5 + $0x118] sm:$0xff] %vm6508, %v6387
  %6545 = vst.msk [vmem:[#allocation5 + $0x120] sm:$0xff] %vm6508, %v6389
  %6546 = vst.msk [vmem:[#allocation5 + $0x128] sm:$0xff] %vm6508, %v6391
  %6547 = vst.msk [vmem:[#allocation5 + $0x130] sm:$0xff] %vm6508, %v6393
  %6548 = vst.msk [vmem:[#allocation5 + $0x138] sm:$0xff] %vm6508, %v6395
  %6549 = vst.msk [vmem:[#allocation5 + $0x140] sm:$0xff] %vm6508, %v6397
  %6550 = vst.msk [vmem:[#allocation5 + $0x148] sm:$0xff] %vm6508, %v6399
  %6551 = vst.msk [vmem:[#allocation5 + $0x150] sm:$0xff] %vm6508, %v6401
  %6552 = vst.msk [vmem:[#allocation5 + $0x158] sm:$0xff] %vm6508, %v6403
  %6553 = vst.msk [vmem:[#allocation5 + $0x160] sm:$0xff] %vm6508, %v6405
  %6554 = vst.msk [vmem:[#allocation5 + $0x168] sm:$0xff] %vm6508, %v6407
  %6555 = vst.msk [vmem:[#allocation5 + $0x170] sm:$0xff] %vm6508, %v6409
  %6556 = vst.msk [vmem:[#allocation5 + $0x178] sm:$0xff] %vm6508, %v6411
  %6557 = vst.msk [vmem:[#allocation5 + $0x180] sm:$0xff] %vm6508, %v6413
  %6558 = vst.msk [vmem:[#allocation5 + $0x188] sm:$0xff] %vm6508, %v6415
  %6559 = vst.msk [vmem:[#allocation5 + $0x190] sm:$0xff] %vm6508, %v6417
  %6560 = vst.msk [vmem:[#allocation5 + $0x198] sm:$0xff] %vm6508, %v6419
  %6561 = vst.msk [vmem:[#allocation5 + $0x1a0] sm:$0xff] %vm6508, %v6421
  %6562 = vst.msk [vmem:[#allocation5 + $0x1a8] sm:$0xff] %vm6508, %v6423
  %6563 = vst.msk [vmem:[#allocation5 + $0x1b0] sm:$0xff] %vm6508, %v6425
  %6564 = vst.msk [vmem:[#allocation5 + $0x1b8] sm:$0xff] %vm6508, %v6427
  %6565 = vst.msk [vmem:[#allocation5 + $0x1c0] sm:$0xff] %vm6508, %v6429
  %6566 = vst.msk [vmem:[#allocation5 + $0x1c8] sm:$0xff] %vm6508, %v6431
  %6567 = vst.msk [vmem:[#allocation5 + $0x1d0] sm:$0xff] %vm6508, %v6433
  %6568 = vst.msk [vmem:[#allocation5 + $0x1d8] sm:$0xff] %vm6508, %v6435
  %6569 = vst.msk [vmem:[#allocation5 + $0x1e0] sm:$0xff] %vm6508, %v6437
  %6570 = vst.msk [vmem:[#allocation5 + $0x1e8] sm:$0xff] %vm6508, %v6439
  %6571 = vst.msk [vmem:[#allocation5 + $0x1f0] sm:$0xff] %vm6508, %v6441
  %6572 = vst.msk [vmem:[#allocation5 + $0x1f8] sm:$0xff] %vm6508, %v6443
  %v6573 = vrot.slane %v4195, 2
  %v6574 = vrot.slane %v4196, 2
  %v6575 = vsel %vm928, %v6573, %v6574
  %v6576 = vrot.slane %v4197, 2
  %v6577 = vsel %vm928, %v6574, %v6576
  %v6578 = vrot.slane %v4249, 2
  %v6579 = vrot.slane %v4250, 2
  %v6580 = vsel %vm928, %v6578, %v6579
  %v6581 = vrot.slane %v4251, 2
  %v6582 = vsel %vm928, %v6579, %v6581
  %6583 = vrot.lane.b32.xlu0 %v4841, 64
  %v6584 = vpop.permute.xlu0 %6583
  %6585 = vrot.lane.b32.xlu0 %v4843, 64
  %v6586 = vpop.permute.xlu0 %6585
  %6587 = vrot.lane.b32.xlu0 %v4846, 64
  %v6588 = vpop.permute.xlu0 %6587
  %6589 = vrot.lane.b32.xlu0 %v4848, 64
  %v6590 = vpop.permute.xlu0 %6589
  %6591 = vrot.lane.b32.xlu0 %v4851, 64
  %v6592 = vpop.permute.xlu0 %6591
  %6593 = vrot.lane.b32.xlu0 %v4853, 64
  %v6594 = vpop.permute.xlu0 %6593
  %6595 = vrot.lane.b32.xlu0 %v4856, 64
  %v6596 = vpop.permute.xlu0 %6595
  %6597 = vrot.lane.b32.xlu0 %v4858, 64
  %v6598 = vpop.permute.xlu0 %6597
  %6599 = vrot.lane.b32.xlu0 %v4861, 64
  %v6600 = vpop.permute.xlu0 %6599
  %6601 = vrot.lane.b32.xlu0 %v4863, 64
  %v6602 = vpop.permute.xlu0 %6601
  %6603 = vrot.lane.b32.xlu0 %v4866, 64
  %v6604 = vpop.permute.xlu0 %6603
  %6605 = vrot.lane.b32.xlu0 %v4868, 64
  %v6606 = vpop.permute.xlu0 %6605
  %6607 = vrot.lane.b32.xlu0 %v4871, 64
  %v6608 = vpop.permute.xlu0 %6607
  %6609 = vrot.lane.b32.xlu0 %v4873, 64
  %v6610 = vpop.permute.xlu0 %6609
  %6611 = vrot.lane.b32.xlu0 %v4876, 64
  %v6612 = vpop.permute.xlu0 %6611
  %6613 = vrot.lane.b32.xlu0 %v4878, 64
  %v6614 = vpop.permute.xlu0 %6613
  %6615 = vrot.lane.b32.xlu0 %v4881, 64
  %v6616 = vpop.permute.xlu0 %6615
  %6617 = vrot.lane.b32.xlu0 %v4883, 64
  %v6618 = vpop.permute.xlu0 %6617
  %6619 = vrot.lane.b32.xlu0 %v4886, 64
  %v6620 = vpop.permute.xlu0 %6619
  %6621 = vrot.lane.b32.xlu0 %v4888, 64
  %v6622 = vpop.permute.xlu0 %6621
  %6623 = vrot.lane.b32.xlu0 %v4891, 64
  %v6624 = vpop.permute.xlu0 %6623
  %6625 = vrot.lane.b32.xlu0 %v4893, 64
  %v6626 = vpop.permute.xlu0 %6625
  %6627 = vrot.lane.b32.xlu0 %v4896, 64
  %v6628 = vpop.permute.xlu0 %6627
  %6629 = vrot.lane.b32.xlu0 %v4898, 64
  %v6630 = vpop.permute.xlu0 %6629
  %6631 = vrot.lane.b32.xlu0 %v4901, 64
  %v6632 = vpop.permute.xlu0 %6631
  %6633 = vrot.lane.b32.xlu0 %v4903, 64
  %v6634 = vpop.permute.xlu0 %6633
  %6635 = vrot.lane.b32.xlu0 %v4906, 64
  %v6636 = vpop.permute.xlu0 %6635
  %6637 = vrot.lane.b32.xlu0 %v4908, 64
  %v6638 = vpop.permute.xlu0 %6637
  %6639 = vrot.lane.b32.xlu0 %v5778, 64
  %v6640 = vpop.permute.xlu0 %6639
  %6641 = vrot.lane.b32.xlu0 %v5780, 64
  %v6642 = vpop.permute.xlu0 %6641
  %6643 = vrot.lane.b32.xlu0 %v6575, 64
  %v6644 = vpop.permute.xlu0 %6643
  %6645 = vrot.lane.b32.xlu0 %v6577, 64
  %v6646 = vpop.permute.xlu0 %6645
  %6647 = vrot.lane.b32.xlu0 %v4921, 64
  %v6648 = vpop.permute.xlu0 %6647
  %6649 = vrot.lane.b32.xlu0 %v4923, 64
  %v6650 = vpop.permute.xlu0 %6649
  %6651 = vrot.lane.b32.xlu0 %v4926, 64
  %v6652 = vpop.permute.xlu0 %6651
  %6653 = vrot.lane.b32.xlu0 %v4928, 64
  %v6654 = vpop.permute.xlu0 %6653
  %6655 = vrot.lane.b32.xlu0 %v4931, 64
  %v6656 = vpop.permute.xlu0 %6655
  %6657 = vrot.lane.b32.xlu0 %v4933, 64
  %v6658 = vpop.permute.xlu0 %6657
  %6659 = vrot.lane.b32.xlu0 %v4936, 64
  %v6660 = vpop.permute.xlu0 %6659
  %6661 = vrot.lane.b32.xlu0 %v4938, 64
  %v6662 = vpop.permute.xlu0 %6661
  %6663 = vrot.lane.b32.xlu0 %v4941, 64
  %v6664 = vpop.permute.xlu0 %6663
  %6665 = vrot.lane.b32.xlu0 %v4943, 64
  %v6666 = vpop.permute.xlu0 %6665
  %6667 = vrot.lane.b32.xlu0 %v4946, 64
  %v6668 = vpop.permute.xlu0 %6667
  %6669 = vrot.lane.b32.xlu0 %v4948, 64
  %v6670 = vpop.permute.xlu0 %6669
  %6671 = vrot.lane.b32.xlu0 %v4951, 64
  %v6672 = vpop.permute.xlu0 %6671
  %6673 = vrot.lane.b32.xlu0 %v4953, 64
  %v6674 = vpop.permute.xlu0 %6673
  %6675 = vrot.lane.b32.xlu0 %v4956, 64
  %v6676 = vpop.permute.xlu0 %6675
  %6677 = vrot.lane.b32.xlu0 %v4958, 64
  %v6678 = vpop.permute.xlu0 %6677
  %6679 = vrot.lane.b32.xlu0 %v4961, 64
  %v6680 = vpop.permute.xlu0 %6679
  %6681 = vrot.lane.b32.xlu0 %v4963, 64
  %v6682 = vpop.permute.xlu0 %6681
  %6683 = vrot.lane.b32.xlu0 %v4966, 64
  %v6684 = vpop.permute.xlu0 %6683
  %6685 = vrot.lane.b32.xlu0 %v4968, 64
  %v6686 = vpop.permute.xlu0 %6685
  %6687 = vrot.lane.b32.xlu0 %v4971, 64
  %v6688 = vpop.permute.xlu0 %6687
  %6689 = vrot.lane.b32.xlu0 %v4973, 64
  %v6690 = vpop.permute.xlu0 %6689
  %6691 = vrot.lane.b32.xlu0 %v4976, 64
  %v6692 = vpop.permute.xlu0 %6691
  %6693 = vrot.lane.b32.xlu0 %v4978, 64
  %v6694 = vpop.permute.xlu0 %6693
  %6695 = vrot.lane.b32.xlu0 %v4981, 64
  %v6696 = vpop.permute.xlu0 %6695
  %6697 = vrot.lane.b32.xlu0 %v4983, 64
  %v6698 = vpop.permute.xlu0 %6697
  %6699 = vrot.lane.b32.xlu0 %v4986, 64
  %v6700 = vpop.permute.xlu0 %6699
  %6701 = vrot.lane.b32.xlu0 %v4988, 64
  %v6702 = vpop.permute.xlu0 %6701
  %6703 = vrot.lane.b32.xlu0 %v5783, 64
  %v6704 = vpop.permute.xlu0 %6703
  %6705 = vrot.lane.b32.xlu0 %v5785, 64
  %v6706 = vpop.permute.xlu0 %6705
  %6707 = vrot.lane.b32.xlu0 %v6580, 64
  %v6708 = vpop.permute.xlu0 %6707
  %6709 = vrot.lane.b32.xlu0 %v6582, 64
  %v6710 = vpop.permute.xlu0 %6709
  %vm6775 = vcmask 589312
  %6776 = vst.msk [vmem:[#allocation5] sm:$0xff] %vm6775, %v6584
  %6777 = vst.msk [vmem:[#allocation5 + $0x8] sm:$0xff] %vm6775, %v6586
  %6778 = vst.msk [vmem:[#allocation5 + $0x10] sm:$0xff] %vm6775, %v6588
  %6779 = vst.msk [vmem:[#allocation5 + $0x18] sm:$0xff] %vm6775, %v6590
  %6780 = vst.msk [vmem:[#allocation5 + $0x20] sm:$0xff] %vm6775, %v6592
  %6781 = vst.msk [vmem:[#allocation5 + $0x28] sm:$0xff] %vm6775, %v6594
  %6782 = vst.msk [vmem:[#allocation5 + $0x30] sm:$0xff] %vm6775, %v6596
  %6783 = vst.msk [vmem:[#allocation5 + $0x38] sm:$0xff] %vm6775, %v6598
  %6784 = vst.msk [vmem:[#allocation5 + $0x40] sm:$0xff] %vm6775, %v6600
  %6785 = vst.msk [vmem:[#allocation5 + $0x48] sm:$0xff] %vm6775, %v6602
  %6786 = vst.msk [vmem:[#allocation5 + $0x50] sm:$0xff] %vm6775, %v6604
  %6787 = vst.msk [vmem:[#allocation5 + $0x58] sm:$0xff] %vm6775, %v6606
  %6788 = vst.msk [vmem:[#allocation5 + $0x60] sm:$0xff] %vm6775, %v6608
  %6789 = vst.msk [vmem:[#allocation5 + $0x68] sm:$0xff] %vm6775, %v6610
  %6790 = vst.msk [vmem:[#allocation5 + $0x70] sm:$0xff] %vm6775, %v6612
  %6791 = vst.msk [vmem:[#allocation5 + $0x78] sm:$0xff] %vm6775, %v6614
  %6792 = vst.msk [vmem:[#allocation5 + $0x80] sm:$0xff] %vm6775, %v6616
  %6793 = vst.msk [vmem:[#allocation5 + $0x88] sm:$0xff] %vm6775, %v6618
  %6794 = vst.msk [vmem:[#allocation5 + $0x90] sm:$0xff] %vm6775, %v6620
  %6795 = vst.msk [vmem:[#allocation5 + $0x98] sm:$0xff] %vm6775, %v6622
  %6796 = vst.msk [vmem:[#allocation5 + $0xa0] sm:$0xff] %vm6775, %v6624
  %6797 = vst.msk [vmem:[#allocation5 + $0xa8] sm:$0xff] %vm6775, %v6626
  %6798 = vst.msk [vmem:[#allocation5 + $0xb0] sm:$0xff] %vm6775, %v6628
  %6799 = vst.msk [vmem:[#allocation5 + $0xb8] sm:$0xff] %vm6775, %v6630
  %6800 = vst.msk [vmem:[#allocation5 + $0xc0] sm:$0xff] %vm6775, %v6632
  %6801 = vst.msk [vmem:[#allocation5 + $0xc8] sm:$0xff] %vm6775, %v6634
  %6802 = vst.msk [vmem:[#allocation5 + $0xd0] sm:$0xff] %vm6775, %v6636
  %6803 = vst.msk [vmem:[#allocation5 + $0xd8] sm:$0xff] %vm6775, %v6638
  %6804 = vst.msk [vmem:[#allocation5 + $0xe0] sm:$0xff] %vm6775, %v6640
  %6805 = vst.msk [vmem:[#allocation5 + $0xe8] sm:$0xff] %vm6775, %v6642
  %6806 = vst.msk [vmem:[#allocation5 + $0xf0] sm:$0xff] %vm6775, %v6644
  %6807 = vst.msk [vmem:[#allocation5 + $0xf8] sm:$0xff] %vm6775, %v6646
  %6808 = vst.msk [vmem:[#allocation5 + $0x100] sm:$0xff] %vm6775, %v6648
  %6809 = vst.msk [vmem:[#allocation5 + $0x108] sm:$0xff] %vm6775, %v6650
  %6810 = vst.msk [vmem:[#allocation5 + $0x110] sm:$0xff] %vm6775, %v6652
  %6811 = vst.msk [vmem:[#allocation5 + $0x118] sm:$0xff] %vm6775, %v6654
  %6812 = vst.msk [vmem:[#allocation5 + $0x120] sm:$0xff] %vm6775, %v6656
  %6813 = vst.msk [vmem:[#allocation5 + $0x128] sm:$0xff] %vm6775, %v6658
  %6814 = vst.msk [vmem:[#allocation5 + $0x130] sm:$0xff] %vm6775, %v6660
  %6815 = vst.msk [vmem:[#allocation5 + $0x138] sm:$0xff] %vm6775, %v6662
  %6816 = vst.msk [vmem:[#allocation5 + $0x140] sm:$0xff] %vm6775, %v6664
  %6817 = vst.msk [vmem:[#allocation5 + $0x148] sm:$0xff] %vm6775, %v6666
  %6818 = vst.msk [vmem:[#allocation5 + $0x150] sm:$0xff] %vm6775, %v6668
  %6819 = vst.msk [vmem:[#allocation5 + $0x158] sm:$0xff] %vm6775, %v6670
  %6820 = vst.msk [vmem:[#allocation5 + $0x160] sm:$0xff] %vm6775, %v6672
  %6821 = vst.msk [vmem:[#allocation5 + $0x168] sm:$0xff] %vm6775, %v6674
  %6822 = vst.msk [vmem:[#allocation5 + $0x170] sm:$0xff] %vm6775, %v6676
  %6823 = vst.msk [vmem:[#allocation5 + $0x178] sm:$0xff] %vm6775, %v6678
  %6824 = vst.msk [vmem:[#allocation5 + $0x180] sm:$0xff] %vm6775, %v6680
  %6825 = vst.msk [vmem:[#allocation5 + $0x188] sm:$0xff] %vm6775, %v6682
  %6826 = vst.msk [vmem:[#allocation5 + $0x190] sm:$0xff] %vm6775, %v6684
  %6827 = vst.msk [vmem:[#allocation5 + $0x198] sm:$0xff] %vm6775, %v6686
  %6828 = vst.msk [vmem:[#allocation5 + $0x1a0] sm:$0xff] %vm6775, %v6688
  %6829 = vst.msk [vmem:[#allocation5 + $0x1a8] sm:$0xff] %vm6775, %v6690
  %6830 = vst.msk [vmem:[#allocation5 + $0x1b0] sm:$0xff] %vm6775, %v6692
  %6831 = vst.msk [vmem:[#allocation5 + $0x1b8] sm:$0xff] %vm6775, %v6694
  %6832 = vst.msk [vmem:[#allocation5 + $0x1c0] sm:$0xff] %vm6775, %v6696
  %6833 = vst.msk [vmem:[#allocation5 + $0x1c8] sm:$0xff] %vm6775, %v6698
  %6834 = vst.msk [vmem:[#allocation5 + $0x1d0] sm:$0xff] %vm6775, %v6700
  %6835 = vst.msk [vmem:[#allocation5 + $0x1d8] sm:$0xff] %vm6775, %v6702
  %6836 = vst.msk [vmem:[#allocation5 + $0x1e0] sm:$0xff] %vm6775, %v6704
  %6837 = vst.msk [vmem:[#allocation5 + $0x1e8] sm:$0xff] %vm6775, %v6706
  %6838 = vst.msk [vmem:[#allocation5 + $0x1f0] sm:$0xff] %vm6775, %v6708
  %6839 = vst.msk [vmem:[#allocation5 + $0x1f8] sm:$0xff] %vm6775, %v6710
  %v6840 = vld [vmem:[#allocation5] sm:$0xff]
  %v6841 = vld [vmem:[#allocation5 + $0x8] sm:$0xff]
  %v6842 = vld [vmem:[#allocation5 + $0x10] sm:$0xff]
  %v6843 = vld [vmem:[#allocation5 + $0x18] sm:$0xff]
  %v6844 = vld [vmem:[#allocation5 + $0x20] sm:$0xff]
  %v6845 = vld [vmem:[#allocation5 + $0x28] sm:$0xff]
  %v6846 = vld [vmem:[#allocation5 + $0x30] sm:$0xff]
  %v6847 = vld [vmem:[#allocation5 + $0x38] sm:$0xff]
  %v6848 = vld [vmem:[#allocation5 + $0x40] sm:$0xff]
  %v6849 = vld [vmem:[#allocation5 + $0x48] sm:$0xff]
  %v6850 = vld [vmem:[#allocation5 + $0x50] sm:$0xff]
  %v6851 = vld [vmem:[#allocation5 + $0x58] sm:$0xff]
  %v6852 = vld [vmem:[#allocation5 + $0x60] sm:$0xff]
  %v6853 = vld [vmem:[#allocation5 + $0x68] sm:$0xff]
  %v6854 = vld [vmem:[#allocation5 + $0x70] sm:$0xff]
  %v6855 = vld [vmem:[#allocation5 + $0x78] sm:$0xff]
  %v6856 = vld [vmem:[#allocation5 + $0x80] sm:$0xff]
  %v6857 = vld [vmem:[#allocation5 + $0x88] sm:$0xff]
  %v6858 = vld [vmem:[#allocation5 + $0x90] sm:$0xff]
  %v6859 = vld [vmem:[#allocation5 + $0x98] sm:$0xff]
  %v6860 = vld [vmem:[#allocation5 + $0xa0] sm:$0xff]
  %v6861 = vld [vmem:[#allocation5 + $0xa8] sm:$0xff]
  %v6862 = vld [vmem:[#allocation5 + $0xb0] sm:$0xff]
  %v6863 = vld [vmem:[#allocation5 + $0xb8] sm:$0xff]
  %v6864 = vld [vmem:[#allocation5 + $0xc0] sm:$0xff]
  %v6865 = vld [vmem:[#allocation5 + $0xc8] sm:$0xff]
  %v6866 = vld [vmem:[#allocation5 + $0xd0] sm:$0xff]
  %v6867 = vld [vmem:[#allocation5 + $0xd8] sm:$0xff]
  %v6868 = vld [vmem:[#allocation5 + $0xe0] sm:$0xff]
  %v6869 = vld [vmem:[#allocation5 + $0xe8] sm:$0xff]
  %v6870 = vld [vmem:[#allocation5 + $0xf0] sm:$0xff]
  %v6871 = vld [vmem:[#allocation5 + $0xf8] sm:$0xff]
  %v6872 = vld [vmem:[#allocation5 + $0x100] sm:$0xff]
  %v6873 = vld [vmem:[#allocation5 + $0x108] sm:$0xff]
  %v6874 = vld [vmem:[#allocation5 + $0x110] sm:$0xff]
  %v6875 = vld [vmem:[#allocation5 + $0x118] sm:$0xff]
  %v6876 = vld [vmem:[#allocation5 + $0x120] sm:$0xff]
  %v6877 = vld [vmem:[#allocation5 + $0x128] sm:$0xff]
  %v6878 = vld [vmem:[#allocation5 + $0x130] sm:$0xff]
  %v6879 = vld [vmem:[#allocation5 + $0x138] sm:$0xff]
  %v6880 = vld [vmem:[#allocation5 + $0x140] sm:$0xff]
  %v6881 = vld [vmem:[#allocation5 + $0x148] sm:$0xff]
  %v6882 = vld [vmem:[#allocation5 + $0x150] sm:$0xff]
  %v6883 = vld [vmem:[#allocation5 + $0x158] sm:$0xff]
  %v6884 = vld [vmem:[#allocation5 + $0x160] sm:$0xff]
  %v6885 = vld [vmem:[#allocation5 + $0x168] sm:$0xff]
  %v6886 = vld [vmem:[#allocation5 + $0x170] sm:$0xff]
  %v6887 = vld [vmem:[#allocation5 + $0x178] sm:$0xff]
  %v6888 = vld [vmem:[#allocation5 + $0x180] sm:$0xff]
  %v6889 = vld [vmem:[#allocation5 + $0x188] sm:$0xff]
  %v6890 = vld [vmem:[#allocation5 + $0x190] sm:$0xff]
  %v6891 = vld [vmem:[#allocation5 + $0x198] sm:$0xff]
  %v6892 = vld [vmem:[#allocation5 + $0x1a0] sm:$0xff]
  %v6893 = vld [vmem:[#allocation5 + $0x1a8] sm:$0xff]
  %v6894 = vld [vmem:[#allocation5 + $0x1b0] sm:$0xff]
  %v6895 = vld [vmem:[#allocation5 + $0x1b8] sm:$0xff]
  %v6896 = vld [vmem:[#allocation5 + $0x1c0] sm:$0xff]
  %v6897 = vld [vmem:[#allocation5 + $0x1c8] sm:$0xff]
  %v6898 = vld [vmem:[#allocation5 + $0x1d0] sm:$0xff]
  %v6899 = vld [vmem:[#allocation5 + $0x1d8] sm:$0xff]
  %v6900 = vld [vmem:[#allocation5 + $0x1e0] sm:$0xff]
  %v6901 = vld [vmem:[#allocation5 + $0x1e8] sm:$0xff]
  %v6902 = vld [vmem:[#allocation5 + $0x1f0] sm:$0xff]
  %v6903 = vld [vmem:[#allocation5 + $0x1f8] sm:$0xff]
  %v6904 = vpack.c.bf16 %v6841, %v6840
  %v6905 = vpack.c.bf16 %v6843, %v6842
  %v6906 = vpack.c.bf16 %v6845, %v6844
  %v6907 = vpack.c.bf16 %v6847, %v6846
  %v6908 = vpack.c.bf16 %v6849, %v6848
  %v6909 = vpack.c.bf16 %v6851, %v6850
  %v6910 = vpack.c.bf16 %v6853, %v6852
  %v6911 = vpack.c.bf16 %v6855, %v6854
  %v6912 = vpack.c.bf16 %v6857, %v6856
  %v6913 = vpack.c.bf16 %v6859, %v6858
  %v6914 = vpack.c.bf16 %v6861, %v6860
  %v6915 = vpack.c.bf16 %v6863, %v6862
  %v6916 = vpack.c.bf16 %v6865, %v6864
  %v6917 = vpack.c.bf16 %v6867, %v6866
  %v6918 = vpack.c.bf16 %v6869, %v6868
  %v6919 = vpack.c.bf16 %v6871, %v6870
  %v6920 = vpack.c.bf16 %v6873, %v6872
  %v6921 = vpack.c.bf16 %v6875, %v6874
  %v6922 = vpack.c.bf16 %v6877, %v6876
  %v6923 = vpack.c.bf16 %v6879, %v6878
  %v6924 = vpack.c.bf16 %v6881, %v6880
  %v6925 = vpack.c.bf16 %v6883, %v6882
  %v6926 = vpack.c.bf16 %v6885, %v6884
  %v6927 = vpack.c.bf16 %v6887, %v6886
  %v6928 = vpack.c.bf16 %v6889, %v6888
  %v6929 = vpack.c.bf16 %v6891, %v6890
  %v6930 = vpack.c.bf16 %v6893, %v6892
  %v6931 = vpack.c.bf16 %v6895, %v6894
  %v6932 = vpack.c.bf16 %v6897, %v6896
  %v6933 = vpack.c.bf16 %v6899, %v6898
  %v6934 = vpack.c.bf16 %v6901, %v6900
  %v6935 = vpack.c.bf16 %v6903, %v6902
  %v6936 = vld [vmem:[%s2] sm:$0xf]
  %v6937 = vld [vmem:[%s2 + $0x4] sm:$0xf]
  %v6938 = vld [vmem:[%s2 + $0x8] sm:$0xf]
  %v6939 = vld [vmem:[%s2 + $0xc] sm:$0xf]
  %v6940 = vld [vmem:[%s2 + $0x10] sm:$0xf]
  %v6941 = vld [vmem:[%s2 + $0x14] sm:$0xf]
  %v6942 = vld [vmem:[%s2 + $0x18] sm:$0xf]
  %v6943 = vld [vmem:[%s2 + $0x1c] sm:$0xf]
  %v6944 = vld [vmem:[%s2 + $0x20] sm:$0xf]
  %v6954 = vunpack.c.l.b16 %v6936
  %v6955 = vunpack.c.l.b16 %v6937
  %v6956 = vunpack.c.l.b16 %v6938
  %v6957 = vunpack.c.l.b16 %v6939
  %v6958 = vunpack.c.l.b16 %v6940
  %v6959 = vunpack.c.l.b16 %v6941
  %v6960 = vunpack.c.l.b16 %v6942
  %v6961 = vunpack.c.l.b16 %v6943
  %v6962 = vunpack.c.l.b16 %v6944
  %v6963 = vpack.c.b16 %v6955, %v6954
  %v6964 = vpack.c.b16 %v6957, %v6956
  %v6965 = vpack.c.b16 %v6959, %v6958
  %v6966 = vpack.c.b16 %v6961, %v6960
  %v6967 = vpack.c.b16 %v6962, %v6962
  %vm6972 = vcmask 588800
  %v6974 = vsel %vm6972, %v6904, 0
  %v6977 = vsel %vm6972, %v6905, 0
  %v6980 = vsel %vm6972, %v6906, 0
  %v6983 = vsel %vm6972, %v6907, 0
  %v6986 = vsel %vm6972, %v6908, 0
  %v6989 = vsel %vm6972, %v6909, 0
  %v6992 = vsel %vm6972, %v6910, 0
  %v6995 = vsel %vm6972, %v6911, 0
  %v6998 = vsel %vm6972, %v6912, 0
  %v7001 = vsel %vm6972, %v6913, 0
  %v7004 = vsel %vm6972, %v6914, 0
  %v7007 = vsel %vm6972, %v6915, 0
  %v7010 = vsel %vm6972, %v6916, 0
  %v7013 = vsel %vm6972, %v6917, 0
  %v7016 = vsel %vm6972, %v6918, 0
  %v7019 = vsel %vm6972, %v6919, 0
  %v7022 = vsel %vm6972, %v6920, 0
  %v7025 = vsel %vm6972, %v6921, 0
  %v7028 = vsel %vm6972, %v6922, 0
  %v7031 = vsel %vm6972, %v6923, 0
  %v7034 = vsel %vm6972, %v6924, 0
  %v7037 = vsel %vm6972, %v6925, 0
  %v7040 = vsel %vm6972, %v6926, 0
  %v7043 = vsel %vm6972, %v6927, 0
  %v7046 = vsel %vm6972, %v6928, 0
  %v7049 = vsel %vm6972, %v6929, 0
  %v7052 = vsel %vm6972, %v6930, 0
  %v7055 = vsel %vm6972, %v6931, 0
  %v7058 = vsel %vm6972, %v6932, 0
  %v7061 = vsel %vm6972, %v6933, 0
  %v7064 = vsel %vm6972, %v6934, 0
  %v7067 = vsel %vm6972, %v6935, 0
  %vm7069 = vcmask 1043456
  %v7071 = vsel %vm7069, %v6967, 0
  %7073 = vmatpush.bf16.msra.mxu0 0
  %7074 = vmatpush.bf16.msra.mxu0 0
  %7075 = vmatpush.bf16.msra.mxu0 0
  %7076 = vmatpush.bf16.msra.mxu0 %v7071
  %7077 = vmatpush.bf16.msra.mxu0 %v6966
  %7078 = vmatpush.bf16.msra.mxu0 %v6965
  %7079 = vmatpush.bf16.msra.mxu0 %v6964
  %7080 = vmatpush.bf16.msra.mxu0 %v6963
  %7081 = vmatmul.bf16.gmra.mxu0 %v6974
  %v7082 = vpop.f32.mrf.mxu0
  %v7083 = vadd.f32 0.0, %v7082
  %v7084 = vpop.f32.mrf.mxu0
  %v7085 = vadd.f32 0.0, %v7084
  %7086 = vmatmul.bf16.gmra.mxu0 %v6977
  %v7087 = vpop.f32.mrf.mxu0
  %v7088 = vadd.f32 0.0, %v7087
  %v7089 = vpop.f32.mrf.mxu0
  %v7090 = vadd.f32 0.0, %v7089
  %7091 = vmatmul.bf16.gmra.mxu0 %v6980
  %v7092 = vpop.f32.mrf.mxu0
  %v7093 = vadd.f32 0.0, %v7092
  %v7094 = vpop.f32.mrf.mxu0
  %v7095 = vadd.f32 0.0, %v7094
  %7096 = vmatmul.bf16.gmra.mxu0 %v6983
  %v7097 = vpop.f32.mrf.mxu0
  %v7098 = vadd.f32 0.0, %v7097
  %v7099 = vpop.f32.mrf.mxu0
  %v7100 = vadd.f32 0.0, %v7099
  %7101 = vmatmul.bf16.gmra.mxu0 %v6986
  %v7102 = vpop.f32.mrf.mxu0
  %v7103 = vadd.f32 0.0, %v7102
  %v7104 = vpop.f32.mrf.mxu0
  %v7105 = vadd.f32 0.0, %v7104
  %7106 = vmatmul.bf16.gmra.mxu0 %v6989
  %v7107 = vpop.f32.mrf.mxu0
  %v7108 = vadd.f32 0.0, %v7107
  %v7109 = vpop.f32.mrf.mxu0
  %v7110 = vadd.f32 0.0, %v7109
  %7111 = vmatmul.bf16.gmra.mxu0 %v6992
  %v7112 = vpop.f32.mrf.mxu0
  %v7113 = vadd.f32 0.0, %v7112
  %v7114 = vpop.f32.mrf.mxu0
  %v7115 = vadd.f32 0.0, %v7114
  %7116 = vmatmul.bf16.gmra.mxu0 %v6995
  %v7117 = vpop.f32.mrf.mxu0
  %v7118 = vadd.f32 0.0, %v7117
  %v7119 = vpop.f32.mrf.mxu0
  %v7120 = vadd.f32 0.0, %v7119
  %7121 = vmatmul.bf16.gmra.mxu0 %v6998
  %v7122 = vpop.f32.mrf.mxu0
  %v7123 = vadd.f32 0.0, %v7122
  %v7124 = vpop.f32.mrf.mxu0
  %v7125 = vadd.f32 0.0, %v7124
  %7126 = vmatmul.bf16.gmra.mxu0 %v7001
  %v7127 = vpop.f32.mrf.mxu0
  %v7128 = vadd.f32 0.0, %v7127
  %v7129 = vpop.f32.mrf.mxu0
  %v7130 = vadd.f32 0.0, %v7129
  %7131 = vmatmul.bf16.gmra.mxu0 %v7004
  %v7132 = vpop.f32.mrf.mxu0
  %v7133 = vadd.f32 0.0, %v7132
  %v7134 = vpop.f32.mrf.mxu0
  %v7135 = vadd.f32 0.0, %v7134
  %7136 = vmatmul.bf16.gmra.mxu0 %v7007
  %v7137 = vpop.f32.mrf.mxu0
  %v7138 = vadd.f32 0.0, %v7137
  %v7139 = vpop.f32.mrf.mxu0
  %v7140 = vadd.f32 0.0, %v7139
  %7141 = vmatmul.bf16.gmra.mxu0 %v7010
  %v7142 = vpop.f32.mrf.mxu0
  %v7143 = vadd.f32 0.0, %v7142
  %v7144 = vpop.f32.mrf.mxu0
  %v7145 = vadd.f32 0.0, %v7144
  %7146 = vmatmul.bf16.gmra.mxu0 %v7013
  %v7147 = vpop.f32.mrf.mxu0
  %v7148 = vadd.f32 0.0, %v7147
  %v7149 = vpop.f32.mrf.mxu0
  %v7150 = vadd.f32 0.0, %v7149
  %7151 = vmatmul.bf16.gmra.mxu0 %v7016
  %v7152 = vpop.f32.mrf.mxu0
  %v7153 = vadd.f32 0.0, %v7152
  %v7154 = vpop.f32.mrf.mxu0
  %v7155 = vadd.f32 0.0, %v7154
  %7156 = vmatmul.bf16.gmra.mxu0 %v7019
  %v7157 = vpop.f32.mrf.mxu0
  %v7158 = vadd.f32 0.0, %v7157
  %v7159 = vpop.f32.mrf.mxu0
  %v7160 = vadd.f32 0.0, %v7159
  %7161 = vmatmul.bf16.gmra.mxu0 %v7022
  %v7162 = vpop.f32.mrf.mxu0
  %v7163 = vadd.f32 0.0, %v7162
  %v7164 = vpop.f32.mrf.mxu0
  %v7165 = vadd.f32 0.0, %v7164
  %7166 = vmatmul.bf16.gmra.mxu0 %v7025
  %v7167 = vpop.f32.mrf.mxu0
  %v7168 = vadd.f32 0.0, %v7167
  %v7169 = vpop.f32.mrf.mxu0
  %v7170 = vadd.f32 0.0, %v7169
  %7171 = vmatmul.bf16.gmra.mxu0 %v7028
  %v7172 = vpop.f32.mrf.mxu0
  %v7173 = vadd.f32 0.0, %v7172
  %v7174 = vpop.f32.mrf.mxu0
  %v7175 = vadd.f32 0.0, %v7174
  %7176 = vmatmul.bf16.gmra.mxu0 %v7031
  %v7177 = vpop.f32.mrf.mxu0
  %v7178 = vadd.f32 0.0, %v7177
  %v7179 = vpop.f32.mrf.mxu0
  %v7180 = vadd.f32 0.0, %v7179
  %7181 = vmatmul.bf16.gmra.mxu0 %v7034
  %v7182 = vpop.f32.mrf.mxu0
  %v7183 = vadd.f32 0.0, %v7182
  %v7184 = vpop.f32.mrf.mxu0
  %v7185 = vadd.f32 0.0, %v7184
  %7186 = vmatmul.bf16.gmra.mxu0 %v7037
  %v7187 = vpop.f32.mrf.mxu0
  %v7188 = vadd.f32 0.0, %v7187
  %v7189 = vpop.f32.mrf.mxu0
  %v7190 = vadd.f32 0.0, %v7189
  %7191 = vmatmul.bf16.gmra.mxu0 %v7040
  %v7192 = vpop.f32.mrf.mxu0
  %v7193 = vadd.f32 0.0, %v7192
  %v7194 = vpop.f32.mrf.mxu0
  %v7195 = vadd.f32 0.0, %v7194
  %7196 = vmatmul.bf16.gmra.mxu0 %v7043
  %v7197 = vpop.f32.mrf.mxu0
  %v7198 = vadd.f32 0.0, %v7197
  %v7199 = vpop.f32.mrf.mxu0
  %v7200 = vadd.f32 0.0, %v7199
  %7201 = vmatmul.bf16.gmra.mxu0 %v7046
  %v7202 = vpop.f32.mrf.mxu0
  %v7203 = vadd.f32 0.0, %v7202
  %v7204 = vpop.f32.mrf.mxu0
  %v7205 = vadd.f32 0.0, %v7204
  %7206 = vmatmul.bf16.gmra.mxu0 %v7049
  %v7207 = vpop.f32.mrf.mxu0
  %v7208 = vadd.f32 0.0, %v7207
  %v7209 = vpop.f32.mrf.mxu0
  %v7210 = vadd.f32 0.0, %v7209
  %7211 = vmatmul.bf16.gmra.mxu0 %v7052
  %v7212 = vpop.f32.mrf.mxu0
  %v7213 = vadd.f32 0.0, %v7212
  %v7214 = vpop.f32.mrf.mxu0
  %v7215 = vadd.f32 0.0, %v7214
  %7216 = vmatmul.bf16.gmra.mxu0 %v7055
  %v7217 = vpop.f32.mrf.mxu0
  %v7218 = vadd.f32 0.0, %v7217
  %v7219 = vpop.f32.mrf.mxu0
  %v7220 = vadd.f32 0.0, %v7219
  %7221 = vmatmul.bf16.gmra.mxu0 %v7058
  %v7222 = vpop.f32.mrf.mxu0
  %v7223 = vadd.f32 0.0, %v7222
  %v7224 = vpop.f32.mrf.mxu0
  %v7225 = vadd.f32 0.0, %v7224
  %7226 = vmatmul.bf16.gmra.mxu0 %v7061
  %v7227 = vpop.f32.mrf.mxu0
  %v7228 = vadd.f32 0.0, %v7227
  %v7229 = vpop.f32.mrf.mxu0
  %v7230 = vadd.f32 0.0, %v7229
  %7231 = vmatmul.bf16.gmra.mxu0 %v7064
  %v7232 = vpop.f32.mrf.mxu0
  %v7233 = vadd.f32 0.0, %v7232
  %v7234 = vpop.f32.mrf.mxu0
  %v7235 = vadd.f32 0.0, %v7234
  %7236 = vmatmul.bf16.gmra.mxu0 %v7067
  %v7237 = vpop.f32.mrf.mxu0
  %v7238 = vadd.f32 0.0, %v7237
  %v7239 = vpop.f32.mrf.mxu0
  %v7240 = vadd.f32 0.0, %v7239
  %7241 = vdwg.mxu0
  %v7242 = vld [vmem:[%s5] sm:$0x1]
  %v7243 = vld [vmem:[%s6] sm:$0x1]
  %v7244 = vsel %vm3328, %v7083, 0.0
  %v7245 = vsel %vm3328, %v7085, 0.0
  %v7246 = vadd.f32 %v7244, %v7245
  %v7247 = vsel %vm3328, %v7088, 0.0
  %v7248 = vadd.f32 %v7246, %v7247
  %v7249 = vsel %vm3328, %v7090, 0.0
  %v7250 = vadd.f32 %v7248, %v7249
  %v7251 = vsel %vm3328, %v7093, 0.0
  %v7252 = vadd.f32 %v7250, %v7251
  %v7253 = vsel %vm3328, %v7095, 0.0
  %v7254 = vadd.f32 %v7252, %v7253
  %v7255 = vsel %vm3328, %v7098, 0.0
  %v7256 = vadd.f32 %v7254, %v7255
  %v7257 = vsel %vm3328, %v7100, 0.0
  %v7258 = vadd.f32 %v7256, %v7257
  %v7259 = vsel %vm3328, %v7103, 0.0
  %v7260 = vadd.f32 %v7258, %v7259
  %v7261 = vsel %vm3328, %v7105, 0.0
  %v7262 = vadd.f32 %v7260, %v7261
  %v7263 = vsel %vm3328, %v7108, 0.0
  %v7264 = vadd.f32 %v7262, %v7263
  %v7265 = vsel %vm3328, %v7110, 0.0
  %v7266 = vadd.f32 %v7264, %v7265
  %v7267 = vsel %vm3328, %v7113, 0.0
  %v7268 = vadd.f32 %v7266, %v7267
  %v7269 = vsel %vm3328, %v7115, 0.0
  %v7270 = vadd.f32 %v7268, %v7269
  %v7271 = vsel %vm3328, %v7118, 0.0
  %v7272 = vadd.f32 %v7270, %v7271
  %v7273 = vsel %vm3328, %v7120, 0.0
  %v7274 = vadd.f32 %v7272, %v7273
  %v7275 = vsel %vm3328, %v7123, 0.0
  %v7276 = vadd.f32 %v7274, %v7275
  %v7277 = vsel %vm3328, %v7125, 0.0
  %v7278 = vadd.f32 %v7276, %v7277
  %v7279 = vsel %vm3328, %v7128, 0.0
  %v7280 = vadd.f32 %v7278, %v7279
  %v7281 = vsel %vm3328, %v7130, 0.0
  %v7282 = vadd.f32 %v7280, %v7281
  %v7283 = vsel %vm3328, %v7133, 0.0
  %v7284 = vadd.f32 %v7282, %v7283
  %v7285 = vsel %vm3328, %v7135, 0.0
  %v7286 = vadd.f32 %v7284, %v7285
  %v7287 = vsel %vm3328, %v7138, 0.0
  %v7288 = vadd.f32 %v7286, %v7287
  %v7289 = vsel %vm3328, %v7140, 0.0
  %v7290 = vadd.f32 %v7288, %v7289
  %v7291 = vsel %vm3328, %v7143, 0.0
  %v7292 = vadd.f32 %v7290, %v7291
  %v7293 = vsel %vm3328, %v7145, 0.0
  %v7294 = vadd.f32 %v7292, %v7293
  %v7295 = vsel %vm3328, %v7148, 0.0
  %v7296 = vadd.f32 %v7294, %v7295
  %v7297 = vsel %vm3328, %v7150, 0.0
  %v7298 = vadd.f32 %v7296, %v7297
  %v7299 = vsel %vm3328, %v7153, 0.0
  %v7300 = vadd.f32 %v7298, %v7299
  %v7301 = vsel %vm3328, %v7155, 0.0
  %v7302 = vadd.f32 %v7300, %v7301
  %v7303 = vsel %vm3328, %v7158, 0.0
  %v7304 = vadd.f32 %v7302, %v7303
  %v7305 = vsel %vm3328, %v7160, 0.0
  %v7306 = vadd.f32 %v7304, %v7305
  %v7307 = vsel %vm3328, %v7163, 0.0
  %v7308 = vadd.f32 %v7306, %v7307
  %v7309 = vsel %vm3328, %v7165, 0.0
  %v7310 = vadd.f32 %v7308, %v7309
  %v7311 = vsel %vm3328, %v7168, 0.0
  %v7312 = vadd.f32 %v7310, %v7311
  %v7313 = vsel %vm3328, %v7170, 0.0
  %v7314 = vadd.f32 %v7312, %v7313
  %v7315 = vsel %vm3328, %v7173, 0.0
  %v7316 = vadd.f32 %v7314, %v7315
  %v7317 = vsel %vm3328, %v7175, 0.0
  %v7318 = vadd.f32 %v7316, %v7317
  %v7319 = vsel %vm3328, %v7178, 0.0
  %v7320 = vadd.f32 %v7318, %v7319
  %v7321 = vsel %vm3328, %v7180, 0.0
  %v7322 = vadd.f32 %v7320, %v7321
  %v7323 = vsel %vm3328, %v7183, 0.0
  %v7324 = vadd.f32 %v7322, %v7323
  %v7325 = vsel %vm3328, %v7185, 0.0
  %v7326 = vadd.f32 %v7324, %v7325
  %v7327 = vsel %vm3328, %v7188, 0.0
  %v7328 = vadd.f32 %v7326, %v7327
  %v7329 = vsel %vm3328, %v7190, 0.0
  %v7330 = vadd.f32 %v7328, %v7329
  %v7331 = vsel %vm3328, %v7193, 0.0
  %v7332 = vadd.f32 %v7330, %v7331
  %v7333 = vsel %vm3328, %v7195, 0.0
  %v7334 = vadd.f32 %v7332, %v7333
  %v7335 = vsel %vm3328, %v7198, 0.0
  %v7336 = vadd.f32 %v7334, %v7335
  %v7337 = vsel %vm3328, %v7200, 0.0
  %v7338 = vadd.f32 %v7336, %v7337
  %v7339 = vsel %vm3328, %v7203, 0.0
  %v7340 = vadd.f32 %v7338, %v7339
  %v7341 = vsel %vm3328, %v7205, 0.0
  %v7342 = vadd.f32 %v7340, %v7341
  %v7343 = vsel %vm3328, %v7208, 0.0
  %v7344 = vadd.f32 %v7342, %v7343
  %v7345 = vsel %vm3328, %v7210, 0.0
  %v7346 = vadd.f32 %v7344, %v7345
  %v7347 = vsel %vm3328, %v7213, 0.0
  %v7348 = vadd.f32 %v7346, %v7347
  %v7349 = vsel %vm3328, %v7215, 0.0
  %v7350 = vadd.f32 %v7348, %v7349
  %v7351 = vsel %vm3328, %v7218, 0.0
  %v7352 = vadd.f32 %v7350, %v7351
  %v7353 = vsel %vm3328, %v7220, 0.0
  %v7354 = vadd.f32 %v7352, %v7353
  %v7355 = vsel %vm3328, %v7223, 0.0
  %v7356 = vadd.f32 %v7354, %v7355
  %v7357 = vsel %vm3328, %v7225, 0.0
  %v7358 = vadd.f32 %v7356, %v7357
  %v7359 = vsel %vm3328, %v7228, 0.0
  %v7360 = vadd.f32 %v7358, %v7359
  %v7361 = vsel %vm3328, %v7230, 0.0
  %v7362 = vadd.f32 %v7360, %v7361
  %v7363 = vsel %vm3328, %v7233, 0.0
  %v7364 = vadd.f32 %v7362, %v7363
  %v7365 = vsel %vm3328, %v7235, 0.0
  %v7366 = vadd.f32 %v7364, %v7365
  %v7367 = vsel %vm3328, %v7238, 0.0
  %v7368 = vadd.f32 %v7366, %v7367
  %v7369 = vsel %vm3328, %v7240, 0.0
  %v7370 = vadd.f32 %v7368, %v7369
  %v7371 = vrot.slane %v7370, 4
  %v7372 = vadd.f32 %v7370, %v7371
  %v7373 = vrot.slane %v7372, 2
  %v7374 = vadd.f32 %v7372, %v7373
  %v7375 = vrot.slane %v7374, 1
  %v7376 = vadd.f32 %v7374, %v7375
  %v7377 = vmul.f32 %v7376, 0.001953125
  %v7378 = vmul.f32 %v7083, %v7083
  %v7379 = vmul.f32 %v7085, %v7085
  %v7380 = vmul.f32 %v7088, %v7088
  %v7381 = vmul.f32 %v7090, %v7090
  %v7382 = vmul.f32 %v7093, %v7093
  %v7383 = vmul.f32 %v7095, %v7095
  %v7384 = vmul.f32 %v7098, %v7098
  %v7385 = vmul.f32 %v7100, %v7100
  %v7386 = vmul.f32 %v7103, %v7103
  %v7387 = vmul.f32 %v7105, %v7105
  %v7388 = vmul.f32 %v7108, %v7108
  %v7389 = vmul.f32 %v7110, %v7110
  %v7390 = vmul.f32 %v7113, %v7113
  %v7391 = vmul.f32 %v7115, %v7115
  %v7392 = vmul.f32 %v7118, %v7118
  %v7393 = vmul.f32 %v7120, %v7120
  %v7394 = vmul.f32 %v7123, %v7123
  %v7395 = vmul.f32 %v7125, %v7125
  %v7396 = vmul.f32 %v7128, %v7128
  %v7397 = vmul.f32 %v7130, %v7130
  %v7398 = vmul.f32 %v7133, %v7133
  %v7399 = vmul.f32 %v7135, %v7135
  %v7400 = vmul.f32 %v7138, %v7138
  %v7401 = vmul.f32 %v7140, %v7140
  %v7402 = vmul.f32 %v7143, %v7143
  %v7403 = vmul.f32 %v7145, %v7145
  %v7404 = vmul.f32 %v7148, %v7148
  %v7405 = vmul.f32 %v7150, %v7150
  %v7406 = vmul.f32 %v7153, %v7153
  %v7407 = vmul.f32 %v7155, %v7155
  %v7408 = vmul.f32 %v7158, %v7158
  %v7409 = vmul.f32 %v7160, %v7160
  %v7410 = vmul.f32 %v7163, %v7163
  %v7411 = vmul.f32 %v7165, %v7165
  %v7412 = vmul.f32 %v7168, %v7168
  %v7413 = vmul.f32 %v7170, %v7170
  %v7414 = vmul.f32 %v7173, %v7173
  %v7415 = vmul.f32 %v7175, %v7175
  %v7416 = vmul.f32 %v7178, %v7178
  %v7417 = vmul.f32 %v7180, %v7180
  %v7418 = vmul.f32 %v7183, %v7183
  %v7419 = vmul.f32 %v7185, %v7185
  %v7420 = vmul.f32 %v7188, %v7188
  %v7421 = vmul.f32 %v7190, %v7190
  %v7422 = vmul.f32 %v7193, %v7193
  %v7423 = vmul.f32 %v7195, %v7195
  %v7424 = vmul.f32 %v7198, %v7198
  %v7425 = vmul.f32 %v7200, %v7200
  %v7426 = vmul.f32 %v7203, %v7203
  %v7427 = vmul.f32 %v7205, %v7205
  %v7428 = vmul.f32 %v7208, %v7208
  %v7429 = vmul.f32 %v7210, %v7210
  %v7430 = vmul.f32 %v7213, %v7213
  %v7431 = vmul.f32 %v7215, %v7215
  %v7432 = vmul.f32 %v7218, %v7218
  %v7433 = vmul.f32 %v7220, %v7220
  %v7434 = vmul.f32 %v7223, %v7223
  %v7435 = vmul.f32 %v7225, %v7225
  %v7436 = vmul.f32 %v7228, %v7228
  %v7437 = vmul.f32 %v7230, %v7230
  %v7438 = vmul.f32 %v7233, %v7233
  %v7439 = vmul.f32 %v7235, %v7235
  %v7440 = vmul.f32 %v7238, %v7238
  %v7441 = vmul.f32 %v7240, %v7240
  %v7442 = vsel %vm3328, %v7378, 0.0
  %v7443 = vsel %vm3328, %v7379, 0.0
  %v7444 = vadd.f32 %v7442, %v7443
  %v7445 = vsel %vm3328, %v7380, 0.0
  %v7446 = vadd.f32 %v7444, %v7445
  %v7447 = vsel %vm3328, %v7381, 0.0
  %v7448 = vadd.f32 %v7446, %v7447
  %v7449 = vsel %vm3328, %v7382, 0.0
  %v7450 = vadd.f32 %v7448, %v7449
  %v7451 = vsel %vm3328, %v7383, 0.0
  %v7452 = vadd.f32 %v7450, %v7451
  %v7453 = vsel %vm3328, %v7384, 0.0
  %v7454 = vadd.f32 %v7452, %v7453
  %v7455 = vsel %vm3328, %v7385, 0.0
  %v7456 = vadd.f32 %v7454, %v7455
  %v7457 = vsel %vm3328, %v7386, 0.0
  %v7458 = vadd.f32 %v7456, %v7457
  %v7459 = vsel %vm3328, %v7387, 0.0
  %v7460 = vadd.f32 %v7458, %v7459
  %v7461 = vsel %vm3328, %v7388, 0.0
  %v7462 = vadd.f32 %v7460, %v7461
  %v7463 = vsel %vm3328, %v7389, 0.0
  %v7464 = vadd.f32 %v7462, %v7463
  %v7465 = vsel %vm3328, %v7390, 0.0
  %v7466 = vadd.f32 %v7464, %v7465
  %v7467 = vsel %vm3328, %v7391, 0.0
  %v7468 = vadd.f32 %v7466, %v7467
  %v7469 = vsel %vm3328, %v7392, 0.0
  %v7470 = vadd.f32 %v7468, %v7469
  %v7471 = vsel %vm3328, %v7393, 0.0
  %v7472 = vadd.f32 %v7470, %v7471
  %v7473 = vsel %vm3328, %v7394, 0.0
  %v7474 = vadd.f32 %v7472, %v7473
  %v7475 = vsel %vm3328, %v7395, 0.0
  %v7476 = vadd.f32 %v7474, %v7475
  %v7477 = vsel %vm3328, %v7396, 0.0
  %v7478 = vadd.f32 %v7476, %v7477
  %v7479 = vsel %vm3328, %v7397, 0.0
  %v7480 = vadd.f32 %v7478, %v7479
  %v7481 = vsel %vm3328, %v7398, 0.0
  %v7482 = vadd.f32 %v7480, %v7481
  %v7483 = vsel %vm3328, %v7399, 0.0
  %v7484 = vadd.f32 %v7482, %v7483
  %v7485 = vsel %vm3328, %v7400, 0.0
  %v7486 = vadd.f32 %v7484, %v7485
  %v7487 = vsel %vm3328, %v7401, 0.0
  %v7488 = vadd.f32 %v7486, %v7487
  %v7489 = vsel %vm3328, %v7402, 0.0
  %v7490 = vadd.f32 %v7488, %v7489
  %v7491 = vsel %vm3328, %v7403, 0.0
  %v7492 = vadd.f32 %v7490, %v7491
  %v7493 = vsel %vm3328, %v7404, 0.0
  %v7494 = vadd.f32 %v7492, %v7493
  %v7495 = vsel %vm3328, %v7405, 0.0
  %v7496 = vadd.f32 %v7494, %v7495
  %v7497 = vsel %vm3328, %v7406, 0.0
  %v7498 = vadd.f32 %v7496, %v7497
  %v7499 = vsel %vm3328, %v7407, 0.0
  %v7500 = vadd.f32 %v7498, %v7499
  %v7501 = vsel %vm3328, %v7408, 0.0
  %v7502 = vadd.f32 %v7500, %v7501
  %v7503 = vsel %vm3328, %v7409, 0.0
  %v7504 = vadd.f32 %v7502, %v7503
  %v7505 = vsel %vm3328, %v7410, 0.0
  %v7506 = vadd.f32 %v7504, %v7505
  %v7507 = vsel %vm3328, %v7411, 0.0
  %v7508 = vadd.f32 %v7506, %v7507
  %v7509 = vsel %vm3328, %v7412, 0.0
  %v7510 = vadd.f32 %v7508, %v7509
  %v7511 = vsel %vm3328, %v7413, 0.0
  %v7512 = vadd.f32 %v7510, %v7511
  %v7513 = vsel %vm3328, %v7414, 0.0
  %v7514 = vadd.f32 %v7512, %v7513
  %v7515 = vsel %vm3328, %v7415, 0.0
  %v7516 = vadd.f32 %v7514, %v7515
  %v7517 = vsel %vm3328, %v7416, 0.0
  %v7518 = vadd.f32 %v7516, %v7517
  %v7519 = vsel %vm3328, %v7417, 0.0
  %v7520 = vadd.f32 %v7518, %v7519
  %v7521 = vsel %vm3328, %v7418, 0.0
  %v7522 = vadd.f32 %v7520, %v7521
  %v7523 = vsel %vm3328, %v7419, 0.0
  %v7524 = vadd.f32 %v7522, %v7523
  %v7525 = vsel %vm3328, %v7420, 0.0
  %v7526 = vadd.f32 %v7524, %v7525
  %v7527 = vsel %vm3328, %v7421, 0.0
  %v7528 = vadd.f32 %v7526, %v7527
  %v7529 = vsel %vm3328, %v7422, 0.0
  %v7530 = vadd.f32 %v7528, %v7529
  %v7531 = vsel %vm3328, %v7423, 0.0
  %v7532 = vadd.f32 %v7530, %v7531
  %v7533 = vsel %vm3328, %v7424, 0.0
  %v7534 = vadd.f32 %v7532, %v7533
  %v7535 = vsel %vm3328, %v7425, 0.0
  %v7536 = vadd.f32 %v7534, %v7535
  %v7537 = vsel %vm3328, %v7426, 0.0
  %v7538 = vadd.f32 %v7536, %v7537
  %v7539 = vsel %vm3328, %v7427, 0.0
  %v7540 = vadd.f32 %v7538, %v7539
  %v7541 = vsel %vm3328, %v7428, 0.0
  %v7542 = vadd.f32 %v7540, %v7541
  %v7543 = vsel %vm3328, %v7429, 0.0
  %v7544 = vadd.f32 %v7542, %v7543
  %v7545 = vsel %vm3328, %v7430, 0.0
  %v7546 = vadd.f32 %v7544, %v7545
  %v7547 = vsel %vm3328, %v7431, 0.0
  %v7548 = vadd.f32 %v7546, %v7547
  %v7549 = vsel %vm3328, %v7432, 0.0
  %v7550 = vadd.f32 %v7548, %v7549
  %v7551 = vsel %vm3328, %v7433, 0.0
  %v7552 = vadd.f32 %v7550, %v7551
  %v7553 = vsel %vm3328, %v7434, 0.0
  %v7554 = vadd.f32 %v7552, %v7553
  %v7555 = vsel %vm3328, %v7435, 0.0
  %v7556 = vadd.f32 %v7554, %v7555
  %v7557 = vsel %vm3328, %v7436, 0.0
  %v7558 = vadd.f32 %v7556, %v7557
  %v7559 = vsel %vm3328, %v7437, 0.0
  %v7560 = vadd.f32 %v7558, %v7559
  %v7561 = vsel %vm3328, %v7438, 0.0
  %v7562 = vadd.f32 %v7560, %v7561
  %v7563 = vsel %vm3328, %v7439, 0.0
  %v7564 = vadd.f32 %v7562, %v7563
  %v7565 = vsel %vm3328, %v7440, 0.0
  %v7566 = vadd.f32 %v7564, %v7565
  %v7567 = vsel %vm3328, %v7441, 0.0
  %v7568 = vadd.f32 %v7566, %v7567
  %v7569 = vrot.slane %v7568, 4
  %v7570 = vadd.f32 %v7568, %v7569
  %v7571 = vrot.slane %v7570, 2
  %v7572 = vadd.f32 %v7570, %v7571
  %v7573 = vrot.slane %v7572, 1
  %v7574 = vadd.f32 %v7572, %v7573
  %v7575 = vmul.f32 %v7574, 0.001953125
  %v7576 = vmul.f32 %v7377, %v7377
  %v7577 = vsub.f32 %v7575, %v7576
  %v7578 = vsub.f32 %v7083, %v7377
  %v7579 = vsub.f32 %v7085, %v7377
  %v7580 = vsub.f32 %v7088, %v7377
  %v7581 = vsub.f32 %v7090, %v7377
  %v7582 = vsub.f32 %v7093, %v7377
  %v7583 = vsub.f32 %v7095, %v7377
  %v7584 = vsub.f32 %v7098, %v7377
  %v7585 = vsub.f32 %v7100, %v7377
  %v7586 = vsub.f32 %v7103, %v7377
  %v7587 = vsub.f32 %v7105, %v7377
  %v7588 = vsub.f32 %v7108, %v7377
  %v7589 = vsub.f32 %v7110, %v7377
  %v7590 = vsub.f32 %v7113, %v7377
  %v7591 = vsub.f32 %v7115, %v7377
  %v7592 = vsub.f32 %v7118, %v7377
  %v7593 = vsub.f32 %v7120, %v7377
  %v7594 = vsub.f32 %v7123, %v7377
  %v7595 = vsub.f32 %v7125, %v7377
  %v7596 = vsub.f32 %v7128, %v7377
  %v7597 = vsub.f32 %v7130, %v7377
  %v7598 = vsub.f32 %v7133, %v7377
  %v7599 = vsub.f32 %v7135, %v7377
  %v7600 = vsub.f32 %v7138, %v7377
  %v7601 = vsub.f32 %v7140, %v7377
  %v7602 = vsub.f32 %v7143, %v7377
  %v7603 = vsub.f32 %v7145, %v7377
  %v7604 = vsub.f32 %v7148, %v7377
  %v7605 = vsub.f32 %v7150, %v7377
  %v7606 = vsub.f32 %v7153, %v7377
  %v7607 = vsub.f32 %v7155, %v7377
  %v7608 = vsub.f32 %v7158, %v7377
  %v7609 = vsub.f32 %v7160, %v7377
  %v7610 = vsub.f32 %v7163, %v7377
  %v7611 = vsub.f32 %v7165, %v7377
  %v7612 = vsub.f32 %v7168, %v7377
  %v7613 = vsub.f32 %v7170, %v7377
  %v7614 = vsub.f32 %v7173, %v7377
  %v7615 = vsub.f32 %v7175, %v7377
  %v7616 = vsub.f32 %v7178, %v7377
  %v7617 = vsub.f32 %v7180, %v7377
  %v7618 = vsub.f32 %v7183, %v7377
  %v7619 = vsub.f32 %v7185, %v7377
  %v7620 = vsub.f32 %v7188, %v7377
  %v7621 = vsub.f32 %v7190, %v7377
  %v7622 = vsub.f32 %v7193, %v7377
  %v7623 = vsub.f32 %v7195, %v7377
  %v7624 = vsub.f32 %v7198, %v7377
  %v7625 = vsub.f32 %v7200, %v7377
  %v7626 = vsub.f32 %v7203, %v7377
  %v7627 = vsub.f32 %v7205, %v7377
  %v7628 = vsub.f32 %v7208, %v7377
  %v7629 = vsub.f32 %v7210, %v7377
  %v7630 = vsub.f32 %v7213, %v7377
  %v7631 = vsub.f32 %v7215, %v7377
  %v7632 = vsub.f32 %v7218, %v7377
  %v7633 = vsub.f32 %v7220, %v7377
  %v7634 = vsub.f32 %v7223, %v7377
  %v7635 = vsub.f32 %v7225, %v7377
  %v7636 = vsub.f32 %v7228, %v7377
  %v7637 = vsub.f32 %v7230, %v7377
  %v7638 = vsub.f32 %v7233, %v7377
  %v7639 = vsub.f32 %v7235, %v7377
  %v7640 = vsub.f32 %v7238, %v7377
  %v7641 = vsub.f32 %v7240, %v7377
  %v7642 = vadd.f32 %v7577, 1e-05
  %v7643 = vrsqrt.pop %v7642
  %v7644 = vmul.f32 %v7643, %v7642
  %v7645 = vmul.f32 %v7644, %v7643
  %v7646 = vmul.f32 0.5, %v7645
  %v7647 = vsub.f32 1.5, %v7646
  %v7648 = vmul.f32 %v7643, %v7647
  %vm7649 = vweird.f32 %v7642
  %vm7650 = vweird.f32 %v7643
  %vm7651 = vmor %vm7649, %vm7650
  %v7652 = vsel %vm7651, %v7643, %v7648
  %v7653 = vmul.f32 %v7578, %v7652
  %v7654 = vmul.f32 %v7579, %v7652
  %v7655 = vmul.f32 %v7580, %v7652
  %v7656 = vmul.f32 %v7581, %v7652
  %v7657 = vmul.f32 %v7582, %v7652
  %v7658 = vmul.f32 %v7583, %v7652
  %v7659 = vmul.f32 %v7584, %v7652
  %v7660 = vmul.f32 %v7585, %v7652
  %v7661 = vmul.f32 %v7586, %v7652
  %v7662 = vmul.f32 %v7587, %v7652
  %v7663 = vmul.f32 %v7588, %v7652
  %v7664 = vmul.f32 %v7589, %v7652
  %v7665 = vmul.f32 %v7590, %v7652
  %v7666 = vmul.f32 %v7591, %v7652
  %v7667 = vmul.f32 %v7592, %v7652
  %v7668 = vmul.f32 %v7593, %v7652
  %v7669 = vmul.f32 %v7594, %v7652
  %v7670 = vmul.f32 %v7595, %v7652
  %v7671 = vmul.f32 %v7596, %v7652
  %v7672 = vmul.f32 %v7597, %v7652
  %v7673 = vmul.f32 %v7598, %v7652
  %v7674 = vmul.f32 %v7599, %v7652
  %v7675 = vmul.f32 %v7600, %v7652
  %v7676 = vmul.f32 %v7601, %v7652
  %v7677 = vmul.f32 %v7602, %v7652
  %v7678 = vmul.f32 %v7603, %v7652
  %v7679 = vmul.f32 %v7604, %v7652
  %v7680 = vmul.f32 %v7605, %v7652
  %v7681 = vmul.f32 %v7606, %v7652
  %v7682 = vmul.f32 %v7607, %v7652
  %v7683 = vmul.f32 %v7608, %v7652
  %v7684 = vmul.f32 %v7609, %v7652
  %v7685 = vmul.f32 %v7610, %v7652
  %v7686 = vmul.f32 %v7611, %v7652
  %v7687 = vmul.f32 %v7612, %v7652
  %v7688 = vmul.f32 %v7613, %v7652
  %v7689 = vmul.f32 %v7614, %v7652
  %v7690 = vmul.f32 %v7615, %v7652
  %v7691 = vmul.f32 %v7616, %v7652
  %v7692 = vmul.f32 %v7617, %v7652
  %v7693 = vmul.f32 %v7618, %v7652
  %v7694 = vmul.f32 %v7619, %v7652
  %v7695 = vmul.f32 %v7620, %v7652
  %v7696 = vmul.f32 %v7621, %v7652
  %v7697 = vmul.f32 %v7622, %v7652
  %v7698 = vmul.f32 %v7623, %v7652
  %v7699 = vmul.f32 %v7624, %v7652
  %v7700 = vmul.f32 %v7625, %v7652
  %v7701 = vmul.f32 %v7626, %v7652
  %v7702 = vmul.f32 %v7627, %v7652
  %v7703 = vmul.f32 %v7628, %v7652
  %v7704 = vmul.f32 %v7629, %v7652
  %v7705 = vmul.f32 %v7630, %v7652
  %v7706 = vmul.f32 %v7631, %v7652
  %v7707 = vmul.f32 %v7632, %v7652
  %v7708 = vmul.f32 %v7633, %v7652
  %v7709 = vmul.f32 %v7634, %v7652
  %v7710 = vmul.f32 %v7635, %v7652
  %v7711 = vmul.f32 %v7636, %v7652
  %v7712 = vmul.f32 %v7637, %v7652
  %v7713 = vmul.f32 %v7638, %v7652
  %v7714 = vmul.f32 %v7639, %v7652
  %v7715 = vmul.f32 %v7640, %v7652
  %v7716 = vmul.f32 %v7641, %v7652
  %v7718 = vperm.slane %v7242, 0
  %v7720 = vmul.f32 %v7653, %v7718
  %v7721 = vmul.f32 %v7654, %v7718
  %v7722 = vmul.f32 %v7655, %v7718
  %v7723 = vmul.f32 %v7656, %v7718
  %v7724 = vmul.f32 %v7657, %v7718
  %v7725 = vmul.f32 %v7658, %v7718
  %v7726 = vmul.f32 %v7659, %v7718
  %v7727 = vmul.f32 %v7660, %v7718
  %v7728 = vmul.f32 %v7661, %v7718
  %v7729 = vmul.f32 %v7662, %v7718
  %v7730 = vmul.f32 %v7663, %v7718
  %v7731 = vmul.f32 %v7664, %v7718
  %v7732 = vmul.f32 %v7665, %v7718
  %v7733 = vmul.f32 %v7666, %v7718
  %v7734 = vmul.f32 %v7667, %v7718
  %v7735 = vmul.f32 %v7668, %v7718
  %v7736 = vmul.f32 %v7669, %v7718
  %v7737 = vmul.f32 %v7670, %v7718
  %v7738 = vmul.f32 %v7671, %v7718
  %v7739 = vmul.f32 %v7672, %v7718
  %v7740 = vmul.f32 %v7673, %v7718
  %v7741 = vmul.f32 %v7674, %v7718
  %v7742 = vmul.f32 %v7675, %v7718
  %v7743 = vmul.f32 %v7676, %v7718
  %v7744 = vmul.f32 %v7677, %v7718
  %v7745 = vmul.f32 %v7678, %v7718
  %v7746 = vmul.f32 %v7679, %v7718
  %v7747 = vmul.f32 %v7680, %v7718
  %v7748 = vmul.f32 %v7681, %v7718
  %v7749 = vmul.f32 %v7682, %v7718
  %v7750 = vmul.f32 %v7683, %v7718
  %v7751 = vmul.f32 %v7684, %v7718
  %v7752 = vmul.f32 %v7685, %v7718
  %v7753 = vmul.f32 %v7686, %v7718
  %v7754 = vmul.f32 %v7687, %v7718
  %v7755 = vmul.f32 %v7688, %v7718
  %v7756 = vmul.f32 %v7689, %v7718
  %v7757 = vmul.f32 %v7690, %v7718
  %v7758 = vmul.f32 %v7691, %v7718
  %v7759 = vmul.f32 %v7692, %v7718
  %v7760 = vmul.f32 %v7693, %v7718
  %v7761 = vmul.f32 %v7694, %v7718
  %v7762 = vmul.f32 %v7695, %v7718
  %v7763 = vmul.f32 %v7696, %v7718
  %v7764 = vmul.f32 %v7697, %v7718
  %v7765 = vmul.f32 %v7698, %v7718
  %v7766 = vmul.f32 %v7699, %v7718
  %v7767 = vmul.f32 %v7700, %v7718
  %v7768 = vmul.f32 %v7701, %v7718
  %v7769 = vmul.f32 %v7702, %v7718
  %v7770 = vmul.f32 %v7703, %v7718
  %v7771 = vmul.f32 %v7704, %v7718
  %v7772 = vmul.f32 %v7705, %v7718
  %v7773 = vmul.f32 %v7706, %v7718
  %v7774 = vmul.f32 %v7707, %v7718
  %v7775 = vmul.f32 %v7708, %v7718
  %v7776 = vmul.f32 %v7709, %v7718
  %v7777 = vmul.f32 %v7710, %v7718
  %v7778 = vmul.f32 %v7711, %v7718
  %v7779 = vmul.f32 %v7712, %v7718
  %v7780 = vmul.f32 %v7713, %v7718
  %v7781 = vmul.f32 %v7714, %v7718
  %v7782 = vmul.f32 %v7715, %v7718
  %v7783 = vmul.f32 %v7716, %v7718
  %v7785 = vperm.slane %v7243, 0
  %v7787 = vadd.f32 %v7720, %v7785
  %v7788 = vadd.f32 %v7721, %v7785
  %v7789 = vadd.f32 %v7722, %v7785
  %v7790 = vadd.f32 %v7723, %v7785
  %v7791 = vadd.f32 %v7724, %v7785
  %v7792 = vadd.f32 %v7725, %v7785
  %v7793 = vadd.f32 %v7726, %v7785
  %v7794 = vadd.f32 %v7727, %v7785
  %v7795 = vadd.f32 %v7728, %v7785
  %v7796 = vadd.f32 %v7729, %v7785
  %v7797 = vadd.f32 %v7730, %v7785
  %v7798 = vadd.f32 %v7731, %v7785
  %v7799 = vadd.f32 %v7732, %v7785
  %v7800 = vadd.f32 %v7733, %v7785
  %v7801 = vadd.f32 %v7734, %v7785
  %v7802 = vadd.f32 %v7735, %v7785
  %v7803 = vadd.f32 %v7736, %v7785
  %v7804 = vadd.f32 %v7737, %v7785
  %v7805 = vadd.f32 %v7738, %v7785
  %v7806 = vadd.f32 %v7739, %v7785
  %v7807 = vadd.f32 %v7740, %v7785
  %v7808 = vadd.f32 %v7741, %v7785
  %v7809 = vadd.f32 %v7742, %v7785
  %v7810 = vadd.f32 %v7743, %v7785
  %v7811 = vadd.f32 %v7744, %v7785
  %v7812 = vadd.f32 %v7745, %v7785
  %v7813 = vadd.f32 %v7746, %v7785
  %v7814 = vadd.f32 %v7747, %v7785
  %v7815 = vadd.f32 %v7748, %v7785
  %v7816 = vadd.f32 %v7749, %v7785
  %v7817 = vadd.f32 %v7750, %v7785
  %v7818 = vadd.f32 %v7751, %v7785
  %v7819 = vadd.f32 %v7752, %v7785
  %v7820 = vadd.f32 %v7753, %v7785
  %v7821 = vadd.f32 %v7754, %v7785
  %v7822 = vadd.f32 %v7755, %v7785
  %v7823 = vadd.f32 %v7756, %v7785
  %v7824 = vadd.f32 %v7757, %v7785
  %v7825 = vadd.f32 %v7758, %v7785
  %v7826 = vadd.f32 %v7759, %v7785
  %v7827 = vadd.f32 %v7760, %v7785
  %v7828 = vadd.f32 %v7761, %v7785
  %v7829 = vadd.f32 %v7762, %v7785
  %v7830 = vadd.f32 %v7763, %v7785
  %v7831 = vadd.f32 %v7764, %v7785
  %v7832 = vadd.f32 %v7765, %v7785
  %v7833 = vadd.f32 %v7766, %v7785
  %v7834 = vadd.f32 %v7767, %v7785
  %v7835 = vadd.f32 %v7768, %v7785
  %v7836 = vadd.f32 %v7769, %v7785
  %v7837 = vadd.f32 %v7770, %v7785
  %v7838 = vadd.f32 %v7771, %v7785
  %v7839 = vadd.f32 %v7772, %v7785
  %v7840 = vadd.f32 %v7773, %v7785
  %v7841 = vadd.f32 %v7774, %v7785
  %v7842 = vadd.f32 %v7775, %v7785
  %v7843 = vadd.f32 %v7776, %v7785
  %v7844 = vadd.f32 %v7777, %v7785
  %v7845 = vadd.f32 %v7778, %v7785
  %v7846 = vadd.f32 %v7779, %v7785
  %v7847 = vadd.f32 %v7780, %v7785
  %v7848 = vadd.f32 %v7781, %v7785
  %v7849 = vadd.f32 %v7782, %v7785
  %v7850 = vadd.f32 %v7783, %v7785
  %v7851 = vld [vmem:[%s7] sm:$0x1]
  %v7852 = vld [vmem:[%s8] sm:$0x1]
  %v7853 = vsel %vm4764, %v3167, 0.0
  %v7854 = vsel %vm4764, %v3169, 0.0
  %v7855 = vadd.f32 %v7853, %v7854
  %v7856 = vsel %vm4764, %v3172, 0.0
  %v7857 = vadd.f32 %v7855, %v7856
  %v7858 = vsel %vm4764, %v3174, 0.0
  %v7859 = vadd.f32 %v7857, %v7858
  %v7860 = vsel %vm4764, %v3177, 0.0
  %v7861 = vadd.f32 %v7859, %v7860
  %v7862 = vsel %vm4764, %v3179, 0.0
  %v7863 = vadd.f32 %v7861, %v7862
  %v7864 = vsel %vm4764, %v3182, 0.0
  %v7865 = vadd.f32 %v7863, %v7864
  %v7866 = vsel %vm4764, %v3184, 0.0
  %v7867 = vadd.f32 %v7865, %v7866
  %v7868 = vsel %vm4764, %v3187, 0.0
  %v7869 = vadd.f32 %v7867, %v7868
  %v7870 = vsel %vm4764, %v3189, 0.0
  %v7871 = vadd.f32 %v7869, %v7870
  %v7872 = vsel %vm4764, %v3192, 0.0
  %v7873 = vadd.f32 %v7871, %v7872
  %v7874 = vsel %vm4764, %v3194, 0.0
  %v7875 = vadd.f32 %v7873, %v7874
  %v7876 = vsel %vm4764, %v3197, 0.0
  %v7877 = vadd.f32 %v7875, %v7876
  %v7878 = vsel %vm4764, %v3199, 0.0
  %v7879 = vadd.f32 %v7877, %v7878
  %v7880 = vsel %vm4764, %v3202, 0.0
  %v7881 = vadd.f32 %v7879, %v7880
  %v7882 = vsel %vm4764, %v3204, 0.0
  %v7883 = vadd.f32 %v7881, %v7882
  %v7884 = vsel %vm4764, %v3207, 0.0
  %v7885 = vadd.f32 %v7883, %v7884
  %v7886 = vsel %vm4764, %v3209, 0.0
  %v7887 = vadd.f32 %v7885, %v7886
  %v7888 = vsel %vm4764, %v3212, 0.0
  %v7889 = vadd.f32 %v7887, %v7888
  %v7890 = vsel %vm4764, %v3214, 0.0
  %v7891 = vadd.f32 %v7889, %v7890
  %v7892 = vsel %vm4764, %v3217, 0.0
  %v7893 = vadd.f32 %v7891, %v7892
  %v7894 = vsel %vm4764, %v3219, 0.0
  %v7895 = vadd.f32 %v7893, %v7894
  %v7896 = vsel %vm4764, %v3222, 0.0
  %v7897 = vadd.f32 %v7895, %v7896
  %v7898 = vsel %vm4764, %v3224, 0.0
  %v7899 = vadd.f32 %v7897, %v7898
  %v7900 = vsel %vm4764, %v3227, 0.0
  %v7901 = vadd.f32 %v7899, %v7900
  %v7902 = vsel %vm4764, %v3229, 0.0
  %v7903 = vadd.f32 %v7901, %v7902
  %v7904 = vsel %vm4764, %v3232, 0.0
  %v7905 = vadd.f32 %v7903, %v7904
  %v7906 = vsel %vm4764, %v3234, 0.0
  %v7907 = vadd.f32 %v7905, %v7906
  %v7908 = vsel %vm4764, %v3237, 0.0
  %v7909 = vadd.f32 %v7907, %v7908
  %v7910 = vsel %vm4764, %v3239, 0.0
  %v7911 = vadd.f32 %v7909, %v7910
  %v7912 = vsel %vm4764, %v3242, 0.0
  %v7913 = vadd.f32 %v7911, %v7912
  %v7914 = vsel %vm4764, %v3244, 0.0
  %v7915 = vadd.f32 %v7913, %v7914
  %v7916 = vsel %vm4764, %v3247, 0.0
  %v7917 = vadd.f32 %v7915, %v7916
  %v7918 = vsel %vm4764, %v3249, 0.0
  %v7919 = vadd.f32 %v7917, %v7918
  %v7920 = vsel %vm4764, %v3252, 0.0
  %v7921 = vadd.f32 %v7919, %v7920
  %v7922 = vsel %vm4764, %v3254, 0.0
  %v7923 = vadd.f32 %v7921, %v7922
  %v7924 = vsel %vm4764, %v3257, 0.0
  %v7925 = vadd.f32 %v7923, %v7924
  %v7926 = vsel %vm4764, %v3259, 0.0
  %v7927 = vadd.f32 %v7925, %v7926
  %v7928 = vsel %vm4764, %v3262, 0.0
  %v7929 = vadd.f32 %v7927, %v7928
  %v7930 = vsel %vm4764, %v3264, 0.0
  %v7931 = vadd.f32 %v7929, %v7930
  %v7932 = vsel %vm4764, %v3267, 0.0
  %v7933 = vadd.f32 %v7931, %v7932
  %v7934 = vsel %vm4764, %v3269, 0.0
  %v7935 = vadd.f32 %v7933, %v7934
  %v7936 = vsel %vm4764, %v3272, 0.0
  %v7937 = vadd.f32 %v7935, %v7936
  %v7938 = vsel %vm4764, %v3274, 0.0
  %v7939 = vadd.f32 %v7937, %v7938
  %v7940 = vsel %vm4764, %v3277, 0.0
  %v7941 = vadd.f32 %v7939, %v7940
  %v7942 = vsel %vm4764, %v3279, 0.0
  %v7943 = vadd.f32 %v7941, %v7942
  %v7944 = vsel %vm4764, %v3282, 0.0
  %v7945 = vadd.f32 %v7943, %v7944
  %v7946 = vsel %vm4764, %v3284, 0.0
  %v7947 = vadd.f32 %v7945, %v7946
  %v7948 = vsel %vm4764, %v3287, 0.0
  %v7949 = vadd.f32 %v7947, %v7948
  %v7950 = vsel %vm4764, %v3289, 0.0
  %v7951 = vadd.f32 %v7949, %v7950
  %v7952 = vsel %vm4764, %v3292, 0.0
  %v7953 = vadd.f32 %v7951, %v7952
  %v7954 = vsel %vm4764, %v3294, 0.0
  %v7955 = vadd.f32 %v7953, %v7954
  %v7956 = vsel %vm4764, %v3297, 0.0
  %v7957 = vadd.f32 %v7955, %v7956
  %v7958 = vsel %vm4764, %v3299, 0.0
  %v7959 = vadd.f32 %v7957, %v7958
  %v7960 = vsel %vm4764, %v3302, 0.0
  %v7961 = vadd.f32 %v7959, %v7960
  %v7962 = vsel %vm4764, %v3304, 0.0
  %v7963 = vadd.f32 %v7961, %v7962
  %v7964 = vsel %vm4764, %v3307, 0.0
  %v7965 = vadd.f32 %v7963, %v7964
  %v7966 = vsel %vm4764, %v3309, 0.0
  %v7967 = vadd.f32 %v7965, %v7966
  %v7968 = vsel %vm4764, %v3312, 0.0
  %v7969 = vadd.f32 %v7967, %v7968
  %v7970 = vsel %vm4764, %v3314, 0.0
  %v7971 = vadd.f32 %v7969, %v7970
  %v7972 = vsel %vm4764, %v3317, 0.0
  %v7973 = vadd.f32 %v7971, %v7972
  %v7974 = vsel %vm4764, %v3319, 0.0
  %v7975 = vadd.f32 %v7973, %v7974
  %v7976 = vsel %vm4764, %v3322, 0.0
  %v7977 = vadd.f32 %v7975, %v7976
  %v7978 = vsel %vm4764, %v3324, 0.0
  %v7979 = vadd.f32 %v7977, %v7978
  %v7980 = vrot.slane %v7979, 4
  %v7981 = vadd.f32 %v7979, %v7980
  %v7982 = vrot.slane %v7981, 2
  %v7983 = vadd.f32 %v7981, %v7982
  %v7984 = vrot.slane %v7983, 1
  %v7985 = vadd.f32 %v7983, %v7984
  %v7986 = vmul.f32 %v7985, 0.001953125
  %v7987 = vsel %vm4764, %v3463, 0.0
  %v7988 = vsel %vm4764, %v3464, 0.0
  %v7989 = vadd.f32 %v7987, %v7988
  %v7990 = vsel %vm4764, %v3465, 0.0
  %v7991 = vadd.f32 %v7989, %v7990
  %v7992 = vsel %vm4764, %v3466, 0.0
  %v7993 = vadd.f32 %v7991, %v7992
  %v7994 = vsel %vm4764, %v3467, 0.0
  %v7995 = vadd.f32 %v7993, %v7994
  %v7996 = vsel %vm4764, %v3468, 0.0
  %v7997 = vadd.f32 %v7995, %v7996
  %v7998 = vsel %vm4764, %v3469, 0.0
  %v7999 = vadd.f32 %v7997, %v7998
  %v8000 = vsel %vm4764, %v3470, 0.0
  %v8001 = vadd.f32 %v7999, %v8000
  %v8002 = vsel %vm4764, %v3471, 0.0
  %v8003 = vadd.f32 %v8001, %v8002
  %v8004 = vsel %vm4764, %v3472, 0.0
  %v8005 = vadd.f32 %v8003, %v8004
  %v8006 = vsel %vm4764, %v3473, 0.0
  %v8007 = vadd.f32 %v8005, %v8006
  %v8008 = vsel %vm4764, %v3474, 0.0
  %v8009 = vadd.f32 %v8007, %v8008
  %v8010 = vsel %vm4764, %v3475, 0.0
  %v8011 = vadd.f32 %v8009, %v8010
  %v8012 = vsel %vm4764, %v3476, 0.0
  %v8013 = vadd.f32 %v8011, %v8012
  %v8014 = vsel %vm4764, %v3477, 0.0
  %v8015 = vadd.f32 %v8013, %v8014
  %v8016 = vsel %vm4764, %v3478, 0.0
  %v8017 = vadd.f32 %v8015, %v8016
  %v8018 = vsel %vm4764, %v3479, 0.0
  %v8019 = vadd.f32 %v8017, %v8018
  %v8020 = vsel %vm4764, %v3480, 0.0
  %v8021 = vadd.f32 %v8019, %v8020
  %v8022 = vsel %vm4764, %v3481, 0.0
  %v8023 = vadd.f32 %v8021, %v8022
  %v8024 = vsel %vm4764, %v3482, 0.0
  %v8025 = vadd.f32 %v8023, %v8024
  %v8026 = vsel %vm4764, %v3483, 0.0
  %v8027 = vadd.f32 %v8025, %v8026
  %v8028 = vsel %vm4764, %v3484, 0.0
  %v8029 = vadd.f32 %v8027, %v8028
  %v8030 = vsel %vm4764, %v3485, 0.0
  %v8031 = vadd.f32 %v8029, %v8030
  %v8032 = vsel %vm4764, %v3486, 0.0
  %v8033 = vadd.f32 %v8031, %v8032
  %v8034 = vsel %vm4764, %v3487, 0.0
  %v8035 = vadd.f32 %v8033, %v8034
  %v8036 = vsel %vm4764, %v3488, 0.0
  %v8037 = vadd.f32 %v8035, %v8036
  %v8038 = vsel %vm4764, %v3489, 0.0
  %v8039 = vadd.f32 %v8037, %v8038
  %v8040 = vsel %vm4764, %v3490, 0.0
  %v8041 = vadd.f32 %v8039, %v8040
  %v8042 = vsel %vm4764, %v3491, 0.0
  %v8043 = vadd.f32 %v8041, %v8042
  %v8044 = vsel %vm4764, %v3492, 0.0
  %v8045 = vadd.f32 %v8043, %v8044
  %v8046 = vsel %vm4764, %v3493, 0.0
  %v8047 = vadd.f32 %v8045, %v8046
  %v8048 = vsel %vm4764, %v3494, 0.0
  %v8049 = vadd.f32 %v8047, %v8048
  %v8050 = vsel %vm4764, %v3495, 0.0
  %v8051 = vadd.f32 %v8049, %v8050
  %v8052 = vsel %vm4764, %v3496, 0.0
  %v8053 = vadd.f32 %v8051, %v8052
  %v8054 = vsel %vm4764, %v3497, 0.0
  %v8055 = vadd.f32 %v8053, %v8054
  %v8056 = vsel %vm4764, %v3498, 0.0
  %v8057 = vadd.f32 %v8055, %v8056
  %v8058 = vsel %vm4764, %v3499, 0.0
  %v8059 = vadd.f32 %v8057, %v8058
  %v8060 = vsel %vm4764, %v3500, 0.0
  %v8061 = vadd.f32 %v8059, %v8060
  %v8062 = vsel %vm4764, %v3501, 0.0
  %v8063 = vadd.f32 %v8061, %v8062
  %v8064 = vsel %vm4764, %v3502, 0.0
  %v8065 = vadd.f32 %v8063, %v8064
  %v8066 = vsel %vm4764, %v3503, 0.0
  %v8067 = vadd.f32 %v8065, %v8066
  %v8068 = vsel %vm4764, %v3504, 0.0
  %v8069 = vadd.f32 %v8067, %v8068
  %v8070 = vsel %vm4764, %v3505, 0.0
  %v8071 = vadd.f32 %v8069, %v8070
  %v8072 = vsel %vm4764, %v3506, 0.0
  %v8073 = vadd.f32 %v8071, %v8072
  %v8074 = vsel %vm4764, %v3507, 0.0
  %v8075 = vadd.f32 %v8073, %v8074
  %v8076 = vsel %vm4764, %v3508, 0.0
  %v8077 = vadd.f32 %v8075, %v8076
  %v8078 = vsel %vm4764, %v3509, 0.0
  %v8079 = vadd.f32 %v8077, %v8078
  %v8080 = vsel %vm4764, %v3510, 0.0
  %v8081 = vadd.f32 %v8079, %v8080
  %v8082 = vsel %vm4764, %v3511, 0.0
  %v8083 = vadd.f32 %v8081, %v8082
  %v8084 = vsel %vm4764, %v3512, 0.0
  %v8085 = vadd.f32 %v8083, %v8084
  %v8086 = vsel %vm4764, %v3513, 0.0
  %v8087 = vadd.f32 %v8085, %v8086
  %v8088 = vsel %vm4764, %v3514, 0.0
  %v8089 = vadd.f32 %v8087, %v8088
  %v8090 = vsel %vm4764, %v3515, 0.0
  %v8091 = vadd.f32 %v8089, %v8090
  %v8092 = vsel %vm4764, %v3516, 0.0
  %v8093 = vadd.f32 %v8091, %v8092
  %v8094 = vsel %vm4764, %v3517, 0.0
  %v8095 = vadd.f32 %v8093, %v8094
  %v8096 = vsel %vm4764, %v3518, 0.0
  %v8097 = vadd.f32 %v8095, %v8096
  %v8098 = vsel %vm4764, %v3519, 0.0
  %v8099 = vadd.f32 %v8097, %v8098
  %v8100 = vsel %vm4764, %v3520, 0.0
  %v8101 = vadd.f32 %v8099, %v8100
  %v8102 = vsel %vm4764, %v3521, 0.0
  %v8103 = vadd.f32 %v8101, %v8102
  %v8104 = vsel %vm4764, %v3522, 0.0
  %v8105 = vadd.f32 %v8103, %v8104
  %v8106 = vsel %vm4764, %v3523, 0.0
  %v8107 = vadd.f32 %v8105, %v8106
  %v8108 = vsel %vm4764, %v3524, 0.0
  %v8109 = vadd.f32 %v8107, %v8108
  %v8110 = vsel %vm4764, %v3525, 0.0
  %v8111 = vadd.f32 %v8109, %v8110
  %v8112 = vsel %vm4764, %v3526, 0.0
  %v8113 = vadd.f32 %v8111, %v8112
  %v8114 = vrot.slane %v8113, 4
  %v8115 = vadd.f32 %v8113, %v8114
  %v8116 = vrot.slane %v8115, 2
  %v8117 = vadd.f32 %v8115, %v8116
  %v8118 = vrot.slane %v8117, 1
  %v8119 = vadd.f32 %v8117, %v8118
  %v8120 = vmul.f32 %v8119, 0.001953125
  %v8121 = vmul.f32 %v7986, %v7986
  %v8122 = vsub.f32 %v8120, %v8121
  %v8123 = vsub.f32 %v3167, %v7986
  %v8124 = vsub.f32 %v3169, %v7986
  %v8125 = vsub.f32 %v3172, %v7986
  %v8126 = vsub.f32 %v3174, %v7986
  %v8127 = vsub.f32 %v3177, %v7986
  %v8128 = vsub.f32 %v3179, %v7986
  %v8129 = vsub.f32 %v3182, %v7986
  %v8130 = vsub.f32 %v3184, %v7986
  %v8131 = vsub.f32 %v3187, %v7986
  %v8132 = vsub.f32 %v3189, %v7986
  %v8133 = vsub.f32 %v3192, %v7986
  %v8134 = vsub.f32 %v3194, %v7986
  %v8135 = vsub.f32 %v3197, %v7986
  %v8136 = vsub.f32 %v3199, %v7986
  %v8137 = vsub.f32 %v3202, %v7986
  %v8138 = vsub.f32 %v3204, %v7986
  %v8139 = vsub.f32 %v3207, %v7986
  %v8140 = vsub.f32 %v3209, %v7986
  %v8141 = vsub.f32 %v3212, %v7986
  %v8142 = vsub.f32 %v3214, %v7986
  %v8143 = vsub.f32 %v3217, %v7986
  %v8144 = vsub.f32 %v3219, %v7986
  %v8145 = vsub.f32 %v3222, %v7986
  %v8146 = vsub.f32 %v3224, %v7986
  %v8147 = vsub.f32 %v3227, %v7986
  %v8148 = vsub.f32 %v3229, %v7986
  %v8149 = vsub.f32 %v3232, %v7986
  %v8150 = vsub.f32 %v3234, %v7986
  %v8151 = vsub.f32 %v3237, %v7986
  %v8152 = vsub.f32 %v3239, %v7986
  %v8153 = vsub.f32 %v3242, %v7986
  %v8154 = vsub.f32 %v3244, %v7986
  %v8155 = vsub.f32 %v3247, %v7986
  %v8156 = vsub.f32 %v3249, %v7986
  %v8157 = vsub.f32 %v3252, %v7986
  %v8158 = vsub.f32 %v3254, %v7986
  %v8159 = vsub.f32 %v3257, %v7986
  %v8160 = vsub.f32 %v3259, %v7986
  %v8161 = vsub.f32 %v3262, %v7986
  %v8162 = vsub.f32 %v3264, %v7986
  %v8163 = vsub.f32 %v3267, %v7986
  %v8164 = vsub.f32 %v3269, %v7986
  %v8165 = vsub.f32 %v3272, %v7986
  %v8166 = vsub.f32 %v3274, %v7986
  %v8167 = vsub.f32 %v3277, %v7986
  %v8168 = vsub.f32 %v3279, %v7986
  %v8169 = vsub.f32 %v3282, %v7986
  %v8170 = vsub.f32 %v3284, %v7986
  %v8171 = vsub.f32 %v3287, %v7986
  %v8172 = vsub.f32 %v3289, %v7986
  %v8173 = vsub.f32 %v3292, %v7986
  %v8174 = vsub.f32 %v3294, %v7986
  %v8175 = vsub.f32 %v3297, %v7986
  %v8176 = vsub.f32 %v3299, %v7986
  %v8177 = vsub.f32 %v3302, %v7986
  %v8178 = vsub.f32 %v3304, %v7986
  %v8179 = vsub.f32 %v3307, %v7986
  %v8180 = vsub.f32 %v3309, %v7986
  %v8181 = vsub.f32 %v3312, %v7986
  %v8182 = vsub.f32 %v3314, %v7986
  %v8183 = vsub.f32 %v3317, %v7986
  %v8184 = vsub.f32 %v3319, %v7986
  %v8185 = vsub.f32 %v3322, %v7986
  %v8186 = vsub.f32 %v3324, %v7986
  %v8187 = vadd.f32 %v8122, 1e-05
  %v8188 = vrsqrt.pop %v8187
  %v8189 = vmul.f32 %v8188, %v8187
  %v8190 = vmul.f32 %v8189, %v8188
  %v8191 = vmul.f32 0.5, %v8190
  %v8192 = vsub.f32 1.5, %v8191
  %v8193 = vmul.f32 %v8188, %v8192
  %vm8194 = vweird.f32 %v8187
  %vm8195 = vweird.f32 %v8188
  %vm8196 = vmor %vm8194, %vm8195
  %v8197 = vsel %vm8196, %v8188, %v8193
  %v8198 = vmul.f32 %v8123, %v8197
  %v8199 = vmul.f32 %v8124, %v8197
  %v8200 = vmul.f32 %v8125, %v8197
  %v8201 = vmul.f32 %v8126, %v8197
  %v8202 = vmul.f32 %v8127, %v8197
  %v8203 = vmul.f32 %v8128, %v8197
  %v8204 = vmul.f32 %v8129, %v8197
  %v8205 = vmul.f32 %v8130, %v8197
  %v8206 = vmul.f32 %v8131, %v8197
  %v8207 = vmul.f32 %v8132, %v8197
  %v8208 = vmul.f32 %v8133, %v8197
  %v8209 = vmul.f32 %v8134, %v8197
  %v8210 = vmul.f32 %v8135, %v8197
  %v8211 = vmul.f32 %v8136, %v8197
  %v8212 = vmul.f32 %v8137, %v8197
  %v8213 = vmul.f32 %v8138, %v8197
  %v8214 = vmul.f32 %v8139, %v8197
  %v8215 = vmul.f32 %v8140, %v8197
  %v8216 = vmul.f32 %v8141, %v8197
  %v8217 = vmul.f32 %v8142, %v8197
  %v8218 = vmul.f32 %v8143, %v8197
  %v8219 = vmul.f32 %v8144, %v8197
  %v8220 = vmul.f32 %v8145, %v8197
  %v8221 = vmul.f32 %v8146, %v8197
  %v8222 = vmul.f32 %v8147, %v8197
  %v8223 = vmul.f32 %v8148, %v8197
  %v8224 = vmul.f32 %v8149, %v8197
  %v8225 = vmul.f32 %v8150, %v8197
  %v8226 = vmul.f32 %v8151, %v8197
  %v8227 = vmul.f32 %v8152, %v8197
  %v8228 = vmul.f32 %v8153, %v8197
  %v8229 = vmul.f32 %v8154, %v8197
  %v8230 = vmul.f32 %v8155, %v8197
  %v8231 = vmul.f32 %v8156, %v8197
  %v8232 = vmul.f32 %v8157, %v8197
  %v8233 = vmul.f32 %v8158, %v8197
  %v8234 = vmul.f32 %v8159, %v8197
  %v8235 = vmul.f32 %v8160, %v8197
  %v8236 = vmul.f32 %v8161, %v8197
  %v8237 = vmul.f32 %v8162, %v8197
  %v8238 = vmul.f32 %v8163, %v8197
  %v8239 = vmul.f32 %v8164, %v8197
  %v8240 = vmul.f32 %v8165, %v8197
  %v8241 = vmul.f32 %v8166, %v8197
  %v8242 = vmul.f32 %v8167, %v8197
  %v8243 = vmul.f32 %v8168, %v8197
  %v8244 = vmul.f32 %v8169, %v8197
  %v8245 = vmul.f32 %v8170, %v8197
  %v8246 = vmul.f32 %v8171, %v8197
  %v8247 = vmul.f32 %v8172, %v8197
  %v8248 = vmul.f32 %v8173, %v8197
  %v8249 = vmul.f32 %v8174, %v8197
  %v8250 = vmul.f32 %v8175, %v8197
  %v8251 = vmul.f32 %v8176, %v8197
  %v8252 = vmul.f32 %v8177, %v8197
  %v8253 = vmul.f32 %v8178, %v8197
  %v8254 = vmul.f32 %v8179, %v8197
  %v8255 = vmul.f32 %v8180, %v8197
  %v8256 = vmul.f32 %v8181, %v8197
  %v8257 = vmul.f32 %v8182, %v8197
  %v8258 = vmul.f32 %v8183, %v8197
  %v8259 = vmul.f32 %v8184, %v8197
  %v8260 = vmul.f32 %v8185, %v8197
  %v8261 = vmul.f32 %v8186, %v8197
  %v8263 = vperm.slane %v7851, 0
  %8264 = vrot.lane.b32.xlu0 %v8263, 8
  %v8265 = vpop.permute.xlu0 %8264
  %v8267 = vmul.f32 %v8198, %v8265
  %v8268 = vmul.f32 %v8199, %v8265
  %v8269 = vmul.f32 %v8200, %v8265
  %v8270 = vmul.f32 %v8201, %v8265
  %v8271 = vmul.f32 %v8202, %v8265
  %v8272 = vmul.f32 %v8203, %v8265
  %v8273 = vmul.f32 %v8204, %v8265
  %v8274 = vmul.f32 %v8205, %v8265
  %v8275 = vmul.f32 %v8206, %v8265
  %v8276 = vmul.f32 %v8207, %v8265
  %v8277 = vmul.f32 %v8208, %v8265
  %v8278 = vmul.f32 %v8209, %v8265
  %v8279 = vmul.f32 %v8210, %v8265
  %v8280 = vmul.f32 %v8211, %v8265
  %v8281 = vmul.f32 %v8212, %v8265
  %v8282 = vmul.f32 %v8213, %v8265
  %v8283 = vmul.f32 %v8214, %v8265
  %v8284 = vmul.f32 %v8215, %v8265
  %v8285 = vmul.f32 %v8216, %v8265
  %v8286 = vmul.f32 %v8217, %v8265
  %v8287 = vmul.f32 %v8218, %v8265
  %v8288 = vmul.f32 %v8219, %v8265
  %v8289 = vmul.f32 %v8220, %v8265
  %v8290 = vmul.f32 %v8221, %v8265
  %v8291 = vmul.f32 %v8222, %v8265
  %v8292 = vmul.f32 %v8223, %v8265
  %v8293 = vmul.f32 %v8224, %v8265
  %v8294 = vmul.f32 %v8225, %v8265
  %v8295 = vmul.f32 %v8226, %v8265
  %v8296 = vmul.f32 %v8227, %v8265
  %v8297 = vmul.f32 %v8228, %v8265
  %v8298 = vmul.f32 %v8229, %v8265
  %v8299 = vmul.f32 %v8230, %v8265
  %v8300 = vmul.f32 %v8231, %v8265
  %v8301 = vmul.f32 %v8232, %v8265
  %v8302 = vmul.f32 %v8233, %v8265
  %v8303 = vmul.f32 %v8234, %v8265
  %v8304 = vmul.f32 %v8235, %v8265
  %v8305 = vmul.f32 %v8236, %v8265
  %v8306 = vmul.f32 %v8237, %v8265
  %v8307 = vmul.f32 %v8238, %v8265
  %v8308 = vmul.f32 %v8239, %v8265
  %v8309 = vmul.f32 %v8240, %v8265
  %v8310 = vmul.f32 %v8241, %v8265
  %v8311 = vmul.f32 %v8242, %v8265
  %v8312 = vmul.f32 %v8243, %v8265
  %v8313 = vmul.f32 %v8244, %v8265
  %v8314 = vmul.f32 %v8245, %v8265
  %v8315 = vmul.f32 %v8246, %v8265
  %v8316 = vmul.f32 %v8247, %v8265
  %v8317 = vmul.f32 %v8248, %v8265
  %v8318 = vmul.f32 %v8249, %v8265
  %v8319 = vmul.f32 %v8250, %v8265
  %v8320 = vmul.f32 %v8251, %v8265
  %v8321 = vmul.f32 %v8252, %v8265
  %v8322 = vmul.f32 %v8253, %v8265
  %v8323 = vmul.f32 %v8254, %v8265
  %v8324 = vmul.f32 %v8255, %v8265
  %v8325 = vmul.f32 %v8256, %v8265
  %v8326 = vmul.f32 %v8257, %v8265
  %v8327 = vmul.f32 %v8258, %v8265
  %v8328 = vmul.f32 %v8259, %v8265
  %v8329 = vmul.f32 %v8260, %v8265
  %v8330 = vmul.f32 %v8261, %v8265
  %v8332 = vperm.slane %v7852, 0
  %8333 = vrot.lane.b32.xlu0 %v8332, 8
  %v8334 = vpop.permute.xlu0 %8333
  %v8336 = vadd.f32 %v8267, %v8334
  %v8337 = vadd.f32 %v8268, %v8334
  %v8338 = vadd.f32 %v8269, %v8334
  %v8339 = vadd.f32 %v8270, %v8334
  %v8340 = vadd.f32 %v8271, %v8334
  %v8341 = vadd.f32 %v8272, %v8334
  %v8342 = vadd.f32 %v8273, %v8334
  %v8343 = vadd.f32 %v8274, %v8334
  %v8344 = vadd.f32 %v8275, %v8334
  %v8345 = vadd.f32 %v8276, %v8334
  %v8346 = vadd.f32 %v8277, %v8334
  %v8347 = vadd.f32 %v8278, %v8334
  %v8348 = vadd.f32 %v8279, %v8334
  %v8349 = vadd.f32 %v8280, %v8334
  %v8350 = vadd.f32 %v8281, %v8334
  %v8351 = vadd.f32 %v8282, %v8334
  %v8352 = vadd.f32 %v8283, %v8334
  %v8353 = vadd.f32 %v8284, %v8334
  %v8354 = vadd.f32 %v8285, %v8334
  %v8355 = vadd.f32 %v8286, %v8334
  %v8356 = vadd.f32 %v8287, %v8334
  %v8357 = vadd.f32 %v8288, %v8334
  %v8358 = vadd.f32 %v8289, %v8334
  %v8359 = vadd.f32 %v8290, %v8334
  %v8360 = vadd.f32 %v8291, %v8334
  %v8361 = vadd.f32 %v8292, %v8334
  %v8362 = vadd.f32 %v8293, %v8334
  %v8363 = vadd.f32 %v8294, %v8334
  %v8364 = vadd.f32 %v8295, %v8334
  %v8365 = vadd.f32 %v8296, %v8334
  %v8366 = vadd.f32 %v8297, %v8334
  %v8367 = vadd.f32 %v8298, %v8334
  %v8368 = vadd.f32 %v8299, %v8334
  %v8369 = vadd.f32 %v8300, %v8334
  %v8370 = vadd.f32 %v8301, %v8334
  %v8371 = vadd.f32 %v8302, %v8334
  %v8372 = vadd.f32 %v8303, %v8334
  %v8373 = vadd.f32 %v8304, %v8334
  %v8374 = vadd.f32 %v8305, %v8334
  %v8375 = vadd.f32 %v8306, %v8334
  %v8376 = vadd.f32 %v8307, %v8334
  %v8377 = vadd.f32 %v8308, %v8334
  %v8378 = vadd.f32 %v8309, %v8334
  %v8379 = vadd.f32 %v8310, %v8334
  %v8380 = vadd.f32 %v8311, %v8334
  %v8381 = vadd.f32 %v8312, %v8334
  %v8382 = vadd.f32 %v8313, %v8334
  %v8383 = vadd.f32 %v8314, %v8334
  %v8384 = vadd.f32 %v8315, %v8334
  %v8385 = vadd.f32 %v8316, %v8334
  %v8386 = vadd.f32 %v8317, %v8334
  %v8387 = vadd.f32 %v8318, %v8334
  %v8388 = vadd.f32 %v8319, %v8334
  %v8389 = vadd.f32 %v8320, %v8334
  %v8390 = vadd.f32 %v8321, %v8334
  %v8391 = vadd.f32 %v8322, %v8334
  %v8392 = vadd.f32 %v8323, %v8334
  %v8393 = vadd.f32 %v8324, %v8334
  %v8394 = vadd.f32 %v8325, %v8334
  %v8395 = vadd.f32 %v8326, %v8334
  %v8396 = vadd.f32 %v8327, %v8334
  %v8397 = vadd.f32 %v8328, %v8334
  %v8398 = vadd.f32 %v8329, %v8334
  %v8399 = vadd.f32 %v8330, %v8334
  %8464 = vrot.lane.b32.xlu0 %v8336, 120
  %v8465 = vpop.permute.xlu0 %8464
  %8466 = vrot.lane.b32.xlu0 %v8337, 120
  %v8467 = vpop.permute.xlu0 %8466
  %8468 = vrot.lane.b32.xlu0 %v8338, 120
  %v8469 = vpop.permute.xlu0 %8468
  %8470 = vrot.lane.b32.xlu0 %v8339, 120
  %v8471 = vpop.permute.xlu0 %8470
  %8472 = vrot.lane.b32.xlu0 %v8340, 120
  %v8473 = vpop.permute.xlu0 %8472
  %8474 = vrot.lane.b32.xlu0 %v8341, 120
  %v8475 = vpop.permute.xlu0 %8474
  %8476 = vrot.lane.b32.xlu0 %v8342, 120
  %v8477 = vpop.permute.xlu0 %8476
  %8478 = vrot.lane.b32.xlu0 %v8343, 120
  %v8479 = vpop.permute.xlu0 %8478
  %8480 = vrot.lane.b32.xlu0 %v8344, 120
  %v8481 = vpop.permute.xlu0 %8480
  %8482 = vrot.lane.b32.xlu0 %v8345, 120
  %v8483 = vpop.permute.xlu0 %8482
  %8484 = vrot.lane.b32.xlu0 %v8346, 120
  %v8485 = vpop.permute.xlu0 %8484
  %8486 = vrot.lane.b32.xlu0 %v8347, 120
  %v8487 = vpop.permute.xlu0 %8486
  %8488 = vrot.lane.b32.xlu0 %v8348, 120
  %v8489 = vpop.permute.xlu0 %8488
  %8490 = vrot.lane.b32.xlu0 %v8349, 120
  %v8491 = vpop.permute.xlu0 %8490
  %8492 = vrot.lane.b32.xlu0 %v8350, 120
  %v8493 = vpop.permute.xlu0 %8492
  %8494 = vrot.lane.b32.xlu0 %v8351, 120
  %v8495 = vpop.permute.xlu0 %8494
  %8496 = vrot.lane.b32.xlu0 %v8352, 120
  %v8497 = vpop.permute.xlu0 %8496
  %8498 = vrot.lane.b32.xlu0 %v8353, 120
  %v8499 = vpop.permute.xlu0 %8498
  %8500 = vrot.lane.b32.xlu0 %v8354, 120
  %v8501 = vpop.permute.xlu0 %8500
  %8502 = vrot.lane.b32.xlu0 %v8355, 120
  %v8503 = vpop.permute.xlu0 %8502
  %8504 = vrot.lane.b32.xlu0 %v8356, 120
  %v8505 = vpop.permute.xlu0 %8504
  %8506 = vrot.lane.b32.xlu0 %v8357, 120
  %v8507 = vpop.permute.xlu0 %8506
  %8508 = vrot.lane.b32.xlu0 %v8358, 120
  %v8509 = vpop.permute.xlu0 %8508
  %8510 = vrot.lane.b32.xlu0 %v8359, 120
  %v8511 = vpop.permute.xlu0 %8510
  %8512 = vrot.lane.b32.xlu0 %v8360, 120
  %v8513 = vpop.permute.xlu0 %8512
  %8514 = vrot.lane.b32.xlu0 %v8361, 120
  %v8515 = vpop.permute.xlu0 %8514
  %8516 = vrot.lane.b32.xlu0 %v8362, 120
  %v8517 = vpop.permute.xlu0 %8516
  %8518 = vrot.lane.b32.xlu0 %v8363, 120
  %v8519 = vpop.permute.xlu0 %8518
  %8520 = vrot.lane.b32.xlu0 %v8364, 120
  %v8521 = vpop.permute.xlu0 %8520
  %8522 = vrot.lane.b32.xlu0 %v8365, 120
  %v8523 = vpop.permute.xlu0 %8522
  %8524 = vrot.lane.b32.xlu0 %v8366, 120
  %v8525 = vpop.permute.xlu0 %8524
  %8526 = vrot.lane.b32.xlu0 %v8367, 120
  %v8527 = vpop.permute.xlu0 %8526
  %8528 = vrot.lane.b32.xlu0 %v8368, 120
  %v8529 = vpop.permute.xlu0 %8528
  %8530 = vrot.lane.b32.xlu0 %v8369, 120
  %v8531 = vpop.permute.xlu0 %8530
  %8532 = vrot.lane.b32.xlu0 %v8370, 120
  %v8533 = vpop.permute.xlu0 %8532
  %8534 = vrot.lane.b32.xlu0 %v8371, 120
  %v8535 = vpop.permute.xlu0 %8534
  %8536 = vrot.lane.b32.xlu0 %v8372, 120
  %v8537 = vpop.permute.xlu0 %8536
  %8538 = vrot.lane.b32.xlu0 %v8373, 120
  %v8539 = vpop.permute.xlu0 %8538
  %8540 = vrot.lane.b32.xlu0 %v8374, 120
  %v8541 = vpop.permute.xlu0 %8540
  %8542 = vrot.lane.b32.xlu0 %v8375, 120
  %v8543 = vpop.permute.xlu0 %8542
  %8544 = vrot.lane.b32.xlu0 %v8376, 120
  %v8545 = vpop.permute.xlu0 %8544
  %8546 = vrot.lane.b32.xlu0 %v8377, 120
  %v8547 = vpop.permute.xlu0 %8546
  %8548 = vrot.lane.b32.xlu0 %v8378, 120
  %v8549 = vpop.permute.xlu0 %8548
  %8550 = vrot.lane.b32.xlu0 %v8379, 120
  %v8551 = vpop.permute.xlu0 %8550
  %8552 = vrot.lane.b32.xlu0 %v8380, 120
  %v8553 = vpop.permute.xlu0 %8552
  %8554 = vrot.lane.b32.xlu0 %v8381, 120
  %v8555 = vpop.permute.xlu0 %8554
  %8556 = vrot.lane.b32.xlu0 %v8382, 120
  %v8557 = vpop.permute.xlu0 %8556
  %8558 = vrot.lane.b32.xlu0 %v8383, 120
  %v8559 = vpop.permute.xlu0 %8558
  %8560 = vrot.lane.b32.xlu0 %v8384, 120
  %v8561 = vpop.permute.xlu0 %8560
  %8562 = vrot.lane.b32.xlu0 %v8385, 120
  %v8563 = vpop.permute.xlu0 %8562
  %8564 = vrot.lane.b32.xlu0 %v8386, 120
  %v8565 = vpop.permute.xlu0 %8564
  %8566 = vrot.lane.b32.xlu0 %v8387, 120
  %v8567 = vpop.permute.xlu0 %8566
  %8568 = vrot.lane.b32.xlu0 %v8388, 120
  %v8569 = vpop.permute.xlu0 %8568
  %8570 = vrot.lane.b32.xlu0 %v8389, 120
  %v8571 = vpop.permute.xlu0 %8570
  %8572 = vrot.lane.b32.xlu0 %v8390, 120
  %v8573 = vpop.permute.xlu0 %8572
  %8574 = vrot.lane.b32.xlu0 %v8391, 120
  %v8575 = vpop.permute.xlu0 %8574
  %8576 = vrot.lane.b32.xlu0 %v8392, 120
  %v8577 = vpop.permute.xlu0 %8576
  %8578 = vrot.lane.b32.xlu0 %v8393, 120
  %v8579 = vpop.permute.xlu0 %8578
  %8580 = vrot.lane.b32.xlu0 %v8394, 120
  %v8581 = vpop.permute.xlu0 %8580
  %8582 = vrot.lane.b32.xlu0 %v8395, 120
  %v8583 = vpop.permute.xlu0 %8582
  %8584 = vrot.lane.b32.xlu0 %v8396, 120
  %v8585 = vpop.permute.xlu0 %8584
  %8586 = vrot.lane.b32.xlu0 %v8397, 120
  %v8587 = vpop.permute.xlu0 %8586
  %8588 = vrot.lane.b32.xlu0 %v8398, 120
  %v8589 = vpop.permute.xlu0 %8588
  %8590 = vrot.lane.b32.xlu0 %v8399, 120
  %v8591 = vpop.permute.xlu0 %8590
  %v8656 = vadd.f32 %v7787, %v8465
  %v8657 = vadd.f32 %v7788, %v8467
  %v8658 = vadd.f32 %v7789, %v8469
  %v8659 = vadd.f32 %v7790, %v8471
  %v8660 = vadd.f32 %v7791, %v8473
  %v8661 = vadd.f32 %v7792, %v8475
  %v8662 = vadd.f32 %v7793, %v8477
  %v8663 = vadd.f32 %v7794, %v8479
  %v8664 = vadd.f32 %v7795, %v8481
  %v8665 = vadd.f32 %v7796, %v8483
  %v8666 = vadd.f32 %v7797, %v8485
  %v8667 = vadd.f32 %v7798, %v8487
  %v8668 = vadd.f32 %v7799, %v8489
  %v8669 = vadd.f32 %v7800, %v8491
  %v8670 = vadd.f32 %v7801, %v8493
  %v8671 = vadd.f32 %v7802, %v8495
  %v8672 = vadd.f32 %v7803, %v8497
  %v8673 = vadd.f32 %v7804, %v8499
  %v8674 = vadd.f32 %v7805, %v8501
  %v8675 = vadd.f32 %v7806, %v8503
  %v8676 = vadd.f32 %v7807, %v8505
  %v8677 = vadd.f32 %v7808, %v8507
  %v8678 = vadd.f32 %v7809, %v8509
  %v8679 = vadd.f32 %v7810, %v8511
  %v8680 = vadd.f32 %v7811, %v8513
  %v8681 = vadd.f32 %v7812, %v8515
  %v8682 = vadd.f32 %v7813, %v8517
  %v8683 = vadd.f32 %v7814, %v8519
  %v8684 = vadd.f32 %v7815, %v8521
  %v8685 = vadd.f32 %v7816, %v8523
  %v8686 = vadd.f32 %v7817, %v8525
  %v8687 = vadd.f32 %v7818, %v8527
  %v8688 = vadd.f32 %v7819, %v8529
  %v8689 = vadd.f32 %v7820, %v8531
  %v8690 = vadd.f32 %v7821, %v8533
  %v8691 = vadd.f32 %v7822, %v8535
  %v8692 = vadd.f32 %v7823, %v8537
  %v8693 = vadd.f32 %v7824, %v8539
  %v8694 = vadd.f32 %v7825, %v8541
  %v8695 = vadd.f32 %v7826, %v8543
  %v8696 = vadd.f32 %v7827, %v8545
  %v8697 = vadd.f32 %v7828, %v8547
  %v8698 = vadd.f32 %v7829, %v8549
  %v8699 = vadd.f32 %v7830, %v8551
  %v8700 = vadd.f32 %v7831, %v8553
  %v8701 = vadd.f32 %v7832, %v8555
  %v8702 = vadd.f32 %v7833, %v8557
  %v8703 = vadd.f32 %v7834, %v8559
  %v8704 = vadd.f32 %v7835, %v8561
  %v8705 = vadd.f32 %v7836, %v8563
  %v8706 = vadd.f32 %v7837, %v8565
  %v8707 = vadd.f32 %v7838, %v8567
  %v8708 = vadd.f32 %v7839, %v8569
  %v8709 = vadd.f32 %v7840, %v8571
  %v8710 = vadd.f32 %v7841, %v8573
  %v8711 = vadd.f32 %v7842, %v8575
  %v8712 = vadd.f32 %v7843, %v8577
  %v8713 = vadd.f32 %v7844, %v8579
  %v8714 = vadd.f32 %v7845, %v8581
  %v8715 = vadd.f32 %v7846, %v8583
  %v8716 = vadd.f32 %v7847, %v8585
  %v8717 = vadd.f32 %v7848, %v8587
  %v8718 = vadd.f32 %v7849, %v8589
  %v8719 = vadd.f32 %v7850, %v8591
  %v8720 = vmax.f32 %v8656, 0.0
  %v8721 = vmax.f32 %v8657, 0.0
  %v8722 = vmax.f32 %v8658, 0.0
  %v8723 = vmax.f32 %v8659, 0.0
  %v8724 = vmax.f32 %v8660, 0.0
  %v8725 = vmax.f32 %v8661, 0.0
  %v8726 = vmax.f32 %v8662, 0.0
  %v8727 = vmax.f32 %v8663, 0.0
  %v8728 = vmax.f32 %v8664, 0.0
  %v8729 = vmax.f32 %v8665, 0.0
  %v8730 = vmax.f32 %v8666, 0.0
  %v8731 = vmax.f32 %v8667, 0.0
  %v8732 = vmax.f32 %v8668, 0.0
  %v8733 = vmax.f32 %v8669, 0.0
  %v8734 = vmax.f32 %v8670, 0.0
  %v8735 = vmax.f32 %v8671, 0.0
  %v8736 = vmax.f32 %v8672, 0.0
  %v8737 = vmax.f32 %v8673, 0.0
  %v8738 = vmax.f32 %v8674, 0.0
  %v8739 = vmax.f32 %v8675, 0.0
  %v8740 = vmax.f32 %v8676, 0.0
  %v8741 = vmax.f32 %v8677, 0.0
  %v8742 = vmax.f32 %v8678, 0.0
  %v8743 = vmax.f32 %v8679, 0.0
  %v8744 = vmax.f32 %v8680, 0.0
  %v8745 = vmax.f32 %v8681, 0.0
  %v8746 = vmax.f32 %v8682, 0.0
  %v8747 = vmax.f32 %v8683, 0.0
  %v8748 = vmax.f32 %v8684, 0.0
  %v8749 = vmax.f32 %v8685, 0.0
  %v8750 = vmax.f32 %v8686, 0.0
  %v8751 = vmax.f32 %v8687, 0.0
  %v8752 = vmax.f32 %v8688, 0.0
  %v8753 = vmax.f32 %v8689, 0.0
  %v8754 = vmax.f32 %v8690, 0.0
  %v8755 = vmax.f32 %v8691, 0.0
  %v8756 = vmax.f32 %v8692, 0.0
  %v8757 = vmax.f32 %v8693, 0.0
  %v8758 = vmax.f32 %v8694, 0.0
  %v8759 = vmax.f32 %v8695, 0.0
  %v8760 = vmax.f32 %v8696, 0.0
  %v8761 = vmax.f32 %v8697, 0.0
  %v8762 = vmax.f32 %v8698, 0.0
  %v8763 = vmax.f32 %v8699, 0.0
  %v8764 = vmax.f32 %v8700, 0.0
  %v8765 = vmax.f32 %v8701, 0.0
  %v8766 = vmax.f32 %v8702, 0.0
  %v8767 = vmax.f32 %v8703, 0.0
  %v8768 = vmax.f32 %v8704, 0.0
  %v8769 = vmax.f32 %v8705, 0.0
  %v8770 = vmax.f32 %v8706, 0.0
  %v8771 = vmax.f32 %v8707, 0.0
  %v8772 = vmax.f32 %v8708, 0.0
  %v8773 = vmax.f32 %v8709, 0.0
  %v8774 = vmax.f32 %v8710, 0.0
  %v8775 = vmax.f32 %v8711, 0.0
  %v8776 = vmax.f32 %v8712, 0.0
  %v8777 = vmax.f32 %v8713, 0.0
  %v8778 = vmax.f32 %v8714, 0.0
  %v8779 = vmax.f32 %v8715, 0.0
  %v8780 = vmax.f32 %v8716, 0.0
  %v8781 = vmax.f32 %v8717, 0.0
  %v8782 = vmax.f32 %v8718, 0.0
  %v8783 = vmax.f32 %v8719, 0.0
  %8784 = vst.msk [vmem:[%s9] sm:$0xff] %vm3328, %v8720
  %8785 = vst.msk [vmem:[%s9 + $0x8] sm:$0xff] %vm3328, %v8721
  %8786 = vst.msk [vmem:[%s9 + $0x10] sm:$0xff] %vm3328, %v8722
  %8787 = vst.msk [vmem:[%s9 + $0x18] sm:$0xff] %vm3328, %v8723
  %8788 = vst.msk [vmem:[%s9 + $0x20] sm:$0xff] %vm3328, %v8724
  %8789 = vst.msk [vmem:[%s9 + $0x28] sm:$0xff] %vm3328, %v8725
  %8790 = vst.msk [vmem:[%s9 + $0x30] sm:$0xff] %vm3328, %v8726
  %8791 = vst.msk [vmem:[%s9 + $0x38] sm:$0xff] %vm3328, %v8727
  %8792 = vst.msk [vmem:[%s9 + $0x40] sm:$0xff] %vm3328, %v8728
  %8793 = vst.msk [vmem:[%s9 + $0x48] sm:$0xff] %vm3328, %v8729
  %8794 = vst.msk [vmem:[%s9 + $0x50] sm:$0xff] %vm3328, %v8730
  %8795 = vst.msk [vmem:[%s9 + $0x58] sm:$0xff] %vm3328, %v8731
  %8796 = vst.msk [vmem:[%s9 + $0x60] sm:$0xff] %vm3328, %v8732
  %8797 = vst.msk [vmem:[%s9 + $0x68] sm:$0xff] %vm3328, %v8733
  %8798 = vst.msk [vmem:[%s9 + $0x70] sm:$0xff] %vm3328, %v8734
  %8799 = vst.msk [vmem:[%s9 + $0x78] sm:$0xff] %vm3328, %v8735
  %8800 = vst.msk [vmem:[%s9 + $0x80] sm:$0xff] %vm3328, %v8736
  %8801 = vst.msk [vmem:[%s9 + $0x88] sm:$0xff] %vm3328, %v8737
  %8802 = vst.msk [vmem:[%s9 + $0x90] sm:$0xff] %vm3328, %v8738
  %8803 = vst.msk [vmem:[%s9 + $0x98] sm:$0xff] %vm3328, %v8739
  %8804 = vst.msk [vmem:[%s9 + $0xa0] sm:$0xff] %vm3328, %v8740
  %8805 = vst.msk [vmem:[%s9 + $0xa8] sm:$0xff] %vm3328, %v8741
  %8806 = vst.msk [vmem:[%s9 + $0xb0] sm:$0xff] %vm3328, %v8742
  %8807 = vst.msk [vmem:[%s9 + $0xb8] sm:$0xff] %vm3328, %v8743
  %8808 = vst.msk [vmem:[%s9 + $0xc0] sm:$0xff] %vm3328, %v8744
  %8809 = vst.msk [vmem:[%s9 + $0xc8] sm:$0xff] %vm3328, %v8745
  %8810 = vst.msk [vmem:[%s9 + $0xd0] sm:$0xff] %vm3328, %v8746
  %8811 = vst.msk [vmem:[%s9 + $0xd8] sm:$0xff] %vm3328, %v8747
  %8812 = vst.msk [vmem:[%s9 + $0xe0] sm:$0xff] %vm3328, %v8748
  %8813 = vst.msk [vmem:[%s9 + $0xe8] sm:$0xff] %vm3328, %v8749
  %8814 = vst.msk [vmem:[%s9 + $0xf0] sm:$0xff] %vm3328, %v8750
  %8815 = vst.msk [vmem:[%s9 + $0xf8] sm:$0xff] %vm3328, %v8751
  %8816 = vst.msk [vmem:[%s9 + $0x100] sm:$0xff] %vm3328, %v8752
  %8817 = vst.msk [vmem:[%s9 + $0x108] sm:$0xff] %vm3328, %v8753
  %8818 = vst.msk [vmem:[%s9 + $0x110] sm:$0xff] %vm3328, %v8754
  %8819 = vst.msk [vmem:[%s9 + $0x118] sm:$0xff] %vm3328, %v8755
  %8820 = vst.msk [vmem:[%s9 + $0x120] sm:$0xff] %vm3328, %v8756
  %8821 = vst.msk [vmem:[%s9 + $0x128] sm:$0xff] %vm3328, %v8757
  %8822 = vst.msk [vmem:[%s9 + $0x130] sm:$0xff] %vm3328, %v8758
  %8823 = vst.msk [vmem:[%s9 + $0x138] sm:$0xff] %vm3328, %v8759
  %8824 = vst.msk [vmem:[%s9 + $0x140] sm:$0xff] %vm3328, %v8760
  %8825 = vst.msk [vmem:[%s9 + $0x148] sm:$0xff] %vm3328, %v8761
  %8826 = vst.msk [vmem:[%s9 + $0x150] sm:$0xff] %vm3328, %v8762
  %8827 = vst.msk [vmem:[%s9 + $0x158] sm:$0xff] %vm3328, %v8763
  %8828 = vst.msk [vmem:[%s9 + $0x160] sm:$0xff] %vm3328, %v8764
  %8829 = vst.msk [vmem:[%s9 + $0x168] sm:$0xff] %vm3328, %v8765
  %8830 = vst.msk [vmem:[%s9 + $0x170] sm:$0xff] %vm3328, %v8766
  %8831 = vst.msk [vmem:[%s9 + $0x178] sm:$0xff] %vm3328, %v8767
  %8832 = vst.msk [vmem:[%s9 + $0x180] sm:$0xff] %vm3328, %v8768
  %8833 = vst.msk [vmem:[%s9 + $0x188] sm:$0xff] %vm3328, %v8769
  %8834 = vst.msk [vmem:[%s9 + $0x190] sm:$0xff] %vm3328, %v8770
  %8835 = vst.msk [vmem:[%s9 + $0x198] sm:$0xff] %vm3328, %v8771
  %8836 = vst.msk [vmem:[%s9 + $0x1a0] sm:$0xff] %vm3328, %v8772
  %8837 = vst.msk [vmem:[%s9 + $0x1a8] sm:$0xff] %vm3328, %v8773
  %8838 = vst.msk [vmem:[%s9 + $0x1b0] sm:$0xff] %vm3328, %v8774
  %8839 = vst.msk [vmem:[%s9 + $0x1b8] sm:$0xff] %vm3328, %v8775
  %8840 = vst.msk [vmem:[%s9 + $0x1c0] sm:$0xff] %vm3328, %v8776
  %8841 = vst.msk [vmem:[%s9 + $0x1c8] sm:$0xff] %vm3328, %v8777
  %8842 = vst.msk [vmem:[%s9 + $0x1d0] sm:$0xff] %vm3328, %v8778
  %8843 = vst.msk [vmem:[%s9 + $0x1d8] sm:$0xff] %vm3328, %v8779
  %8844 = vst.msk [vmem:[%s9 + $0x1e0] sm:$0xff] %vm3328, %v8780
  %8845 = vst.msk [vmem:[%s9 + $0x1e8] sm:$0xff] %vm3328, %v8781
  %8846 = vst.msk [vmem:[%s9 + $0x1f0] sm:$0xff] %vm3328, %v8782
  %8847 = vst.msk [vmem:[%s9 + $0x1f8] sm:$0xff] %vm3328, %v8783
  // Predicated region
  $region38: #{tpu_custom_call.1} parent=0 // pred_check
    _
  $region39: #{tpu_custom_call.1} parent=0 // pred_check_branch
    %8849 = sbr.rel (0) target = $region41
  $region40: #{tpu_custom_call.1} parent=0 // pred_region
    _
  $region41: #{tpu_custom_call.1} parent=0 // pred_fallthru
    _
  // Predicated region
  $region42: #{tpu_custom_call.1} parent=0 // pred_check
    _
  $region43: #{tpu_custom_call.1} parent=0 // pred_check_branch
    %8851 = sbr.rel (0) target = $region45
  $region44: #{tpu_custom_call.1} parent=0 // pred_region
    _
  $region45: #{tpu_custom_call.1} parent=0 // pred_fallthru
    _

</llo_original>
